<compile_context>
chip_gen: v7x
topology: tpu7x:2x2x1
jax: 0.10.0
libtpu: 0.0.40
codegen_flags: <defaults>
</compile_context>

<pallas_src>
import math

import jax
import jax.numpy as jnp
from jax.experimental import pallas as pl
from jax.experimental.pallas import tpu as pltpu

EPS = 1e-5  # LayerNorm / GroupNorm eps (PyTorch default)


# ----------------------------------------------------------------------------
# Kernel
# ----------------------------------------------------------------------------
def _make_block_kernel(T, C, H, S, head_size_divisor):
    inv_div = 1.0 / head_size_divisor
    bf16 = jnp.bfloat16

    def layer_norm(v, w, b):
        mu = jnp.mean(v, axis=-1, keepdims=True)
        var = jnp.mean((v - mu) ** 2, axis=-1, keepdims=True)
        return (v - mu) * jax.lax.rsqrt(var + EPS) * w + b

    def kernel(x_ref,
               ln1_w_ref, ln1_b_ref, ln2_w_ref, ln2_b_ref,
               tmk_ref, tmv_ref, tmr_ref,
               wr_ref, wk_ref, wv_ref, wo_ref,
               gn_w_ref, gn_b_ref,
               wmat_ref, wkdec_ref, wbdec_ref, wsdec_ref,
               ftmk_ref, ftmr_ref,
               fwk_ref, fwv_ref, fwr_ref,
               out_ref,
               s_ref, prev1_ref, prev2_ref,
               r_scr, k_scr, v_scr, g_scr):
        ci = pl.program_id(1)

        # Reset recurrence state + shift-boundary rows at the start of each
        # sequence.  NOTE: this relies on the chunk axis being the innermost
        # grid axis (scratch persists across grid steps).
        @pl.when(ci == 0)
        def _():
            s_ref[...] = jnp.zeros_like(s_ref)
            prev1_ref[...] = jnp.zeros_like(prev1_ref)
            prev2_ref[...] = jnp.zeros_like(prev2_ref)

        x = x_ref[0]                                    # (T, C) f32

        row0 = jax.lax.broadcasted_iota(jnp.int32, (T, 1), 0) == 0

        def shift_rows(v, prev_row):
            # causal time shift: row t gets row t-1; row 0 gets the carried
            # last row of the previous chunk.  XLU roll + (T,1)-mask select.
            return jnp.where(row0, prev_row, pltpu.roll(v, shift=1, axis=0))

        # ---------------- RWKV_TimeMix_RWKV5_Preview ----------------
        x1 = layer_norm(x, ln1_w_ref[...], ln1_b_ref[...])
        xx = shift_rows(x1, prev1_ref[...])
        prev1_ref[...] = x1[T - 1:T, :]                 # carry for next chunk
        diff = x1 - xx                                  # xk = xx + tm*(x-xx)
        xk = (xx + tmk_ref[...] * diff).astype(bf16)
        xv = (xx + tmv_ref[...] * diff).astype(bf16)
        xr = (xx + tmr_ref[...] * diff).astype(bf16)

        # full-K projections (best MXU fill), then one static scatter into
        # lane-aligned head-major slabs so the recurrence loop is fori-indexable
        r = jnp.dot(xr, wr_ref[...], preferred_element_type=jnp.float32)
        k = jnp.dot(xk, wk_ref[...], preferred_element_type=jnp.float32)
        v = jnp.dot(xv, wv_ref[...], preferred_element_type=jnp.float32)
        for h in range(H):                              # pure data movement
            sl = slice(h * S, (h + 1) * S)
            r_scr[h] = r[:, sl]
            k_scr[h] = k[:, sl]
            v_scr[h] = v[:, sl]

        def head_body(h, carry):
            rr = r_scr[h]                               # (T, S) f32
            kk = k_scr[h]
            vv = v_scr[h]
            s_h = s_ref[h]                              # (S, S) f32 state
            a = jax.lax.dot_general(rr, kk, (((1,), (1,)), ((), ())),
                                    preferred_element_type=jnp.float32)
            a = a * wmat_ref[h].astype(jnp.float32)     # (T, T)
            # fused:  a@vv + (rr@s)*wb  ==  [a | wb*rr] @ [vv ; s]
            lhs = jnp.concatenate([a, rr * wbdec_ref[h]], axis=1)   # (T, T+S)
            rhs = jnp.concatenate([vv, s_h], axis=0)                # (T+S, S)
            xc = jnp.dot(lhs, rhs, preferred_element_type=jnp.float32)
            # s <- ws*s + (kk*wk)^T @ vv   (kept f32 to limit state drift)
            s_ref[h] = wsdec_ref[h] * s_h + jax.lax.dot_general(
                kk * wkdec_ref[h], vv, (((0,), (0,)), ((), ())),
                preferred_element_type=jnp.float32)
            # fused GroupNorm (per time step over this head's S channels)
            y = xc * inv_div
            mu = jnp.mean(y, axis=-1, keepdims=True)
            var = jnp.mean((y - mu) ** 2, axis=-1, keepdims=True)
            g = (y - mu) * jax.lax.rsqrt(var + EPS) * gn_w_ref[h] + gn_b_ref[h]
            g_scr[h] = g.astype(bf16)
            return carry

        jax.lax.fori_loop(0, H, head_body, 0, unroll=2)

        # lane-dense gather + a single full-K output projection (T,C)@(C,C)
        g_all = jnp.concatenate([g_scr[h] for h in range(H)], axis=-1)
        x = x + jnp.dot(g_all, wo_ref[...], preferred_element_type=jnp.float32)

        # ---------------- RWKV_ChannelMix ----------------
        x2 = layer_norm(x, ln2_w_ref[...], ln2_b_ref[...])
        xx2 = shift_rows(x2, prev2_ref[...])
        prev2_ref[...] = x2[T - 1:T, :]
        diff2 = x2 - xx2
        fxk = (xx2 + ftmk_ref[...] * diff2).astype(bf16)
        fxr = (xx2 + ftmr_ref[...] * diff2).astype(bf16)
        kf = jnp.dot(fxk, fwk_ref[...], preferred_element_type=jnp.float32)
        kf = jnp.maximum(kf, 0.0)
        kf = kf * kf                                    # squared-ReLU in f32
        kv = jnp.dot(kf.astype(bf16), fwv_ref[...],
                     preferred_element_type=jnp.float32)
        gate = jax.nn.sigmoid(jnp.dot(fxr, fwr_ref[...],
                                      preferred_element_type=jnp.float32))
        out_ref[0] = (x + gate * kv).astype(out_ref.dtype)

    return kernel


# ----------------------------------------------------------------------------
# Wrapper (decay tensors, bf16 weight prep, BlockSpecs, pallas_call)
# ----------------------------------------------------------------------------
def rwkv_block_forward(x, p, *, head_size, chunk_len, out_dtype=None):
    B, TT, C = x.shape
    S = head_size
    H = C // S
    T = chunk_len
    assert TT % T == 0, "ctx_len must be a multiple of chunk_len"
    assert C % S == 0, "n_embd must be a multiple of head_size"
    assert T % 8 == 0 or T == TT, "chunk_len should be a multiple of 8"
    # NOTE: pick T=128..256 (v5e/v7x) or 256+ (v6e) for real workloads; T is the
    # M dim of every matmul and the K dim of the intra-chunk attention.
    divisor = math.sqrt(S)
    n_chunks = TT // T
    out_dtype = out_dtype or x.dtype

    # derive w / wk / wb / ws from time_decay & time_faaaa (plain JAX, host side)
    d = jnp.exp(-jnp.exp(p["att_time_decay"].astype(jnp.float32)))  # (H,)
    u = p["att_time_faaaa"].astype(jnp.float32)                     # (H,)
    tt = jnp.arange(T, dtype=jnp.float32)
    ii, jj = tt[:, None], tt[None, :]
    dmat = d[:, None, None]
    expo = jnp.where(jj < ii, ii - jj - 1.0, 0.0)     # mask BEFORE pow (no inf)
    wmat = jnp.where(jj < ii, dmat ** expo,
                     jnp.where(jj == ii, u[:, None, None], 0.0))
    wmat = wmat.astype(jnp.bfloat16)                  # elementwise scale -> bf16 ok
    wk_dec = (d[:, None] ** (float(T) - 1.0 - tt)[None, :])[:, :, None]  # (H,T,1)
    wb_dec = (d[:, None] ** tt[None, :])[:, :, None]                     # (H,T,1)
    ws_dec = (d ** float(T))[:, None, None]                              # (H,1,1)

    bf16 = jnp.bfloat16
    args = (x,
            p["ln1_w"], p["ln1_b"], p["ln2_w"], p["ln2_b"],
            p["att_tmk"], p["att_tmv"], p["att_tmr"],
            p["att_wr"].astype(bf16), p["att_wk"].astype(bf16),
            p["att_wv"].astype(bf16), p["att_wo"].astype(bf16),
            p["gn_w"].reshape(H, 1, S), p["gn_b"].reshape(H, 1, S),
            wmat, wk_dec, wb_dec, ws_dec,
            p["ffn_tmk"], p["ffn_tmr"],
            p["ffn_wk"].astype(bf16), p["ffn_wv"].astype(bf16),
            p["ffn_wr"].astype(bf16))

    kernel = _make_block_kernel(T, C, H, S, divisor)

    const_bytes = sum(int(a.size) * a.dtype.itemsize for a in args[1:])
    block_bytes = T * C * x.dtype.itemsize
    scratch_bytes = (H * S * S * 4 + 2 * C * 4
                     + 3 * H * T * S * 4 + H * T * S * 2)
    try:
        cap = int(getattr(pltpu.get_tpu_info(), "vmem_capacity_bytes", 64 << 20))
    except Exception:  # conservative across generations
        cap = 64 << 20

    buffered_cls = getattr(pl, "Buffered", None)

    def build(single_buffer_consts):
        use_sb = single_buffer_consts and buffered_cls is not None

        def const_spec(a):
            nd = a.ndim
            idx = lambda b, c, _nd=nd: (0,) * _nd
            if use_sb:
                # grid-invariant constants: single buffer (halves resident VMEM)
                return pl.BlockSpec(a.shape, idx, pipeline_mode=buffered_cls(1))
            return pl.BlockSpec(a.shape, idx)

        in_specs = [pl.BlockSpec((1, T, C), lambda b, c: (b, c, 0))]
        in_specs += [const_spec(a) for a in args[1:]]

        # exact VMEM budget, clamped to the chip's physical capacity
        const_mult = 1 if use_sb else 2
        needed = const_mult * const_bytes + 4 * block_bytes + scratch_bytes
        vmem_limit = int(min(max(needed + (8 << 20), 32 << 20), cap))

        return pl.pallas_call(
            kernel,
            out_shape=jax.ShapeDtypeStruct((B, TT, C), out_dtype),
            grid_spec=pltpu.PrefetchScalarGridSpec(
                num_scalar_prefetch=0,
                # chunk axis MUST stay innermost: scratch carries the recurrence
                grid=(B, n_chunks),
                in_specs=in_specs,
                out_specs=pl.BlockSpec((1, T, C), lambda b, c: (b, c, 0)),
                scratch_shapes=[
                    pltpu.VMEM((H, S, S), jnp.float32),   # recurrence state s
                    pltpu.VMEM((1, C), jnp.float32),      # last ln1 row (shift)
                    pltpu.VMEM((1, C), jnp.float32),      # last ln2 row (shift)
                    pltpu.VMEM((H, T, S), jnp.float32),   # r, head-major
                    pltpu.VMEM((H, T, S), jnp.float32),   # k, head-major
                    pltpu.VMEM((H, T, S), jnp.float32),   # v, head-major
                    pltpu.VMEM((H, T, S), jnp.bfloat16),  # GroupNorm result g
                ]),
            compiler_params=pltpu.CompilerParams(
                dimension_semantics=("parallel", "arbitrary"),
                vmem_limit_bytes=vmem_limit),
        )

    try:
        return build(True)(*args)
    except Exception:
        # fallback if single-buffered (Buffered(1)) constants are unsupported
        return build(False)(*args)


# ----------------------------------------------------------------------------
# Deterministic parameter construction (mirrors the module __init__)
# ----------------------------------------------------------------------------
def init_params(key, *, n_embd, dim_ffn, head_size, n_layer, layer_id):
    C = n_embd
    H = C // head_size
    r0 = layer_id / (n_layer - 1)
    r1 = 1.0 - layer_id / n_layer
    ddd = jnp.arange(C, dtype=jnp.float32) / C

    ks = jax.random.split(key, 7)

    def lin(k, fan_in, fan_out):
        # synthetic weights, stored pre-transposed as (in, out)
        return jax.random.normal(k, (fan_in, fan_out), jnp.float32) * 0.02

    hh = jnp.arange(H, dtype=jnp.float32)
    params = {
        "ln1_w": jnp.ones((1, C), jnp.float32), "ln1_b": jnp.zeros((1, C), jnp.float32),
        "ln2_w": jnp.ones((1, C), jnp.float32), "ln2_b": jnp.zeros((1, C), jnp.float32),
        # TimeMix
        "att_tmk": (ddd ** r1)[None, :],
        "att_tmv": (ddd ** r1 + 0.3 * r0)[None, :],
        "att_tmr": (ddd ** (0.5 * r1))[None, :],
        "att_time_decay": -8.0 + 7.0 * (hh / (H - 1)) ** (0.7 + 1.3 * r0),
        "att_time_faaaa": jnp.full((H,), 0.05, jnp.float32),
        "att_wr": lin(ks[0], C, C),
        "att_wk": lin(ks[1], C, C),
        "att_wv": lin(ks[2], C, C),
        "att_wo": lin(ks[3], C, C),
        "gn_w": jnp.ones((1, C), jnp.float32), "gn_b": jnp.zeros((1, C), jnp.float32),
        # ChannelMix
        "ffn_tmk": (ddd ** r1)[None, :],
        "ffn_tmr": (ddd ** r1)[None, :],
        "ffn_wk": lin(ks[4], C, dim_ffn),
        "ffn_wv": lin(ks[5], dim_ffn, C),
        "ffn_wr": lin(ks[6], C, C),
    }
    return params
    # TODO(synk): dropout / layer_id==0 (ln0, pos_emb, pre_ffn) branches of
    # Block.forward are omitted (config.dropout == 0, layer_id > 0).


# ----------------------------------------------------------------------------
# Pure-JAX f32 reference (sanity check against the PyTorch semantics)
# ----------------------------------------------------------------------------
def reference_forward(x, p, *, head_size, chunk_len):
    B, TT, C = x.shape
    S, T = head_size, chunk_len
    H = C // S
    divisor = math.sqrt(S)

    def ln(v, w, b):
        mu = v.mean(-1, keepdims=True)
        var = ((v - mu) ** 2).mean(-1, keepdims=True)
        return (v - mu) / jnp.sqrt(var + EPS) * w + b

    def shift(v):
        return jnp.concatenate([jnp.zeros_like(v[:, :1]), v[:, :-1]], axis=1)

    d = jnp.exp(-jnp.exp(p["att_time_decay"]))
    u = p["att_time_faaaa"]
    tt = jnp.arange(T, dtype=jnp.float32)
    ii, jj = tt[:, None], tt[None, :]
    expo = jnp.where(jj < ii, ii - jj - 1.0, 0.0)
    W = jnp.where(jj < ii, d[:, None, None] ** expo,
                  jnp.where(jj == ii, u[:, None, None], 0.0))[None]        # (1,H,T,T)
    wk = (d[:, None] ** (float(T) - 1.0 - tt)[None, :])[None, :, None, :]  # (1,H,1,T)
    wb = (d[:, None] ** tt[None, :])[None, :, :, None]                     # (1,H,T,1)
    ws = (d ** float(T))[None, :, None, None]                              # (1,H,1,1)

    x1 = ln(x, p["ln1_w"], p["ln1_b"])
    xx = shift(x1)
    xk = x1 * p["att_tmk"] + xx * (1 - p["att_tmk"])
    xv = x1 * p["att_tmv"] + xx * (1 - p["att_tmv"])
    xr = x1 * p["att_tmr"] + xx * (1 - p["att_tmr"])
    r = (xr @ p["att_wr"]).reshape(B, TT, H, S).transpose(0, 2, 1, 3)
    k = (xk @ p["att_wk"]).reshape(B, TT, H, S).transpose(0, 2, 3, 1)
    v = (xv @ p["att_wv"]).reshape(B, TT, H, S).transpose(0, 2, 1, 3)
    s = jnp.zeros((B, H, S, S), jnp.float32)
    outs = []
    for ci in range(TT // T):
        rr = r[:, :, ci * T:(ci + 1) * T]
        kk = k[:, :, :, ci * T:(ci + 1) * T]
        vv = v[:, :, ci * T:(ci + 1) * T]
        outs.append((rr @ kk * W) @ vv + (rr @ s) * wb)
        s = ws * s + (kk * wk) @ vv
    xo = jnp.concatenate(outs, axis=2).transpose(0, 2, 1, 3).reshape(B * TT, C) / divisor
    g = xo.reshape(B * TT, H, S)
    mu = g.mean(-1, keepdims=True)
    var = ((g - mu) ** 2).mean(-1, keepdims=True)
    xo = ((g - mu) / jnp.sqrt(var + EPS)).reshape(B * TT, C) * p["gn_w"] + p["gn_b"]
    x = x + xo.reshape(B, TT, C) @ p["att_wo"]

    x2 = ln(x, p["ln2_w"], p["ln2_b"])
    xx = shift(x2)
    fk = x2 * p["ffn_tmk"] + xx * (1 - p["ffn_tmk"])
    fr = x2 * p["ffn_tmr"] + xx * (1 - p["ffn_tmr"])
    kf = jnp.maximum(fk @ p["ffn_wk"], 0.0) ** 2
    kv = kf @ p["ffn_wv"]
    return x + jax.nn.sigmoid(fr @ p["ffn_wr"]) * kv


# ----------------------------------------------------------------------------
if __name__ == "__main__":
    # config: n_layer=4, layer_id=1 (no ln0 / pos_emb / pre_ffn path), dropout=0
    B, TT, C = 2, 16, 32
    head_size, chunk_len, dim_ffn, n_layer, layer_id = 16, 8, 64, 4, 1

    key = jax.random.PRNGKey(0)
    kx, kp = jax.random.split(key)
    x = jax.random.normal(kx, (B, TT, C), jnp.float32)
    params = init_params(kp, n_embd=C, dim_ffn=dim_ffn, head_size=head_size,
                         n_layer=n_layer, layer_id=layer_id)

    out = rwkv_block_forward(x, params, head_size=head_size, chunk_len=chunk_len)
    out = jax.block_until_ready(out)

    ref = reference_forward(x, params, head_size=head_size, chunk_len=chunk_len)
    ref = jax.block_until_ready(ref)
    assert out.shape == (B, TT, C)
    # bf16 MXU inputs (and bf16 wmat) in the kernel vs. f32 reference
    err = float(jnp.max(jnp.abs(out - ref)))
    assert jnp.allclose(out, ref, rtol=2e-2, atol=2e-2), err

    print("KERNEL_OK")
</pallas_src>

<mosaic_0001>
module attributes {stable_mosaic.version = 11 : i64} {
  func.func @kernel(%arg0: i32, %arg1: i32, %arg2: memref<1x8x32xf32, #tpu.memory_space<vmem>>, %arg3: memref<1x32xf32, #tpu.memory_space<vmem>>, %arg4: memref<1x32xf32, #tpu.memory_space<vmem>>, %arg5: memref<1x32xf32, #tpu.memory_space<vmem>>, %arg6: memref<1x32xf32, #tpu.memory_space<vmem>>, %arg7: memref<1x32xf32, #tpu.memory_space<vmem>>, %arg8: memref<1x32xf32, #tpu.memory_space<vmem>>, %arg9: memref<1x32xf32, #tpu.memory_space<vmem>>, %arg10: memref<32x32xbf16, #tpu.memory_space<vmem>>, %arg11: memref<32x32xbf16, #tpu.memory_space<vmem>>, %arg12: memref<32x32xbf16, #tpu.memory_space<vmem>>, %arg13: memref<32x32xbf16, #tpu.memory_space<vmem>>, %arg14: memref<2x1x16xf32, #tpu.memory_space<vmem>>, %arg15: memref<2x1x16xf32, #tpu.memory_space<vmem>>, %arg16: memref<2x8x8xbf16, #tpu.memory_space<vmem>>, %arg17: memref<2x8x1xf32, #tpu.memory_space<vmem>>, %arg18: memref<2x8x1xf32, #tpu.memory_space<vmem>>, %arg19: memref<2x1x1xf32, #tpu.memory_space<vmem>>, %arg20: memref<1x32xf32, #tpu.memory_space<vmem>>, %arg21: memref<1x32xf32, #tpu.memory_space<vmem>>, %arg22: memref<32x64xbf16, #tpu.memory_space<vmem>>, %arg23: memref<64x32xbf16, #tpu.memory_space<vmem>>, %arg24: memref<32x32xbf16, #tpu.memory_space<vmem>>, %arg25: memref<1x8x32xf32, #tpu.memory_space<vmem>>, %arg26: memref<2x16x16xf32, #tpu.memory_space<vmem>>, %arg27: memref<1x32xf32, #tpu.memory_space<vmem>>, %arg28: memref<1x32xf32, #tpu.memory_space<vmem>>, %arg29: memref<2x8x16xf32, #tpu.memory_space<vmem>>, %arg30: memref<2x8x16xf32, #tpu.memory_space<vmem>>, %arg31: memref<2x8x16xf32, #tpu.memory_space<vmem>>, %arg32: memref<2x8x16xbf16, #tpu.memory_space<vmem>>) attributes {dimension_semantics = [#tpu.dimension_semantics<parallel>, #tpu.dimension_semantics<arbitrary>], iteration_bounds = array<i64: 2, 2>, scalar_prefetch = 0 : i64, scratch_operands = 7 : i64, tpu.core_type = #tpu.core_type<tc>, window_params = [{transform_indices = @transform_0, window_bounds = array<i64: 1, 8, 32>}, {pipeline_mode = #tpu.pipeline_mode<synchronous>, transform_indices = @transform_1, window_bounds = array<i64: 1, 32>}, {pipeline_mode = #tpu.pipeline_mode<synchronous>, transform_indices = @transform_2, window_bounds = array<i64: 1, 32>}, {pipeline_mode = #tpu.pipeline_mode<synchronous>, transform_indices = @transform_3, window_bounds = array<i64: 1, 32>}, {pipeline_mode = #tpu.pipeline_mode<synchronous>, transform_indices = @transform_4, window_bounds = array<i64: 1, 32>}, {pipeline_mode = #tpu.pipeline_mode<synchronous>, transform_indices = @transform_5, window_bounds = array<i64: 1, 32>}, {pipeline_mode = #tpu.pipeline_mode<synchronous>, transform_indices = @transform_6, window_bounds = array<i64: 1, 32>}, {pipeline_mode = #tpu.pipeline_mode<synchronous>, transform_indices = @transform_7, window_bounds = array<i64: 1, 32>}, {pipeline_mode = #tpu.pipeline_mode<synchronous>, transform_indices = @transform_8, window_bounds = array<i64: 32, 32>}, {pipeline_mode = #tpu.pipeline_mode<synchronous>, transform_indices = @transform_9, window_bounds = array<i64: 32, 32>}, {pipeline_mode = #tpu.pipeline_mode<synchronous>, transform_indices = @transform_10, window_bounds = array<i64: 32, 32>}, {pipeline_mode = #tpu.pipeline_mode<synchronous>, transform_indices = @transform_11, window_bounds = array<i64: 32, 32>}, {pipeline_mode = #tpu.pipeline_mode<synchronous>, transform_indices = @transform_12, window_bounds = array<i64: 2, 1, 16>}, {pipeline_mode = #tpu.pipeline_mode<synchronous>, transform_indices = @transform_13, window_bounds = array<i64: 2, 1, 16>}, {pipeline_mode = #tpu.pipeline_mode<synchronous>, transform_indices = @transform_14, window_bounds = array<i64: 2, 8, 8>}, {pipeline_mode = #tpu.pipeline_mode<synchronous>, transform_indices = @transform_15, window_bounds = array<i64: 2, 8, 1>}, {pipeline_mode = #tpu.pipeline_mode<synchronous>, transform_indices = @transform_16, window_bounds = array<i64: 2, 8, 1>}, {pipeline_mode = #tpu.pipeline_mode<synchronous>, transform_indices = @transform_17, window_bounds = array<i64: 2, 1, 1>}, {pipeline_mode = #tpu.pipeline_mode<synchronous>, transform_indices = @transform_18, window_bounds = array<i64: 1, 32>}, {pipeline_mode = #tpu.pipeline_mode<synchronous>, transform_indices = @transform_19, window_bounds = array<i64: 1, 32>}, {pipeline_mode = #tpu.pipeline_mode<synchronous>, transform_indices = @transform_20, window_bounds = array<i64: 32, 64>}, {pipeline_mode = #tpu.pipeline_mode<synchronous>, transform_indices = @transform_21, window_bounds = array<i64: 64, 32>}, {pipeline_mode = #tpu.pipeline_mode<synchronous>, transform_indices = @transform_22, window_bounds = array<i64: 32, 32>}, {transform_indices = @transform_23, window_bounds = array<i64: 1, 8, 32>}]} {
    %c0_i32 = arith.constant 0 : i32
    %0 = arith.cmpi eq, %arg1, %c0_i32 : i32
    %1 = arith.extui %0 : i1 to i32
    %c0_i32_0 = arith.constant 0 : i32
    %2 = arith.cmpi ne, %1, %c0_i32_0 : i32
    scf.if %2 {
      %cst_157 = arith.constant 0.000000e+00 : f32
      %313 = vector.broadcast %cst_157 : f32 to vector<2x16x16xf32>
      %c0_158 = arith.constant 0 : index
      %c0_159 = arith.constant 0 : index
      %c0_160 = arith.constant 0 : index
      %314 = vector.load %arg26[%c0_158, %c0_159, %c0_160] : memref<2x16x16xf32, #tpu.memory_space<vmem>>, vector<2x16x16xf32>
      tpu.vector_store %arg26[%c0_158, %c0_159, %c0_160], %313 {strides = array<i32>} : memref<2x16x16xf32, #tpu.memory_space<vmem>>, vector<2x16x16xf32>,
      %cst_161 = arith.constant 0.000000e+00 : f32
      %315 = vector.broadcast %cst_161 : f32 to vector<1x32xf32>
      %c0_162 = arith.constant 0 : index
      %c0_163 = arith.constant 0 : index
      %316 = vector.load %arg27[%c0_162, %c0_163] : memref<1x32xf32, #tpu.memory_space<vmem>>, vector<1x32xf32>
      tpu.vector_store %arg27[%c0_162, %c0_163], %315 {strides = array<i32>} : memref<1x32xf32, #tpu.memory_space<vmem>>, vector<1x32xf32>,
      %cst_164 = arith.constant 0.000000e+00 : f32
      %317 = vector.broadcast %cst_164 : f32 to vector<1x32xf32>
      %c0_165 = arith.constant 0 : index
      %c0_166 = arith.constant 0 : index
      %318 = vector.load %arg28[%c0_165, %c0_166] : memref<1x32xf32, #tpu.memory_space<vmem>>, vector<1x32xf32>
      tpu.vector_store %arg28[%c0_165, %c0_166], %317 {strides = array<i32>} : memref<1x32xf32, #tpu.memory_space<vmem>>, vector<1x32xf32>,
    } else {
    }
    %c0 = arith.constant 0 : index
    %c0_1 = arith.constant 0 : index
    %c0_2 = arith.constant 0 : index
    %3 = vector.load %arg2[%c0, %c0_1, %c0_2] : memref<1x8x32xf32, #tpu.memory_space<vmem>>, vector<1x8x32xf32>
    %4 = vector.shape_cast %3 : vector<1x8x32xf32> to vector<8x32xf32>
    %5 = tpu.iota {dimensions = array<i32: 0>} : vector<8x1xi32>
    %c0_i32_3 = arith.constant 0 : i32
    %6 = vector.broadcast %c0_i32_3 : i32 to vector<8x1xi32>
    %7 = arith.cmpi eq, %5, %6 : vector<8x1xi32>
    %c0_4 = arith.constant 0 : index
    %c0_5 = arith.constant 0 : index
    %8 = vector.load %arg3[%c0_4, %c0_5] : memref<1x32xf32, #tpu.memory_space<vmem>>, vector<1x32xf32>
    %c0_6 = arith.constant 0 : index
    %c0_7 = arith.constant 0 : index
    %9 = vector.load %arg4[%c0_6, %c0_7] : memref<1x32xf32, #tpu.memory_space<vmem>>, vector<1x32xf32>
    %cst = arith.constant dense<0.000000e+00> : vector<8xf32>
    %10 = vector.multi_reduction <add>, %4, %cst [1] : vector<8x32xf32> to vector<8xf32>
    %11 = vector.shape_cast %10 : vector<8xf32> to vector<8x1xf32>
    %cst_8 = arith.constant 3.200000e+01 : f32
    %12 = vector.broadcast %cst_8 : f32 to vector<8x1xf32>
    %13 = arith.divf %11, %12 : vector<8x1xf32>
    %14 = vector.broadcast %13 : vector<8x1xf32> to vector<8x32xf32>
    %15 = arith.subf %4, %14 : vector<8x32xf32>
    %16 = arith.mulf %15, %15 : vector<8x32xf32>
    %cst_9 = arith.constant dense<0.000000e+00> : vector<8xf32>
    %17 = vector.multi_reduction <add>, %16, %cst_9 [1] : vector<8x32xf32> to vector<8xf32>
    %18 = vector.shape_cast %17 : vector<8xf32> to vector<8x1xf32>
    %cst_10 = arith.constant 3.200000e+01 : f32
    %19 = vector.broadcast %cst_10 : f32 to vector<8x1xf32>
    %20 = arith.divf %18, %19 : vector<8x1xf32>
    %21 = vector.broadcast %13 : vector<8x1xf32> to vector<8x32xf32>
    %22 = arith.subf %4, %21 : vector<8x32xf32>
    %cst_11 = arith.constant 9.99999974E-6 : f32
    %23 = vector.broadcast %cst_11 : f32 to vector<8x1xf32>
    %24 = arith.addf %20, %23 : vector<8x1xf32>
    %25 = math.rsqrt %24 : vector<8x1xf32>
    %26 = vector.broadcast %25 : vector<8x1xf32> to vector<8x32xf32>
    %27 = arith.mulf %22, %26 : vector<8x32xf32>
    %28 = vector.broadcast %8 : vector<1x32xf32> to vector<8x32xf32>
    %29 = arith.mulf %27, %28 : vector<8x32xf32>
    %30 = vector.broadcast %9 : vector<1x32xf32> to vector<8x32xf32>
    %31 = arith.addf %29, %30 : vector<8x32xf32>
    %c0_12 = arith.constant 0 : index
    %c0_13 = arith.constant 0 : index
    %32 = vector.load %arg27[%c0_12, %c0_13] : memref<1x32xf32, #tpu.memory_space<vmem>>, vector<1x32xf32>
    %c1_i32 = arith.constant 1 : i32
    %33 = tpu.dynamic_rotate %31 by %c1_i32 dim 0 : vector<8x32xf32>, i32 -> vector<8x32xf32>
    %34 = vector.shape_cast %7 : vector<8x1xi1> to vector<8x1xi1>
    %35 = vector.broadcast %34 : vector<8x1xi1> to vector<8x32xi1>
    %36 = vector.shape_cast %32 : vector<1x32xf32> to vector<1x32xf32>
    %37 = vector.broadcast %36 : vector<1x32xf32> to vector<8x32xf32>
    %38 = arith.select %35, %37, %33 : vector<8x32xi1>, vector<8x32xf32>
    %39 = vector.extract_strided_slice %31 {offsets = [7, 0], sizes = [1, 32], strides = [1, 1]} : vector<8x32xf32> to vector<1x32xf32>
    %c0_14 = arith.constant 0 : index
    %c0_15 = arith.constant 0 : index
    %40 = vector.load %arg27[%c0_14, %c0_15] : memref<1x32xf32, #tpu.memory_space<vmem>>, vector<1x32xf32>
    tpu.vector_store %arg27[%c0_14, %c0_15], %39 {strides = array<i32>} : memref<1x32xf32, #tpu.memory_space<vmem>>, vector<1x32xf32>,
    %41 = arith.subf %31, %38 : vector<8x32xf32>
    %c0_16 = arith.constant 0 : index
    %c0_17 = arith.constant 0 : index
    %42 = vector.load %arg7[%c0_16, %c0_17] : memref<1x32xf32, #tpu.memory_space<vmem>>, vector<1x32xf32>
    %43 = vector.broadcast %42 : vector<1x32xf32> to vector<8x32xf32>
    %44 = arith.mulf %43, %41 : vector<8x32xf32>
    %45 = arith.addf %38, %44 : vector<8x32xf32>
    %46 = arith.truncf %45 : vector<8x32xf32> to vector<8x32xbf16>
    %c0_18 = arith.constant 0 : index
    %c0_19 = arith.constant 0 : index
    %47 = vector.load %arg8[%c0_18, %c0_19] : memref<1x32xf32, #tpu.memory_space<vmem>>, vector<1x32xf32>
    %48 = vector.broadcast %47 : vector<1x32xf32> to vector<8x32xf32>
    %49 = arith.mulf %48, %41 : vector<8x32xf32>
    %50 = arith.addf %38, %49 : vector<8x32xf32>
    %51 = arith.truncf %50 : vector<8x32xf32> to vector<8x32xbf16>
    %c0_20 = arith.constant 0 : index
    %c0_21 = arith.constant 0 : index
    %52 = vector.load %arg9[%c0_20, %c0_21] : memref<1x32xf32, #tpu.memory_space<vmem>>, vector<1x32xf32>
    %53 = vector.broadcast %52 : vector<1x32xf32> to vector<8x32xf32>
    %54 = arith.mulf %53, %41 : vector<8x32xf32>
    %55 = arith.addf %38, %54 : vector<8x32xf32>
    %56 = arith.truncf %55 : vector<8x32xf32> to vector<8x32xbf16>
    %c0_22 = arith.constant 0 : index
    %c0_23 = arith.constant 0 : index
    %57 = vector.load %arg10[%c0_22, %c0_23] : memref<32x32xbf16, #tpu.memory_space<vmem>>, vector<32x32xbf16>
    %cst_24 = arith.constant dense<0.000000e+00> : vector<8x32xf32>
    %58 = tpu.matmul %56, %57, %cst_24 {dimension_numbers = #tpu.dot_dimension_numbers<[1], [0], [0], [1], [0, 0, 1, 1], [], []>} : vector<8x32xbf16>, vector<32x32xbf16>, vector<8x32xf32> -> vector<8x32xf32>
    %c0_25 = arith.constant 0 : index
    %c0_26 = arith.constant 0 : index
    %59 = vector.load %arg11[%c0_25, %c0_26] : memref<32x32xbf16, #tpu.memory_space<vmem>>, vector<32x32xbf16>
    %cst_27 = arith.constant dense<0.000000e+00> : vector<8x32xf32>
    %60 = tpu.matmul %46, %59, %cst_27 {dimension_numbers = #tpu.dot_dimension_numbers<[1], [0], [0], [1], [0, 0, 1, 1], [], []>} : vector<8x32xbf16>, vector<32x32xbf16>, vector<8x32xf32> -> vector<8x32xf32>
    %c0_28 = arith.constant 0 : index
    %c0_29 = arith.constant 0 : index
    %61 = vector.load %arg12[%c0_28, %c0_29] : memref<32x32xbf16, #tpu.memory_space<vmem>>, vector<32x32xbf16>
    %cst_30 = arith.constant dense<0.000000e+00> : vector<8x32xf32>
    %62 = tpu.matmul %51, %61, %cst_30 {dimension_numbers = #tpu.dot_dimension_numbers<[1], [0], [0], [1], [0, 0, 1, 1], [], []>} : vector<8x32xbf16>, vector<32x32xbf16>, vector<8x32xf32> -> vector<8x32xf32>
    %63 = vector.extract_strided_slice %58 {offsets = [0, 0], sizes = [8, 16], strides = [1, 1]} : vector<8x32xf32> to vector<8x16xf32>
    %c0_31 = arith.constant 0 : index
    %c0_32 = arith.constant 0 : index
    %c0_33 = arith.constant 0 : index
    %64 = vector.load %arg29[%c0_31, %c0_32, %c0_33] : memref<2x8x16xf32, #tpu.memory_space<vmem>>, vector<1x8x16xf32>
    %65 = vector.shape_cast %64 : vector<1x8x16xf32> to vector<8x16xf32>
    %66 = vector.shape_cast %63 : vector<8x16xf32> to vector<1x8x16xf32>
    tpu.vector_store %arg29[%c0_31, %c0_32, %c0_33], %66 {strides = array<i32>} : memref<2x8x16xf32, #tpu.memory_space<vmem>>, vector<1x8x16xf32>,
    %67 = vector.extract_strided_slice %60 {offsets = [0, 0], sizes = [8, 16], strides = [1, 1]} : vector<8x32xf32> to vector<8x16xf32>
    %c0_34 = arith.constant 0 : index
    %c0_35 = arith.constant 0 : index
    %c0_36 = arith.constant 0 : index
    %68 = vector.load %arg30[%c0_34, %c0_35, %c0_36] : memref<2x8x16xf32, #tpu.memory_space<vmem>>, vector<1x8x16xf32>
    %69 = vector.shape_cast %68 : vector<1x8x16xf32> to vector<8x16xf32>
    %70 = vector.shape_cast %67 : vector<8x16xf32> to vector<1x8x16xf32>
    tpu.vector_store %arg30[%c0_34, %c0_35, %c0_36], %70 {strides = array<i32>} : memref<2x8x16xf32, #tpu.memory_space<vmem>>, vector<1x8x16xf32>,
    %71 = vector.extract_strided_slice %62 {offsets = [0, 0], sizes = [8, 16], strides = [1, 1]} : vector<8x32xf32> to vector<8x16xf32>
    %c0_37 = arith.constant 0 : index
    %c0_38 = arith.constant 0 : index
    %c0_39 = arith.constant 0 : index
    %72 = vector.load %arg31[%c0_37, %c0_38, %c0_39] : memref<2x8x16xf32, #tpu.memory_space<vmem>>, vector<1x8x16xf32>
    %73 = vector.shape_cast %72 : vector<1x8x16xf32> to vector<8x16xf32>
    %74 = vector.shape_cast %71 : vector<8x16xf32> to vector<1x8x16xf32>
    tpu.vector_store %arg31[%c0_37, %c0_38, %c0_39], %74 {strides = array<i32>} : memref<2x8x16xf32, #tpu.memory_space<vmem>>, vector<1x8x16xf32>,
    %75 = vector.extract_strided_slice %58 {offsets = [0, 16], sizes = [8, 16], strides = [1, 1]} : vector<8x32xf32> to vector<8x16xf32>
    %c1 = arith.constant 1 : index
    %c0_40 = arith.constant 0 : index
    %c0_41 = arith.constant 0 : index
    %76 = vector.load %arg29[%c1, %c0_40, %c0_41] : memref<2x8x16xf32, #tpu.memory_space<vmem>>, vector<1x8x16xf32>
    %77 = vector.shape_cast %76 : vector<1x8x16xf32> to vector<8x16xf32>
    %78 = vector.shape_cast %75 : vector<8x16xf32> to vector<1x8x16xf32>
    tpu.vector_store %arg29[%c1, %c0_40, %c0_41], %78 {strides = array<i32>} : memref<2x8x16xf32, #tpu.memory_space<vmem>>, vector<1x8x16xf32>,
    %79 = vector.extract_strided_slice %60 {offsets = [0, 16], sizes = [8, 16], strides = [1, 1]} : vector<8x32xf32> to vector<8x16xf32>
    %c1_42 = arith.constant 1 : index
    %c0_43 = arith.constant 0 : index
    %c0_44 = arith.constant 0 : index
    %80 = vector.load %arg30[%c1_42, %c0_43, %c0_44] : memref<2x8x16xf32, #tpu.memory_space<vmem>>, vector<1x8x16xf32>
    %81 = vector.shape_cast %80 : vector<1x8x16xf32> to vector<8x16xf32>
    %82 = vector.shape_cast %79 : vector<8x16xf32> to vector<1x8x16xf32>
    tpu.vector_store %arg30[%c1_42, %c0_43, %c0_44], %82 {strides = array<i32>} : memref<2x8x16xf32, #tpu.memory_space<vmem>>, vector<1x8x16xf32>,
    %83 = vector.extract_strided_slice %62 {offsets = [0, 16], sizes = [8, 16], strides = [1, 1]} : vector<8x32xf32> to vector<8x16xf32>
    %c1_45 = arith.constant 1 : index
    %c0_46 = arith.constant 0 : index
    %c0_47 = arith.constant 0 : index
    %84 = vector.load %arg31[%c1_45, %c0_46, %c0_47] : memref<2x8x16xf32, #tpu.memory_space<vmem>>, vector<1x8x16xf32>
    %85 = vector.shape_cast %84 : vector<1x8x16xf32> to vector<8x16xf32>
    %86 = vector.shape_cast %83 : vector<8x16xf32> to vector<1x8x16xf32>
    tpu.vector_store %arg31[%c1_45, %c0_46, %c0_47], %86 {strides = array<i32>} : memref<2x8x16xf32, #tpu.memory_space<vmem>>, vector<1x8x16xf32>,
    %c0_i32_48 = arith.constant 0 : i32
    %87 = arith.index_cast %c0_i32_48 : i32 to index
    %c0_49 = arith.constant 0 : index
    %c0_50 = arith.constant 0 : index
    %88 = vector.load %arg29[%87, %c0_49, %c0_50] : memref<2x8x16xf32, #tpu.memory_space<vmem>>, vector<1x8x16xf32>
    %89 = vector.shape_cast %88 : vector<1x8x16xf32> to vector<8x16xf32>
    %90 = arith.index_cast %c0_i32_48 : i32 to index
    %c0_51 = arith.constant 0 : index
    %c0_52 = arith.constant 0 : index
    %91 = vector.load %arg30[%90, %c0_51, %c0_52] : memref<2x8x16xf32, #tpu.memory_space<vmem>>, vector<1x8x16xf32>
    %92 = vector.shape_cast %91 : vector<1x8x16xf32> to vector<8x16xf32>
    %93 = arith.index_cast %c0_i32_48 : i32 to index
    %c0_53 = arith.constant 0 : index
    %c0_54 = arith.constant 0 : index
    %94 = vector.load %arg31[%93, %c0_53, %c0_54] : memref<2x8x16xf32, #tpu.memory_space<vmem>>, vector<1x8x16xf32>
    %95 = vector.shape_cast %94 : vector<1x8x16xf32> to vector<8x16xf32>
    %96 = arith.index_cast %c0_i32_48 : i32 to index
    %c0_55 = arith.constant 0 : index
    %c0_56 = arith.constant 0 : index
    %97 = vector.load %arg26[%96, %c0_55, %c0_56] : memref<2x16x16xf32, #tpu.memory_space<vmem>>, vector<1x16x16xf32>
    %98 = vector.shape_cast %97 : vector<1x16x16xf32> to vector<16x16xf32>
    %cst_57 = arith.constant dense<0.000000e+00> : vector<8x8xf32>
    %99 = tpu.matmul %89, %92, %cst_57 {dimension_numbers = #tpu.dot_dimension_numbers<[1], [1], [0], [0], [0, 0, 1, 0], [], []>} : vector<8x16xf32>, vector<8x16xf32>, vector<8x8xf32> -> vector<8x8xf32>
    %100 = arith.index_cast %c0_i32_48 : i32 to index
    %c0_58 = arith.constant 0 : index
    %c0_59 = arith.constant 0 : index
    %101 = vector.load %arg16[%100, %c0_58, %c0_59] : memref<2x8x8xbf16, #tpu.memory_space<vmem>>, vector<1x8x8xbf16>
    %102 = vector.shape_cast %101 : vector<1x8x8xbf16> to vector<8x8xbf16>
    %103 = arith.extf %102 : vector<8x8xbf16> to vector<8x8xf32>
    %104 = arith.mulf %99, %103 : vector<8x8xf32>
    %105 = arith.index_cast %c0_i32_48 : i32 to index
    %c0_60 = arith.constant 0 : index
    %c0_61 = arith.constant 0 : index
    %106 = vector.load %arg18[%105, %c0_60, %c0_61] : memref<2x8x1xf32, #tpu.memory_space<vmem>>, vector<1x8x1xf32>
    %107 = vector.shape_cast %106 : vector<1x8x1xf32> to vector<8x1xf32>
    %108 = vector.broadcast %107 : vector<8x1xf32> to vector<8x16xf32>
    %109 = arith.mulf %89, %108 : vector<8x16xf32>
    %110 = tpu.concatenate %104, %109 in 1 : vector<8x8xf32>, vector<8x16xf32> -> vector<8x24xf32>
    %111 = tpu.concatenate %95, %98 in 0 : vector<8x16xf32>, vector<16x16xf32> -> vector<24x16xf32>
    %cst_62 = arith.constant dense<0.000000e+00> : vector<8x16xf32>
    %112 = tpu.matmul %110, %111, %cst_62 {dimension_numbers = #tpu.dot_dimension_numbers<[1], [0], [0], [1], [0, 0, 1, 1], [], []>} : vector<8x24xf32>, vector<24x16xf32>, vector<8x16xf32> -> vector<8x16xf32>
    %113 = arith.index_cast %c0_i32_48 : i32 to index
    %c0_63 = arith.constant 0 : index
    %c0_64 = arith.constant 0 : index
    %114 = vector.load %arg19[%113, %c0_63, %c0_64] : memref<2x1x1xf32, #tpu.memory_space<vmem>>, vector<1x1x1xf32>
    %115 = vector.shape_cast %114 : vector<1x1x1xf32> to vector<1x1xf32>
    %116 = vector.broadcast %115 : vector<1x1xf32> to vector<16x16xf32>
    %117 = arith.mulf %116, %98 : vector<16x16xf32>
    %118 = arith.index_cast %c0_i32_48 : i32 to index
    %c0_65 = arith.constant 0 : index
    %c0_66 = arith.constant 0 : index
    %119 = vector.load %arg17[%118, %c0_65, %c0_66] : memref<2x8x1xf32, #tpu.memory_space<vmem>>, vector<1x8x1xf32>
    %120 = vector.shape_cast %119 : vector<1x8x1xf32> to vector<8x1xf32>
    %121 = vector.broadcast %120 : vector<8x1xf32> to vector<8x16xf32>
    %122 = arith.mulf %92, %121 : vector<8x16xf32>
    %cst_67 = arith.constant dense<0.000000e+00> : vector<16x16xf32>
    %123 = tpu.matmul %122, %95, %cst_67 {dimension_numbers = #tpu.dot_dimension_numbers<[0], [0], [1], [1], [0, 1, 1, 1], [], []>} : vector<8x16xf32>, vector<8x16xf32>, vector<16x16xf32> -> vector<16x16xf32>
    %124 = arith.addf %117, %123 : vector<16x16xf32>
    %125 = arith.index_cast %c0_i32_48 : i32 to index
    %c0_68 = arith.constant 0 : index
    %c0_69 = arith.constant 0 : index
    %126 = vector.load %arg26[%125, %c0_68, %c0_69] : memref<2x16x16xf32, #tpu.memory_space<vmem>>, vector<1x16x16xf32>
    %127 = vector.shape_cast %126 : vector<1x16x16xf32> to vector<16x16xf32>
    %128 = vector.shape_cast %124 : vector<16x16xf32> to vector<1x16x16xf32>
    tpu.vector_store %arg26[%125, %c0_68, %c0_69], %128 {strides = array<i32>} : memref<2x16x16xf32, #tpu.memory_space<vmem>>, vector<1x16x16xf32>,
    %cst_70 = arith.constant 2.500000e-01 : f32
    %129 = vector.broadcast %cst_70 : f32 to vector<8x16xf32>
    %130 = arith.mulf %112, %129 : vector<8x16xf32>
    %cst_71 = arith.constant dense<0.000000e+00> : vector<8xf32>
    %131 = vector.multi_reduction <add>, %130, %cst_71 [1] : vector<8x16xf32> to vector<8xf32>
    %132 = vector.shape_cast %131 : vector<8xf32> to vector<8x1xf32>
    %cst_72 = arith.constant 1.600000e+01 : f32
    %133 = vector.broadcast %cst_72 : f32 to vector<8x1xf32>
    %134 = arith.divf %132, %133 : vector<8x1xf32>
    %135 = vector.broadcast %134 : vector<8x1xf32> to vector<8x16xf32>
    %136 = arith.subf %130, %135 : vector<8x16xf32>
    %137 = arith.mulf %136, %136 : vector<8x16xf32>
    %cst_73 = arith.constant dense<0.000000e+00> : vector<8xf32>
    %138 = vector.multi_reduction <add>, %137, %cst_73 [1] : vector<8x16xf32> to vector<8xf32>
    %139 = vector.shape_cast %138 : vector<8xf32> to vector<8x1xf32>
    %cst_74 = arith.constant 1.600000e+01 : f32
    %140 = vector.broadcast %cst_74 : f32 to vector<8x1xf32>
    %141 = arith.divf %139, %140 : vector<8x1xf32>
    %142 = vector.broadcast %134 : vector<8x1xf32> to vector<8x16xf32>
    %143 = arith.subf %130, %142 : vector<8x16xf32>
    %cst_75 = arith.constant 9.99999974E-6 : f32
    %144 = vector.broadcast %cst_75 : f32 to vector<8x1xf32>
    %145 = arith.addf %141, %144 : vector<8x1xf32>
    %146 = math.rsqrt %145 : vector<8x1xf32>
    %147 = vector.broadcast %146 : vector<8x1xf32> to vector<8x16xf32>
    %148 = arith.mulf %143, %147 : vector<8x16xf32>
    %149 = arith.index_cast %c0_i32_48 : i32 to index
    %c0_76 = arith.constant 0 : index
    %c0_77 = arith.constant 0 : index
    %150 = vector.load %arg14[%149, %c0_76, %c0_77] : memref<2x1x16xf32, #tpu.memory_space<vmem>>, vector<1x1x16xf32>
    %151 = vector.shape_cast %150 : vector<1x1x16xf32> to vector<1x16xf32>
    %152 = vector.broadcast %151 : vector<1x16xf32> to vector<8x16xf32>
    %153 = arith.mulf %148, %152 : vector<8x16xf32>
    %154 = arith.index_cast %c0_i32_48 : i32 to index
    %c0_78 = arith.constant 0 : index
    %c0_79 = arith.constant 0 : index
    %155 = vector.load %arg15[%154, %c0_78, %c0_79] : memref<2x1x16xf32, #tpu.memory_space<vmem>>, vector<1x1x16xf32>
    %156 = vector.shape_cast %155 : vector<1x1x16xf32> to vector<1x16xf32>
    %157 = vector.broadcast %156 : vector<1x16xf32> to vector<8x16xf32>
    %158 = arith.addf %153, %157 : vector<8x16xf32>
    %159 = arith.truncf %158 : vector<8x16xf32> to vector<8x16xbf16>
    %160 = arith.index_cast %c0_i32_48 : i32 to index
    %c0_80 = arith.constant 0 : index
    %c0_81 = arith.constant 0 : index
    %161 = vector.load %arg32[%160, %c0_80, %c0_81] : memref<2x8x16xbf16, #tpu.memory_space<vmem>>, vector<1x8x16xbf16>
    %162 = vector.shape_cast %161 : vector<1x8x16xbf16> to vector<8x16xbf16>
    %163 = vector.shape_cast %159 : vector<8x16xbf16> to vector<1x8x16xbf16>
    tpu.vector_store %arg32[%160, %c0_80, %c0_81], %163 {strides = array<i32>} : memref<2x8x16xbf16, #tpu.memory_space<vmem>>, vector<1x8x16xbf16>,
    %c1_i32_82 = arith.constant 1 : i32
    %164 = arith.index_cast %c1_i32_82 : i32 to index
    %c0_83 = arith.constant 0 : index
    %c0_84 = arith.constant 0 : index
    %165 = vector.load %arg29[%164, %c0_83, %c0_84] : memref<2x8x16xf32, #tpu.memory_space<vmem>>, vector<1x8x16xf32>
    %166 = vector.shape_cast %165 : vector<1x8x16xf32> to vector<8x16xf32>
    %167 = arith.index_cast %c1_i32_82 : i32 to index
    %c0_85 = arith.constant 0 : index
    %c0_86 = arith.constant 0 : index
    %168 = vector.load %arg30[%167, %c0_85, %c0_86] : memref<2x8x16xf32, #tpu.memory_space<vmem>>, vector<1x8x16xf32>
    %169 = vector.shape_cast %168 : vector<1x8x16xf32> to vector<8x16xf32>
    %170 = arith.index_cast %c1_i32_82 : i32 to index
    %c0_87 = arith.constant 0 : index
    %c0_88 = arith.constant 0 : index
    %171 = vector.load %arg31[%170, %c0_87, %c0_88] : memref<2x8x16xf32, #tpu.memory_space<vmem>>, vector<1x8x16xf32>
    %172 = vector.shape_cast %171 : vector<1x8x16xf32> to vector<8x16xf32>
    %173 = arith.index_cast %c1_i32_82 : i32 to index
    %c0_89 = arith.constant 0 : index
    %c0_90 = arith.constant 0 : index
    %174 = vector.load %arg26[%173, %c0_89, %c0_90] : memref<2x16x16xf32, #tpu.memory_space<vmem>>, vector<1x16x16xf32>
    %175 = vector.shape_cast %174 : vector<1x16x16xf32> to vector<16x16xf32>
    %cst_91 = arith.constant dense<0.000000e+00> : vector<8x8xf32>
    %176 = tpu.matmul %166, %169, %cst_91 {dimension_numbers = #tpu.dot_dimension_numbers<[1], [1], [0], [0], [0, 0, 1, 0], [], []>} : vector<8x16xf32>, vector<8x16xf32>, vector<8x8xf32> -> vector<8x8xf32>
    %177 = arith.index_cast %c1_i32_82 : i32 to index
    %c0_92 = arith.constant 0 : index
    %c0_93 = arith.constant 0 : index
    %178 = vector.load %arg16[%177, %c0_92, %c0_93] : memref<2x8x8xbf16, #tpu.memory_space<vmem>>, vector<1x8x8xbf16>
    %179 = vector.shape_cast %178 : vector<1x8x8xbf16> to vector<8x8xbf16>
    %180 = arith.extf %179 : vector<8x8xbf16> to vector<8x8xf32>
    %181 = arith.mulf %176, %180 : vector<8x8xf32>
    %182 = arith.index_cast %c1_i32_82 : i32 to index
    %c0_94 = arith.constant 0 : index
    %c0_95 = arith.constant 0 : index
    %183 = vector.load %arg18[%182, %c0_94, %c0_95] : memref<2x8x1xf32, #tpu.memory_space<vmem>>, vector<1x8x1xf32>
    %184 = vector.shape_cast %183 : vector<1x8x1xf32> to vector<8x1xf32>
    %185 = vector.broadcast %184 : vector<8x1xf32> to vector<8x16xf32>
    %186 = arith.mulf %166, %185 : vector<8x16xf32>
    %187 = tpu.concatenate %181, %186 in 1 : vector<8x8xf32>, vector<8x16xf32> -> vector<8x24xf32>
    %188 = tpu.concatenate %172, %175 in 0 : vector<8x16xf32>, vector<16x16xf32> -> vector<24x16xf32>
    %cst_96 = arith.constant dense<0.000000e+00> : vector<8x16xf32>
    %189 = tpu.matmul %187, %188, %cst_96 {dimension_numbers = #tpu.dot_dimension_numbers<[1], [0], [0], [1], [0, 0, 1, 1], [], []>} : vector<8x24xf32>, vector<24x16xf32>, vector<8x16xf32> -> vector<8x16xf32>
    %190 = arith.index_cast %c1_i32_82 : i32 to index
    %c0_97 = arith.constant 0 : index
    %c0_98 = arith.constant 0 : index
    %191 = vector.load %arg19[%190, %c0_97, %c0_98] : memref<2x1x1xf32, #tpu.memory_space<vmem>>, vector<1x1x1xf32>
    %192 = vector.shape_cast %191 : vector<1x1x1xf32> to vector<1x1xf32>
    %193 = vector.broadcast %192 : vector<1x1xf32> to vector<16x16xf32>
    %194 = arith.mulf %193, %175 : vector<16x16xf32>
    %195 = arith.index_cast %c1_i32_82 : i32 to index
    %c0_99 = arith.constant 0 : index
    %c0_100 = arith.constant 0 : index
    %196 = vector.load %arg17[%195, %c0_99, %c0_100] : memref<2x8x1xf32, #tpu.memory_space<vmem>>, vector<1x8x1xf32>
    %197 = vector.shape_cast %196 : vector<1x8x1xf32> to vector<8x1xf32>
    %198 = vector.broadcast %197 : vector<8x1xf32> to vector<8x16xf32>
    %199 = arith.mulf %169, %198 : vector<8x16xf32>
    %cst_101 = arith.constant dense<0.000000e+00> : vector<16x16xf32>
    %200 = tpu.matmul %199, %172, %cst_101 {dimension_numbers = #tpu.dot_dimension_numbers<[0], [0], [1], [1], [0, 1, 1, 1], [], []>} : vector<8x16xf32>, vector<8x16xf32>, vector<16x16xf32> -> vector<16x16xf32>
    %201 = arith.addf %194, %200 : vector<16x16xf32>
    %202 = arith.index_cast %c1_i32_82 : i32 to index
    %c0_102 = arith.constant 0 : index
    %c0_103 = arith.constant 0 : index
    %203 = vector.load %arg26[%202, %c0_102, %c0_103] : memref<2x16x16xf32, #tpu.memory_space<vmem>>, vector<1x16x16xf32>
    %204 = vector.shape_cast %203 : vector<1x16x16xf32> to vector<16x16xf32>
    %205 = vector.shape_cast %201 : vector<16x16xf32> to vector<1x16x16xf32>
    tpu.vector_store %arg26[%202, %c0_102, %c0_103], %205 {strides = array<i32>} : memref<2x16x16xf32, #tpu.memory_space<vmem>>, vector<1x16x16xf32>,
    %cst_104 = arith.constant 2.500000e-01 : f32
    %206 = vector.broadcast %cst_104 : f32 to vector<8x16xf32>
    %207 = arith.mulf %189, %206 : vector<8x16xf32>
    %cst_105 = arith.constant dense<0.000000e+00> : vector<8xf32>
    %208 = vector.multi_reduction <add>, %207, %cst_105 [1] : vector<8x16xf32> to vector<8xf32>
    %209 = vector.shape_cast %208 : vector<8xf32> to vector<8x1xf32>
    %cst_106 = arith.constant 1.600000e+01 : f32
    %210 = vector.broadcast %cst_106 : f32 to vector<8x1xf32>
    %211 = arith.divf %209, %210 : vector<8x1xf32>
    %212 = vector.broadcast %211 : vector<8x1xf32> to vector<8x16xf32>
    %213 = arith.subf %207, %212 : vector<8x16xf32>
    %214 = arith.mulf %213, %213 : vector<8x16xf32>
    %cst_107 = arith.constant dense<0.000000e+00> : vector<8xf32>
    %215 = vector.multi_reduction <add>, %214, %cst_107 [1] : vector<8x16xf32> to vector<8xf32>
    %216 = vector.shape_cast %215 : vector<8xf32> to vector<8x1xf32>
    %cst_108 = arith.constant 1.600000e+01 : f32
    %217 = vector.broadcast %cst_108 : f32 to vector<8x1xf32>
    %218 = arith.divf %216, %217 : vector<8x1xf32>
    %219 = vector.broadcast %211 : vector<8x1xf32> to vector<8x16xf32>
    %220 = arith.subf %207, %219 : vector<8x16xf32>
    %cst_109 = arith.constant 9.99999974E-6 : f32
    %221 = vector.broadcast %cst_109 : f32 to vector<8x1xf32>
    %222 = arith.addf %218, %221 : vector<8x1xf32>
    %223 = math.rsqrt %222 : vector<8x1xf32>
    %224 = vector.broadcast %223 : vector<8x1xf32> to vector<8x16xf32>
    %225 = arith.mulf %220, %224 : vector<8x16xf32>
    %226 = arith.index_cast %c1_i32_82 : i32 to index
    %c0_110 = arith.constant 0 : index
    %c0_111 = arith.constant 0 : index
    %227 = vector.load %arg14[%226, %c0_110, %c0_111] : memref<2x1x16xf32, #tpu.memory_space<vmem>>, vector<1x1x16xf32>
    %228 = vector.shape_cast %227 : vector<1x1x16xf32> to vector<1x16xf32>
    %229 = vector.broadcast %228 : vector<1x16xf32> to vector<8x16xf32>
    %230 = arith.mulf %225, %229 : vector<8x16xf32>
    %231 = arith.index_cast %c1_i32_82 : i32 to index
    %c0_112 = arith.constant 0 : index
    %c0_113 = arith.constant 0 : index
    %232 = vector.load %arg15[%231, %c0_112, %c0_113] : memref<2x1x16xf32, #tpu.memory_space<vmem>>, vector<1x1x16xf32>
    %233 = vector.shape_cast %232 : vector<1x1x16xf32> to vector<1x16xf32>
    %234 = vector.broadcast %233 : vector<1x16xf32> to vector<8x16xf32>
    %235 = arith.addf %230, %234 : vector<8x16xf32>
    %236 = arith.truncf %235 : vector<8x16xf32> to vector<8x16xbf16>
    %237 = arith.index_cast %c1_i32_82 : i32 to index
    %c0_114 = arith.constant 0 : index
    %c0_115 = arith.constant 0 : index
    %238 = vector.load %arg32[%237, %c0_114, %c0_115] : memref<2x8x16xbf16, #tpu.memory_space<vmem>>, vector<1x8x16xbf16>
    %239 = vector.shape_cast %238 : vector<1x8x16xbf16> to vector<8x16xbf16>
    %240 = vector.shape_cast %236 : vector<8x16xbf16> to vector<1x8x16xbf16>
    tpu.vector_store %arg32[%237, %c0_114, %c0_115], %240 {strides = array<i32>} : memref<2x8x16xbf16, #tpu.memory_space<vmem>>, vector<1x8x16xbf16>,
    %c2_i32 = arith.constant 2 : i32
    %c0_116 = arith.constant 0 : index
    %c0_117 = arith.constant 0 : index
    %c0_118 = arith.constant 0 : index
    %241 = vector.load %arg32[%c0_116, %c0_117, %c0_118] : memref<2x8x16xbf16, #tpu.memory_space<vmem>>, vector<1x8x16xbf16>
    %242 = vector.shape_cast %241 : vector<1x8x16xbf16> to vector<8x16xbf16>
    %c1_119 = arith.constant 1 : index
    %c0_120 = arith.constant 0 : index
    %c0_121 = arith.constant 0 : index
    %243 = vector.load %arg32[%c1_119, %c0_120, %c0_121] : memref<2x8x16xbf16, #tpu.memory_space<vmem>>, vector<1x8x16xbf16>
    %244 = vector.shape_cast %243 : vector<1x8x16xbf16> to vector<8x16xbf16>
    %245 = tpu.concatenate %242, %244 in 1 : vector<8x16xbf16>, vector<8x16xbf16> -> vector<8x32xbf16>
    %c0_122 = arith.constant 0 : index
    %c0_123 = arith.constant 0 : index
    %246 = vector.load %arg13[%c0_122, %c0_123] : memref<32x32xbf16, #tpu.memory_space<vmem>>, vector<32x32xbf16>
    %cst_124 = arith.constant dense<0.000000e+00> : vector<8x32xf32>
    %247 = tpu.matmul %245, %246, %cst_124 {dimension_numbers = #tpu.dot_dimension_numbers<[1], [0], [0], [1], [0, 0, 1, 1], [], []>} : vector<8x32xbf16>, vector<32x32xbf16>, vector<8x32xf32> -> vector<8x32xf32>
    %248 = arith.addf %4, %247 : vector<8x32xf32>
    %c0_125 = arith.constant 0 : index
    %c0_126 = arith.constant 0 : index
    %249 = vector.load %arg5[%c0_125, %c0_126] : memref<1x32xf32, #tpu.memory_space<vmem>>, vector<1x32xf32>
    %c0_127 = arith.constant 0 : index
    %c0_128 = arith.constant 0 : index
    %250 = vector.load %arg6[%c0_127, %c0_128] : memref<1x32xf32, #tpu.memory_space<vmem>>, vector<1x32xf32>
    %cst_129 = arith.constant dense<0.000000e+00> : vector<8xf32>
    %251 = vector.multi_reduction <add>, %248, %cst_129 [1] : vector<8x32xf32> to vector<8xf32>
    %252 = vector.shape_cast %251 : vector<8xf32> to vector<8x1xf32>
    %cst_130 = arith.constant 3.200000e+01 : f32
    %253 = vector.broadcast %cst_130 : f32 to vector<8x1xf32>
    %254 = arith.divf %252, %253 : vector<8x1xf32>
    %255 = vector.broadcast %254 : vector<8x1xf32> to vector<8x32xf32>
    %256 = arith.subf %248, %255 : vector<8x32xf32>
    %257 = arith.mulf %256, %256 : vector<8x32xf32>
    %cst_131 = arith.constant dense<0.000000e+00> : vector<8xf32>
    %258 = vector.multi_reduction <add>, %257, %cst_131 [1] : vector<8x32xf32> to vector<8xf32>
    %259 = vector.shape_cast %258 : vector<8xf32> to vector<8x1xf32>
    %cst_132 = arith.constant 3.200000e+01 : f32
    %260 = vector.broadcast %cst_132 : f32 to vector<8x1xf32>
    %261 = arith.divf %259, %260 : vector<8x1xf32>
    %262 = vector.broadcast %254 : vector<8x1xf32> to vector<8x32xf32>
    %263 = arith.subf %248, %262 : vector<8x32xf32>
    %cst_133 = arith.constant 9.99999974E-6 : f32
    %264 = vector.broadcast %cst_133 : f32 to vector<8x1xf32>
    %265 = arith.addf %261, %264 : vector<8x1xf32>
    %266 = math.rsqrt %265 : vector<8x1xf32>
    %267 = vector.broadcast %266 : vector<8x1xf32> to vector<8x32xf32>
    %268 = arith.mulf %263, %267 : vector<8x32xf32>
    %269 = vector.broadcast %249 : vector<1x32xf32> to vector<8x32xf32>
    %270 = arith.mulf %268, %269 : vector<8x32xf32>
    %271 = vector.broadcast %250 : vector<1x32xf32> to vector<8x32xf32>
    %272 = arith.addf %270, %271 : vector<8x32xf32>
    %c0_134 = arith.constant 0 : index
    %c0_135 = arith.constant 0 : index
    %273 = vector.load %arg28[%c0_134, %c0_135] : memref<1x32xf32, #tpu.memory_space<vmem>>, vector<1x32xf32>
    %c1_i32_136 = arith.constant 1 : i32
    %274 = tpu.dynamic_rotate %272 by %c1_i32_136 dim 0 : vector<8x32xf32>, i32 -> vector<8x32xf32>
    %275 = vector.shape_cast %7 : vector<8x1xi1> to vector<8x1xi1>
    %276 = vector.broadcast %275 : vector<8x1xi1> to vector<8x32xi1>
    %277 = vector.shape_cast %273 : vector<1x32xf32> to vector<1x32xf32>
    %278 = vector.broadcast %277 : vector<1x32xf32> to vector<8x32xf32>
    %279 = arith.select %276, %278, %274 : vector<8x32xi1>, vector<8x32xf32>
    %280 = vector.extract_strided_slice %272 {offsets = [7, 0], sizes = [1, 32], strides = [1, 1]} : vector<8x32xf32> to vector<1x32xf32>
    %c0_137 = arith.constant 0 : index
    %c0_138 = arith.constant 0 : index
    %281 = vector.load %arg28[%c0_137, %c0_138] : memref<1x32xf32, #tpu.memory_space<vmem>>, vector<1x32xf32>
    tpu.vector_store %arg28[%c0_137, %c0_138], %280 {strides = array<i32>} : memref<1x32xf32, #tpu.memory_space<vmem>>, vector<1x32xf32>,
    %282 = arith.subf %272, %279 : vector<8x32xf32>
    %c0_139 = arith.constant 0 : index
    %c0_140 = arith.constant 0 : index
    %283 = vector.load %arg20[%c0_139, %c0_140] : memref<1x32xf32, #tpu.memory_space<vmem>>, vector<1x32xf32>
    %284 = vector.broadcast %283 : vector<1x32xf32> to vector<8x32xf32>
    %285 = arith.mulf %284, %282 : vector<8x32xf32>
    %286 = arith.addf %279, %285 : vector<8x32xf32>
    %287 = arith.truncf %286 : vector<8x32xf32> to vector<8x32xbf16>
    %c0_141 = arith.constant 0 : index
    %c0_142 = arith.constant 0 : index
    %288 = vector.load %arg21[%c0_141, %c0_142] : memref<1x32xf32, #tpu.memory_space<vmem>>, vector<1x32xf32>
    %289 = vector.broadcast %288 : vector<1x32xf32> to vector<8x32xf32>
    %290 = arith.mulf %289, %282 : vector<8x32xf32>
    %291 = arith.addf %279, %290 : vector<8x32xf32>
    %292 = arith.truncf %291 : vector<8x32xf32> to vector<8x32xbf16>
    %c0_143 = arith.constant 0 : index
    %c0_144 = arith.constant 0 : index
    %293 = vector.load %arg22[%c0_143, %c0_144] : memref<32x64xbf16, #tpu.memory_space<vmem>>, vector<32x64xbf16>
    %cst_145 = arith.constant dense<0.000000e+00> : vector<8x64xf32>
    %294 = tpu.matmul %287, %293, %cst_145 {dimension_numbers = #tpu.dot_dimension_numbers<[1], [0], [0], [1], [0, 0, 1, 1], [], []>} : vector<8x32xbf16>, vector<32x64xbf16>, vector<8x64xf32> -> vector<8x64xf32>
    %cst_146 = arith.constant 0.000000e+00 : f32
    %295 = vector.broadcast %cst_146 : f32 to vector<8x64xf32>
    %296 = arith.maximumf %294, %295 : vector<8x64xf32>
    %297 = arith.mulf %296, %296 : vector<8x64xf32>
    %298 = arith.truncf %297 : vector<8x64xf32> to vector<8x64xbf16>
    %c0_147 = arith.constant 0 : index
    %c0_148 = arith.constant 0 : index
    %299 = vector.load %arg23[%c0_147, %c0_148] : memref<64x32xbf16, #tpu.memory_space<vmem>>, vector<64x32xbf16>
    %cst_149 = arith.constant dense<0.000000e+00> : vector<8x32xf32>
    %300 = tpu.matmul %298, %299, %cst_149 {dimension_numbers = #tpu.dot_dimension_numbers<[1], [0], [0], [1], [0, 0, 1, 1], [], []>} : vector<8x64xbf16>, vector<64x32xbf16>, vector<8x32xf32> -> vector<8x32xf32>
    %c0_150 = arith.constant 0 : index
    %c0_151 = arith.constant 0 : index
    %301 = vector.load %arg24[%c0_150, %c0_151] : memref<32x32xbf16, #tpu.memory_space<vmem>>, vector<32x32xbf16>
    %cst_152 = arith.constant dense<0.000000e+00> : vector<8x32xf32>
    %302 = tpu.matmul %292, %301, %cst_152 {dimension_numbers = #tpu.dot_dimension_numbers<[1], [0], [0], [1], [0, 0, 1, 1], [], []>} : vector<8x32xbf16>, vector<32x32xbf16>, vector<8x32xf32> -> vector<8x32xf32>
    %303 = arith.negf %302 : vector<8x32xf32>
    %304 = math.exp %303 : vector<8x32xf32>
    %cst_153 = arith.constant 1.000000e+00 : f32
    %305 = vector.broadcast %cst_153 : f32 to vector<8x32xf32>
    %306 = arith.addf %305, %304 : vector<8x32xf32>
    %307 = arith.divf %305, %306 : vector<8x32xf32>
    %308 = arith.mulf %307, %300 : vector<8x32xf32>
    %309 = arith.addf %248, %308 : vector<8x32xf32>
    %c0_154 = arith.constant 0 : index
    %c0_155 = arith.constant 0 : index
    %c0_156 = arith.constant 0 : index
    %310 = vector.load %arg25[%c0_154, %c0_155, %c0_156] : memref<1x8x32xf32, #tpu.memory_space<vmem>>, vector<1x8x32xf32>
    %311 = vector.shape_cast %310 : vector<1x8x32xf32> to vector<8x32xf32>
    %312 = vector.shape_cast %309 : vector<8x32xf32> to vector<1x8x32xf32>
    tpu.vector_store %arg25[%c0_154, %c0_155, %c0_156], %312 {strides = array<i32>} : memref<1x8x32xf32, #tpu.memory_space<vmem>>, vector<1x8x32xf32>,
    return
  }
  func.func @transform_0(%arg0: i32, %arg1: i32) -> (i32, i32, i32) {
    %c0_i32 = arith.constant 0 : i32
    %c0_i32_0 = arith.constant 0 : i32
    return %arg0, %arg1, %c0_i32 : i32, i32, i32
  }
  func.func @transform_1(%arg0: i32, %arg1: i32) -> (i32, i32) {
    %c0_i32 = arith.constant 0 : i32
    %c0_i32_0 = arith.constant 0 : i32
    %c0_i32_1 = arith.constant 0 : i32
    return %c0_i32, %c0_i32_0 : i32, i32
  }
  func.func @transform_2(%arg0: i32, %arg1: i32) -> (i32, i32) {
    %c0_i32 = arith.constant 0 : i32
    %c0_i32_0 = arith.constant 0 : i32
    %c0_i32_1 = arith.constant 0 : i32
    return %c0_i32, %c0_i32_0 : i32, i32
  }
  func.func @transform_3(%arg0: i32, %arg1: i32) -> (i32, i32) {
    %c0_i32 = arith.constant 0 : i32
    %c0_i32_0 = arith.constant 0 : i32
    %c0_i32_1 = arith.constant 0 : i32
    return %c0_i32, %c0_i32_0 : i32, i32
  }
  func.func @transform_4(%arg0: i32, %arg1: i32) -> (i32, i32) {
    %c0_i32 = arith.constant 0 : i32
    %c0_i32_0 = arith.constant 0 : i32
    %c0_i32_1 = arith.constant 0 : i32
    return %c0_i32, %c0_i32_0 : i32, i32
  }
  func.func @transform_5(%arg0: i32, %arg1: i32) -> (i32, i32) {
    %c0_i32 = arith.constant 0 : i32
    %c0_i32_0 = arith.constant 0 : i32
    %c0_i32_1 = arith.constant 0 : i32
    return %c0_i32, %c0_i32_0 : i32, i32
  }
  func.func @transform_6(%arg0: i32, %arg1: i32) -> (i32, i32) {
    %c0_i32 = arith.constant 0 : i32
    %c0_i32_0 = arith.constant 0 : i32
    %c0_i32_1 = arith.constant 0 : i32
    return %c0_i32, %c0_i32_0 : i32, i32
  }
  func.func @transform_7(%arg0: i32, %arg1: i32) -> (i32, i32) {
    %c0_i32 = arith.constant 0 : i32
    %c0_i32_0 = arith.constant 0 : i32
    %c0_i32_1 = arith.constant 0 : i32
    return %c0_i32, %c0_i32_0 : i32, i32
  }
  func.func @transform_8(%arg0: i32, %arg1: i32) -> (i32, i32) {
    %c0_i32 = arith.constant 0 : i32
    %c0_i32_0 = arith.constant 0 : i32
    %c0_i32_1 = arith.constant 0 : i32
    return %c0_i32, %c0_i32_0 : i32, i32
  }
  func.func @transform_9(%arg0: i32, %arg1: i32) -> (i32, i32) {
    %c0_i32 = arith.constant 0 : i32
    %c0_i32_0 = arith.constant 0 : i32
    %c0_i32_1 = arith.constant 0 : i32
    return %c0_i32, %c0_i32_0 : i32, i32
  }
  func.func @transform_10(%arg0: i32, %arg1: i32) -> (i32, i32) {
    %c0_i32 = arith.constant 0 : i32
    %c0_i32_0 = arith.constant 0 : i32
    %c0_i32_1 = arith.constant 0 : i32
    return %c0_i32, %c0_i32_0 : i32, i32
  }
  func.func @transform_11(%arg0: i32, %arg1: i32) -> (i32, i32) {
    %c0_i32 = arith.constant 0 : i32
    %c0_i32_0 = arith.constant 0 : i32
    %c0_i32_1 = arith.constant 0 : i32
    return %c0_i32, %c0_i32_0 : i32, i32
  }
  func.func @transform_12(%arg0: i32, %arg1: i32) -> (i32, i32, i32) {
    %c0_i32 = arith.constant 0 : i32
    %c0_i32_0 = arith.constant 0 : i32
    %c0_i32_1 = arith.constant 0 : i32
    %c0_i32_2 = arith.constant 0 : i32
    return %c0_i32, %c0_i32_0, %c0_i32_1 : i32, i32, i32
  }
  func.func @transform_13(%arg0: i32, %arg1: i32) -> (i32, i32, i32) {
    %c0_i32 = arith.constant 0 : i32
    %c0_i32_0 = arith.constant 0 : i32
    %c0_i32_1 = arith.constant 0 : i32
    %c0_i32_2 = arith.constant 0 : i32
    return %c0_i32, %c0_i32_0, %c0_i32_1 : i32, i32, i32
  }
  func.func @transform_14(%arg0: i32, %arg1: i32) -> (i32, i32, i32) {
    %c0_i32 = arith.constant 0 : i32
    %c0_i32_0 = arith.constant 0 : i32
    %c0_i32_1 = arith.constant 0 : i32
    %c0_i32_2 = arith.constant 0 : i32
    return %c0_i32, %c0_i32_0, %c0_i32_1 : i32, i32, i32
  }
  func.func @transform_15(%arg0: i32, %arg1: i32) -> (i32, i32, i32) {
    %c0_i32 = arith.constant 0 : i32
    %c0_i32_0 = arith.constant 0 : i32
    %c0_i32_1 = arith.constant 0 : i32
    %c0_i32_2 = arith.constant 0 : i32
    return %c0_i32, %c0_i32_0, %c0_i32_1 : i32, i32, i32
  }
  func.func @transform_16(%arg0: i32, %arg1: i32) -> (i32, i32, i32) {
    %c0_i32 = arith.constant 0 : i32
    %c0_i32_0 = arith.constant 0 : i32
    %c0_i32_1 = arith.constant 0 : i32
    %c0_i32_2 = arith.constant 0 : i32
    return %c0_i32, %c0_i32_0, %c0_i32_1 : i32, i32, i32
  }
  func.func @transform_17(%arg0: i32, %arg1: i32) -> (i32, i32, i32) {
    %c0_i32 = arith.constant 0 : i32
    %c0_i32_0 = arith.constant 0 : i32
    %c0_i32_1 = arith.constant 0 : i32
    %c0_i32_2 = arith.constant 0 : i32
    return %c0_i32, %c0_i32_0, %c0_i32_1 : i32, i32, i32
  }
  func.func @transform_18(%arg0: i32, %arg1: i32) -> (i32, i32) {
    %c0_i32 = arith.constant 0 : i32
    %c0_i32_0 = arith.constant 0 : i32
    %c0_i32_1 = arith.constant 0 : i32
    return %c0_i32, %c0_i32_0 : i32, i32
  }
  func.func @transform_19(%arg0: i32, %arg1: i32) -> (i32, i32) {
    %c0_i32 = arith.constant 0 : i32
    %c0_i32_0 = arith.constant 0 : i32
    %c0_i32_1 = arith.constant 0 : i32
    return %c0_i32, %c0_i32_0 : i32, i32
  }
  func.func @transform_20(%arg0: i32, %arg1: i32) -> (i32, i32) {
    %c0_i32 = arith.constant 0 : i32
    %c0_i32_0 = arith.constant 0 : i32
    %c0_i32_1 = arith.constant 0 : i32
    return %c0_i32, %c0_i32_0 : i32, i32
  }
  func.func @transform_21(%arg0: i32, %arg1: i32) -> (i32, i32) {
    %c0_i32 = arith.constant 0 : i32
    %c0_i32_0 = arith.constant 0 : i32
    %c0_i32_1 = arith.constant 0 : i32
    return %c0_i32, %c0_i32_0 : i32, i32
  }
  func.func @transform_22(%arg0: i32, %arg1: i32) -> (i32, i32) {
    %c0_i32 = arith.constant 0 : i32
    %c0_i32_0 = arith.constant 0 : i32
    %c0_i32_1 = arith.constant 0 : i32
    return %c0_i32, %c0_i32_0 : i32, i32
  }
  func.func @transform_23(%arg0: i32, %arg1: i32) -> (i32, i32, i32) {
    %c0_i32 = arith.constant 0 : i32
    %c0_i32_0 = arith.constant 0 : i32
    return %arg0, %arg1, %c0_i32 : i32, i32, i32
  }
}

module attributes {stable_mosaic.version = 11 : i64} {
  func.func @kernel(%arg0: i32, %arg1: i32, %arg2: memref<1x8x32xf32, #tpu.memory_space<vmem>>, %arg3: memref<1x32xf32, #tpu.memory_space<vmem>>, %arg4: memref<1x32xf32, #tpu.memory_space<vmem>>, %arg5: memref<1x32xf32, #tpu.memory_space<vmem>>, %arg6: memref<1x32xf32, #tpu.memory_space<vmem>>, %arg7: memref<1x32xf32, #tpu.memory_space<vmem>>, %arg8: memref<1x32xf32, #tpu.memory_space<vmem>>, %arg9: memref<1x32xf32, #tpu.memory_space<vmem>>, %arg10: memref<32x32xbf16, #tpu.memory_space<vmem>>, %arg11: memref<32x32xbf16, #tpu.memory_space<vmem>>, %arg12: memref<32x32xbf16, #tpu.memory_space<vmem>>, %arg13: memref<32x32xbf16, #tpu.memory_space<vmem>>, %arg14: memref<2x1x16xf32, #tpu.memory_space<vmem>>, %arg15: memref<2x1x16xf32, #tpu.memory_space<vmem>>, %arg16: memref<2x8x8xbf16, #tpu.memory_space<vmem>>, %arg17: memref<2x8x1xf32, #tpu.memory_space<vmem>>, %arg18: memref<2x8x1xf32, #tpu.memory_space<vmem>>, %arg19: memref<2x1x1xf32, #tpu.memory_space<vmem>>, %arg20: memref<1x32xf32, #tpu.memory_space<vmem>>, %arg21: memref<1x32xf32, #tpu.memory_space<vmem>>, %arg22: memref<32x64xbf16, #tpu.memory_space<vmem>>, %arg23: memref<64x32xbf16, #tpu.memory_space<vmem>>, %arg24: memref<32x32xbf16, #tpu.memory_space<vmem>>, %arg25: memref<1x8x32xf32, #tpu.memory_space<vmem>>, %arg26: memref<2x16x16xf32, #tpu.memory_space<vmem>>, %arg27: memref<1x32xf32, #tpu.memory_space<vmem>>, %arg28: memref<1x32xf32, #tpu.memory_space<vmem>>, %arg29: memref<2x8x16xf32, #tpu.memory_space<vmem>>, %arg30: memref<2x8x16xf32, #tpu.memory_space<vmem>>, %arg31: memref<2x8x16xf32, #tpu.memory_space<vmem>>, %arg32: memref<2x8x16xbf16, #tpu.memory_space<vmem>>) attributes {dimension_semantics = [#tpu.dimension_semantics<parallel>, #tpu.dimension_semantics<arbitrary>], iteration_bounds = array<i64: 2, 2>, scalar_prefetch = 0 : i64, scratch_operands = 7 : i64, tpu.core_type = #tpu.core_type<tc>, window_params = [{transform_indices = @transform_0, window_bounds = array<i64: 1, 8, 32>}, {pipeline_mode = #tpu.pipeline_mode<synchronous>, transform_indices = @transform_1, window_bounds = array<i64: 1, 32>}, {pipeline_mode = #tpu.pipeline_mode<synchronous>, transform_indices = @transform_2, window_bounds = array<i64: 1, 32>}, {pipeline_mode = #tpu.pipeline_mode<synchronous>, transform_indices = @transform_3, window_bounds = array<i64: 1, 32>}, {pipeline_mode = #tpu.pipeline_mode<synchronous>, transform_indices = @transform_4, window_bounds = array<i64: 1, 32>}, {pipeline_mode = #tpu.pipeline_mode<synchronous>, transform_indices = @transform_5, window_bounds = array<i64: 1, 32>}, {pipeline_mode = #tpu.pipeline_mode<synchronous>, transform_indices = @transform_6, window_bounds = array<i64: 1, 32>}, {pipeline_mode = #tpu.pipeline_mode<synchronous>, transform_indices = @transform_7, window_bounds = array<i64: 1, 32>}, {pipeline_mode = #tpu.pipeline_mode<synchronous>, transform_indices = @transform_8, window_bounds = array<i64: 32, 32>}, {pipeline_mode = #tpu.pipeline_mode<synchronous>, transform_indices = @transform_9, window_bounds = array<i64: 32, 32>}, {pipeline_mode = #tpu.pipeline_mode<synchronous>, transform_indices = @transform_10, window_bounds = array<i64: 32, 32>}, {pipeline_mode = #tpu.pipeline_mode<synchronous>, transform_indices = @transform_11, window_bounds = array<i64: 32, 32>}, {pipeline_mode = #tpu.pipeline_mode<synchronous>, transform_indices = @transform_12, window_bounds = array<i64: 2, 1, 16>}, {pipeline_mode = #tpu.pipeline_mode<synchronous>, transform_indices = @transform_13, window_bounds = array<i64: 2, 1, 16>}, {pipeline_mode = #tpu.pipeline_mode<synchronous>, transform_indices = @transform_14, window_bounds = array<i64: 2, 8, 8>}, {pipeline_mode = #tpu.pipeline_mode<synchronous>, transform_indices = @transform_15, window_bounds = array<i64: 2, 8, 1>}, {pipeline_mode = #tpu.pipeline_mode<synchronous>, transform_indices = @transform_16, window_bounds = array<i64: 2, 8, 1>}, {pipeline_mode = #tpu.pipeline_mode<synchronous>, transform_indices = @transform_17, window_bounds = array<i64: 2, 1, 1>}, {pipeline_mode = #tpu.pipeline_mode<synchronous>, transform_indices = @transform_18, window_bounds = array<i64: 1, 32>}, {pipeline_mode = #tpu.pipeline_mode<synchronous>, transform_indices = @transform_19, window_bounds = array<i64: 1, 32>}, {pipeline_mode = #tpu.pipeline_mode<synchronous>, transform_indices = @transform_20, window_bounds = array<i64: 32, 64>}, {pipeline_mode = #tpu.pipeline_mode<synchronous>, transform_indices = @transform_21, window_bounds = array<i64: 64, 32>}, {pipeline_mode = #tpu.pipeline_mode<synchronous>, transform_indices = @transform_22, window_bounds = array<i64: 32, 32>}, {transform_indices = @transform_23, window_bounds = array<i64: 1, 8, 32>}]} {
    %c0_i32 = arith.constant 0 : i32
    %0 = arith.cmpi eq, %arg1, %c0_i32 : i32
    %1 = arith.extui %0 : i1 to i32
    %c0_i32_0 = arith.constant 0 : i32
    %2 = arith.cmpi ne, %1, %c0_i32_0 : i32
    scf.if %2 {
      %cst_157 = arith.constant 0.000000e+00 : f32
      %313 = vector.broadcast %cst_157 : f32 to vector<2x16x16xf32>
      %c0_158 = arith.constant 0 : index
      %c0_159 = arith.constant 0 : index
      %c0_160 = arith.constant 0 : index
      %314 = vector.load %arg26[%c0_158, %c0_159, %c0_160] : memref<2x16x16xf32, #tpu.memory_space<vmem>>, vector<2x16x16xf32>
      tpu.vector_store %arg26[%c0_158, %c0_159, %c0_160], %313 {strides = array<i32>} : memref<2x16x16xf32, #tpu.memory_space<vmem>>, vector<2x16x16xf32>,
      %cst_161 = arith.constant 0.000000e+00 : f32
      %315 = vector.broadcast %cst_161 : f32 to vector<1x32xf32>
      %c0_162 = arith.constant 0 : index
      %c0_163 = arith.constant 0 : index
      %316 = vector.load %arg27[%c0_162, %c0_163] : memref<1x32xf32, #tpu.memory_space<vmem>>, vector<1x32xf32>
      tpu.vector_store %arg27[%c0_162, %c0_163], %315 {strides = array<i32>} : memref<1x32xf32, #tpu.memory_space<vmem>>, vector<1x32xf32>,
      %cst_164 = arith.constant 0.000000e+00 : f32
      %317 = vector.broadcast %cst_164 : f32 to vector<1x32xf32>
      %c0_165 = arith.constant 0 : index
      %c0_166 = arith.constant 0 : index
      %318 = vector.load %arg28[%c0_165, %c0_166] : memref<1x32xf32, #tpu.memory_space<vmem>>, vector<1x32xf32>
      tpu.vector_store %arg28[%c0_165, %c0_166], %317 {strides = array<i32>} : memref<1x32xf32, #tpu.memory_space<vmem>>, vector<1x32xf32>,
    } else {
    }
    %c0 = arith.constant 0 : index
    %c0_1 = arith.constant 0 : index
    %c0_2 = arith.constant 0 : index
    %3 = vector.load %arg2[%c0, %c0_1, %c0_2] : memref<1x8x32xf32, #tpu.memory_space<vmem>>, vector<1x8x32xf32>
    %4 = vector.shape_cast %3 : vector<1x8x32xf32> to vector<8x32xf32>
    %5 = tpu.iota {dimensions = array<i32: 0>} : vector<8x1xi32>
    %c0_i32_3 = arith.constant 0 : i32
    %6 = vector.broadcast %c0_i32_3 : i32 to vector<8x1xi32>
    %7 = arith.cmpi eq, %5, %6 : vector<8x1xi32>
    %c0_4 = arith.constant 0 : index
    %c0_5 = arith.constant 0 : index
    %8 = vector.load %arg3[%c0_4, %c0_5] : memref<1x32xf32, #tpu.memory_space<vmem>>, vector<1x32xf32>
    %c0_6 = arith.constant 0 : index
    %c0_7 = arith.constant 0 : index
    %9 = vector.load %arg4[%c0_6, %c0_7] : memref<1x32xf32, #tpu.memory_space<vmem>>, vector<1x32xf32>
    %cst = arith.constant dense<0.000000e+00> : vector<8xf32>
    %10 = vector.multi_reduction <add>, %4, %cst [1] : vector<8x32xf32> to vector<8xf32>
    %11 = vector.shape_cast %10 : vector<8xf32> to vector<8x1xf32>
    %cst_8 = arith.constant 3.200000e+01 : f32
    %12 = vector.broadcast %cst_8 : f32 to vector<8x1xf32>
    %13 = arith.divf %11, %12 : vector<8x1xf32>
    %14 = vector.broadcast %13 : vector<8x1xf32> to vector<8x32xf32>
    %15 = arith.subf %4, %14 : vector<8x32xf32>
    %16 = arith.mulf %15, %15 : vector<8x32xf32>
    %cst_9 = arith.constant dense<0.000000e+00> : vector<8xf32>
    %17 = vector.multi_reduction <add>, %16, %cst_9 [1] : vector<8x32xf32> to vector<8xf32>
    %18 = vector.shape_cast %17 : vector<8xf32> to vector<8x1xf32>
    %cst_10 = arith.constant 3.200000e+01 : f32
    %19 = vector.broadcast %cst_10 : f32 to vector<8x1xf32>
    %20 = arith.divf %18, %19 : vector<8x1xf32>
    %21 = vector.broadcast %13 : vector<8x1xf32> to vector<8x32xf32>
    %22 = arith.subf %4, %21 : vector<8x32xf32>
    %cst_11 = arith.constant 9.99999974E-6 : f32
    %23 = vector.broadcast %cst_11 : f32 to vector<8x1xf32>
    %24 = arith.addf %20, %23 : vector<8x1xf32>
    %25 = math.rsqrt %24 : vector<8x1xf32>
    %26 = vector.broadcast %25 : vector<8x1xf32> to vector<8x32xf32>
    %27 = arith.mulf %22, %26 : vector<8x32xf32>
    %28 = vector.broadcast %8 : vector<1x32xf32> to vector<8x32xf32>
    %29 = arith.mulf %27, %28 : vector<8x32xf32>
    %30 = vector.broadcast %9 : vector<1x32xf32> to vector<8x32xf32>
    %31 = arith.addf %29, %30 : vector<8x32xf32>
    %c0_12 = arith.constant 0 : index
    %c0_13 = arith.constant 0 : index
    %32 = vector.load %arg27[%c0_12, %c0_13] : memref<1x32xf32, #tpu.memory_space<vmem>>, vector<1x32xf32>
    %c1_i32 = arith.constant 1 : i32
    %33 = tpu.dynamic_rotate %31 by %c1_i32 dim 0 : vector<8x32xf32>, i32 -> vector<8x32xf32>
    %34 = vector.shape_cast %7 : vector<8x1xi1> to vector<8x1xi1>
    %35 = vector.broadcast %34 : vector<8x1xi1> to vector<8x32xi1>
    %36 = vector.shape_cast %32 : vector<1x32xf32> to vector<1x32xf32>
    %37 = vector.broadcast %36 : vector<1x32xf32> to vector<8x32xf32>
    %38 = arith.select %35, %37, %33 : vector<8x32xi1>, vector<8x32xf32>
    %39 = vector.extract_strided_slice %31 {offsets = [7, 0], sizes = [1, 32], strides = [1, 1]} : vector<8x32xf32> to vector<1x32xf32>
    %c0_14 = arith.constant 0 : index
    %c0_15 = arith.constant 0 : index
    %40 = vector.load %arg27[%c0_14, %c0_15] : memref<1x32xf32, #tpu.memory_space<vmem>>, vector<1x32xf32>
    tpu.vector_store %arg27[%c0_14, %c0_15], %39 {strides = array<i32>} : memref<1x32xf32, #tpu.memory_space<vmem>>, vector<1x32xf32>,
    %41 = arith.subf %31, %38 : vector<8x32xf32>
    %c0_16 = arith.constant 0 : index
    %c0_17 = arith.constant 0 : index
    %42 = vector.load %arg7[%c0_16, %c0_17] : memref<1x32xf32, #tpu.memory_space<vmem>>, vector<1x32xf32>
    %43 = vector.broadcast %42 : vector<1x32xf32> to vector<8x32xf32>
    %44 = arith.mulf %43, %41 : vector<8x32xf32>
    %45 = arith.addf %38, %44 : vector<8x32xf32>
    %46 = arith.truncf %45 : vector<8x32xf32> to vector<8x32xbf16>
    %c0_18 = arith.constant 0 : index
    %c0_19 = arith.constant 0 : index
    %47 = vector.load %arg8[%c0_18, %c0_19] : memref<1x32xf32, #tpu.memory_space<vmem>>, vector<1x32xf32>
    %48 = vector.broadcast %47 : vector<1x32xf32> to vector<8x32xf32>
    %49 = arith.mulf %48, %41 : vector<8x32xf32>
    %50 = arith.addf %38, %49 : vector<8x32xf32>
    %51 = arith.truncf %50 : vector<8x32xf32> to vector<8x32xbf16>
    %c0_20 = arith.constant 0 : index
    %c0_21 = arith.constant 0 : index
    %52 = vector.load %arg9[%c0_20, %c0_21] : memref<1x32xf32, #tpu.memory_space<vmem>>, vector<1x32xf32>
    %53 = vector.broadcast %52 : vector<1x32xf32> to vector<8x32xf32>
    %54 = arith.mulf %53, %41 : vector<8x32xf32>
    %55 = arith.addf %38, %54 : vector<8x32xf32>
    %56 = arith.truncf %55 : vector<8x32xf32> to vector<8x32xbf16>
    %c0_22 = arith.constant 0 : index
    %c0_23 = arith.constant 0 : index
    %57 = vector.load %arg10[%c0_22, %c0_23] : memref<32x32xbf16, #tpu.memory_space<vmem>>, vector<32x32xbf16>
    %cst_24 = arith.constant dense<0.000000e+00> : vector<8x32xf32>
    %58 = tpu.matmul %56, %57, %cst_24 {dimension_numbers = #tpu.dot_dimension_numbers<[1], [0], [0], [1], [0, 0, 1, 1], [], []>} : vector<8x32xbf16>, vector<32x32xbf16>, vector<8x32xf32> -> vector<8x32xf32>
    %c0_25 = arith.constant 0 : index
    %c0_26 = arith.constant 0 : index
    %59 = vector.load %arg11[%c0_25, %c0_26] : memref<32x32xbf16, #tpu.memory_space<vmem>>, vector<32x32xbf16>
    %cst_27 = arith.constant dense<0.000000e+00> : vector<8x32xf32>
    %60 = tpu.matmul %46, %59, %cst_27 {dimension_numbers = #tpu.dot_dimension_numbers<[1], [0], [0], [1], [0, 0, 1, 1], [], []>} : vector<8x32xbf16>, vector<32x32xbf16>, vector<8x32xf32> -> vector<8x32xf32>
    %c0_28 = arith.constant 0 : index
    %c0_29 = arith.constant 0 : index
    %61 = vector.load %arg12[%c0_28, %c0_29] : memref<32x32xbf16, #tpu.memory_space<vmem>>, vector<32x32xbf16>
    %cst_30 = arith.constant dense<0.000000e+00> : vector<8x32xf32>
    %62 = tpu.matmul %51, %61, %cst_30 {dimension_numbers = #tpu.dot_dimension_numbers<[1], [0], [0], [1], [0, 0, 1, 1], [], []>} : vector<8x32xbf16>, vector<32x32xbf16>, vector<8x32xf32> -> vector<8x32xf32>
    %63 = vector.extract_strided_slice %58 {offsets = [0, 0], sizes = [8, 16], strides = [1, 1]} : vector<8x32xf32> to vector<8x16xf32>
    %c0_31 = arith.constant 0 : index
    %c0_32 = arith.constant 0 : index
    %c0_33 = arith.constant 0 : index
    %64 = vector.load %arg29[%c0_31, %c0_32, %c0_33] : memref<2x8x16xf32, #tpu.memory_space<vmem>>, vector<1x8x16xf32>
    %65 = vector.shape_cast %64 : vector<1x8x16xf32> to vector<8x16xf32>
    %66 = vector.shape_cast %63 : vector<8x16xf32> to vector<1x8x16xf32>
    tpu.vector_store %arg29[%c0_31, %c0_32, %c0_33], %66 {strides = array<i32>} : memref<2x8x16xf32, #tpu.memory_space<vmem>>, vector<1x8x16xf32>,
    %67 = vector.extract_strided_slice %60 {offsets = [0, 0], sizes = [8, 16], strides = [1, 1]} : vector<8x32xf32> to vector<8x16xf32>
    %c0_34 = arith.constant 0 : index
    %c0_35 = arith.constant 0 : index
    %c0_36 = arith.constant 0 : index
    %68 = vector.load %arg30[%c0_34, %c0_35, %c0_36] : memref<2x8x16xf32, #tpu.memory_space<vmem>>, vector<1x8x16xf32>
    %69 = vector.shape_cast %68 : vector<1x8x16xf32> to vector<8x16xf32>
    %70 = vector.shape_cast %67 : vector<8x16xf32> to vector<1x8x16xf32>
    tpu.vector_store %arg30[%c0_34, %c0_35, %c0_36], %70 {strides = array<i32>} : memref<2x8x16xf32, #tpu.memory_space<vmem>>, vector<1x8x16xf32>,
    %71 = vector.extract_strided_slice %62 {offsets = [0, 0], sizes = [8, 16], strides = [1, 1]} : vector<8x32xf32> to vector<8x16xf32>
    %c0_37 = arith.constant 0 : index
    %c0_38 = arith.constant 0 : index
    %c0_39 = arith.constant 0 : index
    %72 = vector.load %arg31[%c0_37, %c0_38, %c0_39] : memref<2x8x16xf32, #tpu.memory_space<vmem>>, vector<1x8x16xf32>
    %73 = vector.shape_cast %72 : vector<1x8x16xf32> to vector<8x16xf32>
    %74 = vector.shape_cast %71 : vector<8x16xf32> to vector<1x8x16xf32>
    tpu.vector_store %arg31[%c0_37, %c0_38, %c0_39], %74 {strides = array<i32>} : memref<2x8x16xf32, #tpu.memory_space<vmem>>, vector<1x8x16xf32>,
    %75 = vector.extract_strided_slice %58 {offsets = [0, 16], sizes = [8, 16], strides = [1, 1]} : vector<8x32xf32> to vector<8x16xf32>
    %c1 = arith.constant 1 : index
    %c0_40 = arith.constant 0 : index
    %c0_41 = arith.constant 0 : index
    %76 = vector.load %arg29[%c1, %c0_40, %c0_41] : memref<2x8x16xf32, #tpu.memory_space<vmem>>, vector<1x8x16xf32>
    %77 = vector.shape_cast %76 : vector<1x8x16xf32> to vector<8x16xf32>
    %78 = vector.shape_cast %75 : vector<8x16xf32> to vector<1x8x16xf32>
    tpu.vector_store %arg29[%c1, %c0_40, %c0_41], %78 {strides = array<i32>} : memref<2x8x16xf32, #tpu.memory_space<vmem>>, vector<1x8x16xf32>,
    %79 = vector.extract_strided_slice %60 {offsets = [0, 16], sizes = [8, 16], strides = [1, 1]} : vector<8x32xf32> to vector<8x16xf32>
    %c1_42 = arith.constant 1 : index
    %c0_43 = arith.constant 0 : index
    %c0_44 = arith.constant 0 : index
    %80 = vector.load %arg30[%c1_42, %c0_43, %c0_44] : memref<2x8x16xf32, #tpu.memory_space<vmem>>, vector<1x8x16xf32>
    %81 = vector.shape_cast %80 : vector<1x8x16xf32> to vector<8x16xf32>
    %82 = vector.shape_cast %79 : vector<8x16xf32> to vector<1x8x16xf32>
    tpu.vector_store %arg30[%c1_42, %c0_43, %c0_44], %82 {strides = array<i32>} : memref<2x8x16xf32, #tpu.memory_space<vmem>>, vector<1x8x16xf32>,
    %83 = vector.extract_strided_slice %62 {offsets = [0, 16], sizes = [8, 16], strides = [1, 1]} : vector<8x32xf32> to vector<8x16xf32>
    %c1_45 = arith.constant 1 : index
    %c0_46 = arith.constant 0 : index
    %c0_47 = arith.constant 0 : index
    %84 = vector.load %arg31[%c1_45, %c0_46, %c0_47] : memref<2x8x16xf32, #tpu.memory_space<vmem>>, vector<1x8x16xf32>
    %85 = vector.shape_cast %84 : vector<1x8x16xf32> to vector<8x16xf32>
    %86 = vector.shape_cast %83 : vector<8x16xf32> to vector<1x8x16xf32>
    tpu.vector_store %arg31[%c1_45, %c0_46, %c0_47], %86 {strides = array<i32>} : memref<2x8x16xf32, #tpu.memory_space<vmem>>, vector<1x8x16xf32>,
    %c0_i32_48 = arith.constant 0 : i32
    %87 = arith.index_cast %c0_i32_48 : i32 to index
    %c0_49 = arith.constant 0 : index
    %c0_50 = arith.constant 0 : index
    %88 = vector.load %arg29[%87, %c0_49, %c0_50] : memref<2x8x16xf32, #tpu.memory_space<vmem>>, vector<1x8x16xf32>
    %89 = vector.shape_cast %88 : vector<1x8x16xf32> to vector<8x16xf32>
    %90 = arith.index_cast %c0_i32_48 : i32 to index
    %c0_51 = arith.constant 0 : index
    %c0_52 = arith.constant 0 : index
    %91 = vector.load %arg30[%90, %c0_51, %c0_52] : memref<2x8x16xf32, #tpu.memory_space<vmem>>, vector<1x8x16xf32>
    %92 = vector.shape_cast %91 : vector<1x8x16xf32> to vector<8x16xf32>
    %93 = arith.index_cast %c0_i32_48 : i32 to index
    %c0_53 = arith.constant 0 : index
    %c0_54 = arith.constant 0 : index
    %94 = vector.load %arg31[%93, %c0_53, %c0_54] : memref<2x8x16xf32, #tpu.memory_space<vmem>>, vector<1x8x16xf32>
    %95 = vector.shape_cast %94 : vector<1x8x16xf32> to vector<8x16xf32>
    %96 = arith.index_cast %c0_i32_48 : i32 to index
    %c0_55 = arith.constant 0 : index
    %c0_56 = arith.constant 0 : index
    %97 = vector.load %arg26[%96, %c0_55, %c0_56] : memref<2x16x16xf32, #tpu.memory_space<vmem>>, vector<1x16x16xf32>
    %98 = vector.shape_cast %97 : vector<1x16x16xf32> to vector<16x16xf32>
    %cst_57 = arith.constant dense<0.000000e+00> : vector<8x8xf32>
    %99 = tpu.matmul %89, %92, %cst_57 {dimension_numbers = #tpu.dot_dimension_numbers<[1], [1], [0], [0], [0, 0, 1, 0], [], []>} : vector<8x16xf32>, vector<8x16xf32>, vector<8x8xf32> -> vector<8x8xf32>
    %100 = arith.index_cast %c0_i32_48 : i32 to index
    %c0_58 = arith.constant 0 : index
    %c0_59 = arith.constant 0 : index
    %101 = vector.load %arg16[%100, %c0_58, %c0_59] : memref<2x8x8xbf16, #tpu.memory_space<vmem>>, vector<1x8x8xbf16>
    %102 = vector.shape_cast %101 : vector<1x8x8xbf16> to vector<8x8xbf16>
    %103 = arith.extf %102 : vector<8x8xbf16> to vector<8x8xf32>
    %104 = arith.mulf %99, %103 : vector<8x8xf32>
    %105 = arith.index_cast %c0_i32_48 : i32 to index
    %c0_60 = arith.constant 0 : index
    %c0_61 = arith.constant 0 : index
    %106 = vector.load %arg18[%105, %c0_60, %c0_61] : memref<2x8x1xf32, #tpu.memory_space<vmem>>, vector<1x8x1xf32>
    %107 = vector.shape_cast %106 : vector<1x8x1xf32> to vector<8x1xf32>
    %108 = vector.broadcast %107 : vector<8x1xf32> to vector<8x16xf32>
    %109 = arith.mulf %89, %108 : vector<8x16xf32>
    %110 = tpu.concatenate %104, %109 in 1 : vector<8x8xf32>, vector<8x16xf32> -> vector<8x24xf32>
    %111 = tpu.concatenate %95, %98 in 0 : vector<8x16xf32>, vector<16x16xf32> -> vector<24x16xf32>
    %cst_62 = arith.constant dense<0.000000e+00> : vector<8x16xf32>
    %112 = tpu.matmul %110, %111, %cst_62 {dimension_numbers = #tpu.dot_dimension_numbers<[1], [0], [0], [1], [0, 0, 1, 1], [], []>} : vector<8x24xf32>, vector<24x16xf32>, vector<8x16xf32> -> vector<8x16xf32>
    %113 = arith.index_cast %c0_i32_48 : i32 to index
    %c0_63 = arith.constant 0 : index
    %c0_64 = arith.constant 0 : index
    %114 = vector.load %arg19[%113, %c0_63, %c0_64] : memref<2x1x1xf32, #tpu.memory_space<vmem>>, vector<1x1x1xf32>
    %115 = vector.shape_cast %114 : vector<1x1x1xf32> to vector<1x1xf32>
    %116 = vector.broadcast %115 : vector<1x1xf32> to vector<16x16xf32>
    %117 = arith.mulf %116, %98 : vector<16x16xf32>
    %118 = arith.index_cast %c0_i32_48 : i32 to index
    %c0_65 = arith.constant 0 : index
    %c0_66 = arith.constant 0 : index
    %119 = vector.load %arg17[%118, %c0_65, %c0_66] : memref<2x8x1xf32, #tpu.memory_space<vmem>>, vector<1x8x1xf32>
    %120 = vector.shape_cast %119 : vector<1x8x1xf32> to vector<8x1xf32>
    %121 = vector.broadcast %120 : vector<8x1xf32> to vector<8x16xf32>
    %122 = arith.mulf %92, %121 : vector<8x16xf32>
    %cst_67 = arith.constant dense<0.000000e+00> : vector<16x16xf32>
    %123 = tpu.matmul %122, %95, %cst_67 {dimension_numbers = #tpu.dot_dimension_numbers<[0], [0], [1], [1], [0, 1, 1, 1], [], []>} : vector<8x16xf32>, vector<8x16xf32>, vector<16x16xf32> -> vector<16x16xf32>
    %124 = arith.addf %117, %123 : vector<16x16xf32>
    %125 = arith.index_cast %c0_i32_48 : i32 to index
    %c0_68 = arith.constant 0 : index
    %c0_69 = arith.constant 0 : index
    %126 = vector.load %arg26[%125, %c0_68, %c0_69] : memref<2x16x16xf32, #tpu.memory_space<vmem>>, vector<1x16x16xf32>
    %127 = vector.shape_cast %126 : vector<1x16x16xf32> to vector<16x16xf32>
    %128 = vector.shape_cast %124 : vector<16x16xf32> to vector<1x16x16xf32>
    tpu.vector_store %arg26[%125, %c0_68, %c0_69], %128 {strides = array<i32>} : memref<2x16x16xf32, #tpu.memory_space<vmem>>, vector<1x16x16xf32>,
    %cst_70 = arith.constant 2.500000e-01 : f32
    %129 = vector.broadcast %cst_70 : f32 to vector<8x16xf32>
    %130 = arith.mulf %112, %129 : vector<8x16xf32>
    %cst_71 = arith.constant dense<0.000000e+00> : vector<8xf32>
    %131 = vector.multi_reduction <add>, %130, %cst_71 [1] : vector<8x16xf32> to vector<8xf32>
    %132 = vector.shape_cast %131 : vector<8xf32> to vector<8x1xf32>
    %cst_72 = arith.constant 1.600000e+01 : f32
    %133 = vector.broadcast %cst_72 : f32 to vector<8x1xf32>
    %134 = arith.divf %132, %133 : vector<8x1xf32>
    %135 = vector.broadcast %134 : vector<8x1xf32> to vector<8x16xf32>
    %136 = arith.subf %130, %135 : vector<8x16xf32>
    %137 = arith.mulf %136, %136 : vector<8x16xf32>
    %cst_73 = arith.constant dense<0.000000e+00> : vector<8xf32>
    %138 = vector.multi_reduction <add>, %137, %cst_73 [1] : vector<8x16xf32> to vector<8xf32>
    %139 = vector.shape_cast %138 : vector<8xf32> to vector<8x1xf32>
    %cst_74 = arith.constant 1.600000e+01 : f32
    %140 = vector.broadcast %cst_74 : f32 to vector<8x1xf32>
    %141 = arith.divf %139, %140 : vector<8x1xf32>
    %142 = vector.broadcast %134 : vector<8x1xf32> to vector<8x16xf32>
    %143 = arith.subf %130, %142 : vector<8x16xf32>
    %cst_75 = arith.constant 9.99999974E-6 : f32
    %144 = vector.broadcast %cst_75 : f32 to vector<8x1xf32>
    %145 = arith.addf %141, %144 : vector<8x1xf32>
    %146 = math.rsqrt %145 : vector<8x1xf32>
    %147 = vector.broadcast %146 : vector<8x1xf32> to vector<8x16xf32>
    %148 = arith.mulf %143, %147 : vector<8x16xf32>
    %149 = arith.index_cast %c0_i32_48 : i32 to index
    %c0_76 = arith.constant 0 : index
    %c0_77 = arith.constant 0 : index
    %150 = vector.load %arg14[%149, %c0_76, %c0_77] : memref<2x1x16xf32, #tpu.memory_space<vmem>>, vector<1x1x16xf32>
    %151 = vector.shape_cast %150 : vector<1x1x16xf32> to vector<1x16xf32>
    %152 = vector.broadcast %151 : vector<1x16xf32> to vector<8x16xf32>
    %153 = arith.mulf %148, %152 : vector<8x16xf32>
    %154 = arith.index_cast %c0_i32_48 : i32 to index
    %c0_78 = arith.constant 0 : index
    %c0_79 = arith.constant 0 : index
    %155 = vector.load %arg15[%154, %c0_78, %c0_79] : memref<2x1x16xf32, #tpu.memory_space<vmem>>, vector<1x1x16xf32>
    %156 = vector.shape_cast %155 : vector<1x1x16xf32> to vector<1x16xf32>
    %157 = vector.broadcast %156 : vector<1x16xf32> to vector<8x16xf32>
    %158 = arith.addf %153, %157 : vector<8x16xf32>
    %159 = arith.truncf %158 : vector<8x16xf32> to vector<8x16xbf16>
    %160 = arith.index_cast %c0_i32_48 : i32 to index
    %c0_80 = arith.constant 0 : index
    %c0_81 = arith.constant 0 : index
    %161 = vector.load %arg32[%160, %c0_80, %c0_81] : memref<2x8x16xbf16, #tpu.memory_space<vmem>>, vector<1x8x16xbf16>
    %162 = vector.shape_cast %161 : vector<1x8x16xbf16> to vector<8x16xbf16>
    %163 = vector.shape_cast %159 : vector<8x16xbf16> to vector<1x8x16xbf16>
    tpu.vector_store %arg32[%160, %c0_80, %c0_81], %163 {strides = array<i32>} : memref<2x8x16xbf16, #tpu.memory_space<vmem>>, vector<1x8x16xbf16>,
    %c1_i32_82 = arith.constant 1 : i32
    %164 = arith.index_cast %c1_i32_82 : i32 to index
    %c0_83 = arith.constant 0 : index
    %c0_84 = arith.constant 0 : index
    %165 = vector.load %arg29[%164, %c0_83, %c0_84] : memref<2x8x16xf32, #tpu.memory_space<vmem>>, vector<1x8x16xf32>
    %166 = vector.shape_cast %165 : vector<1x8x16xf32> to vector<8x16xf32>
    %167 = arith.index_cast %c1_i32_82 : i32 to index
    %c0_85 = arith.constant 0 : index
    %c0_86 = arith.constant 0 : index
    %168 = vector.load %arg30[%167, %c0_85, %c0_86] : memref<2x8x16xf32, #tpu.memory_space<vmem>>, vector<1x8x16xf32>
    %169 = vector.shape_cast %168 : vector<1x8x16xf32> to vector<8x16xf32>
    %170 = arith.index_cast %c1_i32_82 : i32 to index
    %c0_87 = arith.constant 0 : index
    %c0_88 = arith.constant 0 : index
    %171 = vector.load %arg31[%170, %c0_87, %c0_88] : memref<2x8x16xf32, #tpu.memory_space<vmem>>, vector<1x8x16xf32>
    %172 = vector.shape_cast %171 : vector<1x8x16xf32> to vector<8x16xf32>
    %173 = arith.index_cast %c1_i32_82 : i32 to index
    %c0_89 = arith.constant 0 : index
    %c0_90 = arith.constant 0 : index
    %174 = vector.load %arg26[%173, %c0_89, %c0_90] : memref<2x16x16xf32, #tpu.memory_space<vmem>>, vector<1x16x16xf32>
    %175 = vector.shape_cast %174 : vector<1x16x16xf32> to vector<16x16xf32>
    %cst_91 = arith.constant dense<0.000000e+00> : vector<8x8xf32>
    %176 = tpu.matmul %166, %169, %cst_91 {dimension_numbers = #tpu.dot_dimension_numbers<[1], [1], [0], [0], [0, 0, 1, 0], [], []>} : vector<8x16xf32>, vector<8x16xf32>, vector<8x8xf32> -> vector<8x8xf32>
    %177 = arith.index_cast %c1_i32_82 : i32 to index
    %c0_92 = arith.constant 0 : index
    %c0_93 = arith.constant 0 : index
    %178 = vector.load %arg16[%177, %c0_92, %c0_93] : memref<2x8x8xbf16, #tpu.memory_space<vmem>>, vector<1x8x8xbf16>
    %179 = vector.shape_cast %178 : vector<1x8x8xbf16> to vector<8x8xbf16>
    %180 = arith.extf %179 : vector<8x8xbf16> to vector<8x8xf32>
    %181 = arith.mulf %176, %180 : vector<8x8xf32>
    %182 = arith.index_cast %c1_i32_82 : i32 to index
    %c0_94 = arith.constant 0 : index
    %c0_95 = arith.constant 0 : index
    %183 = vector.load %arg18[%182, %c0_94, %c0_95] : memref<2x8x1xf32, #tpu.memory_space<vmem>>, vector<1x8x1xf32>
    %184 = vector.shape_cast %183 : vector<1x8x1xf32> to vector<8x1xf32>
    %185 = vector.broadcast %184 : vector<8x1xf32> to vector<8x16xf32>
    %186 = arith.mulf %166, %185 : vector<8x16xf32>
    %187 = tpu.concatenate %181, %186 in 1 : vector<8x8xf32>, vector<8x16xf32> -> vector<8x24xf32>
    %188 = tpu.concatenate %172, %175 in 0 : vector<8x16xf32>, vector<16x16xf32> -> vector<24x16xf32>
    %cst_96 = arith.constant dense<0.000000e+00> : vector<8x16xf32>
    %189 = tpu.matmul %187, %188, %cst_96 {dimension_numbers = #tpu.dot_dimension_numbers<[1], [0], [0], [1], [0, 0, 1, 1], [], []>} : vector<8x24xf32>, vector<24x16xf32>, vector<8x16xf32> -> vector<8x16xf32>
    %190 = arith.index_cast %c1_i32_82 : i32 to index
    %c0_97 = arith.constant 0 : index
    %c0_98 = arith.constant 0 : index
    %191 = vector.load %arg19[%190, %c0_97, %c0_98] : memref<2x1x1xf32, #tpu.memory_space<vmem>>, vector<1x1x1xf32>
    %192 = vector.shape_cast %191 : vector<1x1x1xf32> to vector<1x1xf32>
    %193 = vector.broadcast %192 : vector<1x1xf32> to vector<16x16xf32>
    %194 = arith.mulf %193, %175 : vector<16x16xf32>
    %195 = arith.index_cast %c1_i32_82 : i32 to index
    %c0_99 = arith.constant 0 : index
    %c0_100 = arith.constant 0 : index
    %196 = vector.load %arg17[%195, %c0_99, %c0_100] : memref<2x8x1xf32, #tpu.memory_space<vmem>>, vector<1x8x1xf32>
    %197 = vector.shape_cast %196 : vector<1x8x1xf32> to vector<8x1xf32>
    %198 = vector.broadcast %197 : vector<8x1xf32> to vector<8x16xf32>
    %199 = arith.mulf %169, %198 : vector<8x16xf32>
    %cst_101 = arith.constant dense<0.000000e+00> : vector<16x16xf32>
    %200 = tpu.matmul %199, %172, %cst_101 {dimension_numbers = #tpu.dot_dimension_numbers<[0], [0], [1], [1], [0, 1, 1, 1], [], []>} : vector<8x16xf32>, vector<8x16xf32>, vector<16x16xf32> -> vector<16x16xf32>
    %201 = arith.addf %194, %200 : vector<16x16xf32>
    %202 = arith.index_cast %c1_i32_82 : i32 to index
    %c0_102 = arith.constant 0 : index
    %c0_103 = arith.constant 0 : index
    %203 = vector.load %arg26[%202, %c0_102, %c0_103] : memref<2x16x16xf32, #tpu.memory_space<vmem>>, vector<1x16x16xf32>
    %204 = vector.shape_cast %203 : vector<1x16x16xf32> to vector<16x16xf32>
    %205 = vector.shape_cast %201 : vector<16x16xf32> to vector<1x16x16xf32>
    tpu.vector_store %arg26[%202, %c0_102, %c0_103], %205 {strides = array<i32>} : memref<2x16x16xf32, #tpu.memory_space<vmem>>, vector<1x16x16xf32>,
    %cst_104 = arith.constant 2.500000e-01 : f32
    %206 = vector.broadcast %cst_104 : f32 to vector<8x16xf32>
    %207 = arith.mulf %189, %206 : vector<8x16xf32>
    %cst_105 = arith.constant dense<0.000000e+00> : vector<8xf32>
    %208 = vector.multi_reduction <add>, %207, %cst_105 [1] : vector<8x16xf32> to vector<8xf32>
    %209 = vector.shape_cast %208 : vector<8xf32> to vector<8x1xf32>
    %cst_106 = arith.constant 1.600000e+01 : f32
    %210 = vector.broadcast %cst_106 : f32 to vector<8x1xf32>
    %211 = arith.divf %209, %210 : vector<8x1xf32>
    %212 = vector.broadcast %211 : vector<8x1xf32> to vector<8x16xf32>
    %213 = arith.subf %207, %212 : vector<8x16xf32>
    %214 = arith.mulf %213, %213 : vector<8x16xf32>
    %cst_107 = arith.constant dense<0.000000e+00> : vector<8xf32>
    %215 = vector.multi_reduction <add>, %214, %cst_107 [1] : vector<8x16xf32> to vector<8xf32>
    %216 = vector.shape_cast %215 : vector<8xf32> to vector<8x1xf32>
    %cst_108 = arith.constant 1.600000e+01 : f32
    %217 = vector.broadcast %cst_108 : f32 to vector<8x1xf32>
    %218 = arith.divf %216, %217 : vector<8x1xf32>
    %219 = vector.broadcast %211 : vector<8x1xf32> to vector<8x16xf32>
    %220 = arith.subf %207, %219 : vector<8x16xf32>
    %cst_109 = arith.constant 9.99999974E-6 : f32
    %221 = vector.broadcast %cst_109 : f32 to vector<8x1xf32>
    %222 = arith.addf %218, %221 : vector<8x1xf32>
    %223 = math.rsqrt %222 : vector<8x1xf32>
    %224 = vector.broadcast %223 : vector<8x1xf32> to vector<8x16xf32>
    %225 = arith.mulf %220, %224 : vector<8x16xf32>
    %226 = arith.index_cast %c1_i32_82 : i32 to index
    %c0_110 = arith.constant 0 : index
    %c0_111 = arith.constant 0 : index
    %227 = vector.load %arg14[%226, %c0_110, %c0_111] : memref<2x1x16xf32, #tpu.memory_space<vmem>>, vector<1x1x16xf32>
    %228 = vector.shape_cast %227 : vector<1x1x16xf32> to vector<1x16xf32>
    %229 = vector.broadcast %228 : vector<1x16xf32> to vector<8x16xf32>
    %230 = arith.mulf %225, %229 : vector<8x16xf32>
    %231 = arith.index_cast %c1_i32_82 : i32 to index
    %c0_112 = arith.constant 0 : index
    %c0_113 = arith.constant 0 : index
    %232 = vector.load %arg15[%231, %c0_112, %c0_113] : memref<2x1x16xf32, #tpu.memory_space<vmem>>, vector<1x1x16xf32>
    %233 = vector.shape_cast %232 : vector<1x1x16xf32> to vector<1x16xf32>
    %234 = vector.broadcast %233 : vector<1x16xf32> to vector<8x16xf32>
    %235 = arith.addf %230, %234 : vector<8x16xf32>
    %236 = arith.truncf %235 : vector<8x16xf32> to vector<8x16xbf16>
    %237 = arith.index_cast %c1_i32_82 : i32 to index
    %c0_114 = arith.constant 0 : index
    %c0_115 = arith.constant 0 : index
    %238 = vector.load %arg32[%237, %c0_114, %c0_115] : memref<2x8x16xbf16, #tpu.memory_space<vmem>>, vector<1x8x16xbf16>
    %239 = vector.shape_cast %238 : vector<1x8x16xbf16> to vector<8x16xbf16>
    %240 = vector.shape_cast %236 : vector<8x16xbf16> to vector<1x8x16xbf16>
    tpu.vector_store %arg32[%237, %c0_114, %c0_115], %240 {strides = array<i32>} : memref<2x8x16xbf16, #tpu.memory_space<vmem>>, vector<1x8x16xbf16>,
    %c2_i32 = arith.constant 2 : i32
    %c0_116 = arith.constant 0 : index
    %c0_117 = arith.constant 0 : index
    %c0_118 = arith.constant 0 : index
    %241 = vector.load %arg32[%c0_116, %c0_117, %c0_118] : memref<2x8x16xbf16, #tpu.memory_space<vmem>>, vector<1x8x16xbf16>
    %242 = vector.shape_cast %241 : vector<1x8x16xbf16> to vector<8x16xbf16>
    %c1_119 = arith.constant 1 : index
    %c0_120 = arith.constant 0 : index
    %c0_121 = arith.constant 0 : index
    %243 = vector.load %arg32[%c1_119, %c0_120, %c0_121] : memref<2x8x16xbf16, #tpu.memory_space<vmem>>, vector<1x8x16xbf16>
    %244 = vector.shape_cast %243 : vector<1x8x16xbf16> to vector<8x16xbf16>
    %245 = tpu.concatenate %242, %244 in 1 : vector<8x16xbf16>, vector<8x16xbf16> -> vector<8x32xbf16>
    %c0_122 = arith.constant 0 : index
    %c0_123 = arith.constant 0 : index
    %246 = vector.load %arg13[%c0_122, %c0_123] : memref<32x32xbf16, #tpu.memory_space<vmem>>, vector<32x32xbf16>
    %cst_124 = arith.constant dense<0.000000e+00> : vector<8x32xf32>
    %247 = tpu.matmul %245, %246, %cst_124 {dimension_numbers = #tpu.dot_dimension_numbers<[1], [0], [0], [1], [0, 0, 1, 1], [], []>} : vector<8x32xbf16>, vector<32x32xbf16>, vector<8x32xf32> -> vector<8x32xf32>
    %248 = arith.addf %4, %247 : vector<8x32xf32>
    %c0_125 = arith.constant 0 : index
    %c0_126 = arith.constant 0 : index
    %249 = vector.load %arg5[%c0_125, %c0_126] : memref<1x32xf32, #tpu.memory_space<vmem>>, vector<1x32xf32>
    %c0_127 = arith.constant 0 : index
    %c0_128 = arith.constant 0 : index
    %250 = vector.load %arg6[%c0_127, %c0_128] : memref<1x32xf32, #tpu.memory_space<vmem>>, vector<1x32xf32>
    %cst_129 = arith.constant dense<0.000000e+00> : vector<8xf32>
    %251 = vector.multi_reduction <add>, %248, %cst_129 [1] : vector<8x32xf32> to vector<8xf32>
    %252 = vector.shape_cast %251 : vector<8xf32> to vector<8x1xf32>
    %cst_130 = arith.constant 3.200000e+01 : f32
    %253 = vector.broadcast %cst_130 : f32 to vector<8x1xf32>
    %254 = arith.divf %252, %253 : vector<8x1xf32>
    %255 = vector.broadcast %254 : vector<8x1xf32> to vector<8x32xf32>
    %256 = arith.subf %248, %255 : vector<8x32xf32>
    %257 = arith.mulf %256, %256 : vector<8x32xf32>
    %cst_131 = arith.constant dense<0.000000e+00> : vector<8xf32>
    %258 = vector.multi_reduction <add>, %257, %cst_131 [1] : vector<8x32xf32> to vector<8xf32>
    %259 = vector.shape_cast %258 : vector<8xf32> to vector<8x1xf32>
    %cst_132 = arith.constant 3.200000e+01 : f32
    %260 = vector.broadcast %cst_132 : f32 to vector<8x1xf32>
    %261 = arith.divf %259, %260 : vector<8x1xf32>
    %262 = vector.broadcast %254 : vector<8x1xf32> to vector<8x32xf32>
    %263 = arith.subf %248, %262 : vector<8x32xf32>
    %cst_133 = arith.constant 9.99999974E-6 : f32
    %264 = vector.broadcast %cst_133 : f32 to vector<8x1xf32>
    %265 = arith.addf %261, %264 : vector<8x1xf32>
    %266 = math.rsqrt %265 : vector<8x1xf32>
    %267 = vector.broadcast %266 : vector<8x1xf32> to vector<8x32xf32>
    %268 = arith.mulf %263, %267 : vector<8x32xf32>
    %269 = vector.broadcast %249 : vector<1x32xf32> to vector<8x32xf32>
    %270 = arith.mulf %268, %269 : vector<8x32xf32>
    %271 = vector.broadcast %250 : vector<1x32xf32> to vector<8x32xf32>
    %272 = arith.addf %270, %271 : vector<8x32xf32>
    %c0_134 = arith.constant 0 : index
    %c0_135 = arith.constant 0 : index
    %273 = vector.load %arg28[%c0_134, %c0_135] : memref<1x32xf32, #tpu.memory_space<vmem>>, vector<1x32xf32>
    %c1_i32_136 = arith.constant 1 : i32
    %274 = tpu.dynamic_rotate %272 by %c1_i32_136 dim 0 : vector<8x32xf32>, i32 -> vector<8x32xf32>
    %275 = vector.shape_cast %7 : vector<8x1xi1> to vector<8x1xi1>
    %276 = vector.broadcast %275 : vector<8x1xi1> to vector<8x32xi1>
    %277 = vector.shape_cast %273 : vector<1x32xf32> to vector<1x32xf32>
    %278 = vector.broadcast %277 : vector<1x32xf32> to vector<8x32xf32>
    %279 = arith.select %276, %278, %274 : vector<8x32xi1>, vector<8x32xf32>
    %280 = vector.extract_strided_slice %272 {offsets = [7, 0], sizes = [1, 32], strides = [1, 1]} : vector<8x32xf32> to vector<1x32xf32>
    %c0_137 = arith.constant 0 : index
    %c0_138 = arith.constant 0 : index
    %281 = vector.load %arg28[%c0_137, %c0_138] : memref<1x32xf32, #tpu.memory_space<vmem>>, vector<1x32xf32>
    tpu.vector_store %arg28[%c0_137, %c0_138], %280 {strides = array<i32>} : memref<1x32xf32, #tpu.memory_space<vmem>>, vector<1x32xf32>,
    %282 = arith.subf %272, %279 : vector<8x32xf32>
    %c0_139 = arith.constant 0 : index
    %c0_140 = arith.constant 0 : index
    %283 = vector.load %arg20[%c0_139, %c0_140] : memref<1x32xf32, #tpu.memory_space<vmem>>, vector<1x32xf32>
    %284 = vector.broadcast %283 : vector<1x32xf32> to vector<8x32xf32>
    %285 = arith.mulf %284, %282 : vector<8x32xf32>
    %286 = arith.addf %279, %285 : vector<8x32xf32>
    %287 = arith.truncf %286 : vector<8x32xf32> to vector<8x32xbf16>
    %c0_141 = arith.constant 0 : index
    %c0_142 = arith.constant 0 : index
    %288 = vector.load %arg21[%c0_141, %c0_142] : memref<1x32xf32, #tpu.memory_space<vmem>>, vector<1x32xf32>
    %289 = vector.broadcast %288 : vector<1x32xf32> to vector<8x32xf32>
    %290 = arith.mulf %289, %282 : vector<8x32xf32>
    %291 = arith.addf %279, %290 : vector<8x32xf32>
    %292 = arith.truncf %291 : vector<8x32xf32> to vector<8x32xbf16>
    %c0_143 = arith.constant 0 : index
    %c0_144 = arith.constant 0 : index
    %293 = vector.load %arg22[%c0_143, %c0_144] : memref<32x64xbf16, #tpu.memory_space<vmem>>, vector<32x64xbf16>
    %cst_145 = arith.constant dense<0.000000e+00> : vector<8x64xf32>
    %294 = tpu.matmul %287, %293, %cst_145 {dimension_numbers = #tpu.dot_dimension_numbers<[1], [0], [0], [1], [0, 0, 1, 1], [], []>} : vector<8x32xbf16>, vector<32x64xbf16>, vector<8x64xf32> -> vector<8x64xf32>
    %cst_146 = arith.constant 0.000000e+00 : f32
    %295 = vector.broadcast %cst_146 : f32 to vector<8x64xf32>
    %296 = arith.maximumf %294, %295 : vector<8x64xf32>
    %297 = arith.mulf %296, %296 : vector<8x64xf32>
    %298 = arith.truncf %297 : vector<8x64xf32> to vector<8x64xbf16>
    %c0_147 = arith.constant 0 : index
    %c0_148 = arith.constant 0 : index
    %299 = vector.load %arg23[%c0_147, %c0_148] : memref<64x32xbf16, #tpu.memory_space<vmem>>, vector<64x32xbf16>
    %cst_149 = arith.constant dense<0.000000e+00> : vector<8x32xf32>
    %300 = tpu.matmul %298, %299, %cst_149 {dimension_numbers = #tpu.dot_dimension_numbers<[1], [0], [0], [1], [0, 0, 1, 1], [], []>} : vector<8x64xbf16>, vector<64x32xbf16>, vector<8x32xf32> -> vector<8x32xf32>
    %c0_150 = arith.constant 0 : index
    %c0_151 = arith.constant 0 : index
    %301 = vector.load %arg24[%c0_150, %c0_151] : memref<32x32xbf16, #tpu.memory_space<vmem>>, vector<32x32xbf16>
    %cst_152 = arith.constant dense<0.000000e+00> : vector<8x32xf32>
    %302 = tpu.matmul %292, %301, %cst_152 {dimension_numbers = #tpu.dot_dimension_numbers<[1], [0], [0], [1], [0, 0, 1, 1], [], []>} : vector<8x32xbf16>, vector<32x32xbf16>, vector<8x32xf32> -> vector<8x32xf32>
    %303 = arith.negf %302 : vector<8x32xf32>
    %304 = math.exp %303 : vector<8x32xf32>
    %cst_153 = arith.constant 1.000000e+00 : f32
    %305 = vector.broadcast %cst_153 : f32 to vector<8x32xf32>
    %306 = arith.addf %305, %304 : vector<8x32xf32>
    %307 = arith.divf %305, %306 : vector<8x32xf32>
    %308 = arith.mulf %307, %300 : vector<8x32xf32>
    %309 = arith.addf %248, %308 : vector<8x32xf32>
    %c0_154 = arith.constant 0 : index
    %c0_155 = arith.constant 0 : index
    %c0_156 = arith.constant 0 : index
    %310 = vector.load %arg25[%c0_154, %c0_155, %c0_156] : memref<1x8x32xf32, #tpu.memory_space<vmem>>, vector<1x8x32xf32>
    %311 = vector.shape_cast %310 : vector<1x8x32xf32> to vector<8x32xf32>
    %312 = vector.shape_cast %309 : vector<8x32xf32> to vector<1x8x32xf32>
    tpu.vector_store %arg25[%c0_154, %c0_155, %c0_156], %312 {strides = array<i32>} : memref<1x8x32xf32, #tpu.memory_space<vmem>>, vector<1x8x32xf32>,
    return
  }
  func.func @transform_0(%arg0: i32, %arg1: i32) -> (i32, i32, i32) {
    %c0_i32 = arith.constant 0 : i32
    %c0_i32_0 = arith.constant 0 : i32
    return %arg0, %arg1, %c0_i32 : i32, i32, i32
  }
  func.func @transform_1(%arg0: i32, %arg1: i32) -> (i32, i32) {
    %c0_i32 = arith.constant 0 : i32
    %c0_i32_0 = arith.constant 0 : i32
    %c0_i32_1 = arith.constant 0 : i32
    return %c0_i32, %c0_i32_0 : i32, i32
  }
  func.func @transform_2(%arg0: i32, %arg1: i32) -> (i32, i32) {
    %c0_i32 = arith.constant 0 : i32
    %c0_i32_0 = arith.constant 0 : i32
    %c0_i32_1 = arith.constant 0 : i32
    return %c0_i32, %c0_i32_0 : i32, i32
  }
  func.func @transform_3(%arg0: i32, %arg1: i32) -> (i32, i32) {
    %c0_i32 = arith.constant 0 : i32
    %c0_i32_0 = arith.constant 0 : i32
    %c0_i32_1 = arith.constant 0 : i32
    return %c0_i32, %c0_i32_0 : i32, i32
  }
  func.func @transform_4(%arg0: i32, %arg1: i32) -> (i32, i32) {
    %c0_i32 = arith.constant 0 : i32
    %c0_i32_0 = arith.constant 0 : i32
    %c0_i32_1 = arith.constant 0 : i32
    return %c0_i32, %c0_i32_0 : i32, i32
  }
  func.func @transform_5(%arg0: i32, %arg1: i32) -> (i32, i32) {
    %c0_i32 = arith.constant 0 : i32
    %c0_i32_0 = arith.constant 0 : i32
    %c0_i32_1 = arith.constant 0 : i32
    return %c0_i32, %c0_i32_0 : i32, i32
  }
  func.func @transform_6(%arg0: i32, %arg1: i32) -> (i32, i32) {
    %c0_i32 = arith.constant 0 : i32
    %c0_i32_0 = arith.constant 0 : i32
    %c0_i32_1 = arith.constant 0 : i32
    return %c0_i32, %c0_i32_0 : i32, i32
  }
  func.func @transform_7(%arg0: i32, %arg1: i32) -> (i32, i32) {
    %c0_i32 = arith.constant 0 : i32
    %c0_i32_0 = arith.constant 0 : i32
    %c0_i32_1 = arith.constant 0 : i32
    return %c0_i32, %c0_i32_0 : i32, i32
  }
  func.func @transform_8(%arg0: i32, %arg1: i32) -> (i32, i32) {
    %c0_i32 = arith.constant 0 : i32
    %c0_i32_0 = arith.constant 0 : i32
    %c0_i32_1 = arith.constant 0 : i32
    return %c0_i32, %c0_i32_0 : i32, i32
  }
  func.func @transform_9(%arg0: i32, %arg1: i32) -> (i32, i32) {
    %c0_i32 = arith.constant 0 : i32
    %c0_i32_0 = arith.constant 0 : i32
    %c0_i32_1 = arith.constant 0 : i32
    return %c0_i32, %c0_i32_0 : i32, i32
  }
  func.func @transform_10(%arg0: i32, %arg1: i32) -> (i32, i32) {
    %c0_i32 = arith.constant 0 : i32
    %c0_i32_0 = arith.constant 0 : i32
    %c0_i32_1 = arith.constant 0 : i32
    return %c0_i32, %c0_i32_0 : i32, i32
  }
  func.func @transform_11(%arg0: i32, %arg1: i32) -> (i32, i32) {
    %c0_i32 = arith.constant 0 : i32
    %c0_i32_0 = arith.constant 0 : i32
    %c0_i32_1 = arith.constant 0 : i32
    return %c0_i32, %c0_i32_0 : i32, i32
  }
  func.func @transform_12(%arg0: i32, %arg1: i32) -> (i32, i32, i32) {
    %c0_i32 = arith.constant 0 : i32
    %c0_i32_0 = arith.constant 0 : i32
    %c0_i32_1 = arith.constant 0 : i32
    %c0_i32_2 = arith.constant 0 : i32
    return %c0_i32, %c0_i32_0, %c0_i32_1 : i32, i32, i32
  }
  func.func @transform_13(%arg0: i32, %arg1: i32) -> (i32, i32, i32) {
    %c0_i32 = arith.constant 0 : i32
    %c0_i32_0 = arith.constant 0 : i32
    %c0_i32_1 = arith.constant 0 : i32
    %c0_i32_2 = arith.constant 0 : i32
    return %c0_i32, %c0_i32_0, %c0_i32_1 : i32, i32, i32
  }
  func.func @transform_14(%arg0: i32, %arg1: i32) -> (i32, i32, i32) {
    %c0_i32 = arith.constant 0 : i32
    %c0_i32_0 = arith.constant 0 : i32
    %c0_i32_1 = arith.constant 0 : i32
    %c0_i32_2 = arith.constant 0 : i32
    return %c0_i32, %c0_i32_0, %c0_i32_1 : i32, i32, i32
  }
  func.func @transform_15(%arg0: i32, %arg1: i32) -> (i32, i32, i32) {
    %c0_i32 = arith.constant 0 : i32
    %c0_i32_0 = arith.constant 0 : i32
    %c0_i32_1 = arith.constant 0 : i32
    %c0_i32_2 = arith.constant 0 : i32
    return %c0_i32, %c0_i32_0, %c0_i32_1 : i32, i32, i32
  }
  func.func @transform_16(%arg0: i32, %arg1: i32) -> (i32, i32, i32) {
    %c0_i32 = arith.constant 0 : i32
    %c0_i32_0 = arith.constant 0 : i32
    %c0_i32_1 = arith.constant 0 : i32
    %c0_i32_2 = arith.constant 0 : i32
    return %c0_i32, %c0_i32_0, %c0_i32_1 : i32, i32, i32
  }
  func.func @transform_17(%arg0: i32, %arg1: i32) -> (i32, i32, i32) {
    %c0_i32 = arith.constant 0 : i32
    %c0_i32_0 = arith.constant 0 : i32
    %c0_i32_1 = arith.constant 0 : i32
    %c0_i32_2 = arith.constant 0 : i32
    return %c0_i32, %c0_i32_0, %c0_i32_1 : i32, i32, i32
  }
  func.func @transform_18(%arg0: i32, %arg1: i32) -> (i32, i32) {
    %c0_i32 = arith.constant 0 : i32
    %c0_i32_0 = arith.constant 0 : i32
    %c0_i32_1 = arith.constant 0 : i32
    return %c0_i32, %c0_i32_0 : i32, i32
  }
  func.func @transform_19(%arg0: i32, %arg1: i32) -> (i32, i32) {
    %c0_i32 = arith.constant 0 : i32
    %c0_i32_0 = arith.constant 0 : i32
    %c0_i32_1 = arith.constant 0 : i32
    return %c0_i32, %c0_i32_0 : i32, i32
  }
  func.func @transform_20(%arg0: i32, %arg1: i32) -> (i32, i32) {
    %c0_i32 = arith.constant 0 : i32
    %c0_i32_0 = arith.constant 0 : i32
    %c0_i32_1 = arith.constant 0 : i32
    return %c0_i32, %c0_i32_0 : i32, i32
  }
  func.func @transform_21(%arg0: i32, %arg1: i32) -> (i32, i32) {
    %c0_i32 = arith.constant 0 : i32
    %c0_i32_0 = arith.constant 0 : i32
    %c0_i32_1 = arith.constant 0 : i32
    return %c0_i32, %c0_i32_0 : i32, i32
  }
  func.func @transform_22(%arg0: i32, %arg1: i32) -> (i32, i32) {
    %c0_i32 = arith.constant 0 : i32
    %c0_i32_0 = arith.constant 0 : i32
    %c0_i32_1 = arith.constant 0 : i32
    return %c0_i32, %c0_i32_0 : i32, i32
  }
  func.func @transform_23(%arg0: i32, %arg1: i32) -> (i32, i32, i32) {
    %c0_i32 = arith.constant 0 : i32
    %c0_i32_0 = arith.constant 0 : i32
    return %arg0, %arg1, %c0_i32 : i32, i32, i32
  }
}

</mosaic_0001>

<llo_original>
// kernel: tpu_custom_call.1
$region0: #{tpu_custom_call.1}
  #allocation0 [shape = 'u32[]', space=smem, size = 0x4, offset = 0x4, fixed_abs, tag = 'smem constant byte address 0x4 - core index']
  #allocation1 [shape = 'u32[144,128]{1,0:T(1,128)}', space=vmem, size = 0x12000, scoped, tag = 'internal scratch']
  #allocation2 [shape = 'f32[2,16,16]{2,1,0:T(8,128)}', space=vmem, size = 0x4000, scoped, tag = 'scratch operand']
  #allocation3 [shape = 'f32[1,32]{1,0:T(1,128)}', space=vmem, size = 0x200, scoped, tag = 'scratch operand']
  #allocation4 [shape = 'f32[1,32]{1,0:T(1,128)}', space=vmem, size = 0x200, scoped, tag = 'scratch operand']
  #allocation5 [shape = 'f32[2,8,16]{2,1,0:T(8,128)}', space=vmem, size = 0x2000, scoped, tag = 'scratch operand']
  #allocation6 [shape = 'f32[2,8,16]{2,1,0:T(8,128)}', space=vmem, size = 0x2000, scoped, tag = 'scratch operand']
  #allocation7 [shape = 'f32[2,8,16]{2,1,0:T(8,128)}', space=vmem, size = 0x2000, scoped, tag = 'scratch operand']
  #allocation8 [shape = 'bf16[2,8,16]{2,1,0:T(8,128)(2,1)}', space=vmem, size = 0x1000, scoped, tag = 'scratch operand']
  %s0 = inlined_call_operand.vmem [shape: f32[2,16,32], index: 0, kind: input, shape index: {}]
  %s1 = inlined_call_operand.hbm [shape: f32[1,32], index: 1, kind: input, shape index: {}]
  %s2 = inlined_call_operand.hbm [shape: f32[1,32], index: 2, kind: input, shape index: {}]
  %s3 = inlined_call_operand.hbm [shape: f32[1,32], index: 3, kind: input, shape index: {}]
  %s4 = inlined_call_operand.hbm [shape: f32[1,32], index: 4, kind: input, shape index: {}]
  %s5 = inlined_call_operand.hbm [shape: f32[1,32], index: 5, kind: input, shape index: {}]
  %s6 = inlined_call_operand.hbm [shape: f32[1,32], index: 6, kind: input, shape index: {}]
  %s7 = inlined_call_operand.hbm [shape: f32[1,32], index: 7, kind: input, shape index: {}]
  %s8 = inlined_call_operand.vmem [shape: bf16[32,32], index: 8, kind: input, shape index: {}]
  %s9 = inlined_call_operand.vmem [shape: bf16[32,32], index: 9, kind: input, shape index: {}]
  %s10 = inlined_call_operand.vmem [shape: bf16[32,32], index: 10, kind: input, shape index: {}]
  %s11 = inlined_call_operand.vmem [shape: bf16[32,32], index: 11, kind: input, shape index: {}]
  %s12 = inlined_call_operand.hbm [shape: f32[2,1,16], index: 12, kind: input, shape index: {}]
  %s13 = inlined_call_operand.hbm [shape: f32[2,1,16], index: 13, kind: input, shape index: {}]
  %s14 = inlined_call_operand.hbm [shape: bf16[2,8,8], index: 14, kind: input, shape index: {}]
  %s15 = inlined_call_operand.vmem [shape: f32[2,8,1], index: 15, kind: input, shape index: {}]
  %s16 = inlined_call_operand.vmem [shape: f32[2,8,1], index: 16, kind: input, shape index: {}]
  %s17 = inlined_call_operand.vmem [shape: f32[2,1,1], index: 17, kind: input, shape index: {}]
  %s18 = inlined_call_operand.vmem [shape: f32[1,32], index: 18, kind: input, shape index: {}]
  %s19 = inlined_call_operand.vmem [shape: f32[1,32], index: 19, kind: input, shape index: {}]
  %s20 = inlined_call_operand.vmem [shape: bf16[32,64], index: 20, kind: input, shape index: {}]
  %s21 = inlined_call_operand.vmem [shape: bf16[64,32], index: 21, kind: input, shape index: {}]
  %s22 = inlined_call_operand.vmem [shape: bf16[32,32], index: 22, kind: input, shape index: {}]
  %s23 = inlined_call_operand.hbm [shape: f32[2,16,32], index: 23, kind: output, shape index: {}]
  %s24 = sld [smem:[#allocation0]]
  $region169: #{tpu_custom_call.1} parent=0
    _
  %s26 = ssub.s32 1, %s24
  %s27 = scalar_select 0, %s26, %s24
  $region1: #{tpu_custom_call.1} parent=0
    #allocation9 [shape = 'u8[512]{0}', space=vmem, size = 0x400, scoped, tag = 'input window, operand 1, single buffered']
    #allocation10 [shape = 's32[2]{0}', space=sflag, size = 0x8, scoped, tag = 'scoped memory for tpu_custom_call.1']
    #allocation11 [shape = 's32[2]{0}', space=sflag, size = 0x8, scoped, tag = 'scoped memory for tpu_custom_call.1']
    #allocation12 [shape = 'u8[512]{0}', space=vmem, size = 0x400, scoped, tag = 'input window, operand 2, single buffered']
    #allocation13 [shape = 's32[1]{0}', space=sflag, size = 0x4, scoped, tag = 'scoped memory for tpu_custom_call.1']
    #allocation14 [shape = 'u8[512]{0}', space=vmem, size = 0x400, scoped, tag = 'input window, operand 3, single buffered']
    #allocation15 [shape = 'u8[512]{0}', space=vmem, size = 0x400, scoped, tag = 'input window, operand 4, single buffered']
    #allocation16 [shape = 's32[1]{0}', space=sflag, size = 0x4, scoped, tag = 'scoped memory for tpu_custom_call.1']
    #allocation17 [shape = 'u8[512]{0}', space=vmem, size = 0x400, scoped, tag = 'input window, operand 5, single buffered']
    #allocation18 [shape = 'u8[512]{0}', space=vmem, size = 0x400, scoped, tag = 'input window, operand 6, single buffered']
    #allocation19 [shape = 's32[1]{0}', space=sflag, size = 0x4, scoped, tag = 'scoped memory for tpu_custom_call.1']
    #allocation20 [shape = 'u8[512]{0}', space=vmem, size = 0x400, scoped, tag = 'input window, operand 7, single buffered']
    #allocation21 [shape = 'u8[1024]{0}', space=vmem, size = 0x400, scoped, tag = 'input window, operand 12, single buffered']
    #allocation22 [shape = 's32[1]{0}', space=sflag, size = 0x4, scoped, tag = 'scoped memory for tpu_custom_call.1']
    #allocation23 [shape = 'u8[1024]{0}', space=vmem, size = 0x400, scoped, tag = 'input window, operand 13, single buffered']
    #allocation24 [shape = 'u8[4096]{0}', space=vmem, size = 0x1000, scoped, tag = 'input window, operand 14, single buffered']
    #allocation25 [shape = 's32[1]{0}', space=sflag, size = 0x4, scoped, tag = 'scoped memory for tpu_custom_call.1']
    #allocation26 [shape = 'u8[8192]{0}', space=vmem, size = 0x2000, scoped, tag = 'output window, operand 0']
    %28 = vsyncpa [#allocation10], 0
    %29 = vsyncpa [#allocation13], 0
    %30 = vsyncpa [#allocation16], 0
    %31 = vsyncpa [#allocation19], 0
    %32 = vsyncpa [#allocation22], 0
    %33 = vsyncpa [#allocation25], 0
    %34 = vsyncpa [#allocation11], 0
    %s35 = scalar_lea.sflag [#allocation11], 1
    %36 = vsyncpa %s35, 0
    loop: start=0, step=1, limit=6
    $region2: #{tpu_custom_call.1} parent=1 // loop_pre_header
      _
    $region3: #{tpu_custom_call.1} parent=1 // loop_header
      %s38 = sphi 0, %s42
      %p39 = scmp.ge.s32.totalorder %s38, 6
      %s45 = sphi 0, %s57
      %s46 = sphi 0, %s53
      %s47 = sphi 0, %s45
      %s48 = sphi 0, %s46
      %s49 = sphi 0, %s47
      %s50 = sphi 0, %s48
      %s62 = sphi 0, %s64
      %s65 = sphi 0, %s62
      %s66 = sphi 0, %s65
      %s82 = sphi 0, %s66
      %s86 = sphi 0, %s86
      %s88 = sphi 0, %s86
      %s89 = sphi 0, %s88
      %s103 = sphi 0, %s89
      %s107 = sphi 0, %s107
      %s109 = sphi 0, %s107
      %s110 = sphi 0, %s109
      %s124 = sphi 0, %s110
      %s128 = sphi 0, %s128
      %s130 = sphi 0, %s128
      %s131 = sphi 0, %s130
      %s145 = sphi 0, %s131
      %s149 = sphi 0, %s149
      %s151 = sphi 0, %s149
      %s152 = sphi 0, %s151
      %s166 = sphi 0, %s152
      %s170 = sphi 0, %s170
      %s172 = sphi 0, %s170
      %s173 = sphi 0, %s172
      %s187 = sphi 0, %s173
      %s191 = sphi 0, %s191
      %s193 = sphi 0, %s191
      %s194 = sphi 0, %s193
      %s208 = sphi 0, %s194
      %s212 = sphi 0, %s212
      %s214 = sphi 0, %s212
      %s215 = sphi 0, %s214
      %s229 = sphi 0, %s215
      %s233 = sphi 0, %s233
      %s235 = sphi 0, %s233
      %s236 = sphi 0, %s235
      %s250 = sphi 0, %s236
      %s254 = sphi 0, %s254
      %s256 = sphi 0, %s254
      %s257 = sphi 0, %s256
      %s271 = sphi 0, %s257
      %s275 = sphi 0, %s275
      %s277 = sphi 0, %s275
      %s278 = sphi 0, %s277
      %s292 = sphi 0, %s278
      %s296 = sphi 0, %s296
      %s298 = sphi 0, %s296
      %s299 = sphi 0, %s298
      %s313 = sphi 0, %s299
      %s317 = sphi 0, %s317
      %s319 = sphi 0, %s317
      %s320 = sphi 0, %s319
      %s334 = sphi 0, %s320
      %s338 = sphi 0, %s338
      %s340 = sphi 0, %s338
      %s341 = sphi 0, %s340
      %s355 = sphi 0, %s341
      %s359 = sphi 0, %s359
      %s361 = sphi 0, %s359
      %s362 = sphi 0, %s361
      %s376 = sphi 0, %s362
      %s380 = sphi 0, %s380
      %s382 = sphi 0, %s380
      %s383 = sphi 0, %s382
      %s397 = sphi 0, %s383
      %s401 = sphi 0, %s401
      %s403 = sphi 0, %s401
      %s404 = sphi 0, %s403
      %s418 = sphi 0, %s404
      %s422 = sphi 0, %s422
      %s424 = sphi 0, %s422
      %s425 = sphi 0, %s424
      %s439 = sphi 0, %s425
      %s443 = sphi 0, %s443
      %s445 = sphi 0, %s443
      %s446 = sphi 0, %s445
      %s460 = sphi 0, %s446
      %s464 = sphi 0, %s464
      %s466 = sphi 0, %s464
      %s467 = sphi 0, %s466
      %s481 = sphi 0, %s467
      %s485 = sphi 0, %s485
      %s487 = sphi 0, %s485
      %s488 = sphi 0, %s487
      %s502 = sphi 0, %s488
      %s506 = sphi 0, %s506
      %s508 = sphi 0, %s506
      %s509 = sphi 0, %s508
      %s523 = sphi 0, %s509
      %s527 = sphi 0, %s527
      %s529 = sphi 0, %s527
      %s530 = sphi 0, %s529
      %s544 = sphi 0, %s530
      %s552 = sphi 0, %s554
      %s555 = sphi 0, %s552
      %s556 = sphi 0, %s555
      %s572 = sphi 0, %s556
    $region4: #{tpu_custom_call.1} parent=1 // loop_header_branch
      %41 = sbr.rel (%p39) target = $region8
    $region5: #{tpu_custom_call.1} parent=1 // loop_body
      %s43 = ssub.s32 %s38, 1
      %s44 = ssub.s32 %s38, 2
      %s51 = sadd.s32 1, %s46
      %p52 = scmp.ge.s32.totalorder %s51, 2
      %s53 = scalar_select %p52, 0, %s51
      %s54 = sadd.s32 1, %s45
      %s55 = scalar_select %p52, %s54, %s45
      %p56 = scmp.ge.s32.totalorder %s55, 2
      %s57 = scalar_select %p56, 0, %s55
      %s58 = ssub.s32 %s45, %s57
      %s59 = ssub.s32 %s46, %s53
      %s60 = sor.u32 %s58, %s59
      %p61 = scmp.eq.s32.totalorder %s60, 0
      %s63 = sadd.s32 %s62, 1
      %s64 = scalar_select %p61, %s62, %s63
      %p67 = pneg %p61
      %p68 = scmp.eq.s32.totalorder %s38, 3
      %p69 = por %p67, %p68
      %p70 = scmp.ne.s32.totalorder %s62, %s65
      %p71 = scmp.eq.s32.totalorder %s38, 0
      %p72 = por %p70, %p71
      %p73 = scmp.ne.s32.totalorder %s62, %s65
      %p74 = scmp.eq.s32.totalorder %s43, 3
      %p75 = por %p73, %p74
      %p76 = scmp.ne.s32.totalorder %s65, %s66
      %p77 = scmp.eq.s32.totalorder %s43, 0
      %p78 = por %p76, %p77
      %p79 = scmp.ne.s32.totalorder %s65, %s66
      %p80 = scmp.eq.s32.totalorder %s44, 3
      %p81 = por %p79, %p80
      %p83 = scmp.ne.s32.totalorder %s66, %s82
      %p84 = scmp.eq.s32.totalorder %s44, 0
      %p85 = por %p83, %p84
      %s87 = sadd.s32 %s86, 1
      %p90 = scmp.eq.s32.totalorder %s38, 3
      %p91 = scmp.ne.s32.totalorder %s86, %s88
      %p92 = scmp.eq.s32.totalorder %s38, 0
      %p93 = por %p91, %p92
      %p94 = scmp.ne.s32.totalorder %s86, %s88
      %p95 = scmp.eq.s32.totalorder %s43, 3
      %p96 = por %p94, %p95
      %p97 = scmp.ne.s32.totalorder %s88, %s89
      %p98 = scmp.eq.s32.totalorder %s43, 0
      %p99 = por %p97, %p98
      %p100 = scmp.ne.s32.totalorder %s88, %s89
      %p101 = scmp.eq.s32.totalorder %s44, 3
      %p102 = por %p100, %p101
      %p104 = scmp.ne.s32.totalorder %s89, %s103
      %p105 = scmp.eq.s32.totalorder %s44, 0
      %p106 = por %p104, %p105
      %s108 = sadd.s32 %s107, 1
      %p111 = scmp.eq.s32.totalorder %s38, 3
      %p112 = scmp.ne.s32.totalorder %s107, %s109
      %p113 = scmp.eq.s32.totalorder %s38, 0
      %p114 = por %p112, %p113
      %p115 = scmp.ne.s32.totalorder %s107, %s109
      %p116 = scmp.eq.s32.totalorder %s43, 3
      %p117 = por %p115, %p116
      %p118 = scmp.ne.s32.totalorder %s109, %s110
      %p119 = scmp.eq.s32.totalorder %s43, 0
      %p120 = por %p118, %p119
      %p121 = scmp.ne.s32.totalorder %s109, %s110
      %p122 = scmp.eq.s32.totalorder %s44, 3
      %p123 = por %p121, %p122
      %p125 = scmp.ne.s32.totalorder %s110, %s124
      %p126 = scmp.eq.s32.totalorder %s44, 0
      %p127 = por %p125, %p126
      %s129 = sadd.s32 %s128, 1
      %p132 = scmp.eq.s32.totalorder %s38, 3
      %p133 = scmp.ne.s32.totalorder %s128, %s130
      %p134 = scmp.eq.s32.totalorder %s38, 0
      %p135 = por %p133, %p134
      %p136 = scmp.ne.s32.totalorder %s128, %s130
      %p137 = scmp.eq.s32.totalorder %s43, 3
      %p138 = por %p136, %p137
      %p139 = scmp.ne.s32.totalorder %s130, %s131
      %p140 = scmp.eq.s32.totalorder %s43, 0
      %p141 = por %p139, %p140
      %p142 = scmp.ne.s32.totalorder %s130, %s131
      %p143 = scmp.eq.s32.totalorder %s44, 3
      %p144 = por %p142, %p143
      %p146 = scmp.ne.s32.totalorder %s131, %s145
      %p147 = scmp.eq.s32.totalorder %s44, 0
      %p148 = por %p146, %p147
      %s150 = sadd.s32 %s149, 1
      %p153 = scmp.eq.s32.totalorder %s38, 3
      %p154 = scmp.ne.s32.totalorder %s149, %s151
      %p155 = scmp.eq.s32.totalorder %s38, 0
      %p156 = por %p154, %p155
      %p157 = scmp.ne.s32.totalorder %s149, %s151
      %p158 = scmp.eq.s32.totalorder %s43, 3
      %p159 = por %p157, %p158
      %p160 = scmp.ne.s32.totalorder %s151, %s152
      %p161 = scmp.eq.s32.totalorder %s43, 0
      %p162 = por %p160, %p161
      %p163 = scmp.ne.s32.totalorder %s151, %s152
      %p164 = scmp.eq.s32.totalorder %s44, 3
      %p165 = por %p163, %p164
      %p167 = scmp.ne.s32.totalorder %s152, %s166
      %p168 = scmp.eq.s32.totalorder %s44, 0
      %p169 = por %p167, %p168
      %s171 = sadd.s32 %s170, 1
      %p174 = scmp.eq.s32.totalorder %s38, 3
      %p175 = scmp.ne.s32.totalorder %s170, %s172
      %p176 = scmp.eq.s32.totalorder %s38, 0
      %p177 = por %p175, %p176
      %p178 = scmp.ne.s32.totalorder %s170, %s172
      %p179 = scmp.eq.s32.totalorder %s43, 3
      %p180 = por %p178, %p179
      %p181 = scmp.ne.s32.totalorder %s172, %s173
      %p182 = scmp.eq.s32.totalorder %s43, 0
      %p183 = por %p181, %p182
      %p184 = scmp.ne.s32.totalorder %s172, %s173
      %p185 = scmp.eq.s32.totalorder %s44, 3
      %p186 = por %p184, %p185
      %p188 = scmp.ne.s32.totalorder %s173, %s187
      %p189 = scmp.eq.s32.totalorder %s44, 0
      %p190 = por %p188, %p189
      %s192 = sadd.s32 %s191, 1
      %p195 = scmp.eq.s32.totalorder %s38, 3
      %p196 = scmp.ne.s32.totalorder %s191, %s193
      %p197 = scmp.eq.s32.totalorder %s38, 0
      %p198 = por %p196, %p197
      %p199 = scmp.ne.s32.totalorder %s191, %s193
      %p200 = scmp.eq.s32.totalorder %s43, 3
      %p201 = por %p199, %p200
      %p202 = scmp.ne.s32.totalorder %s193, %s194
      %p203 = scmp.eq.s32.totalorder %s43, 0
      %p204 = por %p202, %p203
      %p205 = scmp.ne.s32.totalorder %s193, %s194
      %p206 = scmp.eq.s32.totalorder %s44, 3
      %p207 = por %p205, %p206
      %p209 = scmp.ne.s32.totalorder %s194, %s208
      %p210 = scmp.eq.s32.totalorder %s44, 0
      %p211 = por %p209, %p210
      %s213 = sadd.s32 %s212, 1
      %p216 = scmp.eq.s32.totalorder %s38, 3
      %p217 = scmp.ne.s32.totalorder %s212, %s214
      %p218 = scmp.eq.s32.totalorder %s38, 0
      %p219 = por %p217, %p218
      %p220 = scmp.ne.s32.totalorder %s212, %s214
      %p221 = scmp.eq.s32.totalorder %s43, 3
      %p222 = por %p220, %p221
      %p223 = scmp.ne.s32.totalorder %s214, %s215
      %p224 = scmp.eq.s32.totalorder %s43, 0
      %p225 = por %p223, %p224
      %p226 = scmp.ne.s32.totalorder %s214, %s215
      %p227 = scmp.eq.s32.totalorder %s44, 3
      %p228 = por %p226, %p227
      %p230 = scmp.ne.s32.totalorder %s215, %s229
      %p231 = scmp.eq.s32.totalorder %s44, 0
      %p232 = por %p230, %p231
      %s234 = sadd.s32 %s233, 1
      %p237 = scmp.eq.s32.totalorder %s38, 3
      %p238 = scmp.ne.s32.totalorder %s233, %s235
      %p239 = scmp.eq.s32.totalorder %s38, 0
      %p240 = por %p238, %p239
      %p241 = scmp.ne.s32.totalorder %s233, %s235
      %p242 = scmp.eq.s32.totalorder %s43, 3
      %p243 = por %p241, %p242
      %p244 = scmp.ne.s32.totalorder %s235, %s236
      %p245 = scmp.eq.s32.totalorder %s43, 0
      %p246 = por %p244, %p245
      %p247 = scmp.ne.s32.totalorder %s235, %s236
      %p248 = scmp.eq.s32.totalorder %s44, 3
      %p249 = por %p247, %p248
      %p251 = scmp.ne.s32.totalorder %s236, %s250
      %p252 = scmp.eq.s32.totalorder %s44, 0
      %p253 = por %p251, %p252
      %s255 = sadd.s32 %s254, 1
      %p258 = scmp.eq.s32.totalorder %s38, 3
      %p259 = scmp.ne.s32.totalorder %s254, %s256
      %p260 = scmp.eq.s32.totalorder %s38, 0
      %p261 = por %p259, %p260
      %p262 = scmp.ne.s32.totalorder %s254, %s256
      %p263 = scmp.eq.s32.totalorder %s43, 3
      %p264 = por %p262, %p263
      %p265 = scmp.ne.s32.totalorder %s256, %s257
      %p266 = scmp.eq.s32.totalorder %s43, 0
      %p267 = por %p265, %p266
      %p268 = scmp.ne.s32.totalorder %s256, %s257
      %p269 = scmp.eq.s32.totalorder %s44, 3
      %p270 = por %p268, %p269
      %p272 = scmp.ne.s32.totalorder %s257, %s271
      %p273 = scmp.eq.s32.totalorder %s44, 0
      %p274 = por %p272, %p273
      %s276 = sadd.s32 %s275, 1
      %p279 = scmp.eq.s32.totalorder %s38, 3
      %p280 = scmp.ne.s32.totalorder %s275, %s277
      %p281 = scmp.eq.s32.totalorder %s38, 0
      %p282 = por %p280, %p281
      %p283 = scmp.ne.s32.totalorder %s275, %s277
      %p284 = scmp.eq.s32.totalorder %s43, 3
      %p285 = por %p283, %p284
      %p286 = scmp.ne.s32.totalorder %s277, %s278
      %p287 = scmp.eq.s32.totalorder %s43, 0
      %p288 = por %p286, %p287
      %p289 = scmp.ne.s32.totalorder %s277, %s278
      %p290 = scmp.eq.s32.totalorder %s44, 3
      %p291 = por %p289, %p290
      %p293 = scmp.ne.s32.totalorder %s278, %s292
      %p294 = scmp.eq.s32.totalorder %s44, 0
      %p295 = por %p293, %p294
      %s297 = sadd.s32 %s296, 1
      %p300 = scmp.eq.s32.totalorder %s38, 3
      %p301 = scmp.ne.s32.totalorder %s296, %s298
      %p302 = scmp.eq.s32.totalorder %s38, 0
      %p303 = por %p301, %p302
      %p304 = scmp.ne.s32.totalorder %s296, %s298
      %p305 = scmp.eq.s32.totalorder %s43, 3
      %p306 = por %p304, %p305
      %p307 = scmp.ne.s32.totalorder %s298, %s299
      %p308 = scmp.eq.s32.totalorder %s43, 0
      %p309 = por %p307, %p308
      %p310 = scmp.ne.s32.totalorder %s298, %s299
      %p311 = scmp.eq.s32.totalorder %s44, 3
      %p312 = por %p310, %p311
      %p314 = scmp.ne.s32.totalorder %s299, %s313
      %p315 = scmp.eq.s32.totalorder %s44, 0
      %p316 = por %p314, %p315
      %s318 = sadd.s32 %s317, 1
      %p321 = scmp.eq.s32.totalorder %s38, 3
      %p322 = scmp.ne.s32.totalorder %s317, %s319
      %p323 = scmp.eq.s32.totalorder %s38, 0
      %p324 = por %p322, %p323
      %p325 = scmp.ne.s32.totalorder %s317, %s319
      %p326 = scmp.eq.s32.totalorder %s43, 3
      %p327 = por %p325, %p326
      %p328 = scmp.ne.s32.totalorder %s319, %s320
      %p329 = scmp.eq.s32.totalorder %s43, 0
      %p330 = por %p328, %p329
      %p331 = scmp.ne.s32.totalorder %s319, %s320
      %p332 = scmp.eq.s32.totalorder %s44, 3
      %p333 = por %p331, %p332
      %p335 = scmp.ne.s32.totalorder %s320, %s334
      %p336 = scmp.eq.s32.totalorder %s44, 0
      %p337 = por %p335, %p336
      %s339 = sadd.s32 %s338, 1
      %p342 = scmp.eq.s32.totalorder %s38, 3
      %p343 = scmp.ne.s32.totalorder %s338, %s340
      %p344 = scmp.eq.s32.totalorder %s38, 0
      %p345 = por %p343, %p344
      %p346 = scmp.ne.s32.totalorder %s338, %s340
      %p347 = scmp.eq.s32.totalorder %s43, 3
      %p348 = por %p346, %p347
      %p349 = scmp.ne.s32.totalorder %s340, %s341
      %p350 = scmp.eq.s32.totalorder %s43, 0
      %p351 = por %p349, %p350
      %p352 = scmp.ne.s32.totalorder %s340, %s341
      %p353 = scmp.eq.s32.totalorder %s44, 3
      %p354 = por %p352, %p353
      %p356 = scmp.ne.s32.totalorder %s341, %s355
      %p357 = scmp.eq.s32.totalorder %s44, 0
      %p358 = por %p356, %p357
      %s360 = sadd.s32 %s359, 1
      %p363 = scmp.eq.s32.totalorder %s38, 3
      %p364 = scmp.ne.s32.totalorder %s359, %s361
      %p365 = scmp.eq.s32.totalorder %s38, 0
      %p366 = por %p364, %p365
      %p367 = scmp.ne.s32.totalorder %s359, %s361
      %p368 = scmp.eq.s32.totalorder %s43, 3
      %p369 = por %p367, %p368
      %p370 = scmp.ne.s32.totalorder %s361, %s362
      %p371 = scmp.eq.s32.totalorder %s43, 0
      %p372 = por %p370, %p371
      %p373 = scmp.ne.s32.totalorder %s361, %s362
      %p374 = scmp.eq.s32.totalorder %s44, 3
      %p375 = por %p373, %p374
      %p377 = scmp.ne.s32.totalorder %s362, %s376
      %p378 = scmp.eq.s32.totalorder %s44, 0
      %p379 = por %p377, %p378
      %s381 = sadd.s32 %s380, 1
      %p384 = scmp.eq.s32.totalorder %s38, 3
      %p385 = scmp.ne.s32.totalorder %s380, %s382
      %p386 = scmp.eq.s32.totalorder %s38, 0
      %p387 = por %p385, %p386
      %p388 = scmp.ne.s32.totalorder %s380, %s382
      %p389 = scmp.eq.s32.totalorder %s43, 3
      %p390 = por %p388, %p389
      %p391 = scmp.ne.s32.totalorder %s382, %s383
      %p392 = scmp.eq.s32.totalorder %s43, 0
      %p393 = por %p391, %p392
      %p394 = scmp.ne.s32.totalorder %s382, %s383
      %p395 = scmp.eq.s32.totalorder %s44, 3
      %p396 = por %p394, %p395
      %p398 = scmp.ne.s32.totalorder %s383, %s397
      %p399 = scmp.eq.s32.totalorder %s44, 0
      %p400 = por %p398, %p399
      %s402 = sadd.s32 %s401, 1
      %p405 = scmp.eq.s32.totalorder %s38, 3
      %p406 = scmp.ne.s32.totalorder %s401, %s403
      %p407 = scmp.eq.s32.totalorder %s38, 0
      %p408 = por %p406, %p407
      %p409 = scmp.ne.s32.totalorder %s401, %s403
      %p410 = scmp.eq.s32.totalorder %s43, 3
      %p411 = por %p409, %p410
      %p412 = scmp.ne.s32.totalorder %s403, %s404
      %p413 = scmp.eq.s32.totalorder %s43, 0
      %p414 = por %p412, %p413
      %p415 = scmp.ne.s32.totalorder %s403, %s404
      %p416 = scmp.eq.s32.totalorder %s44, 3
      %p417 = por %p415, %p416
      %p419 = scmp.ne.s32.totalorder %s404, %s418
      %p420 = scmp.eq.s32.totalorder %s44, 0
      %p421 = por %p419, %p420
      %s423 = sadd.s32 %s422, 1
      %p426 = scmp.eq.s32.totalorder %s38, 3
      %p427 = scmp.ne.s32.totalorder %s422, %s424
      %p428 = scmp.eq.s32.totalorder %s38, 0
      %p429 = por %p427, %p428
      %p430 = scmp.ne.s32.totalorder %s422, %s424
      %p431 = scmp.eq.s32.totalorder %s43, 3
      %p432 = por %p430, %p431
      %p433 = scmp.ne.s32.totalorder %s424, %s425
      %p434 = scmp.eq.s32.totalorder %s43, 0
      %p435 = por %p433, %p434
      %p436 = scmp.ne.s32.totalorder %s424, %s425
      %p437 = scmp.eq.s32.totalorder %s44, 3
      %p438 = por %p436, %p437
      %p440 = scmp.ne.s32.totalorder %s425, %s439
      %p441 = scmp.eq.s32.totalorder %s44, 0
      %p442 = por %p440, %p441
      %s444 = sadd.s32 %s443, 1
      %p447 = scmp.eq.s32.totalorder %s38, 3
      %p448 = scmp.ne.s32.totalorder %s443, %s445
      %p449 = scmp.eq.s32.totalorder %s38, 0
      %p450 = por %p448, %p449
      %p451 = scmp.ne.s32.totalorder %s443, %s445
      %p452 = scmp.eq.s32.totalorder %s43, 3
      %p453 = por %p451, %p452
      %p454 = scmp.ne.s32.totalorder %s445, %s446
      %p455 = scmp.eq.s32.totalorder %s43, 0
      %p456 = por %p454, %p455
      %p457 = scmp.ne.s32.totalorder %s445, %s446
      %p458 = scmp.eq.s32.totalorder %s44, 3
      %p459 = por %p457, %p458
      %p461 = scmp.ne.s32.totalorder %s446, %s460
      %p462 = scmp.eq.s32.totalorder %s44, 0
      %p463 = por %p461, %p462
      %s465 = sadd.s32 %s464, 1
      %p468 = scmp.eq.s32.totalorder %s38, 3
      %p469 = scmp.ne.s32.totalorder %s464, %s466
      %p470 = scmp.eq.s32.totalorder %s38, 0
      %p471 = por %p469, %p470
      %p472 = scmp.ne.s32.totalorder %s464, %s466
      %p473 = scmp.eq.s32.totalorder %s43, 3
      %p474 = por %p472, %p473
      %p475 = scmp.ne.s32.totalorder %s466, %s467
      %p476 = scmp.eq.s32.totalorder %s43, 0
      %p477 = por %p475, %p476
      %p478 = scmp.ne.s32.totalorder %s466, %s467
      %p479 = scmp.eq.s32.totalorder %s44, 3
      %p480 = por %p478, %p479
      %p482 = scmp.ne.s32.totalorder %s467, %s481
      %p483 = scmp.eq.s32.totalorder %s44, 0
      %p484 = por %p482, %p483
      %s486 = sadd.s32 %s485, 1
      %p489 = scmp.eq.s32.totalorder %s38, 3
      %p490 = scmp.ne.s32.totalorder %s485, %s487
      %p491 = scmp.eq.s32.totalorder %s38, 0
      %p492 = por %p490, %p491
      %p493 = scmp.ne.s32.totalorder %s485, %s487
      %p494 = scmp.eq.s32.totalorder %s43, 3
      %p495 = por %p493, %p494
      %p496 = scmp.ne.s32.totalorder %s487, %s488
      %p497 = scmp.eq.s32.totalorder %s43, 0
      %p498 = por %p496, %p497
      %p499 = scmp.ne.s32.totalorder %s487, %s488
      %p500 = scmp.eq.s32.totalorder %s44, 3
      %p501 = por %p499, %p500
      %p503 = scmp.ne.s32.totalorder %s488, %s502
      %p504 = scmp.eq.s32.totalorder %s44, 0
      %p505 = por %p503, %p504
      %s507 = sadd.s32 %s506, 1
      %p510 = scmp.eq.s32.totalorder %s38, 3
      %p511 = scmp.ne.s32.totalorder %s506, %s508
      %p512 = scmp.eq.s32.totalorder %s38, 0
      %p513 = por %p511, %p512
      %p514 = scmp.ne.s32.totalorder %s506, %s508
      %p515 = scmp.eq.s32.totalorder %s43, 3
      %p516 = por %p514, %p515
      %p517 = scmp.ne.s32.totalorder %s508, %s509
      %p518 = scmp.eq.s32.totalorder %s43, 0
      %p519 = por %p517, %p518
      %p520 = scmp.ne.s32.totalorder %s508, %s509
      %p521 = scmp.eq.s32.totalorder %s44, 3
      %p522 = por %p520, %p521
      %p524 = scmp.ne.s32.totalorder %s509, %s523
      %p525 = scmp.eq.s32.totalorder %s44, 0
      %p526 = por %p524, %p525
      %s528 = sadd.s32 %s527, 1
      %p531 = scmp.eq.s32.totalorder %s38, 3
      %p532 = scmp.ne.s32.totalorder %s527, %s529
      %p533 = scmp.eq.s32.totalorder %s38, 0
      %p534 = por %p532, %p533
      %p535 = scmp.ne.s32.totalorder %s527, %s529
      %p536 = scmp.eq.s32.totalorder %s43, 3
      %p537 = por %p535, %p536
      %p538 = scmp.ne.s32.totalorder %s529, %s530
      %p539 = scmp.eq.s32.totalorder %s43, 0
      %p540 = por %p538, %p539
      %p541 = scmp.ne.s32.totalorder %s529, %s530
      %p542 = scmp.eq.s32.totalorder %s44, 3
      %p543 = por %p541, %p542
      %p545 = scmp.ne.s32.totalorder %s530, %s544
      %p546 = scmp.eq.s32.totalorder %s44, 0
      %p547 = por %p545, %p546
      %s548 = ssub.s32 %s45, %s57
      %s549 = ssub.s32 %s46, %s53
      %s550 = sor.u32 %s548, %s549
      %p551 = scmp.eq.s32.totalorder %s550, 0
      %s553 = sadd.s32 %s552, 1
      %s554 = scalar_select %p551, %s552, %s553
      %p557 = pneg %p551
      %p558 = scmp.eq.s32.totalorder %s38, 3
      %p559 = por %p557, %p558
      %p560 = scmp.ne.s32.totalorder %s552, %s555
      %p561 = scmp.eq.s32.totalorder %s38, 0
      %p562 = por %p560, %p561
      %p563 = scmp.ne.s32.totalorder %s552, %s555
      %p564 = scmp.eq.s32.totalorder %s43, 3
      %p565 = por %p563, %p564
      %p566 = scmp.ne.s32.totalorder %s555, %s556
      %p567 = scmp.eq.s32.totalorder %s43, 0
      %p568 = por %p566, %p567
      %p569 = scmp.ne.s32.totalorder %s555, %s556
      %p570 = scmp.eq.s32.totalorder %s44, 3
      %p571 = por %p569, %p570
      %p573 = scmp.ne.s32.totalorder %s556, %s572
      %p574 = scmp.eq.s32.totalorder %s44, 0
      %p575 = por %p573, %p574
      %p576 = scmp.le.s32.totalorder 1, %s38
      %p577 = scmp.lt.s32.totalorder %s38, 5
      %p578 = pnand %p576, %p577
      %p579 = pneg %p578
      // Predicated region
      $region9: #{tpu_custom_call.1} parent=5 // pred_check
        _
      $region10: #{tpu_custom_call.1} parent=5 // pred_check_branch
        %581 = sbr.rel (%p578) target = $region12
      $region11: #{tpu_custom_call.1} parent=5 // pred_region
        %s582 = ssub.s32 %s38, 1
        // Predicated region
        $region13: #{tpu_custom_call.1} parent=11 // pred_check
          %p583 = pneg %p99
        $region14: #{tpu_custom_call.1} parent=11 // pred_check_branch
          %585 = sbr.rel (%p583) target = $region16
        $region15: #{tpu_custom_call.1} parent=11 // pred_region
          %s587 = ssub.s32 16, 16
          %588 = vsyncadd [#allocation10], %s587
          %s590 = sshll.u32 [#allocation9], 4
          %s591 = int_to_ptr.vmem [resolvable:$true] %s590
          %593 = dma.hbm_to_vmem [thread:$0]  %s1, 16, %s591, [#allocation10]
        $region16: #{tpu_custom_call.1} parent=11 // pred_fallthru
          _
        // Predicated region
        $region17: #{tpu_custom_call.1} parent=11 // pred_check
          %p594 = pneg %p120
        $region18: #{tpu_custom_call.1} parent=11 // pred_check_branch
          %596 = sbr.rel (%p594) target = $region20
        $region19: #{tpu_custom_call.1} parent=11 // pred_region
          %s598 = ssub.s32 16, 16
          %599 = vsyncadd [#allocation13], %s598
          %s601 = sshll.u32 [#allocation12], 4
          %s602 = int_to_ptr.vmem [resolvable:$true] %s601
          %604 = dma.hbm_to_vmem [thread:$0]  %s2, 16, %s602, [#allocation13]
        $region20: #{tpu_custom_call.1} parent=11 // pred_fallthru
          _
        // Predicated region
        $region21: #{tpu_custom_call.1} parent=11 // pred_check
          %p605 = pneg %p141
        $region22: #{tpu_custom_call.1} parent=11 // pred_check_branch
          %607 = sbr.rel (%p605) target = $region24
        $region23: #{tpu_custom_call.1} parent=11 // pred_region
          %s609 = ssub.s32 16, 16
          %610 = vsyncadd [#allocation13], %s609
          %s612 = sshll.u32 [#allocation14], 4
          %s613 = int_to_ptr.vmem [resolvable:$true] %s612
          %615 = dma.hbm_to_vmem [thread:$0]  %s3, 16, %s613, [#allocation13]
        $region24: #{tpu_custom_call.1} parent=11 // pred_fallthru
          _
        // Predicated region
        $region25: #{tpu_custom_call.1} parent=11 // pred_check
          %p616 = pneg %p162
        $region26: #{tpu_custom_call.1} parent=11 // pred_check_branch
          %618 = sbr.rel (%p616) target = $region28
        $region27: #{tpu_custom_call.1} parent=11 // pred_region
          %s620 = ssub.s32 16, 16
          %621 = vsyncadd [#allocation16], %s620
          %s623 = sshll.u32 [#allocation15], 4
          %s624 = int_to_ptr.vmem [resolvable:$true] %s623
          %626 = dma.hbm_to_vmem [thread:$0]  %s4, 16, %s624, [#allocation16]
        $region28: #{tpu_custom_call.1} parent=11 // pred_fallthru
          _
        // Predicated region
        $region29: #{tpu_custom_call.1} parent=11 // pred_check
          %p627 = pneg %p183
        $region30: #{tpu_custom_call.1} parent=11 // pred_check_branch
          %629 = sbr.rel (%p627) target = $region32
        $region31: #{tpu_custom_call.1} parent=11 // pred_region
          %s631 = ssub.s32 16, 16
          %632 = vsyncadd [#allocation16], %s631
          %s634 = sshll.u32 [#allocation17], 4
          %s635 = int_to_ptr.vmem [resolvable:$true] %s634
          %637 = dma.hbm_to_vmem [thread:$0]  %s5, 16, %s635, [#allocation16]
        $region32: #{tpu_custom_call.1} parent=11 // pred_fallthru
          _
        // Predicated region
        $region33: #{tpu_custom_call.1} parent=11 // pred_check
          %p638 = pneg %p204
        $region34: #{tpu_custom_call.1} parent=11 // pred_check_branch
          %640 = sbr.rel (%p638) target = $region36
        $region35: #{tpu_custom_call.1} parent=11 // pred_region
          %s642 = ssub.s32 16, 16
          %643 = vsyncadd [#allocation19], %s642
          %s645 = sshll.u32 [#allocation18], 4
          %s646 = int_to_ptr.vmem [resolvable:$true] %s645
          %648 = dma.hbm_to_vmem [thread:$0]  %s6, 16, %s646, [#allocation19]
        $region36: #{tpu_custom_call.1} parent=11 // pred_fallthru
          _
        // Predicated region
        $region37: #{tpu_custom_call.1} parent=11 // pred_check
          %p649 = pneg %p225
        $region38: #{tpu_custom_call.1} parent=11 // pred_check_branch
          %651 = sbr.rel (%p649) target = $region40
        $region39: #{tpu_custom_call.1} parent=11 // pred_region
          %s653 = ssub.s32 16, 16
          %654 = vsyncadd [#allocation19], %s653
          %s656 = sshll.u32 [#allocation20], 4
          %s657 = int_to_ptr.vmem [resolvable:$true] %s656
          %659 = dma.hbm_to_vmem [thread:$0]  %s7, 16, %s657, [#allocation19]
        $region40: #{tpu_custom_call.1} parent=11 // pred_fallthru
          _
        // Predicated region
        $region41: #{tpu_custom_call.1} parent=11 // pred_check
          %p660 = pneg %p246
        $region42: #{tpu_custom_call.1} parent=11 // pred_check_branch
          %662 = sbr.rel (%p660) target = $region44
        $region43: #{tpu_custom_call.1} parent=11 // pred_region
          _
        $region44: #{tpu_custom_call.1} parent=11 // pred_fallthru
          _
        // Predicated region
        $region45: #{tpu_custom_call.1} parent=11 // pred_check
          %p663 = pneg %p267
        $region46: #{tpu_custom_call.1} parent=11 // pred_check_branch
          %665 = sbr.rel (%p663) target = $region48
        $region47: #{tpu_custom_call.1} parent=11 // pred_region
          _
        $region48: #{tpu_custom_call.1} parent=11 // pred_fallthru
          _
        // Predicated region
        $region49: #{tpu_custom_call.1} parent=11 // pred_check
          %p666 = pneg %p288
        $region50: #{tpu_custom_call.1} parent=11 // pred_check_branch
          %668 = sbr.rel (%p666) target = $region52
        $region51: #{tpu_custom_call.1} parent=11 // pred_region
          _
        $region52: #{tpu_custom_call.1} parent=11 // pred_fallthru
          _
        // Predicated region
        $region53: #{tpu_custom_call.1} parent=11 // pred_check
          %p669 = pneg %p309
        $region54: #{tpu_custom_call.1} parent=11 // pred_check_branch
          %671 = sbr.rel (%p669) target = $region56
        $region55: #{tpu_custom_call.1} parent=11 // pred_region
          _
        $region56: #{tpu_custom_call.1} parent=11 // pred_fallthru
          _
        // Predicated region
        $region57: #{tpu_custom_call.1} parent=11 // pred_check
          %p672 = pneg %p330
        $region58: #{tpu_custom_call.1} parent=11 // pred_check_branch
          %674 = sbr.rel (%p672) target = $region60
        $region59: #{tpu_custom_call.1} parent=11 // pred_region
          %s676 = ssub.s32 32, 32
          %677 = vsyncadd [#allocation22], %s676
          %s678 = sshll.u32 [#allocation21], 4
          %s679 = int_to_ptr.vmem [resolvable:$true] %s678
          %684 = dma.hbm_to_vmem [thread:$0]  %s12, 32, %s679, [#allocation22], 16, 16, 1
        $region60: #{tpu_custom_call.1} parent=11 // pred_fallthru
          _
        // Predicated region
        $region61: #{tpu_custom_call.1} parent=11 // pred_check
          %p685 = pneg %p351
        $region62: #{tpu_custom_call.1} parent=11 // pred_check_branch
          %687 = sbr.rel (%p685) target = $region64
        $region63: #{tpu_custom_call.1} parent=11 // pred_region
          %s689 = ssub.s32 32, 32
          %690 = vsyncadd [#allocation22], %s689
          %s691 = sshll.u32 [#allocation23], 4
          %s692 = int_to_ptr.vmem [resolvable:$true] %s691
          %697 = dma.hbm_to_vmem [thread:$0]  %s13, 32, %s692, [#allocation22], 16, 16, 1
        $region64: #{tpu_custom_call.1} parent=11 // pred_fallthru
          _
        // Predicated region
        $region65: #{tpu_custom_call.1} parent=11 // pred_check
          %p698 = pneg %p372
        $region66: #{tpu_custom_call.1} parent=11 // pred_check_branch
          %700 = sbr.rel (%p698) target = $region68
        $region67: #{tpu_custom_call.1} parent=11 // pred_region
          %s702 = ssub.s32 128, 128
          %703 = vsyncadd [#allocation25], %s702
          %s704 = sshll.u32 [#allocation24], 4
          %s705 = int_to_ptr.vmem [resolvable:$true] %s704
          %710 = dma.hbm_to_vmem [thread:$0]  %s14, 128, %s705, [#allocation25], 64, 64, 4
        $region68: #{tpu_custom_call.1} parent=11 // pred_fallthru
          _
        // Predicated region
        $region69: #{tpu_custom_call.1} parent=11 // pred_check
          %p711 = pneg %p393
        $region70: #{tpu_custom_call.1} parent=11 // pred_check_branch
          %713 = sbr.rel (%p711) target = $region72
        $region71: #{tpu_custom_call.1} parent=11 // pred_region
          _
        $region72: #{tpu_custom_call.1} parent=11 // pred_fallthru
          _
        // Predicated region
        $region73: #{tpu_custom_call.1} parent=11 // pred_check
          %p714 = pneg %p414
        $region74: #{tpu_custom_call.1} parent=11 // pred_check_branch
          %716 = sbr.rel (%p714) target = $region76
        $region75: #{tpu_custom_call.1} parent=11 // pred_region
          _
        $region76: #{tpu_custom_call.1} parent=11 // pred_fallthru
          _
        // Predicated region
        $region77: #{tpu_custom_call.1} parent=11 // pred_check
          %p717 = pneg %p435
        $region78: #{tpu_custom_call.1} parent=11 // pred_check_branch
          %719 = sbr.rel (%p717) target = $region80
        $region79: #{tpu_custom_call.1} parent=11 // pred_region
          _
        $region80: #{tpu_custom_call.1} parent=11 // pred_fallthru
          _
        // Predicated region
        $region81: #{tpu_custom_call.1} parent=11 // pred_check
          %p720 = pneg %p456
        $region82: #{tpu_custom_call.1} parent=11 // pred_check_branch
          %722 = sbr.rel (%p720) target = $region84
        $region83: #{tpu_custom_call.1} parent=11 // pred_region
          _
        $region84: #{tpu_custom_call.1} parent=11 // pred_fallthru
          _
        // Predicated region
        $region85: #{tpu_custom_call.1} parent=11 // pred_check
          %p723 = pneg %p477
        $region86: #{tpu_custom_call.1} parent=11 // pred_check_branch
          %725 = sbr.rel (%p723) target = $region88
        $region87: #{tpu_custom_call.1} parent=11 // pred_region
          _
        $region88: #{tpu_custom_call.1} parent=11 // pred_fallthru
          _
        // Predicated region
        $region89: #{tpu_custom_call.1} parent=11 // pred_check
          %p726 = pneg %p498
        $region90: #{tpu_custom_call.1} parent=11 // pred_check_branch
          %728 = sbr.rel (%p726) target = $region92
        $region91: #{tpu_custom_call.1} parent=11 // pred_region
          _
        $region92: #{tpu_custom_call.1} parent=11 // pred_fallthru
          _
        // Predicated region
        $region93: #{tpu_custom_call.1} parent=11 // pred_check
          %p729 = pneg %p519
        $region94: #{tpu_custom_call.1} parent=11 // pred_check_branch
          %731 = sbr.rel (%p729) target = $region96
        $region95: #{tpu_custom_call.1} parent=11 // pred_region
          _
        $region96: #{tpu_custom_call.1} parent=11 // pred_fallthru
          _
        // Predicated region
        $region97: #{tpu_custom_call.1} parent=11 // pred_check
          %p732 = pneg %p540
        $region98: #{tpu_custom_call.1} parent=11 // pred_check_branch
          %734 = sbr.rel (%p732) target = $region100
        $region99: #{tpu_custom_call.1} parent=11 // pred_region
          _
        $region100: #{tpu_custom_call.1} parent=11 // pred_fallthru
          _
      $region12: #{tpu_custom_call.1} parent=5 // pred_fallthru
        _
      %p735 = scmp.lt.s32.totalorder %s38, 4
      // Predicated region
      $region101: #{tpu_custom_call.1} parent=5 // pred_check
        %p736 = pneg %p735
      $region102: #{tpu_custom_call.1} parent=5 // pred_check_branch
        %738 = sbr.rel (%p736) target = $region104
      $region103: #{tpu_custom_call.1} parent=5 // pred_region
        // Predicated region
        $region105: #{tpu_custom_call.1} parent=103 // pred_check
          %p739 = pneg %p72
        $region106: #{tpu_custom_call.1} parent=103 // pred_check_branch
          %741 = sbr.rel (%p739) target = $region108
        $region107: #{tpu_custom_call.1} parent=103 // pred_region
          %p742 = scmp.lt.s32.totalorder %s45, 1
          %s743 = scalar_select %p742, %s45, 1
          %p744 = scmp.lt.s32.totalorder %s46, 1
          %s745 = scalar_select %p744, %s46, 1
          %s746 = smul.addr %s743, 2
          %s747 = sadd.s32 %s745, %s746
          %s748 = smul.addr %s747, 8
          %s749 = scalar_lea.vmem %s0, %s748
        $region108: #{tpu_custom_call.1} parent=103 // pred_fallthru
          _
      $region104: #{tpu_custom_call.1} parent=5 // pred_fallthru
        _
      %p750 = scmp.le.s32.totalorder 1, %s38
      %p751 = scmp.lt.s32.totalorder %s38, 5
      %p752 = pnand %p750, %p751
      %p753 = pneg %p752
      // Predicated region
      $region109: #{tpu_custom_call.1} parent=5 // pred_check
        _
      $region110: #{tpu_custom_call.1} parent=5 // pred_check_branch
        %755 = sbr.rel (%p752) target = $region112
      $region111: #{tpu_custom_call.1} parent=5 // pred_region
        %s756 = ssub.s32 %s38, 1
        // Predicated region
        $region113: #{tpu_custom_call.1} parent=111 // pred_check
          %p757 = pneg %p99
        $region114: #{tpu_custom_call.1} parent=111 // pred_check_branch
          %759 = sbr.rel (%p757) target = $region116
        $region115: #{tpu_custom_call.1} parent=111 // pred_region
          %760 = dma.done [#allocation10], 16
        $region116: #{tpu_custom_call.1} parent=111 // pred_fallthru
          _
        // Predicated region
        $region117: #{tpu_custom_call.1} parent=111 // pred_check
          %p761 = pneg %p120
        $region118: #{tpu_custom_call.1} parent=111 // pred_check_branch
          %763 = sbr.rel (%p761) target = $region120
        $region119: #{tpu_custom_call.1} parent=111 // pred_region
          %764 = dma.done [#allocation13], 16
        $region120: #{tpu_custom_call.1} parent=111 // pred_fallthru
          _
        // Predicated region
        $region121: #{tpu_custom_call.1} parent=111 // pred_check
          %p765 = pneg %p141
        $region122: #{tpu_custom_call.1} parent=111 // pred_check_branch
          %767 = sbr.rel (%p765) target = $region124
        $region123: #{tpu_custom_call.1} parent=111 // pred_region
          %768 = dma.done [#allocation13], 16
        $region124: #{tpu_custom_call.1} parent=111 // pred_fallthru
          _
        // Predicated region
        $region125: #{tpu_custom_call.1} parent=111 // pred_check
          %p769 = pneg %p162
        $region126: #{tpu_custom_call.1} parent=111 // pred_check_branch
          %771 = sbr.rel (%p769) target = $region128
        $region127: #{tpu_custom_call.1} parent=111 // pred_region
          %772 = dma.done [#allocation16], 16
        $region128: #{tpu_custom_call.1} parent=111 // pred_fallthru
          _
        // Predicated region
        $region129: #{tpu_custom_call.1} parent=111 // pred_check
          %p773 = pneg %p183
        $region130: #{tpu_custom_call.1} parent=111 // pred_check_branch
          %775 = sbr.rel (%p773) target = $region132
        $region131: #{tpu_custom_call.1} parent=111 // pred_region
          %776 = dma.done [#allocation16], 16
        $region132: #{tpu_custom_call.1} parent=111 // pred_fallthru
          _
        // Predicated region
        $region133: #{tpu_custom_call.1} parent=111 // pred_check
          %p777 = pneg %p204
        $region134: #{tpu_custom_call.1} parent=111 // pred_check_branch
          %779 = sbr.rel (%p777) target = $region136
        $region135: #{tpu_custom_call.1} parent=111 // pred_region
          %780 = dma.done [#allocation19], 16
        $region136: #{tpu_custom_call.1} parent=111 // pred_fallthru
          _
        // Predicated region
        $region137: #{tpu_custom_call.1} parent=111 // pred_check
          %p781 = pneg %p225
        $region138: #{tpu_custom_call.1} parent=111 // pred_check_branch
          %783 = sbr.rel (%p781) target = $region140
        $region139: #{tpu_custom_call.1} parent=111 // pred_region
          %784 = dma.done [#allocation19], 16
        $region140: #{tpu_custom_call.1} parent=111 // pred_fallthru
          _
        // Predicated region
        $region141: #{tpu_custom_call.1} parent=111 // pred_check
          %p785 = pneg %p330
        $region142: #{tpu_custom_call.1} parent=111 // pred_check_branch
          %787 = sbr.rel (%p785) target = $region144
        $region143: #{tpu_custom_call.1} parent=111 // pred_region
          %788 = dma.done [#allocation22], 32
        $region144: #{tpu_custom_call.1} parent=111 // pred_fallthru
          _
        // Predicated region
        $region145: #{tpu_custom_call.1} parent=111 // pred_check
          %p789 = pneg %p351
        $region146: #{tpu_custom_call.1} parent=111 // pred_check_branch
          %791 = sbr.rel (%p789) target = $region148
        $region147: #{tpu_custom_call.1} parent=111 // pred_region
          %792 = dma.done [#allocation22], 32
        $region148: #{tpu_custom_call.1} parent=111 // pred_fallthru
          _
        // Predicated region
        $region149: #{tpu_custom_call.1} parent=111 // pred_check
          %p793 = pneg %p372
        $region150: #{tpu_custom_call.1} parent=111 // pred_check_branch
          %795 = sbr.rel (%p793) target = $region152
        $region151: #{tpu_custom_call.1} parent=111 // pred_region
          %796 = dma.done [#allocation25], 128
        $region152: #{tpu_custom_call.1} parent=111 // pred_fallthru
          _
        %p797 = scmp.lt.s32.totalorder %s47, 1
        %s798 = scalar_select %p797, %s47, 1
        %p799 = scmp.lt.s32.totalorder %s48, 1
        %s800 = scalar_select %p799, %s48, 1
        %s801 = smul.addr %s798, 2
        %s802 = sadd.s32 %s800, %s801
        %s803 = smul.addr %s802, 8
        %s804 = scalar_lea.vmem %s0, %s803
        %p805 = pneg %p78
        %p806 = pneg %p75
        %p807 = pneg %p99
        %p808 = pneg %p96
        %p809 = pneg %p120
        %p810 = pneg %p117
        %p811 = pneg %p141
        %p812 = pneg %p138
        %p813 = pneg %p162
        %p814 = pneg %p159
        %p815 = pneg %p183
        %p816 = pneg %p180
        %p817 = pneg %p204
        %p818 = pneg %p201
        %p819 = pneg %p225
        %p820 = pneg %p222
        %p821 = pneg %p246
        %p822 = pneg %p243
        %p823 = pneg %p267
        %p824 = pneg %p264
        %p825 = pneg %p288
        %p826 = pneg %p285
        %p827 = pneg %p309
        %p828 = pneg %p306
        %p829 = pneg %p330
        %p830 = pneg %p327
        %p831 = pneg %p351
        %p832 = pneg %p348
        %p833 = pneg %p372
        %p834 = pneg %p369
        %p835 = pneg %p393
        %p836 = pneg %p390
        %p837 = pneg %p414
        %p838 = pneg %p411
        %p839 = pneg %p435
        %p840 = pneg %p432
        %p841 = pneg %p456
        %p842 = pneg %p453
        %p843 = pneg %p477
        %p844 = pneg %p474
        %p845 = pneg %p498
        %p846 = pneg %p495
        %p847 = pneg %p519
        %p848 = pneg %p516
        %p849 = pneg %p540
        %p850 = pneg %p537
        %p851 = pneg %p568
        %p852 = pneg %p565
        %s853 = sand.u32 %s555, 1
        %s854 = scalar_lea.sflag [#allocation11], %s853
        %s855 = sand.u32 %s555, 1
        %s856 = smul.addr %s855, 8
        %s857 = scalar_lea.vmem [#allocation26], %s856
        %p858 = scmp.lt.s32.totalorder %s47, 1
        %s859 = scalar_select %p858, %s47, 1
        %p860 = scmp.lt.s32.totalorder %s48, 1
        %s861 = scalar_select %p860, %s48, 1
        %s862 = smul.addr %s859, 2
        %s863 = sadd.s32 %s861, %s862
        %s864 = smul.addr %s863, 8
        %s865 = scalar_lea.vmem %s0, %s864
        %p867 = scmp.eq.s32.totalorder %s48, 0
        // Predicated region
        $region153: #{tpu_custom_call.1} parent=111 // pred_check
          %p868 = pneg %p867
        $region154: #{tpu_custom_call.1} parent=111 // pred_check_branch
          %870 = sbr.rel (%p868) target = $region156
        $region155: #{tpu_custom_call.1} parent=111 // pred_region
          %vm871 = vcmask 130048
          %872 = vst.msk [vmem:[#allocation2] sm:$0xff] %vm871, 0.0
          %873 = vst.msk [vmem:[#allocation2 + $0x8] sm:$0xff] %vm871, 0.0
          %874 = vst.msk [vmem:[#allocation2 + $0x10] sm:$0xff] %vm871, 0.0
          %875 = vst.msk [vmem:[#allocation2 + $0x18] sm:$0xff] %vm871, 0.0
          %vm876 = vcmask 253952
          %877 = vst.msk [vmem:[#allocation3] sm:$0x1] %vm876, 0.0
          %878 = vst.msk [vmem:[#allocation4] sm:$0x1] %vm876, 0.0
        $region156: #{tpu_custom_call.1} parent=111 // pred_fallthru
          _
        %v879 = vld [vmem:[%s865] sm:$0xff]
        %v880 = vlaneseq
        %v881 = vshrl.u32 %v880, 7
        %vm882 = vcmp.eq.s32.totalorder %v881, 0
        %v883 = vld [vmem:[#allocation9] sm:$0x1]
        %v884 = vld [vmem:[#allocation12] sm:$0x1]
        %vm885 = vcmask 261120
        %v886 = vsel %vm885, %v879, 0.0
        %887 = vadd.xlane.f32.xlu0 %v886
        %v888 = vpop.xlane.xlu0 %887
        %v889 = vrcp.pop 32.0
        %v890 = vmul.f32 %v888, %v889
        %v891 = vsub.f32 %v879, %v890
        %v892 = vmul.f32 %v891, %v891
        %v893 = vsel %vm885, %v892, 0.0
        %894 = vadd.xlane.f32.xlu0 %v893
        %v895 = vpop.xlane.xlu0 %894
        %v896 = vmul.f32 %v895, %v889
        %v897 = vadd.f32 %v896, 1e-05
        %v898 = vrsqrt.pop %v897
        %v899 = vmul.f32 %v891, %v898
        %v901 = vlaneseq
        %v902 = vshrl.u32 %v901, 7
        %v903 = vsub.s32 0, %v902
        %v904 = vrot.slane %v883, %v903
        %v906 = vmul.f32 %v899, %v904
        %v908 = vlaneseq
        %v909 = vshrl.u32 %v908, 7
        %v910 = vsub.s32 0, %v909
        %v911 = vrot.slane %v884, %v910
        %v913 = vadd.f32 %v906, %v911
        %v914 = vld [vmem:[#allocation3] sm:$0x1]
        %v915 = vrot.slane %v913, 7
        %v916 = vsel %vm882, 1, 0
        %vm917 = vcmp.eq.s32.totalorder %v916, 1
        %v919 = vlaneseq
        %v920 = vshrl.u32 %v919, 7
        %v921 = vsub.s32 0, %v920
        %v922 = vrot.slane %v914, %v921
        %v924 = vsel %vm917, %v922, %v915
        %vm925 = vcmask 261127
        %926 = vst.msk [vmem:[#allocation3 - $0x7] sm:$0x80] %vm925, %v913
        %v927 = vsub.f32 %v913, %v924
        %v928 = vld [vmem:[#allocation17] sm:$0x1]
        %v930 = vlaneseq
        %v931 = vshrl.u32 %v930, 7
        %v932 = vsub.s32 0, %v931
        %v933 = vrot.slane %v928, %v932
        %v935 = vmul.f32 %v933, %v927
        %v936 = vadd.f32 %v924, %v935
        %v937 = vpack.c.bf16 %v936, %v936
        %v938 = vld [vmem:[#allocation18] sm:$0x1]
        %v940 = vlaneseq
        %v941 = vshrl.u32 %v940, 7
        %v942 = vsub.s32 0, %v941
        %v943 = vrot.slane %v938, %v942
        %v945 = vmul.f32 %v943, %v927
        %v946 = vadd.f32 %v924, %v945
        %v947 = vpack.c.bf16 %v946, %v946
        %v948 = vld [vmem:[#allocation20] sm:$0x1]
        %v950 = vlaneseq
        %v951 = vshrl.u32 %v950, 7
        %v952 = vsub.s32 0, %v951
        %v953 = vrot.slane %v948, %v952
        %v955 = vmul.f32 %v953, %v927
        %v956 = vadd.f32 %v924, %v955
        %v957 = vpack.c.bf16 %v956, %v956
        %v958 = vld [vmem:[%s8] sm:$0xf]
        %v959 = vld [vmem:[%s8 + $0x4] sm:$0xf]
        %v960 = vld [vmem:[%s8 + $0x8] sm:$0xf]
        %v961 = vld [vmem:[%s8 + $0xc] sm:$0xf]
        %v966 = vunpack.c.l.b16 %v958
        %v967 = vunpack.c.l.b16 %v959
        %v968 = vunpack.c.l.b16 %v960
        %v969 = vunpack.c.l.b16 %v961
        %v970 = vpack.c.b16 %v967, %v966
        %v971 = vpack.c.b16 %v969, %v968
        %v975 = vsel %vm885, %v957, 0
        %977 = vmatprep.subr.bf16.mxu0 0
        %978 = vmatpush1.bf16.msra.mxu0 %v970
        %979 = vmatprep.subr.bf16.mxu0 0
        %980 = vmatpush1.bf16.msra.mxu0 %v971
        %981 = vmatprep.subr.bf16.mxu0 0
        %982 = vmatpush1.bf16.msra.mxu0 0
        %983 = vmatprep.subr.bf16.mxu0 0
        %984 = vmatpush1.bf16.msra.mxu0 0
        %985 = vmatprep.subr.bf16.mxu0 0
        %986 = vmatpush1.bf16.msra.mxu0 0
        %987 = vmatprep.subr.bf16.mxu0 0
        %988 = vmatpush1.bf16.msra.mxu0 0
        %989 = vmatprep.subr.bf16.mxu0 0
        %990 = vmatpush1.bf16.msra.mxu0 0
        %991 = vmatprep.subr.bf16.mxu0 0
        %992 = vmatpush1.bf16.msra.mxu0 0
        %993 = vmatprep.subr.bf16.mxu0 0
        %994 = vmatpush1.bf16.msra.mxu0 0
        %995 = vmatprep.subr.bf16.mxu0 0
        %996 = vmatpush1.bf16.msra.mxu0 0
        %997 = vmatprep.subr.bf16.mxu0 0
        %998 = vmatpush1.bf16.msra.mxu0 0
        %999 = vmatprep.subr.bf16.mxu0 0
        %1000 = vmatpush1.bf16.msra.mxu0 0
        %1001 = vmatprep.subr.bf16.mxu0 0
        %1002 = vmatpush1.bf16.msra.mxu0 0
        %1003 = vmatprep.subr.bf16.mxu0 0
        %1004 = vmatpush1.bf16.msra.mxu0 0
        %1005 = vmatprep.subr.bf16.mxu0 0
        %1006 = vmatpush1.bf16.msra.mxu0 0
        %1007 = vmatprep.subr.bf16.mxu0 0
        %1008 = vmatpush1.bf16.msra.mxu0 0
        %1009 = vmatprep.mubr.bf16.mxu0 0
        %1010 = vmatmul.mubr.bf16.gmra.mrb[0].mxu0 %v975
        %v1011 = vpop.f32.mrb[0].mxu0
        %v1012 = vadd.f32 0.0, %v1011
        %v1013 = vpop.f32.mrb[0].mxu0
        %v1014 = vpop.f32.mrb[0].mxu0
        %v1015 = vpop.f32.mrb[0].mxu0
        %1016 = vdwg.mxu0
        %v1017 = vld [vmem:[%s9] sm:$0xf]
        %v1018 = vld [vmem:[%s9 + $0x4] sm:$0xf]
        %v1019 = vld [vmem:[%s9 + $0x8] sm:$0xf]
        %v1020 = vld [vmem:[%s9 + $0xc] sm:$0xf]
        %v1025 = vunpack.c.l.b16 %v1017
        %v1026 = vunpack.c.l.b16 %v1018
        %v1027 = vunpack.c.l.b16 %v1019
        %v1028 = vunpack.c.l.b16 %v1020
        %v1029 = vpack.c.b16 %v1026, %v1025
        %v1030 = vpack.c.b16 %v1028, %v1027
        %v1034 = vsel %vm885, %v937, 0
        %1036 = vmatprep.subr.bf16.mxu0 0
        %1037 = vmatpush1.bf16.msra.mxu0 %v1029
        %1038 = vmatprep.subr.bf16.mxu0 0
        %1039 = vmatpush1.bf16.msra.mxu0 %v1030
        %1040 = vmatprep.subr.bf16.mxu0 0
        %1041 = vmatpush1.bf16.msra.mxu0 0
        %1042 = vmatprep.subr.bf16.mxu0 0
        %1043 = vmatpush1.bf16.msra.mxu0 0
        %1044 = vmatprep.subr.bf16.mxu0 0
        %1045 = vmatpush1.bf16.msra.mxu0 0
        %1046 = vmatprep.subr.bf16.mxu0 0
        %1047 = vmatpush1.bf16.msra.mxu0 0
        %1048 = vmatprep.subr.bf16.mxu0 0
        %1049 = vmatpush1.bf16.msra.mxu0 0
        %1050 = vmatprep.subr.bf16.mxu0 0
        %1051 = vmatpush1.bf16.msra.mxu0 0
        %1052 = vmatprep.subr.bf16.mxu0 0
        %1053 = vmatpush1.bf16.msra.mxu0 0
        %1054 = vmatprep.subr.bf16.mxu0 0
        %1055 = vmatpush1.bf16.msra.mxu0 0
        %1056 = vmatprep.subr.bf16.mxu0 0
        %1057 = vmatpush1.bf16.msra.mxu0 0
        %1058 = vmatprep.subr.bf16.mxu0 0
        %1059 = vmatpush1.bf16.msra.mxu0 0
        %1060 = vmatprep.subr.bf16.mxu0 0
        %1061 = vmatpush1.bf16.msra.mxu0 0
        %1062 = vmatprep.subr.bf16.mxu0 0
        %1063 = vmatpush1.bf16.msra.mxu0 0
        %1064 = vmatprep.subr.bf16.mxu0 0
        %1065 = vmatpush1.bf16.msra.mxu0 0
        %1066 = vmatprep.subr.bf16.mxu0 0
        %1067 = vmatpush1.bf16.msra.mxu0 0
        %1068 = vmatprep.mubr.bf16.mxu0 0
        %1069 = vmatmul.mubr.bf16.gmra.mrb[0].mxu0 %v1034
        %v1070 = vpop.f32.mrb[0].mxu0
        %v1071 = vadd.f32 0.0, %v1070
        %v1072 = vpop.f32.mrb[0].mxu0
        %v1073 = vpop.f32.mrb[0].mxu0
        %v1074 = vpop.f32.mrb[0].mxu0
        %1075 = vdwg.mxu0
        %v1076 = vld [vmem:[%s10] sm:$0xf]
        %v1077 = vld [vmem:[%s10 + $0x4] sm:$0xf]
        %v1078 = vld [vmem:[%s10 + $0x8] sm:$0xf]
        %v1079 = vld [vmem:[%s10 + $0xc] sm:$0xf]
        %v1084 = vunpack.c.l.b16 %v1076
        %v1085 = vunpack.c.l.b16 %v1077
        %v1086 = vunpack.c.l.b16 %v1078
        %v1087 = vunpack.c.l.b16 %v1079
        %v1088 = vpack.c.b16 %v1085, %v1084
        %v1089 = vpack.c.b16 %v1087, %v1086
        %v1093 = vsel %vm885, %v947, 0
        %1095 = vmatprep.subr.bf16.mxu0 0
        %1096 = vmatpush1.bf16.msra.mxu0 %v1088
        %1097 = vmatprep.subr.bf16.mxu0 0
        %1098 = vmatpush1.bf16.msra.mxu0 %v1089
        %1099 = vmatprep.subr.bf16.mxu0 0
        %1100 = vmatpush1.bf16.msra.mxu0 0
        %1101 = vmatprep.subr.bf16.mxu0 0
        %1102 = vmatpush1.bf16.msra.mxu0 0
        %1103 = vmatprep.subr.bf16.mxu0 0
        %1104 = vmatpush1.bf16.msra.mxu0 0
        %1105 = vmatprep.subr.bf16.mxu0 0
        %1106 = vmatpush1.bf16.msra.mxu0 0
        %1107 = vmatprep.subr.bf16.mxu0 0
        %1108 = vmatpush1.bf16.msra.mxu0 0
        %1109 = vmatprep.subr.bf16.mxu0 0
        %1110 = vmatpush1.bf16.msra.mxu0 0
        %1111 = vmatprep.subr.bf16.mxu0 0
        %1112 = vmatpush1.bf16.msra.mxu0 0
        %1113 = vmatprep.subr.bf16.mxu0 0
        %1114 = vmatpush1.bf16.msra.mxu0 0
        %1115 = vmatprep.subr.bf16.mxu0 0
        %1116 = vmatpush1.bf16.msra.mxu0 0
        %1117 = vmatprep.subr.bf16.mxu0 0
        %1118 = vmatpush1.bf16.msra.mxu0 0
        %1119 = vmatprep.subr.bf16.mxu0 0
        %1120 = vmatpush1.bf16.msra.mxu0 0
        %1121 = vmatprep.subr.bf16.mxu0 0
        %1122 = vmatpush1.bf16.msra.mxu0 0
        %1123 = vmatprep.subr.bf16.mxu0 0
        %1124 = vmatpush1.bf16.msra.mxu0 0
        %1125 = vmatprep.subr.bf16.mxu0 0
        %1126 = vmatpush1.bf16.msra.mxu0 0
        %1127 = vmatprep.mubr.bf16.mxu0 0
        %1128 = vmatmul.mubr.bf16.gmra.mrb[0].mxu0 %v1093
        %v1129 = vpop.f32.mrb[0].mxu0
        %v1130 = vadd.f32 0.0, %v1129
        %v1131 = vpop.f32.mrb[0].mxu0
        %v1132 = vpop.f32.mrb[0].mxu0
        %v1133 = vpop.f32.mrb[0].mxu0
        %1134 = vdwg.mxu0
        %vm1135 = vcmask 130048
        %1136 = vst.msk [vmem:[#allocation5] sm:$0xff] %vm1135, %v1012
        %1137 = vst.msk [vmem:[#allocation6] sm:$0xff] %vm1135, %v1071
        %1138 = vst.msk [vmem:[#allocation7] sm:$0xff] %vm1135, %v1130
        %1140 = vrot.lane.b32.xlu0 %v1012, 112
        %v1141 = vpop.permute.xlu0 %1140
        %s1143 = scalar_lea.vmem [#allocation5], 8
        %1144 = vst.msk [vmem:[%s1143] sm:$0xff] %vm1135, %v1141
        %1146 = vrot.lane.b32.xlu0 %v1071, 112
        %v1147 = vpop.permute.xlu0 %1146
        %s1149 = scalar_lea.vmem [#allocation6], 8
        %1150 = vst.msk [vmem:[%s1149] sm:$0xff] %vm1135, %v1147
        %1152 = vrot.lane.b32.xlu0 %v1130, 112
        %v1153 = vpop.permute.xlu0 %1152
        %s1155 = scalar_lea.vmem [#allocation7], 8
        %1156 = vst.msk [vmem:[%s1155] sm:$0xff] %vm1135, %v1153
        %v1157 = vld [vmem:[#allocation5] sm:$0xff]
        %v1158 = vld [vmem:[#allocation6] sm:$0xff]
        %v1159 = vld [vmem:[#allocation7] sm:$0xff]
        %v1160 = vld [vmem:[#allocation2] sm:$0xff]
        %v1161 = vld [vmem:[#allocation2 + $0x8] sm:$0xff]
        %v1163 = vsel %vm1135, %v1157, 0
        %v1166 = vsel %vm1135, %v1158, 0
        %1168 = vmatprep.subr.mxu0 0.0
        %1169 = vmatpush1.xpose.msra.mxu0 %v1166
        %1170 = vmatprep.subr.mxu0 0.0
        %1171 = vmatpush1.xpose.msra.mxu0 0.0
        %1172 = vmatprep.subr.mxu0 0.0
        %1173 = vmatpush1.xpose.msra.mxu0 0.0
        %1174 = vmatprep.subr.mxu0 0.0
        %1175 = vmatpush1.xpose.msra.mxu0 0.0
        %1176 = vmatprep.subr.mxu0 0.0
        %1177 = vmatpush1.xpose.msra.mxu0 0.0
        %1178 = vmatprep.subr.mxu0 0.0
        %1179 = vmatpush1.xpose.msra.mxu0 0.0
        %1180 = vmatprep.subr.mxu0 0.0
        %1181 = vmatpush1.xpose.msra.mxu0 0.0
        %1182 = vmatprep.subr.mxu0 0.0
        %1183 = vmatpush1.xpose.msra.mxu0 0.0
        %1184 = vmatprep.subr.mxu0 0.0
        %1185 = vmatpush1.xpose.msra.mxu0 0.0
        %1186 = vmatprep.subr.mxu0 0.0
        %1187 = vmatpush1.xpose.msra.mxu0 0.0
        %1188 = vmatprep.subr.mxu0 0.0
        %1189 = vmatpush1.xpose.msra.mxu0 0.0
        %1190 = vmatprep.subr.mxu0 0.0
        %1191 = vmatpush1.xpose.msra.mxu0 0.0
        %1192 = vmatprep.subr.mxu0 0.0
        %1193 = vmatpush1.xpose.msra.mxu0 0.0
        %1194 = vmatprep.subr.mxu0 0.0
        %1195 = vmatpush1.xpose.msra.mxu0 0.0
        %1196 = vmatprep.subr.mxu0 0.0
        %1197 = vmatpush1.xpose.msra.mxu0 0.0
        %1198 = vmatprep.subr.mxu0 0.0
        %1199 = vmatpush1.xpose.msra.mxu0 0.0
        %1200 = vmatprep.subr.mxu0 0.0
        %1201 = vmatpush1.xpose.msra.mxu0 0.0
        %1202 = vmatprep.subr.mxu0 0.0
        %1203 = vmatpush1.xpose.msra.mxu0 0.0
        %1204 = vmatprep.subr.mxu0 0.0
        %1205 = vmatpush1.xpose.msra.mxu0 0.0
        %1206 = vmatprep.subr.mxu0 0.0
        %1207 = vmatpush1.xpose.msra.mxu0 0.0
        %1208 = vmatprep.subr.mxu0 0.0
        %1209 = vmatpush1.xpose.msra.mxu0 0.0
        %1210 = vmatprep.subr.mxu0 0.0
        %1211 = vmatpush1.xpose.msra.mxu0 0.0
        %1212 = vmatprep.subr.mxu0 0.0
        %1213 = vmatpush1.xpose.msra.mxu0 0.0
        %1214 = vmatprep.subr.mxu0 0.0
        %1215 = vmatpush1.xpose.msra.mxu0 0.0
        %1216 = vmatprep.subr.mxu0 0.0
        %1217 = vmatpush1.xpose.msra.mxu0 0.0
        %1218 = vmatprep.subr.mxu0 0.0
        %1219 = vmatpush1.xpose.msra.mxu0 0.0
        %1220 = vmatprep.subr.mxu0 0.0
        %1221 = vmatpush1.xpose.msra.mxu0 0.0
        %1222 = vmatprep.subr.mxu0 0.0
        %1223 = vmatpush1.xpose.msra.mxu0 0.0
        %1224 = vmatprep.subr.mxu0 0.0
        %1225 = vmatpush1.xpose.msra.mxu0 0.0
        %1226 = vmatprep.subr.mxu0 0.0
        %1227 = vmatpush1.xpose.msra.mxu0 0.0
        %1228 = vmatprep.subr.mxu0 0.0
        %1229 = vmatpush1.xpose.msra.mxu0 0.0
        %1230 = vmatprep.subr.mxu0 0.0
        %1231 = vmatpush1.xpose.msra.mxu0 0.0
        %1232 = vmatprep.mubr.f32.mxu0 0.0
        %1233 = vmatmul.mubr.f32.gmra.mrb[0].mxu0 %v1163
        %v1234 = vpop.f32.mrb[0].mxu0
        %v1235 = vadd.f32 0.0, %v1234
        %v1236 = vpop.f32.mrb[0].mxu0
        %1237 = vdwg.mxu0
        %v1238 = vld [vmem:[#allocation24] sm:$0xf]
        %v1239 = vunpack.c.l.bf16 %v1238
        %v1240 = vmul.f32 %v1235, %v1239
        %v1241 = vld [vmem:[%s16] sm:$0xff]
        %1243 = vset.pattern.permute.xlu0 0
        %1244 = vperm.xlu0 %1243, %v1241
        %v1245 = vpop.permute.xlu0 %1244
        %v1247 = vmul.f32 %v1157, %v1245
        %1249 = vrot.lane.b32.xlu0 %v1247, 8
        %v1250 = vpop.permute.xlu0 %1249
        %vm1252 = vcmask 64512
        %v1253 = vsel %vm1252, %v1240, %v1250
        %vm1254 = vcmask 195584
        %v1256 = vsel %vm1254, %v1253, 0
        %1258 = vmatprep.subr.mxu0 0.0
        %1259 = vmatpush1.msra.mxu0 %v1159
        %1260 = vmatprep.subr.mxu0 0.0
        %1261 = vmatpush1.msra.mxu0 %v1160
        %1262 = vmatprep.subr.mxu0 0.0
        %1263 = vmatpush1.msra.mxu0 %v1161
        %1264 = vmatprep.subr.mxu0 0.0
        %1265 = vmatpush1.msra.mxu0 0.0
        %1266 = vmatprep.subr.mxu0 0.0
        %1267 = vmatpush1.msra.mxu0 0.0
        %1268 = vmatprep.subr.mxu0 0.0
        %1269 = vmatpush1.msra.mxu0 0.0
        %1270 = vmatprep.subr.mxu0 0.0
        %1271 = vmatpush1.msra.mxu0 0.0
        %1272 = vmatprep.subr.mxu0 0.0
        %1273 = vmatpush1.msra.mxu0 0.0
        %1274 = vmatprep.subr.mxu0 0.0
        %1275 = vmatpush1.msra.mxu0 0.0
        %1276 = vmatprep.subr.mxu0 0.0
        %1277 = vmatpush1.msra.mxu0 0.0
        %1278 = vmatprep.subr.mxu0 0.0
        %1279 = vmatpush1.msra.mxu0 0.0
        %1280 = vmatprep.subr.mxu0 0.0
        %1281 = vmatpush1.msra.mxu0 0.0
        %1282 = vmatprep.subr.mxu0 0.0
        %1283 = vmatpush1.msra.mxu0 0.0
        %1284 = vmatprep.subr.mxu0 0.0
        %1285 = vmatpush1.msra.mxu0 0.0
        %1286 = vmatprep.subr.mxu0 0.0
        %1287 = vmatpush1.msra.mxu0 0.0
        %1288 = vmatprep.subr.mxu0 0.0
        %1289 = vmatpush1.msra.mxu0 0.0
        %1290 = vmatprep.subr.mxu0 0.0
        %1291 = vmatpush1.msra.mxu0 0.0
        %1292 = vmatprep.subr.mxu0 0.0
        %1293 = vmatpush1.msra.mxu0 0.0
        %1294 = vmatprep.subr.mxu0 0.0
        %1295 = vmatpush1.msra.mxu0 0.0
        %1296 = vmatprep.subr.mxu0 0.0
        %1297 = vmatpush1.msra.mxu0 0.0
        %1298 = vmatprep.subr.mxu0 0.0
        %1299 = vmatpush1.msra.mxu0 0.0
        %1300 = vmatprep.subr.mxu0 0.0
        %1301 = vmatpush1.msra.mxu0 0.0
        %1302 = vmatprep.subr.mxu0 0.0
        %1303 = vmatpush1.msra.mxu0 0.0
        %1304 = vmatprep.subr.mxu0 0.0
        %1305 = vmatpush1.msra.mxu0 0.0
        %1306 = vmatprep.subr.mxu0 0.0
        %1307 = vmatpush1.msra.mxu0 0.0
        %1308 = vmatprep.subr.mxu0 0.0
        %1309 = vmatpush1.msra.mxu0 0.0
        %1310 = vmatprep.subr.mxu0 0.0
        %1311 = vmatpush1.msra.mxu0 0.0
        %1312 = vmatprep.subr.mxu0 0.0
        %1313 = vmatpush1.msra.mxu0 0.0
        %1314 = vmatprep.subr.mxu0 0.0
        %1315 = vmatpush1.msra.mxu0 0.0
        %1316 = vmatprep.subr.mxu0 0.0
        %1317 = vmatpush1.msra.mxu0 0.0
        %1318 = vmatprep.subr.mxu0 0.0
        %1319 = vmatpush1.msra.mxu0 0.0
        %1320 = vmatprep.subr.mxu0 0.0
        %1321 = vmatpush1.msra.mxu0 0.0
        %1322 = vmatprep.mubr.f32.mxu0 0.0
        %1323 = vmatmul.mubr.f32.gmra.mrb[0].mxu0 %v1256
        %v1324 = vpop.f32.mrb[0].mxu0
        %v1325 = vadd.f32 0.0, %v1324
        %v1326 = vpop.f32.mrb[0].mxu0
        %1327 = vdwg.mxu0
        %v1328 = vld [vmem:[%s17] sm:$0x1]
        %v1330 = vlaneseq
        %v1331 = vshrl.u32 %v1330, 7
        %v1332 = vsub.s32 0, %v1331
        %v1333 = vrot.slane %v1328, %v1332
        %1334 = vset.pattern.permute.xlu0 0
        %1335 = vperm.xlu0 %1334, %v1333
        %v1336 = vpop.permute.xlu0 %1335
        %v1338 = vmul.f32 %v1336, %v1160
        %v1339 = vmul.f32 %v1336, %v1161
        %v1340 = vld [vmem:[%s15] sm:$0xff]
        %1342 = vset.pattern.permute.xlu0 0
        %1343 = vperm.xlu0 %1342, %v1340
        %v1344 = vpop.permute.xlu0 %1343
        %v1346 = vmul.f32 %v1158, %v1344
        %1347 = vxpose.xlu0.b32.start [1/16] %v1346, 128
        %1348 = vxpose.xlu0.b32.cont [2/16] 0.0, 128
        %1349 = vxpose.xlu0.b32.cont [3/16] 0.0, 128
        %1350 = vxpose.xlu0.b32.cont [4/16] 0.0, 128
        %1351 = vxpose.xlu0.b32.cont [5/16] 0.0, 128
        %1352 = vxpose.xlu0.b32.cont [6/16] 0.0, 128
        %1353 = vxpose.xlu0.b32.cont [7/16] 0.0, 128
        %1354 = vxpose.xlu0.b32.cont [8/16] 0.0, 128
        %1355 = vxpose.xlu0.b32.cont [9/16] 0.0, 128
        %1356 = vxpose.xlu0.b32.cont [10/16] 0.0, 128
        %1357 = vxpose.xlu0.b32.cont [11/16] 0.0, 128
        %1358 = vxpose.xlu0.b32.cont [12/16] 0.0, 128
        %1359 = vxpose.xlu0.b32.cont [13/16] 0.0, 128
        %1360 = vxpose.xlu0.b32.cont [14/16] 0.0, 128
        %1361 = vxpose.xlu0.b32.cont [15/16] 0.0, 128
        %1362 = vxpose.xlu0.b32.end [16/16] 0.0, 128
        %v1363 = vpop.trf.xlu0
        %v1364 = vpop.trf.xlu0
        %v1365 = vpop.trf.xlu0
        %v1366 = vpop.trf.xlu0
        %v1367 = vpop.trf.xlu0
        %v1368 = vpop.trf.xlu0
        %v1369 = vpop.trf.xlu0
        %v1370 = vpop.trf.xlu0
        %v1371 = vpop.trf.xlu0
        %v1372 = vpop.trf.xlu0
        %v1373 = vpop.trf.xlu0
        %v1374 = vpop.trf.xlu0
        %v1375 = vpop.trf.xlu0
        %v1376 = vpop.trf.xlu0
        %v1377 = vpop.trf.xlu0
        %v1378 = vpop.trf.xlu0
        %v1380 = vsel %vm1252, %v1363, 0
        %v1383 = vsel %vm1252, %v1364, 0
        %1385 = vmatprep.subr.mxu0 0.0
        %1386 = vmatpush1.msra.mxu0 %v1159
        %1387 = vmatprep.subr.mxu0 0.0
        %1388 = vmatpush1.msra.mxu0 0.0
        %1389 = vmatprep.subr.mxu0 0.0
        %1390 = vmatpush1.msra.mxu0 0.0
        %1391 = vmatprep.subr.mxu0 0.0
        %1392 = vmatpush1.msra.mxu0 0.0
        %1393 = vmatprep.subr.mxu0 0.0
        %1394 = vmatpush1.msra.mxu0 0.0
        %1395 = vmatprep.subr.mxu0 0.0
        %1396 = vmatpush1.msra.mxu0 0.0
        %1397 = vmatprep.subr.mxu0 0.0
        %1398 = vmatpush1.msra.mxu0 0.0
        %1399 = vmatprep.subr.mxu0 0.0
        %1400 = vmatpush1.msra.mxu0 0.0
        %1401 = vmatprep.subr.mxu0 0.0
        %1402 = vmatpush1.msra.mxu0 0.0
        %1403 = vmatprep.subr.mxu0 0.0
        %1404 = vmatpush1.msra.mxu0 0.0
        %1405 = vmatprep.subr.mxu0 0.0
        %1406 = vmatpush1.msra.mxu0 0.0
        %1407 = vmatprep.subr.mxu0 0.0
        %1408 = vmatpush1.msra.mxu0 0.0
        %1409 = vmatprep.subr.mxu0 0.0
        %1410 = vmatpush1.msra.mxu0 0.0
        %1411 = vmatprep.subr.mxu0 0.0
        %1412 = vmatpush1.msra.mxu0 0.0
        %1413 = vmatprep.subr.mxu0 0.0
        %1414 = vmatpush1.msra.mxu0 0.0
        %1415 = vmatprep.subr.mxu0 0.0
        %1416 = vmatpush1.msra.mxu0 0.0
        %1417 = vmatprep.subr.mxu0 0.0
        %1418 = vmatpush1.msra.mxu0 0.0
        %1419 = vmatprep.subr.mxu0 0.0
        %1420 = vmatpush1.msra.mxu0 0.0
        %1421 = vmatprep.subr.mxu0 0.0
        %1422 = vmatpush1.msra.mxu0 0.0
        %1423 = vmatprep.subr.mxu0 0.0
        %1424 = vmatpush1.msra.mxu0 0.0
        %1425 = vmatprep.subr.mxu0 0.0
        %1426 = vmatpush1.msra.mxu0 0.0
        %1427 = vmatprep.subr.mxu0 0.0
        %1428 = vmatpush1.msra.mxu0 0.0
        %1429 = vmatprep.subr.mxu0 0.0
        %1430 = vmatpush1.msra.mxu0 0.0
        %1431 = vmatprep.subr.mxu0 0.0
        %1432 = vmatpush1.msra.mxu0 0.0
        %1433 = vmatprep.subr.mxu0 0.0
        %1434 = vmatpush1.msra.mxu0 0.0
        %1435 = vmatprep.subr.mxu0 0.0
        %1436 = vmatpush1.msra.mxu0 0.0
        %1437 = vmatprep.subr.mxu0 0.0
        %1438 = vmatpush1.msra.mxu0 0.0
        %1439 = vmatprep.subr.mxu0 0.0
        %1440 = vmatpush1.msra.mxu0 0.0
        %1441 = vmatprep.subr.mxu0 0.0
        %1442 = vmatpush1.msra.mxu0 0.0
        %1443 = vmatprep.subr.mxu0 0.0
        %1444 = vmatpush1.msra.mxu0 0.0
        %1445 = vmatprep.subr.mxu0 0.0
        %1446 = vmatpush1.msra.mxu0 0.0
        %1447 = vmatprep.subr.mxu0 0.0
        %1448 = vmatpush1.msra.mxu0 0.0
        %1449 = vmatprep.mubr.f32.mxu0 0.0
        %1450 = vmatmul.mubr.f32.gmra.mrb[0].mxu0 %v1380
        %v1451 = vpop.f32.mrb[0].mxu0
        %v1452 = vadd.f32 0.0, %v1451
        %v1453 = vpop.f32.mrb[0].mxu0
        %1454 = vmatprep.mubr.f32.mxu0 0.0
        %1455 = vmatmul.mubr.f32.gmra.mrb[0].mxu0 %v1383
        %v1456 = vpop.f32.mrb[0].mxu0
        %v1457 = vadd.f32 0.0, %v1456
        %v1458 = vpop.f32.mrb[0].mxu0
        %1459 = vdwg.mxu0
        %v1460 = vadd.f32 %v1338, %v1452
        %v1461 = vadd.f32 %v1339, %v1457
        %1462 = vst.msk [vmem:[#allocation2] sm:$0xff] %vm1135, %v1460
        %1463 = vst.msk [vmem:[#allocation2 + $0x8] sm:$0xff] %vm1135, %v1461
        %v1464 = vmul.f32 %v1325, 0.25
        %v1465 = vsel %vm1135, %v1464, 0.0
        %1466 = vadd.xlane.f32.xlu0 %v1465
        %v1467 = vpop.xlane.xlu0 %1466
        %v1468 = vrcp.pop 16.0
        %v1469 = vmul.f32 %v1467, %v1468
        %v1470 = vsub.f32 %v1464, %v1469
        %v1471 = vmul.f32 %v1470, %v1470
        %v1472 = vsel %vm1135, %v1471, 0.0
        %1473 = vadd.xlane.f32.xlu0 %v1472
        %v1474 = vpop.xlane.xlu0 %1473
        %v1475 = vmul.f32 %v1474, %v1468
        %v1476 = vadd.f32 %v1475, 1e-05
        %v1477 = vrsqrt.pop %v1476
        %v1478 = vmul.f32 %v1470, %v1477
        %v1479 = vld [vmem:[#allocation21] sm:$0x1]
        %v1481 = vlaneseq
        %v1482 = vshrl.u32 %v1481, 7
        %v1483 = vsub.s32 0, %v1482
        %v1484 = vrot.slane %v1479, %v1483
        %v1486 = vmul.f32 %v1478, %v1484
        %v1487 = vld [vmem:[#allocation23] sm:$0x1]
        %v1489 = vlaneseq
        %v1490 = vshrl.u32 %v1489, 7
        %v1491 = vsub.s32 0, %v1490
        %v1492 = vrot.slane %v1487, %v1491
        %v1494 = vadd.f32 %v1486, %v1492
        %v1495 = vpack.c.bf16 %v1494, %v1494
        %vm1496 = vcmask 125952
        %1497 = vst.msk [vmem:[#allocation8] sm:$0xf] %vm1496, %v1495
        %v1498 = vld [vmem:[%s1143] sm:$0xff]
        %v1499 = vld [vmem:[%s1149] sm:$0xff]
        %v1500 = vld [vmem:[%s1155] sm:$0xff]
        %s1501 = scalar_lea.vmem [#allocation2], 16
        %v1502 = vld [vmem:[%s1501] sm:$0xff]
        %v1503 = vld [vmem:[%s1501 + $0x8] sm:$0xff]
        %v1505 = vsel %vm1135, %v1498, 0
        %v1508 = vsel %vm1135, %v1499, 0
        %1510 = vmatprep.subr.mxu0 0.0
        %1511 = vmatpush1.xpose.msra.mxu0 %v1508
        %1512 = vmatprep.subr.mxu0 0.0
        %1513 = vmatpush1.xpose.msra.mxu0 0.0
        %1514 = vmatprep.subr.mxu0 0.0
        %1515 = vmatpush1.xpose.msra.mxu0 0.0
        %1516 = vmatprep.subr.mxu0 0.0
        %1517 = vmatpush1.xpose.msra.mxu0 0.0
        %1518 = vmatprep.subr.mxu0 0.0
        %1519 = vmatpush1.xpose.msra.mxu0 0.0
        %1520 = vmatprep.subr.mxu0 0.0
        %1521 = vmatpush1.xpose.msra.mxu0 0.0
        %1522 = vmatprep.subr.mxu0 0.0
        %1523 = vmatpush1.xpose.msra.mxu0 0.0
        %1524 = vmatprep.subr.mxu0 0.0
        %1525 = vmatpush1.xpose.msra.mxu0 0.0
        %1526 = vmatprep.subr.mxu0 0.0
        %1527 = vmatpush1.xpose.msra.mxu0 0.0
        %1528 = vmatprep.subr.mxu0 0.0
        %1529 = vmatpush1.xpose.msra.mxu0 0.0
        %1530 = vmatprep.subr.mxu0 0.0
        %1531 = vmatpush1.xpose.msra.mxu0 0.0
        %1532 = vmatprep.subr.mxu0 0.0
        %1533 = vmatpush1.xpose.msra.mxu0 0.0
        %1534 = vmatprep.subr.mxu0 0.0
        %1535 = vmatpush1.xpose.msra.mxu0 0.0
        %1536 = vmatprep.subr.mxu0 0.0
        %1537 = vmatpush1.xpose.msra.mxu0 0.0
        %1538 = vmatprep.subr.mxu0 0.0
        %1539 = vmatpush1.xpose.msra.mxu0 0.0
        %1540 = vmatprep.subr.mxu0 0.0
        %1541 = vmatpush1.xpose.msra.mxu0 0.0
        %1542 = vmatprep.subr.mxu0 0.0
        %1543 = vmatpush1.xpose.msra.mxu0 0.0
        %1544 = vmatprep.subr.mxu0 0.0
        %1545 = vmatpush1.xpose.msra.mxu0 0.0
        %1546 = vmatprep.subr.mxu0 0.0
        %1547 = vmatpush1.xpose.msra.mxu0 0.0
        %1548 = vmatprep.subr.mxu0 0.0
        %1549 = vmatpush1.xpose.msra.mxu0 0.0
        %1550 = vmatprep.subr.mxu0 0.0
        %1551 = vmatpush1.xpose.msra.mxu0 0.0
        %1552 = vmatprep.subr.mxu0 0.0
        %1553 = vmatpush1.xpose.msra.mxu0 0.0
        %1554 = vmatprep.subr.mxu0 0.0
        %1555 = vmatpush1.xpose.msra.mxu0 0.0
        %1556 = vmatprep.subr.mxu0 0.0
        %1557 = vmatpush1.xpose.msra.mxu0 0.0
        %1558 = vmatprep.subr.mxu0 0.0
        %1559 = vmatpush1.xpose.msra.mxu0 0.0
        %1560 = vmatprep.subr.mxu0 0.0
        %1561 = vmatpush1.xpose.msra.mxu0 0.0
        %1562 = vmatprep.subr.mxu0 0.0
        %1563 = vmatpush1.xpose.msra.mxu0 0.0
        %1564 = vmatprep.subr.mxu0 0.0
        %1565 = vmatpush1.xpose.msra.mxu0 0.0
        %1566 = vmatprep.subr.mxu0 0.0
        %1567 = vmatpush1.xpose.msra.mxu0 0.0
        %1568 = vmatprep.subr.mxu0 0.0
        %1569 = vmatpush1.xpose.msra.mxu0 0.0
        %1570 = vmatprep.subr.mxu0 0.0
        %1571 = vmatpush1.xpose.msra.mxu0 0.0
        %1572 = vmatprep.subr.mxu0 0.0
        %1573 = vmatpush1.xpose.msra.mxu0 0.0
        %1574 = vmatprep.mubr.f32.mxu0 0.0
        %1575 = vmatmul.mubr.f32.gmra.mrb[0].mxu0 %v1505
        %v1576 = vpop.f32.mrb[0].mxu0
        %v1577 = vadd.f32 0.0, %v1576
        %v1578 = vpop.f32.mrb[0].mxu0
        %1579 = vdwg.mxu0
        %s1580 = scalar_lea.vmem [#allocation24], 4
        %v1581 = vld [vmem:[%s1580] sm:$0xf]
        %v1582 = vunpack.c.l.bf16 %v1581
        %v1583 = vmul.f32 %v1577, %v1582
        %s1584 = scalar_lea.vmem %s16, 8
        %v1585 = vld [vmem:[%s1584] sm:$0xff]
        %1587 = vset.pattern.permute.xlu0 0
        %1588 = vperm.xlu0 %1587, %v1585
        %v1589 = vpop.permute.xlu0 %1588
        %v1591 = vmul.f32 %v1498, %v1589
        %1593 = vrot.lane.b32.xlu0 %v1591, 8
        %v1594 = vpop.permute.xlu0 %1593
        %v1596 = vsel %vm1252, %v1583, %v1594
        %v1598 = vsel %vm1254, %v1596, 0
        %1600 = vmatprep.subr.mxu0 0.0
        %1601 = vmatpush1.msra.mxu0 %v1500
        %1602 = vmatprep.subr.mxu0 0.0
        %1603 = vmatpush1.msra.mxu0 %v1502
        %1604 = vmatprep.subr.mxu0 0.0
        %1605 = vmatpush1.msra.mxu0 %v1503
        %1606 = vmatprep.subr.mxu0 0.0
        %1607 = vmatpush1.msra.mxu0 0.0
        %1608 = vmatprep.subr.mxu0 0.0
        %1609 = vmatpush1.msra.mxu0 0.0
        %1610 = vmatprep.subr.mxu0 0.0
        %1611 = vmatpush1.msra.mxu0 0.0
        %1612 = vmatprep.subr.mxu0 0.0
        %1613 = vmatpush1.msra.mxu0 0.0
        %1614 = vmatprep.subr.mxu0 0.0
        %1615 = vmatpush1.msra.mxu0 0.0
        %1616 = vmatprep.subr.mxu0 0.0
        %1617 = vmatpush1.msra.mxu0 0.0
        %1618 = vmatprep.subr.mxu0 0.0
        %1619 = vmatpush1.msra.mxu0 0.0
        %1620 = vmatprep.subr.mxu0 0.0
        %1621 = vmatpush1.msra.mxu0 0.0
        %1622 = vmatprep.subr.mxu0 0.0
        %1623 = vmatpush1.msra.mxu0 0.0
        %1624 = vmatprep.subr.mxu0 0.0
        %1625 = vmatpush1.msra.mxu0 0.0
        %1626 = vmatprep.subr.mxu0 0.0
        %1627 = vmatpush1.msra.mxu0 0.0
        %1628 = vmatprep.subr.mxu0 0.0
        %1629 = vmatpush1.msra.mxu0 0.0
        %1630 = vmatprep.subr.mxu0 0.0
        %1631 = vmatpush1.msra.mxu0 0.0
        %1632 = vmatprep.subr.mxu0 0.0
        %1633 = vmatpush1.msra.mxu0 0.0
        %1634 = vmatprep.subr.mxu0 0.0
        %1635 = vmatpush1.msra.mxu0 0.0
        %1636 = vmatprep.subr.mxu0 0.0
        %1637 = vmatpush1.msra.mxu0 0.0
        %1638 = vmatprep.subr.mxu0 0.0
        %1639 = vmatpush1.msra.mxu0 0.0
        %1640 = vmatprep.subr.mxu0 0.0
        %1641 = vmatpush1.msra.mxu0 0.0
        %1642 = vmatprep.subr.mxu0 0.0
        %1643 = vmatpush1.msra.mxu0 0.0
        %1644 = vmatprep.subr.mxu0 0.0
        %1645 = vmatpush1.msra.mxu0 0.0
        %1646 = vmatprep.subr.mxu0 0.0
        %1647 = vmatpush1.msra.mxu0 0.0
        %1648 = vmatprep.subr.mxu0 0.0
        %1649 = vmatpush1.msra.mxu0 0.0
        %1650 = vmatprep.subr.mxu0 0.0
        %1651 = vmatpush1.msra.mxu0 0.0
        %1652 = vmatprep.subr.mxu0 0.0
        %1653 = vmatpush1.msra.mxu0 0.0
        %1654 = vmatprep.subr.mxu0 0.0
        %1655 = vmatpush1.msra.mxu0 0.0
        %1656 = vmatprep.subr.mxu0 0.0
        %1657 = vmatpush1.msra.mxu0 0.0
        %1658 = vmatprep.subr.mxu0 0.0
        %1659 = vmatpush1.msra.mxu0 0.0
        %1660 = vmatprep.subr.mxu0 0.0
        %1661 = vmatpush1.msra.mxu0 0.0
        %1662 = vmatprep.subr.mxu0 0.0
        %1663 = vmatpush1.msra.mxu0 0.0
        %1664 = vmatprep.mubr.f32.mxu0 0.0
        %1665 = vmatmul.mubr.f32.gmra.mrb[0].mxu0 %v1598
        %v1666 = vpop.f32.mrb[0].mxu0
        %v1667 = vadd.f32 0.0, %v1666
        %v1668 = vpop.f32.mrb[0].mxu0
        %1669 = vdwg.mxu0
        %s1670 = scalar_lea.vmem %s17, 1
        %v1671 = vld [vmem:[%s1670] sm:$0x1]
        %v1673 = vlaneseq
        %v1674 = vshrl.u32 %v1673, 7
        %v1675 = vsub.s32 0, %v1674
        %v1676 = vrot.slane %v1671, %v1675
        %1677 = vset.pattern.permute.xlu0 0
        %1678 = vperm.xlu0 %1677, %v1676
        %v1679 = vpop.permute.xlu0 %1678
        %v1681 = vmul.f32 %v1679, %v1502
        %v1682 = vmul.f32 %v1679, %v1503
        %s1683 = scalar_lea.vmem %s15, 8
        %v1684 = vld [vmem:[%s1683] sm:$0xff]
        %1686 = vset.pattern.permute.xlu0 0
        %1687 = vperm.xlu0 %1686, %v1684
        %v1688 = vpop.permute.xlu0 %1687
        %v1690 = vmul.f32 %v1499, %v1688
        %1691 = vxpose.xlu0.b32.start [1/16] %v1690, 128
        %1692 = vxpose.xlu0.b32.cont [2/16] 0.0, 128
        %1693 = vxpose.xlu0.b32.cont [3/16] 0.0, 128
        %1694 = vxpose.xlu0.b32.cont [4/16] 0.0, 128
        %1695 = vxpose.xlu0.b32.cont [5/16] 0.0, 128
        %1696 = vxpose.xlu0.b32.cont [6/16] 0.0, 128
        %1697 = vxpose.xlu0.b32.cont [7/16] 0.0, 128
        %1698 = vxpose.xlu0.b32.cont [8/16] 0.0, 128
        %1699 = vxpose.xlu0.b32.cont [9/16] 0.0, 128
        %1700 = vxpose.xlu0.b32.cont [10/16] 0.0, 128
        %1701 = vxpose.xlu0.b32.cont [11/16] 0.0, 128
        %1702 = vxpose.xlu0.b32.cont [12/16] 0.0, 128
        %1703 = vxpose.xlu0.b32.cont [13/16] 0.0, 128
        %1704 = vxpose.xlu0.b32.cont [14/16] 0.0, 128
        %1705 = vxpose.xlu0.b32.cont [15/16] 0.0, 128
        %1706 = vxpose.xlu0.b32.end [16/16] 0.0, 128
        %v1707 = vpop.trf.xlu0
        %v1708 = vpop.trf.xlu0
        %v1709 = vpop.trf.xlu0
        %v1710 = vpop.trf.xlu0
        %v1711 = vpop.trf.xlu0
        %v1712 = vpop.trf.xlu0
        %v1713 = vpop.trf.xlu0
        %v1714 = vpop.trf.xlu0
        %v1715 = vpop.trf.xlu0
        %v1716 = vpop.trf.xlu0
        %v1717 = vpop.trf.xlu0
        %v1718 = vpop.trf.xlu0
        %v1719 = vpop.trf.xlu0
        %v1720 = vpop.trf.xlu0
        %v1721 = vpop.trf.xlu0
        %v1722 = vpop.trf.xlu0
        %v1724 = vsel %vm1252, %v1707, 0
        %v1727 = vsel %vm1252, %v1708, 0
        %1729 = vmatprep.subr.mxu0 0.0
        %1730 = vmatpush1.msra.mxu0 %v1500
        %1731 = vmatprep.subr.mxu0 0.0
        %1732 = vmatpush1.msra.mxu0 0.0
        %1733 = vmatprep.subr.mxu0 0.0
        %1734 = vmatpush1.msra.mxu0 0.0
        %1735 = vmatprep.subr.mxu0 0.0
        %1736 = vmatpush1.msra.mxu0 0.0
        %1737 = vmatprep.subr.mxu0 0.0
        %1738 = vmatpush1.msra.mxu0 0.0
        %1739 = vmatprep.subr.mxu0 0.0
        %1740 = vmatpush1.msra.mxu0 0.0
        %1741 = vmatprep.subr.mxu0 0.0
        %1742 = vmatpush1.msra.mxu0 0.0
        %1743 = vmatprep.subr.mxu0 0.0
        %1744 = vmatpush1.msra.mxu0 0.0
        %1745 = vmatprep.subr.mxu0 0.0
        %1746 = vmatpush1.msra.mxu0 0.0
        %1747 = vmatprep.subr.mxu0 0.0
        %1748 = vmatpush1.msra.mxu0 0.0
        %1749 = vmatprep.subr.mxu0 0.0
        %1750 = vmatpush1.msra.mxu0 0.0
        %1751 = vmatprep.subr.mxu0 0.0
        %1752 = vmatpush1.msra.mxu0 0.0
        %1753 = vmatprep.subr.mxu0 0.0
        %1754 = vmatpush1.msra.mxu0 0.0
        %1755 = vmatprep.subr.mxu0 0.0
        %1756 = vmatpush1.msra.mxu0 0.0
        %1757 = vmatprep.subr.mxu0 0.0
        %1758 = vmatpush1.msra.mxu0 0.0
        %1759 = vmatprep.subr.mxu0 0.0
        %1760 = vmatpush1.msra.mxu0 0.0
        %1761 = vmatprep.subr.mxu0 0.0
        %1762 = vmatpush1.msra.mxu0 0.0
        %1763 = vmatprep.subr.mxu0 0.0
        %1764 = vmatpush1.msra.mxu0 0.0
        %1765 = vmatprep.subr.mxu0 0.0
        %1766 = vmatpush1.msra.mxu0 0.0
        %1767 = vmatprep.subr.mxu0 0.0
        %1768 = vmatpush1.msra.mxu0 0.0
        %1769 = vmatprep.subr.mxu0 0.0
        %1770 = vmatpush1.msra.mxu0 0.0
        %1771 = vmatprep.subr.mxu0 0.0
        %1772 = vmatpush1.msra.mxu0 0.0
        %1773 = vmatprep.subr.mxu0 0.0
        %1774 = vmatpush1.msra.mxu0 0.0
        %1775 = vmatprep.subr.mxu0 0.0
        %1776 = vmatpush1.msra.mxu0 0.0
        %1777 = vmatprep.subr.mxu0 0.0
        %1778 = vmatpush1.msra.mxu0 0.0
        %1779 = vmatprep.subr.mxu0 0.0
        %1780 = vmatpush1.msra.mxu0 0.0
        %1781 = vmatprep.subr.mxu0 0.0
        %1782 = vmatpush1.msra.mxu0 0.0
        %1783 = vmatprep.subr.mxu0 0.0
        %1784 = vmatpush1.msra.mxu0 0.0
        %1785 = vmatprep.subr.mxu0 0.0
        %1786 = vmatpush1.msra.mxu0 0.0
        %1787 = vmatprep.subr.mxu0 0.0
        %1788 = vmatpush1.msra.mxu0 0.0
        %1789 = vmatprep.subr.mxu0 0.0
        %1790 = vmatpush1.msra.mxu0 0.0
        %1791 = vmatprep.subr.mxu0 0.0
        %1792 = vmatpush1.msra.mxu0 0.0
        %1793 = vmatprep.mubr.f32.mxu0 0.0
        %1794 = vmatmul.mubr.f32.gmra.mrb[0].mxu0 %v1724
        %v1795 = vpop.f32.mrb[0].mxu0
        %v1796 = vadd.f32 0.0, %v1795
        %v1797 = vpop.f32.mrb[0].mxu0
        %1798 = vmatprep.mubr.f32.mxu0 0.0
        %1799 = vmatmul.mubr.f32.gmra.mrb[0].mxu0 %v1727
        %v1800 = vpop.f32.mrb[0].mxu0
        %v1801 = vadd.f32 0.0, %v1800
        %v1802 = vpop.f32.mrb[0].mxu0
        %1803 = vdwg.mxu0
        %v1804 = vadd.f32 %v1681, %v1796
        %v1805 = vadd.f32 %v1682, %v1801
        %1806 = vst.msk [vmem:[%s1501] sm:$0xff] %vm1135, %v1804
        %1807 = vst.msk [vmem:[%s1501 + $0x8] sm:$0xff] %vm1135, %v1805
        %v1808 = vmul.f32 %v1667, 0.25
        %v1809 = vsel %vm1135, %v1808, 0.0
        %1810 = vadd.xlane.f32.xlu0 %v1809
        %v1811 = vpop.xlane.xlu0 %1810
        %v1812 = vmul.f32 %v1811, %v1468
        %v1813 = vsub.f32 %v1808, %v1812
        %v1814 = vmul.f32 %v1813, %v1813
        %v1815 = vsel %vm1135, %v1814, 0.0
        %1816 = vadd.xlane.f32.xlu0 %v1815
        %v1817 = vpop.xlane.xlu0 %1816
        %v1818 = vmul.f32 %v1817, %v1468
        %v1819 = vadd.f32 %v1818, 1e-05
        %v1820 = vrsqrt.pop %v1819
        %v1821 = vmul.f32 %v1813, %v1820
        %s1822 = scalar_lea.vmem [#allocation21], 1
        %v1823 = vld [vmem:[%s1822] sm:$0x1]
        %v1825 = vlaneseq
        %v1826 = vshrl.u32 %v1825, 7
        %v1827 = vsub.s32 0, %v1826
        %v1828 = vrot.slane %v1823, %v1827
        %v1830 = vmul.f32 %v1821, %v1828
        %s1831 = scalar_lea.vmem [#allocation23], 1
        %v1832 = vld [vmem:[%s1831] sm:$0x1]
        %v1834 = vlaneseq
        %v1835 = vshrl.u32 %v1834, 7
        %v1836 = vsub.s32 0, %v1835
        %v1837 = vrot.slane %v1832, %v1836
        %v1839 = vadd.f32 %v1830, %v1837
        %v1840 = vpack.c.bf16 %v1839, %v1839
        %s1841 = scalar_lea.vmem [#allocation8], 4
        %1842 = vst.msk [vmem:[%s1841] sm:$0xf] %vm1496, %v1840
        %v1843 = vld [vmem:[#allocation8] sm:$0xf]
        %v1844 = vld [vmem:[%s1841] sm:$0xf]
        %v1846 = vunpack.c.l.b16 %v1844
        %v1847 = vpack.c.b16 %v1846, %v1846
        %1848 = vrot.lane.b32.xlu0 %v1847, 16
        %v1849 = vpop.permute.xlu0 %1848
        %v1852 = vsel %vm1135, %v1843, %v1849
        %v1853 = vld [vmem:[%s11] sm:$0xf]
        %v1854 = vld [vmem:[%s11 + $0x4] sm:$0xf]
        %v1855 = vld [vmem:[%s11 + $0x8] sm:$0xf]
        %v1856 = vld [vmem:[%s11 + $0xc] sm:$0xf]
        %v1861 = vunpack.c.l.b16 %v1853
        %v1862 = vunpack.c.l.b16 %v1854
        %v1863 = vunpack.c.l.b16 %v1855
        %v1864 = vunpack.c.l.b16 %v1856
        %v1865 = vpack.c.b16 %v1862, %v1861
        %v1866 = vpack.c.b16 %v1864, %v1863
        %v1869 = vsel %vm885, %v1852, 0
        %1871 = vmatprep.subr.bf16.mxu0 0
        %1872 = vmatpush1.bf16.msra.mxu0 %v1865
        %1873 = vmatprep.subr.bf16.mxu0 0
        %1874 = vmatpush1.bf16.msra.mxu0 %v1866
        %1875 = vmatprep.subr.bf16.mxu0 0
        %1876 = vmatpush1.bf16.msra.mxu0 0
        %1877 = vmatprep.subr.bf16.mxu0 0
        %1878 = vmatpush1.bf16.msra.mxu0 0
        %1879 = vmatprep.subr.bf16.mxu0 0
        %1880 = vmatpush1.bf16.msra.mxu0 0
        %1881 = vmatprep.subr.bf16.mxu0 0
        %1882 = vmatpush1.bf16.msra.mxu0 0
        %1883 = vmatprep.subr.bf16.mxu0 0
        %1884 = vmatpush1.bf16.msra.mxu0 0
        %1885 = vmatprep.subr.bf16.mxu0 0
        %1886 = vmatpush1.bf16.msra.mxu0 0
        %1887 = vmatprep.subr.bf16.mxu0 0
        %1888 = vmatpush1.bf16.msra.mxu0 0
        %1889 = vmatprep.subr.bf16.mxu0 0
        %1890 = vmatpush1.bf16.msra.mxu0 0
        %1891 = vmatprep.subr.bf16.mxu0 0
        %1892 = vmatpush1.bf16.msra.mxu0 0
        %1893 = vmatprep.subr.bf16.mxu0 0
        %1894 = vmatpush1.bf16.msra.mxu0 0
        %1895 = vmatprep.subr.bf16.mxu0 0
        %1896 = vmatpush1.bf16.msra.mxu0 0
        %1897 = vmatprep.subr.bf16.mxu0 0
        %1898 = vmatpush1.bf16.msra.mxu0 0
        %1899 = vmatprep.subr.bf16.mxu0 0
        %1900 = vmatpush1.bf16.msra.mxu0 0
        %1901 = vmatprep.subr.bf16.mxu0 0
        %1902 = vmatpush1.bf16.msra.mxu0 0
        %1903 = vmatprep.mubr.bf16.mxu0 0
        %1904 = vmatmul.mubr.bf16.gmra.mrb[0].mxu0 %v1869
        %v1905 = vpop.f32.mrb[0].mxu0
        %v1906 = vadd.f32 0.0, %v1905
        %v1907 = vpop.f32.mrb[0].mxu0
        %v1908 = vpop.f32.mrb[0].mxu0
        %v1909 = vpop.f32.mrb[0].mxu0
        %1910 = vdwg.mxu0
        %v1911 = vadd.f32 %v879, %v1906
        %v1912 = vld [vmem:[#allocation14] sm:$0x1]
        %v1913 = vld [vmem:[#allocation15] sm:$0x1]
        %v1914 = vsel %vm885, %v1911, 0.0
        %1915 = vadd.xlane.f32.xlu0 %v1914
        %v1916 = vpop.xlane.xlu0 %1915
        %v1917 = vmul.f32 %v1916, %v889
        %v1918 = vsub.f32 %v1911, %v1917
        %v1919 = vmul.f32 %v1918, %v1918
        %v1920 = vsel %vm885, %v1919, 0.0
        %1921 = vadd.xlane.f32.xlu0 %v1920
        %v1922 = vpop.xlane.xlu0 %1921
        %v1923 = vmul.f32 %v1922, %v889
        %v1924 = vadd.f32 %v1923, 1e-05
        %v1925 = vrsqrt.pop %v1924
        %v1926 = vmul.f32 %v1918, %v1925
        %v1928 = vlaneseq
        %v1929 = vshrl.u32 %v1928, 7
        %v1930 = vsub.s32 0, %v1929
        %v1931 = vrot.slane %v1912, %v1930
        %v1933 = vmul.f32 %v1926, %v1931
        %v1935 = vlaneseq
        %v1936 = vshrl.u32 %v1935, 7
        %v1937 = vsub.s32 0, %v1936
        %v1938 = vrot.slane %v1913, %v1937
        %v1940 = vadd.f32 %v1933, %v1938
        %v1941 = vld [vmem:[#allocation4] sm:$0x1]
        %v1942 = vrot.slane %v1940, 7
        %v1944 = vlaneseq
        %v1945 = vshrl.u32 %v1944, 7
        %v1946 = vsub.s32 0, %v1945
        %v1947 = vrot.slane %v1941, %v1946
        %v1949 = vsel %vm917, %v1947, %v1942
        %1950 = vst.msk [vmem:[#allocation4 - $0x7] sm:$0x80] %vm925, %v1940
        %v1951 = vsub.f32 %v1940, %v1949
        %v1952 = vld [vmem:[%s18] sm:$0x1]
        %v1954 = vlaneseq
        %v1955 = vshrl.u32 %v1954, 7
        %v1956 = vsub.s32 0, %v1955
        %v1957 = vrot.slane %v1952, %v1956
        %v1959 = vmul.f32 %v1957, %v1951
        %v1960 = vadd.f32 %v1949, %v1959
        %v1961 = vpack.c.bf16 %v1960, %v1960
        %v1962 = vld [vmem:[%s19] sm:$0x1]
        %v1964 = vlaneseq
        %v1965 = vshrl.u32 %v1964, 7
        %v1966 = vsub.s32 0, %v1965
        %v1967 = vrot.slane %v1962, %v1966
        %v1969 = vmul.f32 %v1967, %v1951
        %v1970 = vadd.f32 %v1949, %v1969
        %v1971 = vpack.c.bf16 %v1970, %v1970
        %v1972 = vld [vmem:[%s20] sm:$0xf]
        %v1973 = vld [vmem:[%s20 + $0x4] sm:$0xf]
        %v1974 = vld [vmem:[%s20 + $0x8] sm:$0xf]
        %v1975 = vld [vmem:[%s20 + $0xc] sm:$0xf]
        %v1980 = vunpack.c.l.b16 %v1972
        %v1981 = vunpack.c.l.b16 %v1973
        %v1982 = vunpack.c.l.b16 %v1974
        %v1983 = vunpack.c.l.b16 %v1975
        %v1984 = vpack.c.b16 %v1981, %v1980
        %v1985 = vpack.c.b16 %v1983, %v1982
        %v1989 = vsel %vm885, %v1961, 0
        %1991 = vmatprep.subr.bf16.mxu0 0
        %1992 = vmatpush1.bf16.msra.mxu0 %v1984
        %1993 = vmatprep.subr.bf16.mxu0 0
        %1994 = vmatpush1.bf16.msra.mxu0 %v1985
        %1995 = vmatprep.subr.bf16.mxu0 0
        %1996 = vmatpush1.bf16.msra.mxu0 0
        %1997 = vmatprep.subr.bf16.mxu0 0
        %1998 = vmatpush1.bf16.msra.mxu0 0
        %1999 = vmatprep.subr.bf16.mxu0 0
        %2000 = vmatpush1.bf16.msra.mxu0 0
        %2001 = vmatprep.subr.bf16.mxu0 0
        %2002 = vmatpush1.bf16.msra.mxu0 0
        %2003 = vmatprep.subr.bf16.mxu0 0
        %2004 = vmatpush1.bf16.msra.mxu0 0
        %2005 = vmatprep.subr.bf16.mxu0 0
        %2006 = vmatpush1.bf16.msra.mxu0 0
        %2007 = vmatprep.subr.bf16.mxu0 0
        %2008 = vmatpush1.bf16.msra.mxu0 0
        %2009 = vmatprep.subr.bf16.mxu0 0
        %2010 = vmatpush1.bf16.msra.mxu0 0
        %2011 = vmatprep.subr.bf16.mxu0 0
        %2012 = vmatpush1.bf16.msra.mxu0 0
        %2013 = vmatprep.subr.bf16.mxu0 0
        %2014 = vmatpush1.bf16.msra.mxu0 0
        %2015 = vmatprep.subr.bf16.mxu0 0
        %2016 = vmatpush1.bf16.msra.mxu0 0
        %2017 = vmatprep.subr.bf16.mxu0 0
        %2018 = vmatpush1.bf16.msra.mxu0 0
        %2019 = vmatprep.subr.bf16.mxu0 0
        %2020 = vmatpush1.bf16.msra.mxu0 0
        %2021 = vmatprep.subr.bf16.mxu0 0
        %2022 = vmatpush1.bf16.msra.mxu0 0
        %2023 = vmatprep.mubr.bf16.mxu0 0
        %2024 = vmatmul.mubr.bf16.gmra.mrb[0].mxu0 %v1989
        %v2025 = vpop.f32.mrb[0].mxu0
        %v2026 = vadd.f32 0.0, %v2025
        %v2027 = vpop.f32.mrb[0].mxu0
        %v2028 = vpop.f32.mrb[0].mxu0
        %v2029 = vpop.f32.mrb[0].mxu0
        %2030 = vdwg.mxu0
        %v2031 = vmax.f32 %v2026, 0.0
        %v2032 = vmul.f32 %v2031, %v2031
        %v2033 = vpack.c.bf16 %v2032, %v2032
        %v2034 = vld [vmem:[%s21] sm:$0xf]
        %v2035 = vld [vmem:[%s21 + $0x4] sm:$0xf]
        %v2036 = vld [vmem:[%s21 + $0x8] sm:$0xf]
        %v2037 = vld [vmem:[%s21 + $0xc] sm:$0xf]
        %v2038 = vld [vmem:[%s21 + $0x10] sm:$0xf]
        %v2039 = vld [vmem:[%s21 + $0x14] sm:$0xf]
        %v2040 = vld [vmem:[%s21 + $0x18] sm:$0xf]
        %v2041 = vld [vmem:[%s21 + $0x1c] sm:$0xf]
        %v2050 = vunpack.c.l.b16 %v2034
        %v2051 = vunpack.c.l.b16 %v2035
        %v2052 = vunpack.c.l.b16 %v2036
        %v2053 = vunpack.c.l.b16 %v2037
        %v2054 = vunpack.c.l.b16 %v2038
        %v2055 = vunpack.c.l.b16 %v2039
        %v2056 = vunpack.c.l.b16 %v2040
        %v2057 = vunpack.c.l.b16 %v2041
        %v2058 = vpack.c.b16 %v2051, %v2050
        %v2059 = vpack.c.b16 %v2053, %v2052
        %v2060 = vpack.c.b16 %v2055, %v2054
        %v2061 = vpack.c.b16 %v2057, %v2056
        %vm2066 = vcmask 523264
        %v2068 = vsel %vm2066, %v2033, 0
        %2070 = vmatprep.subr.bf16.mxu0 0
        %2071 = vmatpush1.bf16.msra.mxu0 %v2058
        %2072 = vmatprep.subr.bf16.mxu0 0
        %2073 = vmatpush1.bf16.msra.mxu0 %v2059
        %2074 = vmatprep.subr.bf16.mxu0 0
        %2075 = vmatpush1.bf16.msra.mxu0 %v2060
        %2076 = vmatprep.subr.bf16.mxu0 0
        %2077 = vmatpush1.bf16.msra.mxu0 %v2061
        %2078 = vmatprep.subr.bf16.mxu0 0
        %2079 = vmatpush1.bf16.msra.mxu0 0
        %2080 = vmatprep.subr.bf16.mxu0 0
        %2081 = vmatpush1.bf16.msra.mxu0 0
        %2082 = vmatprep.subr.bf16.mxu0 0
        %2083 = vmatpush1.bf16.msra.mxu0 0
        %2084 = vmatprep.subr.bf16.mxu0 0
        %2085 = vmatpush1.bf16.msra.mxu0 0
        %2086 = vmatprep.subr.bf16.mxu0 0
        %2087 = vmatpush1.bf16.msra.mxu0 0
        %2088 = vmatprep.subr.bf16.mxu0 0
        %2089 = vmatpush1.bf16.msra.mxu0 0
        %2090 = vmatprep.subr.bf16.mxu0 0
        %2091 = vmatpush1.bf16.msra.mxu0 0
        %2092 = vmatprep.subr.bf16.mxu0 0
        %2093 = vmatpush1.bf16.msra.mxu0 0
        %2094 = vmatprep.subr.bf16.mxu0 0
        %2095 = vmatpush1.bf16.msra.mxu0 0
        %2096 = vmatprep.subr.bf16.mxu0 0
        %2097 = vmatpush1.bf16.msra.mxu0 0
        %2098 = vmatprep.subr.bf16.mxu0 0
        %2099 = vmatpush1.bf16.msra.mxu0 0
        %2100 = vmatprep.subr.bf16.mxu0 0
        %2101 = vmatpush1.bf16.msra.mxu0 0
        %2102 = vmatprep.mubr.bf16.mxu0 0
        %2103 = vmatmul.mubr.bf16.gmra.mrb[0].mxu0 %v2068
        %v2104 = vpop.f32.mrb[0].mxu0
        %v2105 = vadd.f32 0.0, %v2104
        %v2106 = vpop.f32.mrb[0].mxu0
        %v2107 = vpop.f32.mrb[0].mxu0
        %v2108 = vpop.f32.mrb[0].mxu0
        %2109 = vdwg.mxu0
        %v2110 = vld [vmem:[%s22] sm:$0xf]
        %v2111 = vld [vmem:[%s22 + $0x4] sm:$0xf]
        %v2112 = vld [vmem:[%s22 + $0x8] sm:$0xf]
        %v2113 = vld [vmem:[%s22 + $0xc] sm:$0xf]
        %v2118 = vunpack.c.l.b16 %v2110
        %v2119 = vunpack.c.l.b16 %v2111
        %v2120 = vunpack.c.l.b16 %v2112
        %v2121 = vunpack.c.l.b16 %v2113
        %v2122 = vpack.c.b16 %v2119, %v2118
        %v2123 = vpack.c.b16 %v2121, %v2120
        %v2127 = vsel %vm885, %v1971, 0
        %2129 = vmatprep.subr.bf16.mxu0 0
        %2130 = vmatpush1.bf16.msra.mxu0 %v2122
        %2131 = vmatprep.subr.bf16.mxu0 0
        %2132 = vmatpush1.bf16.msra.mxu0 %v2123
        %2133 = vmatprep.subr.bf16.mxu0 0
        %2134 = vmatpush1.bf16.msra.mxu0 0
        %2135 = vmatprep.subr.bf16.mxu0 0
        %2136 = vmatpush1.bf16.msra.mxu0 0
        %2137 = vmatprep.subr.bf16.mxu0 0
        %2138 = vmatpush1.bf16.msra.mxu0 0
        %2139 = vmatprep.subr.bf16.mxu0 0
        %2140 = vmatpush1.bf16.msra.mxu0 0
        %2141 = vmatprep.subr.bf16.mxu0 0
        %2142 = vmatpush1.bf16.msra.mxu0 0
        %2143 = vmatprep.subr.bf16.mxu0 0
        %2144 = vmatpush1.bf16.msra.mxu0 0
        %2145 = vmatprep.subr.bf16.mxu0 0
        %2146 = vmatpush1.bf16.msra.mxu0 0
        %2147 = vmatprep.subr.bf16.mxu0 0
        %2148 = vmatpush1.bf16.msra.mxu0 0
        %2149 = vmatprep.subr.bf16.mxu0 0
        %2150 = vmatpush1.bf16.msra.mxu0 0
        %2151 = vmatprep.subr.bf16.mxu0 0
        %2152 = vmatpush1.bf16.msra.mxu0 0
        %2153 = vmatprep.subr.bf16.mxu0 0
        %2154 = vmatpush1.bf16.msra.mxu0 0
        %2155 = vmatprep.subr.bf16.mxu0 0
        %2156 = vmatpush1.bf16.msra.mxu0 0
        %2157 = vmatprep.subr.bf16.mxu0 0
        %2158 = vmatpush1.bf16.msra.mxu0 0
        %2159 = vmatprep.subr.bf16.mxu0 0
        %2160 = vmatpush1.bf16.msra.mxu0 0
        %2161 = vmatprep.mubr.bf16.mxu0 0
        %2162 = vmatmul.mubr.bf16.gmra.mrb[0].mxu0 %v2127
        %v2163 = vpop.f32.mrb[0].mxu0
        %v2164 = vadd.f32 0.0, %v2163
        %v2165 = vpop.f32.mrb[0].mxu0
        %v2166 = vpop.f32.mrb[0].mxu0
        %v2167 = vpop.f32.mrb[0].mxu0
        %2168 = vdwg.mxu0
        %v2169 = vxor.u32 %v2164, 2147483648
        %v2170 = vmul.f32 %v2169, 1.442695
        %v2171 = vpow.pop %v2170
        %v2172 = vadd.f32 %v2171, 1.0
        %v2173 = vrcp.pop %v2172
        %v2174 = vmul.f32 1.0, %v2173
        %v2175 = vmul.f32 %v2174, %v2105
        %v2176 = vadd.f32 %v1911, %v2175
        %2177 = vst.msk [vmem:[%s857] sm:$0xff] %vm885, %v2176
        %s2178 = sand.u32 %s555, 1
        %s2179 = scalar_lea.sflag [#allocation11], %s2178
        %s2180 = sand.u32 %s555, 1
        %s2181 = smul.addr %s2180, 8
        %s2182 = scalar_lea.vmem [#allocation26], %s2181
        // Predicated region
        $region157: #{tpu_custom_call.1} parent=111 // pred_check
          %p2183 = pneg %p565
        $region158: #{tpu_custom_call.1} parent=111 // pred_check_branch
          %2185 = sbr.rel (%p2183) target = $region160
        $region159: #{tpu_custom_call.1} parent=111 // pred_region
          %s2187 = ssub.s32 128, 128
          %2188 = vsyncadd %s2179, %s2187
          %s2189 = smul.addr %s47, 2
          %s2190 = sadd.s32 %s48, %s2189
          %s2191 = smul.addr %s2190, 128
          %s2192 = scalar_lea.hbm %s23, %s2191
          %s2194 = sshll.u32 %s2182, 4
          %s2195 = int_to_ptr.vmem [resolvable:$true] %s2194
          %2197 = dma.vmem_to_hbm [thread:$0]  %s2195, 128, %s2192, %s2179
        $region160: #{tpu_custom_call.1} parent=111 // pred_fallthru
          _
      $region112: #{tpu_custom_call.1} parent=5 // pred_fallthru
        _
      %p2198 = scmp.le.s32.totalorder 2, %s38
      // Predicated region
      $region161: #{tpu_custom_call.1} parent=5 // pred_check
        %p2199 = pneg %p2198
      $region162: #{tpu_custom_call.1} parent=5 // pred_check_branch
        %2201 = sbr.rel (%p2199) target = $region164
      $region163: #{tpu_custom_call.1} parent=5 // pred_region
        %s2202 = ssub.s32 %s38, 2
        // Predicated region
        $region165: #{tpu_custom_call.1} parent=163 // pred_check
          %p2203 = pneg %p571
        $region166: #{tpu_custom_call.1} parent=163 // pred_check_branch
          %2205 = sbr.rel (%p2203) target = $region168
        $region167: #{tpu_custom_call.1} parent=163 // pred_region
          %s2206 = sand.u32 %s556, 1
          %s2207 = scalar_lea.sflag [#allocation11], %s2206
          %s2208 = sand.u32 %s556, 1
          %s2209 = smul.addr %s2208, 8
          %s2210 = scalar_lea.vmem [#allocation26], %s2209
          %2211 = dma.done %s2207, 128
        $region168: #{tpu_custom_call.1} parent=163 // pred_fallthru
          _
      $region164: #{tpu_custom_call.1} parent=5 // pred_fallthru
        _
    $region6: #{tpu_custom_call.1} parent=1 // loop_footer
      %s42 = sadd.s32 1, %s38
    $region7: #{tpu_custom_call.1} parent=1 // loop_footer_branch
      %37 = sbr.rel target = $region3
    $region8: #{tpu_custom_call.1} parent=1 // loop_exit
      _
    %2212 = vsyncpa [#allocation10], 1
    %s2213 = scalar_lea.sflag [#allocation10], 1
    %2214 = vsyncpa %s2213, 1
    %2215 = vsyncpa [#allocation13], 1
    %2216 = vsyncpa [#allocation16], 1
    %2217 = vsyncpa [#allocation19], 1
    %2218 = vsyncpa [#allocation22], 1
    %2219 = vsyncpa [#allocation25], 1
    %2220 = vsyncpa [#allocation11], 1
    %s2221 = scalar_lea.sflag [#allocation11], 1
    %2222 = vsyncpa %s2221, 1

// kernel: tpu_custom_call.1
$region0: #{tpu_custom_call.1}
  #allocation0 [shape = 'u32[]', space=smem, size = 0x4, offset = 0x4, fixed_abs, tag = 'smem constant byte address 0x4 - core index']
  #allocation1 [shape = 'u32[144,128]{1,0:T(1,128)}', space=vmem, size = 0x12000, scoped, tag = 'internal scratch']
  #allocation2 [shape = 'f32[2,16,16]{2,1,0:T(8,128)}', space=vmem, size = 0x4000, scoped, tag = 'scratch operand']
  #allocation3 [shape = 'f32[1,32]{1,0:T(1,128)}', space=vmem, size = 0x200, scoped, tag = 'scratch operand']
  #allocation4 [shape = 'f32[1,32]{1,0:T(1,128)}', space=vmem, size = 0x200, scoped, tag = 'scratch operand']
  #allocation5 [shape = 'f32[2,8,16]{2,1,0:T(8,128)}', space=vmem, size = 0x2000, scoped, tag = 'scratch operand']
  #allocation6 [shape = 'f32[2,8,16]{2,1,0:T(8,128)}', space=vmem, size = 0x2000, scoped, tag = 'scratch operand']
  #allocation7 [shape = 'f32[2,8,16]{2,1,0:T(8,128)}', space=vmem, size = 0x2000, scoped, tag = 'scratch operand']
  #allocation8 [shape = 'bf16[2,8,16]{2,1,0:T(8,128)(2,1)}', space=vmem, size = 0x1000, scoped, tag = 'scratch operand']
  %s0 = inlined_call_operand.vmem [shape: f32[2,16,32], index: 0, kind: input, shape index: {}]
  %s1 = inlined_call_operand.hbm [shape: f32[1,32], index: 1, kind: input, shape index: {}]
  %s2 = inlined_call_operand.hbm [shape: f32[1,32], index: 2, kind: input, shape index: {}]
  %s3 = inlined_call_operand.hbm [shape: f32[1,32], index: 3, kind: input, shape index: {}]
  %s4 = inlined_call_operand.hbm [shape: f32[1,32], index: 4, kind: input, shape index: {}]
  %s5 = inlined_call_operand.hbm [shape: f32[1,32], index: 5, kind: input, shape index: {}]
  %s6 = inlined_call_operand.hbm [shape: f32[1,32], index: 6, kind: input, shape index: {}]
  %s7 = inlined_call_operand.hbm [shape: f32[1,32], index: 7, kind: input, shape index: {}]
  %s8 = inlined_call_operand.vmem [shape: bf16[32,32], index: 8, kind: input, shape index: {}]
  %s9 = inlined_call_operand.vmem [shape: bf16[32,32], index: 9, kind: input, shape index: {}]
  %s10 = inlined_call_operand.vmem [shape: bf16[32,32], index: 10, kind: input, shape index: {}]
  %s11 = inlined_call_operand.vmem [shape: bf16[32,32], index: 11, kind: input, shape index: {}]
  %s12 = inlined_call_operand.hbm [shape: f32[2,1,16], index: 12, kind: input, shape index: {}]
  %s13 = inlined_call_operand.hbm [shape: f32[2,1,16], index: 13, kind: input, shape index: {}]
  %s14 = inlined_call_operand.hbm [shape: bf16[2,8,8], index: 14, kind: input, shape index: {}]
  %s15 = inlined_call_operand.vmem [shape: f32[2,8,1], index: 15, kind: input, shape index: {}]
  %s16 = inlined_call_operand.vmem [shape: f32[2,8,1], index: 16, kind: input, shape index: {}]
  %s17 = inlined_call_operand.vmem [shape: f32[2,1,1], index: 17, kind: input, shape index: {}]
  %s18 = inlined_call_operand.vmem [shape: f32[1,32], index: 18, kind: input, shape index: {}]
  %s19 = inlined_call_operand.vmem [shape: f32[1,32], index: 19, kind: input, shape index: {}]
  %s20 = inlined_call_operand.vmem [shape: bf16[32,64], index: 20, kind: input, shape index: {}]
  %s21 = inlined_call_operand.vmem [shape: bf16[64,32], index: 21, kind: input, shape index: {}]
  %s22 = inlined_call_operand.vmem [shape: bf16[32,32], index: 22, kind: input, shape index: {}]
  %s23 = inlined_call_operand.hbm [shape: f32[2,16,32], index: 23, kind: output, shape index: {}]
  %s24 = sld [smem:[#allocation0]]
  $region169: #{tpu_custom_call.1} parent=0
    _
  %s26 = ssub.s32 1, %s24
  %s27 = scalar_select 0, %s26, %s24
  $region1: #{tpu_custom_call.1} parent=0
    #allocation9 [shape = 'u8[512]{0}', space=vmem, size = 0x400, scoped, tag = 'input window, operand 1, single buffered']
    #allocation10 [shape = 's32[2]{0}', space=sflag, size = 0x8, scoped, tag = 'scoped memory for tpu_custom_call.1']
    #allocation11 [shape = 's32[2]{0}', space=sflag, size = 0x8, scoped, tag = 'scoped memory for tpu_custom_call.1']
    #allocation12 [shape = 'u8[512]{0}', space=vmem, size = 0x400, scoped, tag = 'input window, operand 2, single buffered']
    #allocation13 [shape = 's32[1]{0}', space=sflag, size = 0x4, scoped, tag = 'scoped memory for tpu_custom_call.1']
    #allocation14 [shape = 'u8[512]{0}', space=vmem, size = 0x400, scoped, tag = 'input window, operand 3, single buffered']
    #allocation15 [shape = 'u8[512]{0}', space=vmem, size = 0x400, scoped, tag = 'input window, operand 4, single buffered']
    #allocation16 [shape = 's32[1]{0}', space=sflag, size = 0x4, scoped, tag = 'scoped memory for tpu_custom_call.1']
    #allocation17 [shape = 'u8[512]{0}', space=vmem, size = 0x400, scoped, tag = 'input window, operand 5, single buffered']
    #allocation18 [shape = 'u8[512]{0}', space=vmem, size = 0x400, scoped, tag = 'input window, operand 6, single buffered']
    #allocation19 [shape = 's32[1]{0}', space=sflag, size = 0x4, scoped, tag = 'scoped memory for tpu_custom_call.1']
    #allocation20 [shape = 'u8[512]{0}', space=vmem, size = 0x400, scoped, tag = 'input window, operand 7, single buffered']
    #allocation21 [shape = 'u8[1024]{0}', space=vmem, size = 0x400, scoped, tag = 'input window, operand 12, single buffered']
    #allocation22 [shape = 's32[1]{0}', space=sflag, size = 0x4, scoped, tag = 'scoped memory for tpu_custom_call.1']
    #allocation23 [shape = 'u8[1024]{0}', space=vmem, size = 0x400, scoped, tag = 'input window, operand 13, single buffered']
    #allocation24 [shape = 'u8[4096]{0}', space=vmem, size = 0x1000, scoped, tag = 'input window, operand 14, single buffered']
    #allocation25 [shape = 's32[1]{0}', space=sflag, size = 0x4, scoped, tag = 'scoped memory for tpu_custom_call.1']
    #allocation26 [shape = 'u8[8192]{0}', space=vmem, size = 0x2000, scoped, tag = 'output window, operand 0']
    %28 = vsyncpa [#allocation10], 0
    %29 = vsyncpa [#allocation13], 0
    %30 = vsyncpa [#allocation16], 0
    %31 = vsyncpa [#allocation19], 0
    %32 = vsyncpa [#allocation22], 0
    %33 = vsyncpa [#allocation25], 0
    %34 = vsyncpa [#allocation11], 0
    %s35 = scalar_lea.sflag [#allocation11], 1
    %36 = vsyncpa %s35, 0
    loop: start=0, step=1, limit=6
    $region2: #{tpu_custom_call.1} parent=1 // loop_pre_header
      _
    $region3: #{tpu_custom_call.1} parent=1 // loop_header
      %s38 = sphi 0, %s42
      %p39 = scmp.ge.s32.totalorder %s38, 6
      %s45 = sphi 0, %s57
      %s46 = sphi 0, %s53
      %s47 = sphi 0, %s45
      %s48 = sphi 0, %s46
      %s49 = sphi 0, %s47
      %s50 = sphi 0, %s48
      %s62 = sphi 0, %s64
      %s65 = sphi 0, %s62
      %s66 = sphi 0, %s65
      %s82 = sphi 0, %s66
      %s86 = sphi 0, %s86
      %s88 = sphi 0, %s86
      %s89 = sphi 0, %s88
      %s103 = sphi 0, %s89
      %s107 = sphi 0, %s107
      %s109 = sphi 0, %s107
      %s110 = sphi 0, %s109
      %s124 = sphi 0, %s110
      %s128 = sphi 0, %s128
      %s130 = sphi 0, %s128
      %s131 = sphi 0, %s130
      %s145 = sphi 0, %s131
      %s149 = sphi 0, %s149
      %s151 = sphi 0, %s149
      %s152 = sphi 0, %s151
      %s166 = sphi 0, %s152
      %s170 = sphi 0, %s170
      %s172 = sphi 0, %s170
      %s173 = sphi 0, %s172
      %s187 = sphi 0, %s173
      %s191 = sphi 0, %s191
      %s193 = sphi 0, %s191
      %s194 = sphi 0, %s193
      %s208 = sphi 0, %s194
      %s212 = sphi 0, %s212
      %s214 = sphi 0, %s212
      %s215 = sphi 0, %s214
      %s229 = sphi 0, %s215
      %s233 = sphi 0, %s233
      %s235 = sphi 0, %s233
      %s236 = sphi 0, %s235
      %s250 = sphi 0, %s236
      %s254 = sphi 0, %s254
      %s256 = sphi 0, %s254
      %s257 = sphi 0, %s256
      %s271 = sphi 0, %s257
      %s275 = sphi 0, %s275
      %s277 = sphi 0, %s275
      %s278 = sphi 0, %s277
      %s292 = sphi 0, %s278
      %s296 = sphi 0, %s296
      %s298 = sphi 0, %s296
      %s299 = sphi 0, %s298
      %s313 = sphi 0, %s299
      %s317 = sphi 0, %s317
      %s319 = sphi 0, %s317
      %s320 = sphi 0, %s319
      %s334 = sphi 0, %s320
      %s338 = sphi 0, %s338
      %s340 = sphi 0, %s338
      %s341 = sphi 0, %s340
      %s355 = sphi 0, %s341
      %s359 = sphi 0, %s359
      %s361 = sphi 0, %s359
      %s362 = sphi 0, %s361
      %s376 = sphi 0, %s362
      %s380 = sphi 0, %s380
      %s382 = sphi 0, %s380
      %s383 = sphi 0, %s382
      %s397 = sphi 0, %s383
      %s401 = sphi 0, %s401
      %s403 = sphi 0, %s401
      %s404 = sphi 0, %s403
      %s418 = sphi 0, %s404
      %s422 = sphi 0, %s422
      %s424 = sphi 0, %s422
      %s425 = sphi 0, %s424
      %s439 = sphi 0, %s425
      %s443 = sphi 0, %s443
      %s445 = sphi 0, %s443
      %s446 = sphi 0, %s445
      %s460 = sphi 0, %s446
      %s464 = sphi 0, %s464
      %s466 = sphi 0, %s464
      %s467 = sphi 0, %s466
      %s481 = sphi 0, %s467
      %s485 = sphi 0, %s485
      %s487 = sphi 0, %s485
      %s488 = sphi 0, %s487
      %s502 = sphi 0, %s488
      %s506 = sphi 0, %s506
      %s508 = sphi 0, %s506
      %s509 = sphi 0, %s508
      %s523 = sphi 0, %s509
      %s527 = sphi 0, %s527
      %s529 = sphi 0, %s527
      %s530 = sphi 0, %s529
      %s544 = sphi 0, %s530
      %s552 = sphi 0, %s554
      %s555 = sphi 0, %s552
      %s556 = sphi 0, %s555
      %s572 = sphi 0, %s556
    $region4: #{tpu_custom_call.1} parent=1 // loop_header_branch
      %41 = sbr.rel (%p39) target = $region8
    $region5: #{tpu_custom_call.1} parent=1 // loop_body
      %s43 = ssub.s32 %s38, 1
      %s44 = ssub.s32 %s38, 2
      %s51 = sadd.s32 1, %s46
      %p52 = scmp.ge.s32.totalorder %s51, 2
      %s53 = scalar_select %p52, 0, %s51
      %s54 = sadd.s32 1, %s45
      %s55 = scalar_select %p52, %s54, %s45
      %p56 = scmp.ge.s32.totalorder %s55, 2
      %s57 = scalar_select %p56, 0, %s55
      %s58 = ssub.s32 %s45, %s57
      %s59 = ssub.s32 %s46, %s53
      %s60 = sor.u32 %s58, %s59
      %p61 = scmp.eq.s32.totalorder %s60, 0
      %s63 = sadd.s32 %s62, 1
      %s64 = scalar_select %p61, %s62, %s63
      %p67 = pneg %p61
      %p68 = scmp.eq.s32.totalorder %s38, 3
      %p69 = por %p67, %p68
      %p70 = scmp.ne.s32.totalorder %s62, %s65
      %p71 = scmp.eq.s32.totalorder %s38, 0
      %p72 = por %p70, %p71
      %p73 = scmp.ne.s32.totalorder %s62, %s65
      %p74 = scmp.eq.s32.totalorder %s43, 3
      %p75 = por %p73, %p74
      %p76 = scmp.ne.s32.totalorder %s65, %s66
      %p77 = scmp.eq.s32.totalorder %s43, 0
      %p78 = por %p76, %p77
      %p79 = scmp.ne.s32.totalorder %s65, %s66
      %p80 = scmp.eq.s32.totalorder %s44, 3
      %p81 = por %p79, %p80
      %p83 = scmp.ne.s32.totalorder %s66, %s82
      %p84 = scmp.eq.s32.totalorder %s44, 0
      %p85 = por %p83, %p84
      %s87 = sadd.s32 %s86, 1
      %p90 = scmp.eq.s32.totalorder %s38, 3
      %p91 = scmp.ne.s32.totalorder %s86, %s88
      %p92 = scmp.eq.s32.totalorder %s38, 0
      %p93 = por %p91, %p92
      %p94 = scmp.ne.s32.totalorder %s86, %s88
      %p95 = scmp.eq.s32.totalorder %s43, 3
      %p96 = por %p94, %p95
      %p97 = scmp.ne.s32.totalorder %s88, %s89
      %p98 = scmp.eq.s32.totalorder %s43, 0
      %p99 = por %p97, %p98
      %p100 = scmp.ne.s32.totalorder %s88, %s89
      %p101 = scmp.eq.s32.totalorder %s44, 3
      %p102 = por %p100, %p101
      %p104 = scmp.ne.s32.totalorder %s89, %s103
      %p105 = scmp.eq.s32.totalorder %s44, 0
      %p106 = por %p104, %p105
      %s108 = sadd.s32 %s107, 1
      %p111 = scmp.eq.s32.totalorder %s38, 3
      %p112 = scmp.ne.s32.totalorder %s107, %s109
      %p113 = scmp.eq.s32.totalorder %s38, 0
      %p114 = por %p112, %p113
      %p115 = scmp.ne.s32.totalorder %s107, %s109
      %p116 = scmp.eq.s32.totalorder %s43, 3
      %p117 = por %p115, %p116
      %p118 = scmp.ne.s32.totalorder %s109, %s110
      %p119 = scmp.eq.s32.totalorder %s43, 0
      %p120 = por %p118, %p119
      %p121 = scmp.ne.s32.totalorder %s109, %s110
      %p122 = scmp.eq.s32.totalorder %s44, 3
      %p123 = por %p121, %p122
      %p125 = scmp.ne.s32.totalorder %s110, %s124
      %p126 = scmp.eq.s32.totalorder %s44, 0
      %p127 = por %p125, %p126
      %s129 = sadd.s32 %s128, 1
      %p132 = scmp.eq.s32.totalorder %s38, 3
      %p133 = scmp.ne.s32.totalorder %s128, %s130
      %p134 = scmp.eq.s32.totalorder %s38, 0
      %p135 = por %p133, %p134
      %p136 = scmp.ne.s32.totalorder %s128, %s130
      %p137 = scmp.eq.s32.totalorder %s43, 3
      %p138 = por %p136, %p137
      %p139 = scmp.ne.s32.totalorder %s130, %s131
      %p140 = scmp.eq.s32.totalorder %s43, 0
      %p141 = por %p139, %p140
      %p142 = scmp.ne.s32.totalorder %s130, %s131
      %p143 = scmp.eq.s32.totalorder %s44, 3
      %p144 = por %p142, %p143
      %p146 = scmp.ne.s32.totalorder %s131, %s145
      %p147 = scmp.eq.s32.totalorder %s44, 0
      %p148 = por %p146, %p147
      %s150 = sadd.s32 %s149, 1
      %p153 = scmp.eq.s32.totalorder %s38, 3
      %p154 = scmp.ne.s32.totalorder %s149, %s151
      %p155 = scmp.eq.s32.totalorder %s38, 0
      %p156 = por %p154, %p155
      %p157 = scmp.ne.s32.totalorder %s149, %s151
      %p158 = scmp.eq.s32.totalorder %s43, 3
      %p159 = por %p157, %p158
      %p160 = scmp.ne.s32.totalorder %s151, %s152
      %p161 = scmp.eq.s32.totalorder %s43, 0
      %p162 = por %p160, %p161
      %p163 = scmp.ne.s32.totalorder %s151, %s152
      %p164 = scmp.eq.s32.totalorder %s44, 3
      %p165 = por %p163, %p164
      %p167 = scmp.ne.s32.totalorder %s152, %s166
      %p168 = scmp.eq.s32.totalorder %s44, 0
      %p169 = por %p167, %p168
      %s171 = sadd.s32 %s170, 1
      %p174 = scmp.eq.s32.totalorder %s38, 3
      %p175 = scmp.ne.s32.totalorder %s170, %s172
      %p176 = scmp.eq.s32.totalorder %s38, 0
      %p177 = por %p175, %p176
      %p178 = scmp.ne.s32.totalorder %s170, %s172
      %p179 = scmp.eq.s32.totalorder %s43, 3
      %p180 = por %p178, %p179
      %p181 = scmp.ne.s32.totalorder %s172, %s173
      %p182 = scmp.eq.s32.totalorder %s43, 0
      %p183 = por %p181, %p182
      %p184 = scmp.ne.s32.totalorder %s172, %s173
      %p185 = scmp.eq.s32.totalorder %s44, 3
      %p186 = por %p184, %p185
      %p188 = scmp.ne.s32.totalorder %s173, %s187
      %p189 = scmp.eq.s32.totalorder %s44, 0
      %p190 = por %p188, %p189
      %s192 = sadd.s32 %s191, 1
      %p195 = scmp.eq.s32.totalorder %s38, 3
      %p196 = scmp.ne.s32.totalorder %s191, %s193
      %p197 = scmp.eq.s32.totalorder %s38, 0
      %p198 = por %p196, %p197
      %p199 = scmp.ne.s32.totalorder %s191, %s193
      %p200 = scmp.eq.s32.totalorder %s43, 3
      %p201 = por %p199, %p200
      %p202 = scmp.ne.s32.totalorder %s193, %s194
      %p203 = scmp.eq.s32.totalorder %s43, 0
      %p204 = por %p202, %p203
      %p205 = scmp.ne.s32.totalorder %s193, %s194
      %p206 = scmp.eq.s32.totalorder %s44, 3
      %p207 = por %p205, %p206
      %p209 = scmp.ne.s32.totalorder %s194, %s208
      %p210 = scmp.eq.s32.totalorder %s44, 0
      %p211 = por %p209, %p210
      %s213 = sadd.s32 %s212, 1
      %p216 = scmp.eq.s32.totalorder %s38, 3
      %p217 = scmp.ne.s32.totalorder %s212, %s214
      %p218 = scmp.eq.s32.totalorder %s38, 0
      %p219 = por %p217, %p218
      %p220 = scmp.ne.s32.totalorder %s212, %s214
      %p221 = scmp.eq.s32.totalorder %s43, 3
      %p222 = por %p220, %p221
      %p223 = scmp.ne.s32.totalorder %s214, %s215
      %p224 = scmp.eq.s32.totalorder %s43, 0
      %p225 = por %p223, %p224
      %p226 = scmp.ne.s32.totalorder %s214, %s215
      %p227 = scmp.eq.s32.totalorder %s44, 3
      %p228 = por %p226, %p227
      %p230 = scmp.ne.s32.totalorder %s215, %s229
      %p231 = scmp.eq.s32.totalorder %s44, 0
      %p232 = por %p230, %p231
      %s234 = sadd.s32 %s233, 1
      %p237 = scmp.eq.s32.totalorder %s38, 3
      %p238 = scmp.ne.s32.totalorder %s233, %s235
      %p239 = scmp.eq.s32.totalorder %s38, 0
      %p240 = por %p238, %p239
      %p241 = scmp.ne.s32.totalorder %s233, %s235
      %p242 = scmp.eq.s32.totalorder %s43, 3
      %p243 = por %p241, %p242
      %p244 = scmp.ne.s32.totalorder %s235, %s236
      %p245 = scmp.eq.s32.totalorder %s43, 0
      %p246 = por %p244, %p245
      %p247 = scmp.ne.s32.totalorder %s235, %s236
      %p248 = scmp.eq.s32.totalorder %s44, 3
      %p249 = por %p247, %p248
      %p251 = scmp.ne.s32.totalorder %s236, %s250
      %p252 = scmp.eq.s32.totalorder %s44, 0
      %p253 = por %p251, %p252
      %s255 = sadd.s32 %s254, 1
      %p258 = scmp.eq.s32.totalorder %s38, 3
      %p259 = scmp.ne.s32.totalorder %s254, %s256
      %p260 = scmp.eq.s32.totalorder %s38, 0
      %p261 = por %p259, %p260
      %p262 = scmp.ne.s32.totalorder %s254, %s256
      %p263 = scmp.eq.s32.totalorder %s43, 3
      %p264 = por %p262, %p263
      %p265 = scmp.ne.s32.totalorder %s256, %s257
      %p266 = scmp.eq.s32.totalorder %s43, 0
      %p267 = por %p265, %p266
      %p268 = scmp.ne.s32.totalorder %s256, %s257
      %p269 = scmp.eq.s32.totalorder %s44, 3
      %p270 = por %p268, %p269
      %p272 = scmp.ne.s32.totalorder %s257, %s271
      %p273 = scmp.eq.s32.totalorder %s44, 0
      %p274 = por %p272, %p273
      %s276 = sadd.s32 %s275, 1
      %p279 = scmp.eq.s32.totalorder %s38, 3
      %p280 = scmp.ne.s32.totalorder %s275, %s277
      %p281 = scmp.eq.s32.totalorder %s38, 0
      %p282 = por %p280, %p281
      %p283 = scmp.ne.s32.totalorder %s275, %s277
      %p284 = scmp.eq.s32.totalorder %s43, 3
      %p285 = por %p283, %p284
      %p286 = scmp.ne.s32.totalorder %s277, %s278
      %p287 = scmp.eq.s32.totalorder %s43, 0
      %p288 = por %p286, %p287
      %p289 = scmp.ne.s32.totalorder %s277, %s278
      %p290 = scmp.eq.s32.totalorder %s44, 3
      %p291 = por %p289, %p290
      %p293 = scmp.ne.s32.totalorder %s278, %s292
      %p294 = scmp.eq.s32.totalorder %s44, 0
      %p295 = por %p293, %p294
      %s297 = sadd.s32 %s296, 1
      %p300 = scmp.eq.s32.totalorder %s38, 3
      %p301 = scmp.ne.s32.totalorder %s296, %s298
      %p302 = scmp.eq.s32.totalorder %s38, 0
      %p303 = por %p301, %p302
      %p304 = scmp.ne.s32.totalorder %s296, %s298
      %p305 = scmp.eq.s32.totalorder %s43, 3
      %p306 = por %p304, %p305
      %p307 = scmp.ne.s32.totalorder %s298, %s299
      %p308 = scmp.eq.s32.totalorder %s43, 0
      %p309 = por %p307, %p308
      %p310 = scmp.ne.s32.totalorder %s298, %s299
      %p311 = scmp.eq.s32.totalorder %s44, 3
      %p312 = por %p310, %p311
      %p314 = scmp.ne.s32.totalorder %s299, %s313
      %p315 = scmp.eq.s32.totalorder %s44, 0
      %p316 = por %p314, %p315
      %s318 = sadd.s32 %s317, 1
      %p321 = scmp.eq.s32.totalorder %s38, 3
      %p322 = scmp.ne.s32.totalorder %s317, %s319
      %p323 = scmp.eq.s32.totalorder %s38, 0
      %p324 = por %p322, %p323
      %p325 = scmp.ne.s32.totalorder %s317, %s319
      %p326 = scmp.eq.s32.totalorder %s43, 3
      %p327 = por %p325, %p326
      %p328 = scmp.ne.s32.totalorder %s319, %s320
      %p329 = scmp.eq.s32.totalorder %s43, 0
      %p330 = por %p328, %p329
      %p331 = scmp.ne.s32.totalorder %s319, %s320
      %p332 = scmp.eq.s32.totalorder %s44, 3
      %p333 = por %p331, %p332
      %p335 = scmp.ne.s32.totalorder %s320, %s334
      %p336 = scmp.eq.s32.totalorder %s44, 0
      %p337 = por %p335, %p336
      %s339 = sadd.s32 %s338, 1
      %p342 = scmp.eq.s32.totalorder %s38, 3
      %p343 = scmp.ne.s32.totalorder %s338, %s340
      %p344 = scmp.eq.s32.totalorder %s38, 0
      %p345 = por %p343, %p344
      %p346 = scmp.ne.s32.totalorder %s338, %s340
      %p347 = scmp.eq.s32.totalorder %s43, 3
      %p348 = por %p346, %p347
      %p349 = scmp.ne.s32.totalorder %s340, %s341
      %p350 = scmp.eq.s32.totalorder %s43, 0
      %p351 = por %p349, %p350
      %p352 = scmp.ne.s32.totalorder %s340, %s341
      %p353 = scmp.eq.s32.totalorder %s44, 3
      %p354 = por %p352, %p353
      %p356 = scmp.ne.s32.totalorder %s341, %s355
      %p357 = scmp.eq.s32.totalorder %s44, 0
      %p358 = por %p356, %p357
      %s360 = sadd.s32 %s359, 1
      %p363 = scmp.eq.s32.totalorder %s38, 3
      %p364 = scmp.ne.s32.totalorder %s359, %s361
      %p365 = scmp.eq.s32.totalorder %s38, 0
      %p366 = por %p364, %p365
      %p367 = scmp.ne.s32.totalorder %s359, %s361
      %p368 = scmp.eq.s32.totalorder %s43, 3
      %p369 = por %p367, %p368
      %p370 = scmp.ne.s32.totalorder %s361, %s362
      %p371 = scmp.eq.s32.totalorder %s43, 0
      %p372 = por %p370, %p371
      %p373 = scmp.ne.s32.totalorder %s361, %s362
      %p374 = scmp.eq.s32.totalorder %s44, 3
      %p375 = por %p373, %p374
      %p377 = scmp.ne.s32.totalorder %s362, %s376
      %p378 = scmp.eq.s32.totalorder %s44, 0
      %p379 = por %p377, %p378
      %s381 = sadd.s32 %s380, 1
      %p384 = scmp.eq.s32.totalorder %s38, 3
      %p385 = scmp.ne.s32.totalorder %s380, %s382
      %p386 = scmp.eq.s32.totalorder %s38, 0
      %p387 = por %p385, %p386
      %p388 = scmp.ne.s32.totalorder %s380, %s382
      %p389 = scmp.eq.s32.totalorder %s43, 3
      %p390 = por %p388, %p389
      %p391 = scmp.ne.s32.totalorder %s382, %s383
      %p392 = scmp.eq.s32.totalorder %s43, 0
      %p393 = por %p391, %p392
      %p394 = scmp.ne.s32.totalorder %s382, %s383
      %p395 = scmp.eq.s32.totalorder %s44, 3
      %p396 = por %p394, %p395
      %p398 = scmp.ne.s32.totalorder %s383, %s397
      %p399 = scmp.eq.s32.totalorder %s44, 0
      %p400 = por %p398, %p399
      %s402 = sadd.s32 %s401, 1
      %p405 = scmp.eq.s32.totalorder %s38, 3
      %p406 = scmp.ne.s32.totalorder %s401, %s403
      %p407 = scmp.eq.s32.totalorder %s38, 0
      %p408 = por %p406, %p407
      %p409 = scmp.ne.s32.totalorder %s401, %s403
      %p410 = scmp.eq.s32.totalorder %s43, 3
      %p411 = por %p409, %p410
      %p412 = scmp.ne.s32.totalorder %s403, %s404
      %p413 = scmp.eq.s32.totalorder %s43, 0
      %p414 = por %p412, %p413
      %p415 = scmp.ne.s32.totalorder %s403, %s404
      %p416 = scmp.eq.s32.totalorder %s44, 3
      %p417 = por %p415, %p416
      %p419 = scmp.ne.s32.totalorder %s404, %s418
      %p420 = scmp.eq.s32.totalorder %s44, 0
      %p421 = por %p419, %p420
      %s423 = sadd.s32 %s422, 1
      %p426 = scmp.eq.s32.totalorder %s38, 3
      %p427 = scmp.ne.s32.totalorder %s422, %s424
      %p428 = scmp.eq.s32.totalorder %s38, 0
      %p429 = por %p427, %p428
      %p430 = scmp.ne.s32.totalorder %s422, %s424
      %p431 = scmp.eq.s32.totalorder %s43, 3
      %p432 = por %p430, %p431
      %p433 = scmp.ne.s32.totalorder %s424, %s425
      %p434 = scmp.eq.s32.totalorder %s43, 0
      %p435 = por %p433, %p434
      %p436 = scmp.ne.s32.totalorder %s424, %s425
      %p437 = scmp.eq.s32.totalorder %s44, 3
      %p438 = por %p436, %p437
      %p440 = scmp.ne.s32.totalorder %s425, %s439
      %p441 = scmp.eq.s32.totalorder %s44, 0
      %p442 = por %p440, %p441
      %s444 = sadd.s32 %s443, 1
      %p447 = scmp.eq.s32.totalorder %s38, 3
      %p448 = scmp.ne.s32.totalorder %s443, %s445
      %p449 = scmp.eq.s32.totalorder %s38, 0
      %p450 = por %p448, %p449
      %p451 = scmp.ne.s32.totalorder %s443, %s445
      %p452 = scmp.eq.s32.totalorder %s43, 3
      %p453 = por %p451, %p452
      %p454 = scmp.ne.s32.totalorder %s445, %s446
      %p455 = scmp.eq.s32.totalorder %s43, 0
      %p456 = por %p454, %p455
      %p457 = scmp.ne.s32.totalorder %s445, %s446
      %p458 = scmp.eq.s32.totalorder %s44, 3
      %p459 = por %p457, %p458
      %p461 = scmp.ne.s32.totalorder %s446, %s460
      %p462 = scmp.eq.s32.totalorder %s44, 0
      %p463 = por %p461, %p462
      %s465 = sadd.s32 %s464, 1
      %p468 = scmp.eq.s32.totalorder %s38, 3
      %p469 = scmp.ne.s32.totalorder %s464, %s466
      %p470 = scmp.eq.s32.totalorder %s38, 0
      %p471 = por %p469, %p470
      %p472 = scmp.ne.s32.totalorder %s464, %s466
      %p473 = scmp.eq.s32.totalorder %s43, 3
      %p474 = por %p472, %p473
      %p475 = scmp.ne.s32.totalorder %s466, %s467
      %p476 = scmp.eq.s32.totalorder %s43, 0
      %p477 = por %p475, %p476
      %p478 = scmp.ne.s32.totalorder %s466, %s467
      %p479 = scmp.eq.s32.totalorder %s44, 3
      %p480 = por %p478, %p479
      %p482 = scmp.ne.s32.totalorder %s467, %s481
      %p483 = scmp.eq.s32.totalorder %s44, 0
      %p484 = por %p482, %p483
      %s486 = sadd.s32 %s485, 1
      %p489 = scmp.eq.s32.totalorder %s38, 3
      %p490 = scmp.ne.s32.totalorder %s485, %s487
      %p491 = scmp.eq.s32.totalorder %s38, 0
      %p492 = por %p490, %p491
      %p493 = scmp.ne.s32.totalorder %s485, %s487
      %p494 = scmp.eq.s32.totalorder %s43, 3
      %p495 = por %p493, %p494
      %p496 = scmp.ne.s32.totalorder %s487, %s488
      %p497 = scmp.eq.s32.totalorder %s43, 0
      %p498 = por %p496, %p497
      %p499 = scmp.ne.s32.totalorder %s487, %s488
      %p500 = scmp.eq.s32.totalorder %s44, 3
      %p501 = por %p499, %p500
      %p503 = scmp.ne.s32.totalorder %s488, %s502
      %p504 = scmp.eq.s32.totalorder %s44, 0
      %p505 = por %p503, %p504
      %s507 = sadd.s32 %s506, 1
      %p510 = scmp.eq.s32.totalorder %s38, 3
      %p511 = scmp.ne.s32.totalorder %s506, %s508
      %p512 = scmp.eq.s32.totalorder %s38, 0
      %p513 = por %p511, %p512
      %p514 = scmp.ne.s32.totalorder %s506, %s508
      %p515 = scmp.eq.s32.totalorder %s43, 3
      %p516 = por %p514, %p515
      %p517 = scmp.ne.s32.totalorder %s508, %s509
      %p518 = scmp.eq.s32.totalorder %s43, 0
      %p519 = por %p517, %p518
      %p520 = scmp.ne.s32.totalorder %s508, %s509
      %p521 = scmp.eq.s32.totalorder %s44, 3
      %p522 = por %p520, %p521
      %p524 = scmp.ne.s32.totalorder %s509, %s523
      %p525 = scmp.eq.s32.totalorder %s44, 0
      %p526 = por %p524, %p525
      %s528 = sadd.s32 %s527, 1
      %p531 = scmp.eq.s32.totalorder %s38, 3
      %p532 = scmp.ne.s32.totalorder %s527, %s529
      %p533 = scmp.eq.s32.totalorder %s38, 0
      %p534 = por %p532, %p533
      %p535 = scmp.ne.s32.totalorder %s527, %s529
      %p536 = scmp.eq.s32.totalorder %s43, 3
      %p537 = por %p535, %p536
      %p538 = scmp.ne.s32.totalorder %s529, %s530
      %p539 = scmp.eq.s32.totalorder %s43, 0
      %p540 = por %p538, %p539
      %p541 = scmp.ne.s32.totalorder %s529, %s530
      %p542 = scmp.eq.s32.totalorder %s44, 3
      %p543 = por %p541, %p542
      %p545 = scmp.ne.s32.totalorder %s530, %s544
      %p546 = scmp.eq.s32.totalorder %s44, 0
      %p547 = por %p545, %p546
      %s548 = ssub.s32 %s45, %s57
      %s549 = ssub.s32 %s46, %s53
      %s550 = sor.u32 %s548, %s549
      %p551 = scmp.eq.s32.totalorder %s550, 0
      %s553 = sadd.s32 %s552, 1
      %s554 = scalar_select %p551, %s552, %s553
      %p557 = pneg %p551
      %p558 = scmp.eq.s32.totalorder %s38, 3
      %p559 = por %p557, %p558
      %p560 = scmp.ne.s32.totalorder %s552, %s555
      %p561 = scmp.eq.s32.totalorder %s38, 0
      %p562 = por %p560, %p561
      %p563 = scmp.ne.s32.totalorder %s552, %s555
      %p564 = scmp.eq.s32.totalorder %s43, 3
      %p565 = por %p563, %p564
      %p566 = scmp.ne.s32.totalorder %s555, %s556
      %p567 = scmp.eq.s32.totalorder %s43, 0
      %p568 = por %p566, %p567
      %p569 = scmp.ne.s32.totalorder %s555, %s556
      %p570 = scmp.eq.s32.totalorder %s44, 3
      %p571 = por %p569, %p570
      %p573 = scmp.ne.s32.totalorder %s556, %s572
      %p574 = scmp.eq.s32.totalorder %s44, 0
      %p575 = por %p573, %p574
      %p576 = scmp.le.s32.totalorder 1, %s38
      %p577 = scmp.lt.s32.totalorder %s38, 5
      %p578 = pnand %p576, %p577
      %p579 = pneg %p578
      // Predicated region
      $region9: #{tpu_custom_call.1} parent=5 // pred_check
        _
      $region10: #{tpu_custom_call.1} parent=5 // pred_check_branch
        %581 = sbr.rel (%p578) target = $region12
      $region11: #{tpu_custom_call.1} parent=5 // pred_region
        %s582 = ssub.s32 %s38, 1
        // Predicated region
        $region13: #{tpu_custom_call.1} parent=11 // pred_check
          %p583 = pneg %p99
        $region14: #{tpu_custom_call.1} parent=11 // pred_check_branch
          %585 = sbr.rel (%p583) target = $region16
        $region15: #{tpu_custom_call.1} parent=11 // pred_region
          %s587 = ssub.s32 16, 16
          %588 = vsyncadd [#allocation10], %s587
          %s590 = sshll.u32 [#allocation9], 4
          %s591 = int_to_ptr.vmem [resolvable:$true] %s590
          %593 = dma.hbm_to_vmem [thread:$0]  %s1, 16, %s591, [#allocation10]
        $region16: #{tpu_custom_call.1} parent=11 // pred_fallthru
          _
        // Predicated region
        $region17: #{tpu_custom_call.1} parent=11 // pred_check
          %p594 = pneg %p120
        $region18: #{tpu_custom_call.1} parent=11 // pred_check_branch
          %596 = sbr.rel (%p594) target = $region20
        $region19: #{tpu_custom_call.1} parent=11 // pred_region
          %s598 = ssub.s32 16, 16
          %599 = vsyncadd [#allocation13], %s598
          %s601 = sshll.u32 [#allocation12], 4
          %s602 = int_to_ptr.vmem [resolvable:$true] %s601
          %604 = dma.hbm_to_vmem [thread:$0]  %s2, 16, %s602, [#allocation13]
        $region20: #{tpu_custom_call.1} parent=11 // pred_fallthru
          _
        // Predicated region
        $region21: #{tpu_custom_call.1} parent=11 // pred_check
          %p605 = pneg %p141
        $region22: #{tpu_custom_call.1} parent=11 // pred_check_branch
          %607 = sbr.rel (%p605) target = $region24
        $region23: #{tpu_custom_call.1} parent=11 // pred_region
          %s609 = ssub.s32 16, 16
          %610 = vsyncadd [#allocation13], %s609
          %s612 = sshll.u32 [#allocation14], 4
          %s613 = int_to_ptr.vmem [resolvable:$true] %s612
          %615 = dma.hbm_to_vmem [thread:$0]  %s3, 16, %s613, [#allocation13]
        $region24: #{tpu_custom_call.1} parent=11 // pred_fallthru
          _
        // Predicated region
        $region25: #{tpu_custom_call.1} parent=11 // pred_check
          %p616 = pneg %p162
        $region26: #{tpu_custom_call.1} parent=11 // pred_check_branch
          %618 = sbr.rel (%p616) target = $region28
        $region27: #{tpu_custom_call.1} parent=11 // pred_region
          %s620 = ssub.s32 16, 16
          %621 = vsyncadd [#allocation16], %s620
          %s623 = sshll.u32 [#allocation15], 4
          %s624 = int_to_ptr.vmem [resolvable:$true] %s623
          %626 = dma.hbm_to_vmem [thread:$0]  %s4, 16, %s624, [#allocation16]
        $region28: #{tpu_custom_call.1} parent=11 // pred_fallthru
          _
        // Predicated region
        $region29: #{tpu_custom_call.1} parent=11 // pred_check
          %p627 = pneg %p183
        $region30: #{tpu_custom_call.1} parent=11 // pred_check_branch
          %629 = sbr.rel (%p627) target = $region32
        $region31: #{tpu_custom_call.1} parent=11 // pred_region
          %s631 = ssub.s32 16, 16
          %632 = vsyncadd [#allocation16], %s631
          %s634 = sshll.u32 [#allocation17], 4
          %s635 = int_to_ptr.vmem [resolvable:$true] %s634
          %637 = dma.hbm_to_vmem [thread:$0]  %s5, 16, %s635, [#allocation16]
        $region32: #{tpu_custom_call.1} parent=11 // pred_fallthru
          _
        // Predicated region
        $region33: #{tpu_custom_call.1} parent=11 // pred_check
          %p638 = pneg %p204
        $region34: #{tpu_custom_call.1} parent=11 // pred_check_branch
          %640 = sbr.rel (%p638) target = $region36
        $region35: #{tpu_custom_call.1} parent=11 // pred_region
          %s642 = ssub.s32 16, 16
          %643 = vsyncadd [#allocation19], %s642
          %s645 = sshll.u32 [#allocation18], 4
          %s646 = int_to_ptr.vmem [resolvable:$true] %s645
          %648 = dma.hbm_to_vmem [thread:$0]  %s6, 16, %s646, [#allocation19]
        $region36: #{tpu_custom_call.1} parent=11 // pred_fallthru
          _
        // Predicated region
        $region37: #{tpu_custom_call.1} parent=11 // pred_check
          %p649 = pneg %p225
        $region38: #{tpu_custom_call.1} parent=11 // pred_check_branch
          %651 = sbr.rel (%p649) target = $region40
        $region39: #{tpu_custom_call.1} parent=11 // pred_region
          %s653 = ssub.s32 16, 16
          %654 = vsyncadd [#allocation19], %s653
          %s656 = sshll.u32 [#allocation20], 4
          %s657 = int_to_ptr.vmem [resolvable:$true] %s656
          %659 = dma.hbm_to_vmem [thread:$0]  %s7, 16, %s657, [#allocation19]
        $region40: #{tpu_custom_call.1} parent=11 // pred_fallthru
          _
        // Predicated region
        $region41: #{tpu_custom_call.1} parent=11 // pred_check
          %p660 = pneg %p246
        $region42: #{tpu_custom_call.1} parent=11 // pred_check_branch
          %662 = sbr.rel (%p660) target = $region44
        $region43: #{tpu_custom_call.1} parent=11 // pred_region
          _
        $region44: #{tpu_custom_call.1} parent=11 // pred_fallthru
          _
        // Predicated region
        $region45: #{tpu_custom_call.1} parent=11 // pred_check
          %p663 = pneg %p267
        $region46: #{tpu_custom_call.1} parent=11 // pred_check_branch
          %665 = sbr.rel (%p663) target = $region48
        $region47: #{tpu_custom_call.1} parent=11 // pred_region
          _
        $region48: #{tpu_custom_call.1} parent=11 // pred_fallthru
          _
        // Predicated region
        $region49: #{tpu_custom_call.1} parent=11 // pred_check
          %p666 = pneg %p288
        $region50: #{tpu_custom_call.1} parent=11 // pred_check_branch
          %668 = sbr.rel (%p666) target = $region52
        $region51: #{tpu_custom_call.1} parent=11 // pred_region
          _
        $region52: #{tpu_custom_call.1} parent=11 // pred_fallthru
          _
        // Predicated region
        $region53: #{tpu_custom_call.1} parent=11 // pred_check
          %p669 = pneg %p309
        $region54: #{tpu_custom_call.1} parent=11 // pred_check_branch
          %671 = sbr.rel (%p669) target = $region56
        $region55: #{tpu_custom_call.1} parent=11 // pred_region
          _
        $region56: #{tpu_custom_call.1} parent=11 // pred_fallthru
          _
        // Predicated region
        $region57: #{tpu_custom_call.1} parent=11 // pred_check
          %p672 = pneg %p330
        $region58: #{tpu_custom_call.1} parent=11 // pred_check_branch
          %674 = sbr.rel (%p672) target = $region60
        $region59: #{tpu_custom_call.1} parent=11 // pred_region
          %s676 = ssub.s32 32, 32
          %677 = vsyncadd [#allocation22], %s676
          %s678 = sshll.u32 [#allocation21], 4
          %s679 = int_to_ptr.vmem [resolvable:$true] %s678
          %684 = dma.hbm_to_vmem [thread:$0]  %s12, 32, %s679, [#allocation22], 16, 16, 1
        $region60: #{tpu_custom_call.1} parent=11 // pred_fallthru
          _
        // Predicated region
        $region61: #{tpu_custom_call.1} parent=11 // pred_check
          %p685 = pneg %p351
        $region62: #{tpu_custom_call.1} parent=11 // pred_check_branch
          %687 = sbr.rel (%p685) target = $region64
        $region63: #{tpu_custom_call.1} parent=11 // pred_region
          %s689 = ssub.s32 32, 32
          %690 = vsyncadd [#allocation22], %s689
          %s691 = sshll.u32 [#allocation23], 4
          %s692 = int_to_ptr.vmem [resolvable:$true] %s691
          %697 = dma.hbm_to_vmem [thread:$0]  %s13, 32, %s692, [#allocation22], 16, 16, 1
        $region64: #{tpu_custom_call.1} parent=11 // pred_fallthru
          _
        // Predicated region
        $region65: #{tpu_custom_call.1} parent=11 // pred_check
          %p698 = pneg %p372
        $region66: #{tpu_custom_call.1} parent=11 // pred_check_branch
          %700 = sbr.rel (%p698) target = $region68
        $region67: #{tpu_custom_call.1} parent=11 // pred_region
          %s702 = ssub.s32 128, 128
          %703 = vsyncadd [#allocation25], %s702
          %s704 = sshll.u32 [#allocation24], 4
          %s705 = int_to_ptr.vmem [resolvable:$true] %s704
          %710 = dma.hbm_to_vmem [thread:$0]  %s14, 128, %s705, [#allocation25], 64, 64, 4
        $region68: #{tpu_custom_call.1} parent=11 // pred_fallthru
          _
        // Predicated region
        $region69: #{tpu_custom_call.1} parent=11 // pred_check
          %p711 = pneg %p393
        $region70: #{tpu_custom_call.1} parent=11 // pred_check_branch
          %713 = sbr.rel (%p711) target = $region72
        $region71: #{tpu_custom_call.1} parent=11 // pred_region
          _
        $region72: #{tpu_custom_call.1} parent=11 // pred_fallthru
          _
        // Predicated region
        $region73: #{tpu_custom_call.1} parent=11 // pred_check
          %p714 = pneg %p414
        $region74: #{tpu_custom_call.1} parent=11 // pred_check_branch
          %716 = sbr.rel (%p714) target = $region76
        $region75: #{tpu_custom_call.1} parent=11 // pred_region
          _
        $region76: #{tpu_custom_call.1} parent=11 // pred_fallthru
          _
        // Predicated region
        $region77: #{tpu_custom_call.1} parent=11 // pred_check
          %p717 = pneg %p435
        $region78: #{tpu_custom_call.1} parent=11 // pred_check_branch
          %719 = sbr.rel (%p717) target = $region80
        $region79: #{tpu_custom_call.1} parent=11 // pred_region
          _
        $region80: #{tpu_custom_call.1} parent=11 // pred_fallthru
          _
        // Predicated region
        $region81: #{tpu_custom_call.1} parent=11 // pred_check
          %p720 = pneg %p456
        $region82: #{tpu_custom_call.1} parent=11 // pred_check_branch
          %722 = sbr.rel (%p720) target = $region84
        $region83: #{tpu_custom_call.1} parent=11 // pred_region
          _
        $region84: #{tpu_custom_call.1} parent=11 // pred_fallthru
          _
        // Predicated region
        $region85: #{tpu_custom_call.1} parent=11 // pred_check
          %p723 = pneg %p477
        $region86: #{tpu_custom_call.1} parent=11 // pred_check_branch
          %725 = sbr.rel (%p723) target = $region88
        $region87: #{tpu_custom_call.1} parent=11 // pred_region
          _
        $region88: #{tpu_custom_call.1} parent=11 // pred_fallthru
          _
        // Predicated region
        $region89: #{tpu_custom_call.1} parent=11 // pred_check
          %p726 = pneg %p498
        $region90: #{tpu_custom_call.1} parent=11 // pred_check_branch
          %728 = sbr.rel (%p726) target = $region92
        $region91: #{tpu_custom_call.1} parent=11 // pred_region
          _
        $region92: #{tpu_custom_call.1} parent=11 // pred_fallthru
          _
        // Predicated region
        $region93: #{tpu_custom_call.1} parent=11 // pred_check
          %p729 = pneg %p519
        $region94: #{tpu_custom_call.1} parent=11 // pred_check_branch
          %731 = sbr.rel (%p729) target = $region96
        $region95: #{tpu_custom_call.1} parent=11 // pred_region
          _
        $region96: #{tpu_custom_call.1} parent=11 // pred_fallthru
          _
        // Predicated region
        $region97: #{tpu_custom_call.1} parent=11 // pred_check
          %p732 = pneg %p540
        $region98: #{tpu_custom_call.1} parent=11 // pred_check_branch
          %734 = sbr.rel (%p732) target = $region100
        $region99: #{tpu_custom_call.1} parent=11 // pred_region
          _
        $region100: #{tpu_custom_call.1} parent=11 // pred_fallthru
          _
      $region12: #{tpu_custom_call.1} parent=5 // pred_fallthru
        _
      %p735 = scmp.lt.s32.totalorder %s38, 4
      // Predicated region
      $region101: #{tpu_custom_call.1} parent=5 // pred_check
        %p736 = pneg %p735
      $region102: #{tpu_custom_call.1} parent=5 // pred_check_branch
        %738 = sbr.rel (%p736) target = $region104
      $region103: #{tpu_custom_call.1} parent=5 // pred_region
        // Predicated region
        $region105: #{tpu_custom_call.1} parent=103 // pred_check
          %p739 = pneg %p72
        $region106: #{tpu_custom_call.1} parent=103 // pred_check_branch
          %741 = sbr.rel (%p739) target = $region108
        $region107: #{tpu_custom_call.1} parent=103 // pred_region
          %p742 = scmp.lt.s32.totalorder %s45, 1
          %s743 = scalar_select %p742, %s45, 1
          %p744 = scmp.lt.s32.totalorder %s46, 1
          %s745 = scalar_select %p744, %s46, 1
          %s746 = smul.addr %s743, 2
          %s747 = sadd.s32 %s745, %s746
          %s748 = smul.addr %s747, 8
          %s749 = scalar_lea.vmem %s0, %s748
        $region108: #{tpu_custom_call.1} parent=103 // pred_fallthru
          _
      $region104: #{tpu_custom_call.1} parent=5 // pred_fallthru
        _
      %p750 = scmp.le.s32.totalorder 1, %s38
      %p751 = scmp.lt.s32.totalorder %s38, 5
      %p752 = pnand %p750, %p751
      %p753 = pneg %p752
      // Predicated region
      $region109: #{tpu_custom_call.1} parent=5 // pred_check
        _
      $region110: #{tpu_custom_call.1} parent=5 // pred_check_branch
        %755 = sbr.rel (%p752) target = $region112
      $region111: #{tpu_custom_call.1} parent=5 // pred_region
        %s756 = ssub.s32 %s38, 1
        // Predicated region
        $region113: #{tpu_custom_call.1} parent=111 // pred_check
          %p757 = pneg %p99
        $region114: #{tpu_custom_call.1} parent=111 // pred_check_branch
          %759 = sbr.rel (%p757) target = $region116
        $region115: #{tpu_custom_call.1} parent=111 // pred_region
          %760 = dma.done [#allocation10], 16
        $region116: #{tpu_custom_call.1} parent=111 // pred_fallthru
          _
        // Predicated region
        $region117: #{tpu_custom_call.1} parent=111 // pred_check
          %p761 = pneg %p120
        $region118: #{tpu_custom_call.1} parent=111 // pred_check_branch
          %763 = sbr.rel (%p761) target = $region120
        $region119: #{tpu_custom_call.1} parent=111 // pred_region
          %764 = dma.done [#allocation13], 16
        $region120: #{tpu_custom_call.1} parent=111 // pred_fallthru
          _
        // Predicated region
        $region121: #{tpu_custom_call.1} parent=111 // pred_check
          %p765 = pneg %p141
        $region122: #{tpu_custom_call.1} parent=111 // pred_check_branch
          %767 = sbr.rel (%p765) target = $region124
        $region123: #{tpu_custom_call.1} parent=111 // pred_region
          %768 = dma.done [#allocation13], 16
        $region124: #{tpu_custom_call.1} parent=111 // pred_fallthru
          _
        // Predicated region
        $region125: #{tpu_custom_call.1} parent=111 // pred_check
          %p769 = pneg %p162
        $region126: #{tpu_custom_call.1} parent=111 // pred_check_branch
          %771 = sbr.rel (%p769) target = $region128
        $region127: #{tpu_custom_call.1} parent=111 // pred_region
          %772 = dma.done [#allocation16], 16
        $region128: #{tpu_custom_call.1} parent=111 // pred_fallthru
          _
        // Predicated region
        $region129: #{tpu_custom_call.1} parent=111 // pred_check
          %p773 = pneg %p183
        $region130: #{tpu_custom_call.1} parent=111 // pred_check_branch
          %775 = sbr.rel (%p773) target = $region132
        $region131: #{tpu_custom_call.1} parent=111 // pred_region
          %776 = dma.done [#allocation16], 16
        $region132: #{tpu_custom_call.1} parent=111 // pred_fallthru
          _
        // Predicated region
        $region133: #{tpu_custom_call.1} parent=111 // pred_check
          %p777 = pneg %p204
        $region134: #{tpu_custom_call.1} parent=111 // pred_check_branch
          %779 = sbr.rel (%p777) target = $region136
        $region135: #{tpu_custom_call.1} parent=111 // pred_region
          %780 = dma.done [#allocation19], 16
        $region136: #{tpu_custom_call.1} parent=111 // pred_fallthru
          _
        // Predicated region
        $region137: #{tpu_custom_call.1} parent=111 // pred_check
          %p781 = pneg %p225
        $region138: #{tpu_custom_call.1} parent=111 // pred_check_branch
          %783 = sbr.rel (%p781) target = $region140
        $region139: #{tpu_custom_call.1} parent=111 // pred_region
          %784 = dma.done [#allocation19], 16
        $region140: #{tpu_custom_call.1} parent=111 // pred_fallthru
          _
        // Predicated region
        $region141: #{tpu_custom_call.1} parent=111 // pred_check
          %p785 = pneg %p330
        $region142: #{tpu_custom_call.1} parent=111 // pred_check_branch
          %787 = sbr.rel (%p785) target = $region144
        $region143: #{tpu_custom_call.1} parent=111 // pred_region
          %788 = dma.done [#allocation22], 32
        $region144: #{tpu_custom_call.1} parent=111 // pred_fallthru
          _
        // Predicated region
        $region145: #{tpu_custom_call.1} parent=111 // pred_check
          %p789 = pneg %p351
        $region146: #{tpu_custom_call.1} parent=111 // pred_check_branch
          %791 = sbr.rel (%p789) target = $region148
        $region147: #{tpu_custom_call.1} parent=111 // pred_region
          %792 = dma.done [#allocation22], 32
        $region148: #{tpu_custom_call.1} parent=111 // pred_fallthru
          _
        // Predicated region
        $region149: #{tpu_custom_call.1} parent=111 // pred_check
          %p793 = pneg %p372
        $region150: #{tpu_custom_call.1} parent=111 // pred_check_branch
          %795 = sbr.rel (%p793) target = $region152
        $region151: #{tpu_custom_call.1} parent=111 // pred_region
          %796 = dma.done [#allocation25], 128
        $region152: #{tpu_custom_call.1} parent=111 // pred_fallthru
          _
        %p797 = scmp.lt.s32.totalorder %s47, 1
        %s798 = scalar_select %p797, %s47, 1
        %p799 = scmp.lt.s32.totalorder %s48, 1
        %s800 = scalar_select %p799, %s48, 1
        %s801 = smul.addr %s798, 2
        %s802 = sadd.s32 %s800, %s801
        %s803 = smul.addr %s802, 8
        %s804 = scalar_lea.vmem %s0, %s803
        %p805 = pneg %p78
        %p806 = pneg %p75
        %p807 = pneg %p99
        %p808 = pneg %p96
        %p809 = pneg %p120
        %p810 = pneg %p117
        %p811 = pneg %p141
        %p812 = pneg %p138
        %p813 = pneg %p162
        %p814 = pneg %p159
        %p815 = pneg %p183
        %p816 = pneg %p180
        %p817 = pneg %p204
        %p818 = pneg %p201
        %p819 = pneg %p225
        %p820 = pneg %p222
        %p821 = pneg %p246
        %p822 = pneg %p243
        %p823 = pneg %p267
        %p824 = pneg %p264
        %p825 = pneg %p288
        %p826 = pneg %p285
        %p827 = pneg %p309
        %p828 = pneg %p306
        %p829 = pneg %p330
        %p830 = pneg %p327
        %p831 = pneg %p351
        %p832 = pneg %p348
        %p833 = pneg %p372
        %p834 = pneg %p369
        %p835 = pneg %p393
        %p836 = pneg %p390
        %p837 = pneg %p414
        %p838 = pneg %p411
        %p839 = pneg %p435
        %p840 = pneg %p432
        %p841 = pneg %p456
        %p842 = pneg %p453
        %p843 = pneg %p477
        %p844 = pneg %p474
        %p845 = pneg %p498
        %p846 = pneg %p495
        %p847 = pneg %p519
        %p848 = pneg %p516
        %p849 = pneg %p540
        %p850 = pneg %p537
        %p851 = pneg %p568
        %p852 = pneg %p565
        %s853 = sand.u32 %s555, 1
        %s854 = scalar_lea.sflag [#allocation11], %s853
        %s855 = sand.u32 %s555, 1
        %s856 = smul.addr %s855, 8
        %s857 = scalar_lea.vmem [#allocation26], %s856
        %p858 = scmp.lt.s32.totalorder %s47, 1
        %s859 = scalar_select %p858, %s47, 1
        %p860 = scmp.lt.s32.totalorder %s48, 1
        %s861 = scalar_select %p860, %s48, 1
        %s862 = smul.addr %s859, 2
        %s863 = sadd.s32 %s861, %s862
        %s864 = smul.addr %s863, 8
        %s865 = scalar_lea.vmem %s0, %s864
        %p867 = scmp.eq.s32.totalorder %s48, 0
        // Predicated region
        $region153: #{tpu_custom_call.1} parent=111 // pred_check
          %p868 = pneg %p867
        $region154: #{tpu_custom_call.1} parent=111 // pred_check_branch
          %870 = sbr.rel (%p868) target = $region156
        $region155: #{tpu_custom_call.1} parent=111 // pred_region
          %vm871 = vcmask 130048
          %872 = vst.msk [vmem:[#allocation2] sm:$0xff] %vm871, 0.0
          %873 = vst.msk [vmem:[#allocation2 + $0x8] sm:$0xff] %vm871, 0.0
          %874 = vst.msk [vmem:[#allocation2 + $0x10] sm:$0xff] %vm871, 0.0
          %875 = vst.msk [vmem:[#allocation2 + $0x18] sm:$0xff] %vm871, 0.0
          %vm876 = vcmask 253952
          %877 = vst.msk [vmem:[#allocation3] sm:$0x1] %vm876, 0.0
          %878 = vst.msk [vmem:[#allocation4] sm:$0x1] %vm876, 0.0
        $region156: #{tpu_custom_call.1} parent=111 // pred_fallthru
          _
        %v879 = vld [vmem:[%s865] sm:$0xff]
        %v880 = vlaneseq
        %v881 = vshrl.u32 %v880, 7
        %vm882 = vcmp.eq.s32.totalorder %v881, 0
        %v883 = vld [vmem:[#allocation9] sm:$0x1]
        %v884 = vld [vmem:[#allocation12] sm:$0x1]
        %vm885 = vcmask 261120
        %v886 = vsel %vm885, %v879, 0.0
        %887 = vadd.xlane.f32.xlu0 %v886
        %v888 = vpop.xlane.xlu0 %887
        %v889 = vrcp.pop 32.0
        %v890 = vmul.f32 %v888, %v889
        %v891 = vsub.f32 %v879, %v890
        %v892 = vmul.f32 %v891, %v891
        %v893 = vsel %vm885, %v892, 0.0
        %894 = vadd.xlane.f32.xlu0 %v893
        %v895 = vpop.xlane.xlu0 %894
        %v896 = vmul.f32 %v895, %v889
        %v897 = vadd.f32 %v896, 1e-05
        %v898 = vrsqrt.pop %v897
        %v899 = vmul.f32 %v891, %v898
        %v901 = vlaneseq
        %v902 = vshrl.u32 %v901, 7
        %v903 = vsub.s32 0, %v902
        %v904 = vrot.slane %v883, %v903
        %v906 = vmul.f32 %v899, %v904
        %v908 = vlaneseq
        %v909 = vshrl.u32 %v908, 7
        %v910 = vsub.s32 0, %v909
        %v911 = vrot.slane %v884, %v910
        %v913 = vadd.f32 %v906, %v911
        %v914 = vld [vmem:[#allocation3] sm:$0x1]
        %v915 = vrot.slane %v913, 7
        %v916 = vsel %vm882, 1, 0
        %vm917 = vcmp.eq.s32.totalorder %v916, 1
        %v919 = vlaneseq
        %v920 = vshrl.u32 %v919, 7
        %v921 = vsub.s32 0, %v920
        %v922 = vrot.slane %v914, %v921
        %v924 = vsel %vm917, %v922, %v915
        %vm925 = vcmask 261127
        %926 = vst.msk [vmem:[#allocation3 - $0x7] sm:$0x80] %vm925, %v913
        %v927 = vsub.f32 %v913, %v924
        %v928 = vld [vmem:[#allocation17] sm:$0x1]
        %v930 = vlaneseq
        %v931 = vshrl.u32 %v930, 7
        %v932 = vsub.s32 0, %v931
        %v933 = vrot.slane %v928, %v932
        %v935 = vmul.f32 %v933, %v927
        %v936 = vadd.f32 %v924, %v935
        %v937 = vpack.c.bf16 %v936, %v936
        %v938 = vld [vmem:[#allocation18] sm:$0x1]
        %v940 = vlaneseq
        %v941 = vshrl.u32 %v940, 7
        %v942 = vsub.s32 0, %v941
        %v943 = vrot.slane %v938, %v942
        %v945 = vmul.f32 %v943, %v927
        %v946 = vadd.f32 %v924, %v945
        %v947 = vpack.c.bf16 %v946, %v946
        %v948 = vld [vmem:[#allocation20] sm:$0x1]
        %v950 = vlaneseq
        %v951 = vshrl.u32 %v950, 7
        %v952 = vsub.s32 0, %v951
        %v953 = vrot.slane %v948, %v952
        %v955 = vmul.f32 %v953, %v927
        %v956 = vadd.f32 %v924, %v955
        %v957 = vpack.c.bf16 %v956, %v956
        %v958 = vld [vmem:[%s8] sm:$0xf]
        %v959 = vld [vmem:[%s8 + $0x4] sm:$0xf]
        %v960 = vld [vmem:[%s8 + $0x8] sm:$0xf]
        %v961 = vld [vmem:[%s8 + $0xc] sm:$0xf]
        %v966 = vunpack.c.l.b16 %v958
        %v967 = vunpack.c.l.b16 %v959
        %v968 = vunpack.c.l.b16 %v960
        %v969 = vunpack.c.l.b16 %v961
        %v970 = vpack.c.b16 %v967, %v966
        %v971 = vpack.c.b16 %v969, %v968
        %v975 = vsel %vm885, %v957, 0
        %977 = vmatprep.subr.bf16.mxu0 0
        %978 = vmatpush1.bf16.msra.mxu0 %v970
        %979 = vmatprep.subr.bf16.mxu0 0
        %980 = vmatpush1.bf16.msra.mxu0 %v971
        %981 = vmatprep.subr.bf16.mxu0 0
        %982 = vmatpush1.bf16.msra.mxu0 0
        %983 = vmatprep.subr.bf16.mxu0 0
        %984 = vmatpush1.bf16.msra.mxu0 0
        %985 = vmatprep.subr.bf16.mxu0 0
        %986 = vmatpush1.bf16.msra.mxu0 0
        %987 = vmatprep.subr.bf16.mxu0 0
        %988 = vmatpush1.bf16.msra.mxu0 0
        %989 = vmatprep.subr.bf16.mxu0 0
        %990 = vmatpush1.bf16.msra.mxu0 0
        %991 = vmatprep.subr.bf16.mxu0 0
        %992 = vmatpush1.bf16.msra.mxu0 0
        %993 = vmatprep.subr.bf16.mxu0 0
        %994 = vmatpush1.bf16.msra.mxu0 0
        %995 = vmatprep.subr.bf16.mxu0 0
        %996 = vmatpush1.bf16.msra.mxu0 0
        %997 = vmatprep.subr.bf16.mxu0 0
        %998 = vmatpush1.bf16.msra.mxu0 0
        %999 = vmatprep.subr.bf16.mxu0 0
        %1000 = vmatpush1.bf16.msra.mxu0 0
        %1001 = vmatprep.subr.bf16.mxu0 0
        %1002 = vmatpush1.bf16.msra.mxu0 0
        %1003 = vmatprep.subr.bf16.mxu0 0
        %1004 = vmatpush1.bf16.msra.mxu0 0
        %1005 = vmatprep.subr.bf16.mxu0 0
        %1006 = vmatpush1.bf16.msra.mxu0 0
        %1007 = vmatprep.subr.bf16.mxu0 0
        %1008 = vmatpush1.bf16.msra.mxu0 0
        %1009 = vmatprep.mubr.bf16.mxu0 0
        %1010 = vmatmul.mubr.bf16.gmra.mrb[0].mxu0 %v975
        %v1011 = vpop.f32.mrb[0].mxu0
        %v1012 = vadd.f32 0.0, %v1011
        %v1013 = vpop.f32.mrb[0].mxu0
        %v1014 = vpop.f32.mrb[0].mxu0
        %v1015 = vpop.f32.mrb[0].mxu0
        %1016 = vdwg.mxu0
        %v1017 = vld [vmem:[%s9] sm:$0xf]
        %v1018 = vld [vmem:[%s9 + $0x4] sm:$0xf]
        %v1019 = vld [vmem:[%s9 + $0x8] sm:$0xf]
        %v1020 = vld [vmem:[%s9 + $0xc] sm:$0xf]
        %v1025 = vunpack.c.l.b16 %v1017
        %v1026 = vunpack.c.l.b16 %v1018
        %v1027 = vunpack.c.l.b16 %v1019
        %v1028 = vunpack.c.l.b16 %v1020
        %v1029 = vpack.c.b16 %v1026, %v1025
        %v1030 = vpack.c.b16 %v1028, %v1027
        %v1034 = vsel %vm885, %v937, 0
        %1036 = vmatprep.subr.bf16.mxu0 0
        %1037 = vmatpush1.bf16.msra.mxu0 %v1029
        %1038 = vmatprep.subr.bf16.mxu0 0
        %1039 = vmatpush1.bf16.msra.mxu0 %v1030
        %1040 = vmatprep.subr.bf16.mxu0 0
        %1041 = vmatpush1.bf16.msra.mxu0 0
        %1042 = vmatprep.subr.bf16.mxu0 0
        %1043 = vmatpush1.bf16.msra.mxu0 0
        %1044 = vmatprep.subr.bf16.mxu0 0
        %1045 = vmatpush1.bf16.msra.mxu0 0
        %1046 = vmatprep.subr.bf16.mxu0 0
        %1047 = vmatpush1.bf16.msra.mxu0 0
        %1048 = vmatprep.subr.bf16.mxu0 0
        %1049 = vmatpush1.bf16.msra.mxu0 0
        %1050 = vmatprep.subr.bf16.mxu0 0
        %1051 = vmatpush1.bf16.msra.mxu0 0
        %1052 = vmatprep.subr.bf16.mxu0 0
        %1053 = vmatpush1.bf16.msra.mxu0 0
        %1054 = vmatprep.subr.bf16.mxu0 0
        %1055 = vmatpush1.bf16.msra.mxu0 0
        %1056 = vmatprep.subr.bf16.mxu0 0
        %1057 = vmatpush1.bf16.msra.mxu0 0
        %1058 = vmatprep.subr.bf16.mxu0 0
        %1059 = vmatpush1.bf16.msra.mxu0 0
        %1060 = vmatprep.subr.bf16.mxu0 0
        %1061 = vmatpush1.bf16.msra.mxu0 0
        %1062 = vmatprep.subr.bf16.mxu0 0
        %1063 = vmatpush1.bf16.msra.mxu0 0
        %1064 = vmatprep.subr.bf16.mxu0 0
        %1065 = vmatpush1.bf16.msra.mxu0 0
        %1066 = vmatprep.subr.bf16.mxu0 0
        %1067 = vmatpush1.bf16.msra.mxu0 0
        %1068 = vmatprep.mubr.bf16.mxu0 0
        %1069 = vmatmul.mubr.bf16.gmra.mrb[0].mxu0 %v1034
        %v1070 = vpop.f32.mrb[0].mxu0
        %v1071 = vadd.f32 0.0, %v1070
        %v1072 = vpop.f32.mrb[0].mxu0
        %v1073 = vpop.f32.mrb[0].mxu0
        %v1074 = vpop.f32.mrb[0].mxu0
        %1075 = vdwg.mxu0
        %v1076 = vld [vmem:[%s10] sm:$0xf]
        %v1077 = vld [vmem:[%s10 + $0x4] sm:$0xf]
        %v1078 = vld [vmem:[%s10 + $0x8] sm:$0xf]
        %v1079 = vld [vmem:[%s10 + $0xc] sm:$0xf]
        %v1084 = vunpack.c.l.b16 %v1076
        %v1085 = vunpack.c.l.b16 %v1077
        %v1086 = vunpack.c.l.b16 %v1078
        %v1087 = vunpack.c.l.b16 %v1079
        %v1088 = vpack.c.b16 %v1085, %v1084
        %v1089 = vpack.c.b16 %v1087, %v1086
        %v1093 = vsel %vm885, %v947, 0
        %1095 = vmatprep.subr.bf16.mxu0 0
        %1096 = vmatpush1.bf16.msra.mxu0 %v1088
        %1097 = vmatprep.subr.bf16.mxu0 0
        %1098 = vmatpush1.bf16.msra.mxu0 %v1089
        %1099 = vmatprep.subr.bf16.mxu0 0
        %1100 = vmatpush1.bf16.msra.mxu0 0
        %1101 = vmatprep.subr.bf16.mxu0 0
        %1102 = vmatpush1.bf16.msra.mxu0 0
        %1103 = vmatprep.subr.bf16.mxu0 0
        %1104 = vmatpush1.bf16.msra.mxu0 0
        %1105 = vmatprep.subr.bf16.mxu0 0
        %1106 = vmatpush1.bf16.msra.mxu0 0
        %1107 = vmatprep.subr.bf16.mxu0 0
        %1108 = vmatpush1.bf16.msra.mxu0 0
        %1109 = vmatprep.subr.bf16.mxu0 0
        %1110 = vmatpush1.bf16.msra.mxu0 0
        %1111 = vmatprep.subr.bf16.mxu0 0
        %1112 = vmatpush1.bf16.msra.mxu0 0
        %1113 = vmatprep.subr.bf16.mxu0 0
        %1114 = vmatpush1.bf16.msra.mxu0 0
        %1115 = vmatprep.subr.bf16.mxu0 0
        %1116 = vmatpush1.bf16.msra.mxu0 0
        %1117 = vmatprep.subr.bf16.mxu0 0
        %1118 = vmatpush1.bf16.msra.mxu0 0
        %1119 = vmatprep.subr.bf16.mxu0 0
        %1120 = vmatpush1.bf16.msra.mxu0 0
        %1121 = vmatprep.subr.bf16.mxu0 0
        %1122 = vmatpush1.bf16.msra.mxu0 0
        %1123 = vmatprep.subr.bf16.mxu0 0
        %1124 = vmatpush1.bf16.msra.mxu0 0
        %1125 = vmatprep.subr.bf16.mxu0 0
        %1126 = vmatpush1.bf16.msra.mxu0 0
        %1127 = vmatprep.mubr.bf16.mxu0 0
        %1128 = vmatmul.mubr.bf16.gmra.mrb[0].mxu0 %v1093
        %v1129 = vpop.f32.mrb[0].mxu0
        %v1130 = vadd.f32 0.0, %v1129
        %v1131 = vpop.f32.mrb[0].mxu0
        %v1132 = vpop.f32.mrb[0].mxu0
        %v1133 = vpop.f32.mrb[0].mxu0
        %1134 = vdwg.mxu0
        %vm1135 = vcmask 130048
        %1136 = vst.msk [vmem:[#allocation5] sm:$0xff] %vm1135, %v1012
        %1137 = vst.msk [vmem:[#allocation6] sm:$0xff] %vm1135, %v1071
        %1138 = vst.msk [vmem:[#allocation7] sm:$0xff] %vm1135, %v1130
        %1140 = vrot.lane.b32.xlu0 %v1012, 112
        %v1141 = vpop.permute.xlu0 %1140
        %s1143 = scalar_lea.vmem [#allocation5], 8
        %1144 = vst.msk [vmem:[%s1143] sm:$0xff] %vm1135, %v1141
        %1146 = vrot.lane.b32.xlu0 %v1071, 112
        %v1147 = vpop.permute.xlu0 %1146
        %s1149 = scalar_lea.vmem [#allocation6], 8
        %1150 = vst.msk [vmem:[%s1149] sm:$0xff] %vm1135, %v1147
        %1152 = vrot.lane.b32.xlu0 %v1130, 112
        %v1153 = vpop.permute.xlu0 %1152
        %s1155 = scalar_lea.vmem [#allocation7], 8
        %1156 = vst.msk [vmem:[%s1155] sm:$0xff] %vm1135, %v1153
        %v1157 = vld [vmem:[#allocation5] sm:$0xff]
        %v1158 = vld [vmem:[#allocation6] sm:$0xff]
        %v1159 = vld [vmem:[#allocation7] sm:$0xff]
        %v1160 = vld [vmem:[#allocation2] sm:$0xff]
        %v1161 = vld [vmem:[#allocation2 + $0x8] sm:$0xff]
        %v1163 = vsel %vm1135, %v1157, 0
        %v1166 = vsel %vm1135, %v1158, 0
        %1168 = vmatprep.subr.mxu0 0.0
        %1169 = vmatpush1.xpose.msra.mxu0 %v1166
        %1170 = vmatprep.subr.mxu0 0.0
        %1171 = vmatpush1.xpose.msra.mxu0 0.0
        %1172 = vmatprep.subr.mxu0 0.0
        %1173 = vmatpush1.xpose.msra.mxu0 0.0
        %1174 = vmatprep.subr.mxu0 0.0
        %1175 = vmatpush1.xpose.msra.mxu0 0.0
        %1176 = vmatprep.subr.mxu0 0.0
        %1177 = vmatpush1.xpose.msra.mxu0 0.0
        %1178 = vmatprep.subr.mxu0 0.0
        %1179 = vmatpush1.xpose.msra.mxu0 0.0
        %1180 = vmatprep.subr.mxu0 0.0
        %1181 = vmatpush1.xpose.msra.mxu0 0.0
        %1182 = vmatprep.subr.mxu0 0.0
        %1183 = vmatpush1.xpose.msra.mxu0 0.0
        %1184 = vmatprep.subr.mxu0 0.0
        %1185 = vmatpush1.xpose.msra.mxu0 0.0
        %1186 = vmatprep.subr.mxu0 0.0
        %1187 = vmatpush1.xpose.msra.mxu0 0.0
        %1188 = vmatprep.subr.mxu0 0.0
        %1189 = vmatpush1.xpose.msra.mxu0 0.0
        %1190 = vmatprep.subr.mxu0 0.0
        %1191 = vmatpush1.xpose.msra.mxu0 0.0
        %1192 = vmatprep.subr.mxu0 0.0
        %1193 = vmatpush1.xpose.msra.mxu0 0.0
        %1194 = vmatprep.subr.mxu0 0.0
        %1195 = vmatpush1.xpose.msra.mxu0 0.0
        %1196 = vmatprep.subr.mxu0 0.0
        %1197 = vmatpush1.xpose.msra.mxu0 0.0
        %1198 = vmatprep.subr.mxu0 0.0
        %1199 = vmatpush1.xpose.msra.mxu0 0.0
        %1200 = vmatprep.subr.mxu0 0.0
        %1201 = vmatpush1.xpose.msra.mxu0 0.0
        %1202 = vmatprep.subr.mxu0 0.0
        %1203 = vmatpush1.xpose.msra.mxu0 0.0
        %1204 = vmatprep.subr.mxu0 0.0
        %1205 = vmatpush1.xpose.msra.mxu0 0.0
        %1206 = vmatprep.subr.mxu0 0.0
        %1207 = vmatpush1.xpose.msra.mxu0 0.0
        %1208 = vmatprep.subr.mxu0 0.0
        %1209 = vmatpush1.xpose.msra.mxu0 0.0
        %1210 = vmatprep.subr.mxu0 0.0
        %1211 = vmatpush1.xpose.msra.mxu0 0.0
        %1212 = vmatprep.subr.mxu0 0.0
        %1213 = vmatpush1.xpose.msra.mxu0 0.0
        %1214 = vmatprep.subr.mxu0 0.0
        %1215 = vmatpush1.xpose.msra.mxu0 0.0
        %1216 = vmatprep.subr.mxu0 0.0
        %1217 = vmatpush1.xpose.msra.mxu0 0.0
        %1218 = vmatprep.subr.mxu0 0.0
        %1219 = vmatpush1.xpose.msra.mxu0 0.0
        %1220 = vmatprep.subr.mxu0 0.0
        %1221 = vmatpush1.xpose.msra.mxu0 0.0
        %1222 = vmatprep.subr.mxu0 0.0
        %1223 = vmatpush1.xpose.msra.mxu0 0.0
        %1224 = vmatprep.subr.mxu0 0.0
        %1225 = vmatpush1.xpose.msra.mxu0 0.0
        %1226 = vmatprep.subr.mxu0 0.0
        %1227 = vmatpush1.xpose.msra.mxu0 0.0
        %1228 = vmatprep.subr.mxu0 0.0
        %1229 = vmatpush1.xpose.msra.mxu0 0.0
        %1230 = vmatprep.subr.mxu0 0.0
        %1231 = vmatpush1.xpose.msra.mxu0 0.0
        %1232 = vmatprep.mubr.f32.mxu0 0.0
        %1233 = vmatmul.mubr.f32.gmra.mrb[0].mxu0 %v1163
        %v1234 = vpop.f32.mrb[0].mxu0
        %v1235 = vadd.f32 0.0, %v1234
        %v1236 = vpop.f32.mrb[0].mxu0
        %1237 = vdwg.mxu0
        %v1238 = vld [vmem:[#allocation24] sm:$0xf]
        %v1239 = vunpack.c.l.bf16 %v1238
        %v1240 = vmul.f32 %v1235, %v1239
        %v1241 = vld [vmem:[%s16] sm:$0xff]
        %1243 = vset.pattern.permute.xlu0 0
        %1244 = vperm.xlu0 %1243, %v1241
        %v1245 = vpop.permute.xlu0 %1244
        %v1247 = vmul.f32 %v1157, %v1245
        %1249 = vrot.lane.b32.xlu0 %v1247, 8
        %v1250 = vpop.permute.xlu0 %1249
        %vm1252 = vcmask 64512
        %v1253 = vsel %vm1252, %v1240, %v1250
        %vm1254 = vcmask 195584
        %v1256 = vsel %vm1254, %v1253, 0
        %1258 = vmatprep.subr.mxu0 0.0
        %1259 = vmatpush1.msra.mxu0 %v1159
        %1260 = vmatprep.subr.mxu0 0.0
        %1261 = vmatpush1.msra.mxu0 %v1160
        %1262 = vmatprep.subr.mxu0 0.0
        %1263 = vmatpush1.msra.mxu0 %v1161
        %1264 = vmatprep.subr.mxu0 0.0
        %1265 = vmatpush1.msra.mxu0 0.0
        %1266 = vmatprep.subr.mxu0 0.0
        %1267 = vmatpush1.msra.mxu0 0.0
        %1268 = vmatprep.subr.mxu0 0.0
        %1269 = vmatpush1.msra.mxu0 0.0
        %1270 = vmatprep.subr.mxu0 0.0
        %1271 = vmatpush1.msra.mxu0 0.0
        %1272 = vmatprep.subr.mxu0 0.0
        %1273 = vmatpush1.msra.mxu0 0.0
        %1274 = vmatprep.subr.mxu0 0.0
        %1275 = vmatpush1.msra.mxu0 0.0
        %1276 = vmatprep.subr.mxu0 0.0
        %1277 = vmatpush1.msra.mxu0 0.0
        %1278 = vmatprep.subr.mxu0 0.0
        %1279 = vmatpush1.msra.mxu0 0.0
        %1280 = vmatprep.subr.mxu0 0.0
        %1281 = vmatpush1.msra.mxu0 0.0
        %1282 = vmatprep.subr.mxu0 0.0
        %1283 = vmatpush1.msra.mxu0 0.0
        %1284 = vmatprep.subr.mxu0 0.0
        %1285 = vmatpush1.msra.mxu0 0.0
        %1286 = vmatprep.subr.mxu0 0.0
        %1287 = vmatpush1.msra.mxu0 0.0
        %1288 = vmatprep.subr.mxu0 0.0
        %1289 = vmatpush1.msra.mxu0 0.0
        %1290 = vmatprep.subr.mxu0 0.0
        %1291 = vmatpush1.msra.mxu0 0.0
        %1292 = vmatprep.subr.mxu0 0.0
        %1293 = vmatpush1.msra.mxu0 0.0
        %1294 = vmatprep.subr.mxu0 0.0
        %1295 = vmatpush1.msra.mxu0 0.0
        %1296 = vmatprep.subr.mxu0 0.0
        %1297 = vmatpush1.msra.mxu0 0.0
        %1298 = vmatprep.subr.mxu0 0.0
        %1299 = vmatpush1.msra.mxu0 0.0
        %1300 = vmatprep.subr.mxu0 0.0
        %1301 = vmatpush1.msra.mxu0 0.0
        %1302 = vmatprep.subr.mxu0 0.0
        %1303 = vmatpush1.msra.mxu0 0.0
        %1304 = vmatprep.subr.mxu0 0.0
        %1305 = vmatpush1.msra.mxu0 0.0
        %1306 = vmatprep.subr.mxu0 0.0
        %1307 = vmatpush1.msra.mxu0 0.0
        %1308 = vmatprep.subr.mxu0 0.0
        %1309 = vmatpush1.msra.mxu0 0.0
        %1310 = vmatprep.subr.mxu0 0.0
        %1311 = vmatpush1.msra.mxu0 0.0
        %1312 = vmatprep.subr.mxu0 0.0
        %1313 = vmatpush1.msra.mxu0 0.0
        %1314 = vmatprep.subr.mxu0 0.0
        %1315 = vmatpush1.msra.mxu0 0.0
        %1316 = vmatprep.subr.mxu0 0.0
        %1317 = vmatpush1.msra.mxu0 0.0
        %1318 = vmatprep.subr.mxu0 0.0
        %1319 = vmatpush1.msra.mxu0 0.0
        %1320 = vmatprep.subr.mxu0 0.0
        %1321 = vmatpush1.msra.mxu0 0.0
        %1322 = vmatprep.mubr.f32.mxu0 0.0
        %1323 = vmatmul.mubr.f32.gmra.mrb[0].mxu0 %v1256
        %v1324 = vpop.f32.mrb[0].mxu0
        %v1325 = vadd.f32 0.0, %v1324
        %v1326 = vpop.f32.mrb[0].mxu0
        %1327 = vdwg.mxu0
        %v1328 = vld [vmem:[%s17] sm:$0x1]
        %v1330 = vlaneseq
        %v1331 = vshrl.u32 %v1330, 7
        %v1332 = vsub.s32 0, %v1331
        %v1333 = vrot.slane %v1328, %v1332
        %1334 = vset.pattern.permute.xlu0 0
        %1335 = vperm.xlu0 %1334, %v1333
        %v1336 = vpop.permute.xlu0 %1335
        %v1338 = vmul.f32 %v1336, %v1160
        %v1339 = vmul.f32 %v1336, %v1161
        %v1340 = vld [vmem:[%s15] sm:$0xff]
        %1342 = vset.pattern.permute.xlu0 0
        %1343 = vperm.xlu0 %1342, %v1340
        %v1344 = vpop.permute.xlu0 %1343
        %v1346 = vmul.f32 %v1158, %v1344
        %1347 = vxpose.xlu0.b32.start [1/16] %v1346, 128
        %1348 = vxpose.xlu0.b32.cont [2/16] 0.0, 128
        %1349 = vxpose.xlu0.b32.cont [3/16] 0.0, 128
        %1350 = vxpose.xlu0.b32.cont [4/16] 0.0, 128
        %1351 = vxpose.xlu0.b32.cont [5/16] 0.0, 128
        %1352 = vxpose.xlu0.b32.cont [6/16] 0.0, 128
        %1353 = vxpose.xlu0.b32.cont [7/16] 0.0, 128
        %1354 = vxpose.xlu0.b32.cont [8/16] 0.0, 128
        %1355 = vxpose.xlu0.b32.cont [9/16] 0.0, 128
        %1356 = vxpose.xlu0.b32.cont [10/16] 0.0, 128
        %1357 = vxpose.xlu0.b32.cont [11/16] 0.0, 128
        %1358 = vxpose.xlu0.b32.cont [12/16] 0.0, 128
        %1359 = vxpose.xlu0.b32.cont [13/16] 0.0, 128
        %1360 = vxpose.xlu0.b32.cont [14/16] 0.0, 128
        %1361 = vxpose.xlu0.b32.cont [15/16] 0.0, 128
        %1362 = vxpose.xlu0.b32.end [16/16] 0.0, 128
        %v1363 = vpop.trf.xlu0
        %v1364 = vpop.trf.xlu0
        %v1365 = vpop.trf.xlu0
        %v1366 = vpop.trf.xlu0
        %v1367 = vpop.trf.xlu0
        %v1368 = vpop.trf.xlu0
        %v1369 = vpop.trf.xlu0
        %v1370 = vpop.trf.xlu0
        %v1371 = vpop.trf.xlu0
        %v1372 = vpop.trf.xlu0
        %v1373 = vpop.trf.xlu0
        %v1374 = vpop.trf.xlu0
        %v1375 = vpop.trf.xlu0
        %v1376 = vpop.trf.xlu0
        %v1377 = vpop.trf.xlu0
        %v1378 = vpop.trf.xlu0
        %v1380 = vsel %vm1252, %v1363, 0
        %v1383 = vsel %vm1252, %v1364, 0
        %1385 = vmatprep.subr.mxu0 0.0
        %1386 = vmatpush1.msra.mxu0 %v1159
        %1387 = vmatprep.subr.mxu0 0.0
        %1388 = vmatpush1.msra.mxu0 0.0
        %1389 = vmatprep.subr.mxu0 0.0
        %1390 = vmatpush1.msra.mxu0 0.0
        %1391 = vmatprep.subr.mxu0 0.0
        %1392 = vmatpush1.msra.mxu0 0.0
        %1393 = vmatprep.subr.mxu0 0.0
        %1394 = vmatpush1.msra.mxu0 0.0
        %1395 = vmatprep.subr.mxu0 0.0
        %1396 = vmatpush1.msra.mxu0 0.0
        %1397 = vmatprep.subr.mxu0 0.0
        %1398 = vmatpush1.msra.mxu0 0.0
        %1399 = vmatprep.subr.mxu0 0.0
        %1400 = vmatpush1.msra.mxu0 0.0
        %1401 = vmatprep.subr.mxu0 0.0
        %1402 = vmatpush1.msra.mxu0 0.0
        %1403 = vmatprep.subr.mxu0 0.0
        %1404 = vmatpush1.msra.mxu0 0.0
        %1405 = vmatprep.subr.mxu0 0.0
        %1406 = vmatpush1.msra.mxu0 0.0
        %1407 = vmatprep.subr.mxu0 0.0
        %1408 = vmatpush1.msra.mxu0 0.0
        %1409 = vmatprep.subr.mxu0 0.0
        %1410 = vmatpush1.msra.mxu0 0.0
        %1411 = vmatprep.subr.mxu0 0.0
        %1412 = vmatpush1.msra.mxu0 0.0
        %1413 = vmatprep.subr.mxu0 0.0
        %1414 = vmatpush1.msra.mxu0 0.0
        %1415 = vmatprep.subr.mxu0 0.0
        %1416 = vmatpush1.msra.mxu0 0.0
        %1417 = vmatprep.subr.mxu0 0.0
        %1418 = vmatpush1.msra.mxu0 0.0
        %1419 = vmatprep.subr.mxu0 0.0
        %1420 = vmatpush1.msra.mxu0 0.0
        %1421 = vmatprep.subr.mxu0 0.0
        %1422 = vmatpush1.msra.mxu0 0.0
        %1423 = vmatprep.subr.mxu0 0.0
        %1424 = vmatpush1.msra.mxu0 0.0
        %1425 = vmatprep.subr.mxu0 0.0
        %1426 = vmatpush1.msra.mxu0 0.0
        %1427 = vmatprep.subr.mxu0 0.0
        %1428 = vmatpush1.msra.mxu0 0.0
        %1429 = vmatprep.subr.mxu0 0.0
        %1430 = vmatpush1.msra.mxu0 0.0
        %1431 = vmatprep.subr.mxu0 0.0
        %1432 = vmatpush1.msra.mxu0 0.0
        %1433 = vmatprep.subr.mxu0 0.0
        %1434 = vmatpush1.msra.mxu0 0.0
        %1435 = vmatprep.subr.mxu0 0.0
        %1436 = vmatpush1.msra.mxu0 0.0
        %1437 = vmatprep.subr.mxu0 0.0
        %1438 = vmatpush1.msra.mxu0 0.0
        %1439 = vmatprep.subr.mxu0 0.0
        %1440 = vmatpush1.msra.mxu0 0.0
        %1441 = vmatprep.subr.mxu0 0.0
        %1442 = vmatpush1.msra.mxu0 0.0
        %1443 = vmatprep.subr.mxu0 0.0
        %1444 = vmatpush1.msra.mxu0 0.0
        %1445 = vmatprep.subr.mxu0 0.0
        %1446 = vmatpush1.msra.mxu0 0.0
        %1447 = vmatprep.subr.mxu0 0.0
        %1448 = vmatpush1.msra.mxu0 0.0
        %1449 = vmatprep.mubr.f32.mxu0 0.0
        %1450 = vmatmul.mubr.f32.gmra.mrb[0].mxu0 %v1380
        %v1451 = vpop.f32.mrb[0].mxu0
        %v1452 = vadd.f32 0.0, %v1451
        %v1453 = vpop.f32.mrb[0].mxu0
        %1454 = vmatprep.mubr.f32.mxu0 0.0
        %1455 = vmatmul.mubr.f32.gmra.mrb[0].mxu0 %v1383
        %v1456 = vpop.f32.mrb[0].mxu0
        %v1457 = vadd.f32 0.0, %v1456
        %v1458 = vpop.f32.mrb[0].mxu0
        %1459 = vdwg.mxu0
        %v1460 = vadd.f32 %v1338, %v1452
        %v1461 = vadd.f32 %v1339, %v1457
        %1462 = vst.msk [vmem:[#allocation2] sm:$0xff] %vm1135, %v1460
        %1463 = vst.msk [vmem:[#allocation2 + $0x8] sm:$0xff] %vm1135, %v1461
        %v1464 = vmul.f32 %v1325, 0.25
        %v1465 = vsel %vm1135, %v1464, 0.0
        %1466 = vadd.xlane.f32.xlu0 %v1465
        %v1467 = vpop.xlane.xlu0 %1466
        %v1468 = vrcp.pop 16.0
        %v1469 = vmul.f32 %v1467, %v1468
        %v1470 = vsub.f32 %v1464, %v1469
        %v1471 = vmul.f32 %v1470, %v1470
        %v1472 = vsel %vm1135, %v1471, 0.0
        %1473 = vadd.xlane.f32.xlu0 %v1472
        %v1474 = vpop.xlane.xlu0 %1473
        %v1475 = vmul.f32 %v1474, %v1468
        %v1476 = vadd.f32 %v1475, 1e-05
        %v1477 = vrsqrt.pop %v1476
        %v1478 = vmul.f32 %v1470, %v1477
        %v1479 = vld [vmem:[#allocation21] sm:$0x1]
        %v1481 = vlaneseq
        %v1482 = vshrl.u32 %v1481, 7
        %v1483 = vsub.s32 0, %v1482
        %v1484 = vrot.slane %v1479, %v1483
        %v1486 = vmul.f32 %v1478, %v1484
        %v1487 = vld [vmem:[#allocation23] sm:$0x1]
        %v1489 = vlaneseq
        %v1490 = vshrl.u32 %v1489, 7
        %v1491 = vsub.s32 0, %v1490
        %v1492 = vrot.slane %v1487, %v1491
        %v1494 = vadd.f32 %v1486, %v1492
        %v1495 = vpack.c.bf16 %v1494, %v1494
        %vm1496 = vcmask 125952
        %1497 = vst.msk [vmem:[#allocation8] sm:$0xf] %vm1496, %v1495
        %v1498 = vld [vmem:[%s1143] sm:$0xff]
        %v1499 = vld [vmem:[%s1149] sm:$0xff]
        %v1500 = vld [vmem:[%s1155] sm:$0xff]
        %s1501 = scalar_lea.vmem [#allocation2], 16
        %v1502 = vld [vmem:[%s1501] sm:$0xff]
        %v1503 = vld [vmem:[%s1501 + $0x8] sm:$0xff]
        %v1505 = vsel %vm1135, %v1498, 0
        %v1508 = vsel %vm1135, %v1499, 0
        %1510 = vmatprep.subr.mxu0 0.0
        %1511 = vmatpush1.xpose.msra.mxu0 %v1508
        %1512 = vmatprep.subr.mxu0 0.0
        %1513 = vmatpush1.xpose.msra.mxu0 0.0
        %1514 = vmatprep.subr.mxu0 0.0
        %1515 = vmatpush1.xpose.msra.mxu0 0.0
        %1516 = vmatprep.subr.mxu0 0.0
        %1517 = vmatpush1.xpose.msra.mxu0 0.0
        %1518 = vmatprep.subr.mxu0 0.0
        %1519 = vmatpush1.xpose.msra.mxu0 0.0
        %1520 = vmatprep.subr.mxu0 0.0
        %1521 = vmatpush1.xpose.msra.mxu0 0.0
        %1522 = vmatprep.subr.mxu0 0.0
        %1523 = vmatpush1.xpose.msra.mxu0 0.0
        %1524 = vmatprep.subr.mxu0 0.0
        %1525 = vmatpush1.xpose.msra.mxu0 0.0
        %1526 = vmatprep.subr.mxu0 0.0
        %1527 = vmatpush1.xpose.msra.mxu0 0.0
        %1528 = vmatprep.subr.mxu0 0.0
        %1529 = vmatpush1.xpose.msra.mxu0 0.0
        %1530 = vmatprep.subr.mxu0 0.0
        %1531 = vmatpush1.xpose.msra.mxu0 0.0
        %1532 = vmatprep.subr.mxu0 0.0
        %1533 = vmatpush1.xpose.msra.mxu0 0.0
        %1534 = vmatprep.subr.mxu0 0.0
        %1535 = vmatpush1.xpose.msra.mxu0 0.0
        %1536 = vmatprep.subr.mxu0 0.0
        %1537 = vmatpush1.xpose.msra.mxu0 0.0
        %1538 = vmatprep.subr.mxu0 0.0
        %1539 = vmatpush1.xpose.msra.mxu0 0.0
        %1540 = vmatprep.subr.mxu0 0.0
        %1541 = vmatpush1.xpose.msra.mxu0 0.0
        %1542 = vmatprep.subr.mxu0 0.0
        %1543 = vmatpush1.xpose.msra.mxu0 0.0
        %1544 = vmatprep.subr.mxu0 0.0
        %1545 = vmatpush1.xpose.msra.mxu0 0.0
        %1546 = vmatprep.subr.mxu0 0.0
        %1547 = vmatpush1.xpose.msra.mxu0 0.0
        %1548 = vmatprep.subr.mxu0 0.0
        %1549 = vmatpush1.xpose.msra.mxu0 0.0
        %1550 = vmatprep.subr.mxu0 0.0
        %1551 = vmatpush1.xpose.msra.mxu0 0.0
        %1552 = vmatprep.subr.mxu0 0.0
        %1553 = vmatpush1.xpose.msra.mxu0 0.0
        %1554 = vmatprep.subr.mxu0 0.0
        %1555 = vmatpush1.xpose.msra.mxu0 0.0
        %1556 = vmatprep.subr.mxu0 0.0
        %1557 = vmatpush1.xpose.msra.mxu0 0.0
        %1558 = vmatprep.subr.mxu0 0.0
        %1559 = vmatpush1.xpose.msra.mxu0 0.0
        %1560 = vmatprep.subr.mxu0 0.0
        %1561 = vmatpush1.xpose.msra.mxu0 0.0
        %1562 = vmatprep.subr.mxu0 0.0
        %1563 = vmatpush1.xpose.msra.mxu0 0.0
        %1564 = vmatprep.subr.mxu0 0.0
        %1565 = vmatpush1.xpose.msra.mxu0 0.0
        %1566 = vmatprep.subr.mxu0 0.0
        %1567 = vmatpush1.xpose.msra.mxu0 0.0
        %1568 = vmatprep.subr.mxu0 0.0
        %1569 = vmatpush1.xpose.msra.mxu0 0.0
        %1570 = vmatprep.subr.mxu0 0.0
        %1571 = vmatpush1.xpose.msra.mxu0 0.0
        %1572 = vmatprep.subr.mxu0 0.0
        %1573 = vmatpush1.xpose.msra.mxu0 0.0
        %1574 = vmatprep.mubr.f32.mxu0 0.0
        %1575 = vmatmul.mubr.f32.gmra.mrb[0].mxu0 %v1505
        %v1576 = vpop.f32.mrb[0].mxu0
        %v1577 = vadd.f32 0.0, %v1576
        %v1578 = vpop.f32.mrb[0].mxu0
        %1579 = vdwg.mxu0
        %s1580 = scalar_lea.vmem [#allocation24], 4
        %v1581 = vld [vmem:[%s1580] sm:$0xf]
        %v1582 = vunpack.c.l.bf16 %v1581
        %v1583 = vmul.f32 %v1577, %v1582
        %s1584 = scalar_lea.vmem %s16, 8
        %v1585 = vld [vmem:[%s1584] sm:$0xff]
        %1587 = vset.pattern.permute.xlu0 0
        %1588 = vperm.xlu0 %1587, %v1585
        %v1589 = vpop.permute.xlu0 %1588
        %v1591 = vmul.f32 %v1498, %v1589
        %1593 = vrot.lane.b32.xlu0 %v1591, 8
        %v1594 = vpop.permute.xlu0 %1593
        %v1596 = vsel %vm1252, %v1583, %v1594
        %v1598 = vsel %vm1254, %v1596, 0
        %1600 = vmatprep.subr.mxu0 0.0
        %1601 = vmatpush1.msra.mxu0 %v1500
        %1602 = vmatprep.subr.mxu0 0.0
        %1603 = vmatpush1.msra.mxu0 %v1502
        %1604 = vmatprep.subr.mxu0 0.0
        %1605 = vmatpush1.msra.mxu0 %v1503
        %1606 = vmatprep.subr.mxu0 0.0
        %1607 = vmatpush1.msra.mxu0 0.0
        %1608 = vmatprep.subr.mxu0 0.0
        %1609 = vmatpush1.msra.mxu0 0.0
        %1610 = vmatprep.subr.mxu0 0.0
        %1611 = vmatpush1.msra.mxu0 0.0
        %1612 = vmatprep.subr.mxu0 0.0
        %1613 = vmatpush1.msra.mxu0 0.0
        %1614 = vmatprep.subr.mxu0 0.0
        %1615 = vmatpush1.msra.mxu0 0.0
        %1616 = vmatprep.subr.mxu0 0.0
        %1617 = vmatpush1.msra.mxu0 0.0
        %1618 = vmatprep.subr.mxu0 0.0
        %1619 = vmatpush1.msra.mxu0 0.0
        %1620 = vmatprep.subr.mxu0 0.0
        %1621 = vmatpush1.msra.mxu0 0.0
        %1622 = vmatprep.subr.mxu0 0.0
        %1623 = vmatpush1.msra.mxu0 0.0
        %1624 = vmatprep.subr.mxu0 0.0
        %1625 = vmatpush1.msra.mxu0 0.0
        %1626 = vmatprep.subr.mxu0 0.0
        %1627 = vmatpush1.msra.mxu0 0.0
        %1628 = vmatprep.subr.mxu0 0.0
        %1629 = vmatpush1.msra.mxu0 0.0
        %1630 = vmatprep.subr.mxu0 0.0
        %1631 = vmatpush1.msra.mxu0 0.0
        %1632 = vmatprep.subr.mxu0 0.0
        %1633 = vmatpush1.msra.mxu0 0.0
        %1634 = vmatprep.subr.mxu0 0.0
        %1635 = vmatpush1.msra.mxu0 0.0
        %1636 = vmatprep.subr.mxu0 0.0
        %1637 = vmatpush1.msra.mxu0 0.0
        %1638 = vmatprep.subr.mxu0 0.0
        %1639 = vmatpush1.msra.mxu0 0.0
        %1640 = vmatprep.subr.mxu0 0.0
        %1641 = vmatpush1.msra.mxu0 0.0
        %1642 = vmatprep.subr.mxu0 0.0
        %1643 = vmatpush1.msra.mxu0 0.0
        %1644 = vmatprep.subr.mxu0 0.0
        %1645 = vmatpush1.msra.mxu0 0.0
        %1646 = vmatprep.subr.mxu0 0.0
        %1647 = vmatpush1.msra.mxu0 0.0
        %1648 = vmatprep.subr.mxu0 0.0
        %1649 = vmatpush1.msra.mxu0 0.0
        %1650 = vmatprep.subr.mxu0 0.0
        %1651 = vmatpush1.msra.mxu0 0.0
        %1652 = vmatprep.subr.mxu0 0.0
        %1653 = vmatpush1.msra.mxu0 0.0
        %1654 = vmatprep.subr.mxu0 0.0
        %1655 = vmatpush1.msra.mxu0 0.0
        %1656 = vmatprep.subr.mxu0 0.0
        %1657 = vmatpush1.msra.mxu0 0.0
        %1658 = vmatprep.subr.mxu0 0.0
        %1659 = vmatpush1.msra.mxu0 0.0
        %1660 = vmatprep.subr.mxu0 0.0
        %1661 = vmatpush1.msra.mxu0 0.0
        %1662 = vmatprep.subr.mxu0 0.0
        %1663 = vmatpush1.msra.mxu0 0.0
        %1664 = vmatprep.mubr.f32.mxu0 0.0
        %1665 = vmatmul.mubr.f32.gmra.mrb[0].mxu0 %v1598
        %v1666 = vpop.f32.mrb[0].mxu0
        %v1667 = vadd.f32 0.0, %v1666
        %v1668 = vpop.f32.mrb[0].mxu0
        %1669 = vdwg.mxu0
        %s1670 = scalar_lea.vmem %s17, 1
        %v1671 = vld [vmem:[%s1670] sm:$0x1]
        %v1673 = vlaneseq
        %v1674 = vshrl.u32 %v1673, 7
        %v1675 = vsub.s32 0, %v1674
        %v1676 = vrot.slane %v1671, %v1675
        %1677 = vset.pattern.permute.xlu0 0
        %1678 = vperm.xlu0 %1677, %v1676
        %v1679 = vpop.permute.xlu0 %1678
        %v1681 = vmul.f32 %v1679, %v1502
        %v1682 = vmul.f32 %v1679, %v1503
        %s1683 = scalar_lea.vmem %s15, 8
        %v1684 = vld [vmem:[%s1683] sm:$0xff]
        %1686 = vset.pattern.permute.xlu0 0
        %1687 = vperm.xlu0 %1686, %v1684
        %v1688 = vpop.permute.xlu0 %1687
        %v1690 = vmul.f32 %v1499, %v1688
        %1691 = vxpose.xlu0.b32.start [1/16] %v1690, 128
        %1692 = vxpose.xlu0.b32.cont [2/16] 0.0, 128
        %1693 = vxpose.xlu0.b32.cont [3/16] 0.0, 128
        %1694 = vxpose.xlu0.b32.cont [4/16] 0.0, 128
        %1695 = vxpose.xlu0.b32.cont [5/16] 0.0, 128
        %1696 = vxpose.xlu0.b32.cont [6/16] 0.0, 128
        %1697 = vxpose.xlu0.b32.cont [7/16] 0.0, 128
        %1698 = vxpose.xlu0.b32.cont [8/16] 0.0, 128
        %1699 = vxpose.xlu0.b32.cont [9/16] 0.0, 128
        %1700 = vxpose.xlu0.b32.cont [10/16] 0.0, 128
        %1701 = vxpose.xlu0.b32.cont [11/16] 0.0, 128
        %1702 = vxpose.xlu0.b32.cont [12/16] 0.0, 128
        %1703 = vxpose.xlu0.b32.cont [13/16] 0.0, 128
        %1704 = vxpose.xlu0.b32.cont [14/16] 0.0, 128
        %1705 = vxpose.xlu0.b32.cont [15/16] 0.0, 128
        %1706 = vxpose.xlu0.b32.end [16/16] 0.0, 128
        %v1707 = vpop.trf.xlu0
        %v1708 = vpop.trf.xlu0
        %v1709 = vpop.trf.xlu0
        %v1710 = vpop.trf.xlu0
        %v1711 = vpop.trf.xlu0
        %v1712 = vpop.trf.xlu0
        %v1713 = vpop.trf.xlu0
        %v1714 = vpop.trf.xlu0
        %v1715 = vpop.trf.xlu0
        %v1716 = vpop.trf.xlu0
        %v1717 = vpop.trf.xlu0
        %v1718 = vpop.trf.xlu0
        %v1719 = vpop.trf.xlu0
        %v1720 = vpop.trf.xlu0
        %v1721 = vpop.trf.xlu0
        %v1722 = vpop.trf.xlu0
        %v1724 = vsel %vm1252, %v1707, 0
        %v1727 = vsel %vm1252, %v1708, 0
        %1729 = vmatprep.subr.mxu0 0.0
        %1730 = vmatpush1.msra.mxu0 %v1500
        %1731 = vmatprep.subr.mxu0 0.0
        %1732 = vmatpush1.msra.mxu0 0.0
        %1733 = vmatprep.subr.mxu0 0.0
        %1734 = vmatpush1.msra.mxu0 0.0
        %1735 = vmatprep.subr.mxu0 0.0
        %1736 = vmatpush1.msra.mxu0 0.0
        %1737 = vmatprep.subr.mxu0 0.0
        %1738 = vmatpush1.msra.mxu0 0.0
        %1739 = vmatprep.subr.mxu0 0.0
        %1740 = vmatpush1.msra.mxu0 0.0
        %1741 = vmatprep.subr.mxu0 0.0
        %1742 = vmatpush1.msra.mxu0 0.0
        %1743 = vmatprep.subr.mxu0 0.0
        %1744 = vmatpush1.msra.mxu0 0.0
        %1745 = vmatprep.subr.mxu0 0.0
        %1746 = vmatpush1.msra.mxu0 0.0
        %1747 = vmatprep.subr.mxu0 0.0
        %1748 = vmatpush1.msra.mxu0 0.0
        %1749 = vmatprep.subr.mxu0 0.0
        %1750 = vmatpush1.msra.mxu0 0.0
        %1751 = vmatprep.subr.mxu0 0.0
        %1752 = vmatpush1.msra.mxu0 0.0
        %1753 = vmatprep.subr.mxu0 0.0
        %1754 = vmatpush1.msra.mxu0 0.0
        %1755 = vmatprep.subr.mxu0 0.0
        %1756 = vmatpush1.msra.mxu0 0.0
        %1757 = vmatprep.subr.mxu0 0.0
        %1758 = vmatpush1.msra.mxu0 0.0
        %1759 = vmatprep.subr.mxu0 0.0
        %1760 = vmatpush1.msra.mxu0 0.0
        %1761 = vmatprep.subr.mxu0 0.0
        %1762 = vmatpush1.msra.mxu0 0.0
        %1763 = vmatprep.subr.mxu0 0.0
        %1764 = vmatpush1.msra.mxu0 0.0
        %1765 = vmatprep.subr.mxu0 0.0
        %1766 = vmatpush1.msra.mxu0 0.0
        %1767 = vmatprep.subr.mxu0 0.0
        %1768 = vmatpush1.msra.mxu0 0.0
        %1769 = vmatprep.subr.mxu0 0.0
        %1770 = vmatpush1.msra.mxu0 0.0
        %1771 = vmatprep.subr.mxu0 0.0
        %1772 = vmatpush1.msra.mxu0 0.0
        %1773 = vmatprep.subr.mxu0 0.0
        %1774 = vmatpush1.msra.mxu0 0.0
        %1775 = vmatprep.subr.mxu0 0.0
        %1776 = vmatpush1.msra.mxu0 0.0
        %1777 = vmatprep.subr.mxu0 0.0
        %1778 = vmatpush1.msra.mxu0 0.0
        %1779 = vmatprep.subr.mxu0 0.0
        %1780 = vmatpush1.msra.mxu0 0.0
        %1781 = vmatprep.subr.mxu0 0.0
        %1782 = vmatpush1.msra.mxu0 0.0
        %1783 = vmatprep.subr.mxu0 0.0
        %1784 = vmatpush1.msra.mxu0 0.0
        %1785 = vmatprep.subr.mxu0 0.0
        %1786 = vmatpush1.msra.mxu0 0.0
        %1787 = vmatprep.subr.mxu0 0.0
        %1788 = vmatpush1.msra.mxu0 0.0
        %1789 = vmatprep.subr.mxu0 0.0
        %1790 = vmatpush1.msra.mxu0 0.0
        %1791 = vmatprep.subr.mxu0 0.0
        %1792 = vmatpush1.msra.mxu0 0.0
        %1793 = vmatprep.mubr.f32.mxu0 0.0
        %1794 = vmatmul.mubr.f32.gmra.mrb[0].mxu0 %v1724
        %v1795 = vpop.f32.mrb[0].mxu0
        %v1796 = vadd.f32 0.0, %v1795
        %v1797 = vpop.f32.mrb[0].mxu0
        %1798 = vmatprep.mubr.f32.mxu0 0.0
        %1799 = vmatmul.mubr.f32.gmra.mrb[0].mxu0 %v1727
        %v1800 = vpop.f32.mrb[0].mxu0
        %v1801 = vadd.f32 0.0, %v1800
        %v1802 = vpop.f32.mrb[0].mxu0
        %1803 = vdwg.mxu0
        %v1804 = vadd.f32 %v1681, %v1796
        %v1805 = vadd.f32 %v1682, %v1801
        %1806 = vst.msk [vmem:[%s1501] sm:$0xff] %vm1135, %v1804
        %1807 = vst.msk [vmem:[%s1501 + $0x8] sm:$0xff] %vm1135, %v1805
        %v1808 = vmul.f32 %v1667, 0.25
        %v1809 = vsel %vm1135, %v1808, 0.0
        %1810 = vadd.xlane.f32.xlu0 %v1809
        %v1811 = vpop.xlane.xlu0 %1810
        %v1812 = vmul.f32 %v1811, %v1468
        %v1813 = vsub.f32 %v1808, %v1812
        %v1814 = vmul.f32 %v1813, %v1813
        %v1815 = vsel %vm1135, %v1814, 0.0
        %1816 = vadd.xlane.f32.xlu0 %v1815
        %v1817 = vpop.xlane.xlu0 %1816
        %v1818 = vmul.f32 %v1817, %v1468
        %v1819 = vadd.f32 %v1818, 1e-05
        %v1820 = vrsqrt.pop %v1819
        %v1821 = vmul.f32 %v1813, %v1820
        %s1822 = scalar_lea.vmem [#allocation21], 1
        %v1823 = vld [vmem:[%s1822] sm:$0x1]
        %v1825 = vlaneseq
        %v1826 = vshrl.u32 %v1825, 7
        %v1827 = vsub.s32 0, %v1826
        %v1828 = vrot.slane %v1823, %v1827
        %v1830 = vmul.f32 %v1821, %v1828
        %s1831 = scalar_lea.vmem [#allocation23], 1
        %v1832 = vld [vmem:[%s1831] sm:$0x1]
        %v1834 = vlaneseq
        %v1835 = vshrl.u32 %v1834, 7
        %v1836 = vsub.s32 0, %v1835
        %v1837 = vrot.slane %v1832, %v1836
        %v1839 = vadd.f32 %v1830, %v1837
        %v1840 = vpack.c.bf16 %v1839, %v1839
        %s1841 = scalar_lea.vmem [#allocation8], 4
        %1842 = vst.msk [vmem:[%s1841] sm:$0xf] %vm1496, %v1840
        %v1843 = vld [vmem:[#allocation8] sm:$0xf]
        %v1844 = vld [vmem:[%s1841] sm:$0xf]
        %v1846 = vunpack.c.l.b16 %v1844
        %v1847 = vpack.c.b16 %v1846, %v1846
        %1848 = vrot.lane.b32.xlu0 %v1847, 16
        %v1849 = vpop.permute.xlu0 %1848
        %v1852 = vsel %vm1135, %v1843, %v1849
        %v1853 = vld [vmem:[%s11] sm:$0xf]
        %v1854 = vld [vmem:[%s11 + $0x4] sm:$0xf]
        %v1855 = vld [vmem:[%s11 + $0x8] sm:$0xf]
        %v1856 = vld [vmem:[%s11 + $0xc] sm:$0xf]
        %v1861 = vunpack.c.l.b16 %v1853
        %v1862 = vunpack.c.l.b16 %v1854
        %v1863 = vunpack.c.l.b16 %v1855
        %v1864 = vunpack.c.l.b16 %v1856
        %v1865 = vpack.c.b16 %v1862, %v1861
        %v1866 = vpack.c.b16 %v1864, %v1863
        %v1869 = vsel %vm885, %v1852, 0
        %1871 = vmatprep.subr.bf16.mxu0 0
        %1872 = vmatpush1.bf16.msra.mxu0 %v1865
        %1873 = vmatprep.subr.bf16.mxu0 0
        %1874 = vmatpush1.bf16.msra.mxu0 %v1866
        %1875 = vmatprep.subr.bf16.mxu0 0
        %1876 = vmatpush1.bf16.msra.mxu0 0
        %1877 = vmatprep.subr.bf16.mxu0 0
        %1878 = vmatpush1.bf16.msra.mxu0 0
        %1879 = vmatprep.subr.bf16.mxu0 0
        %1880 = vmatpush1.bf16.msra.mxu0 0
        %1881 = vmatprep.subr.bf16.mxu0 0
        %1882 = vmatpush1.bf16.msra.mxu0 0
        %1883 = vmatprep.subr.bf16.mxu0 0
        %1884 = vmatpush1.bf16.msra.mxu0 0
        %1885 = vmatprep.subr.bf16.mxu0 0
        %1886 = vmatpush1.bf16.msra.mxu0 0
        %1887 = vmatprep.subr.bf16.mxu0 0
        %1888 = vmatpush1.bf16.msra.mxu0 0
        %1889 = vmatprep.subr.bf16.mxu0 0
        %1890 = vmatpush1.bf16.msra.mxu0 0
        %1891 = vmatprep.subr.bf16.mxu0 0
        %1892 = vmatpush1.bf16.msra.mxu0 0
        %1893 = vmatprep.subr.bf16.mxu0 0
        %1894 = vmatpush1.bf16.msra.mxu0 0
        %1895 = vmatprep.subr.bf16.mxu0 0
        %1896 = vmatpush1.bf16.msra.mxu0 0
        %1897 = vmatprep.subr.bf16.mxu0 0
        %1898 = vmatpush1.bf16.msra.mxu0 0
        %1899 = vmatprep.subr.bf16.mxu0 0
        %1900 = vmatpush1.bf16.msra.mxu0 0
        %1901 = vmatprep.subr.bf16.mxu0 0
        %1902 = vmatpush1.bf16.msra.mxu0 0
        %1903 = vmatprep.mubr.bf16.mxu0 0
        %1904 = vmatmul.mubr.bf16.gmra.mrb[0].mxu0 %v1869
        %v1905 = vpop.f32.mrb[0].mxu0
        %v1906 = vadd.f32 0.0, %v1905
        %v1907 = vpop.f32.mrb[0].mxu0
        %v1908 = vpop.f32.mrb[0].mxu0
        %v1909 = vpop.f32.mrb[0].mxu0
        %1910 = vdwg.mxu0
        %v1911 = vadd.f32 %v879, %v1906
        %v1912 = vld [vmem:[#allocation14] sm:$0x1]
        %v1913 = vld [vmem:[#allocation15] sm:$0x1]
        %v1914 = vsel %vm885, %v1911, 0.0
        %1915 = vadd.xlane.f32.xlu0 %v1914
        %v1916 = vpop.xlane.xlu0 %1915
        %v1917 = vmul.f32 %v1916, %v889
        %v1918 = vsub.f32 %v1911, %v1917
        %v1919 = vmul.f32 %v1918, %v1918
        %v1920 = vsel %vm885, %v1919, 0.0
        %1921 = vadd.xlane.f32.xlu0 %v1920
        %v1922 = vpop.xlane.xlu0 %1921
        %v1923 = vmul.f32 %v1922, %v889
        %v1924 = vadd.f32 %v1923, 1e-05
        %v1925 = vrsqrt.pop %v1924
        %v1926 = vmul.f32 %v1918, %v1925
        %v1928 = vlaneseq
        %v1929 = vshrl.u32 %v1928, 7
        %v1930 = vsub.s32 0, %v1929
        %v1931 = vrot.slane %v1912, %v1930
        %v1933 = vmul.f32 %v1926, %v1931
        %v1935 = vlaneseq
        %v1936 = vshrl.u32 %v1935, 7
        %v1937 = vsub.s32 0, %v1936
        %v1938 = vrot.slane %v1913, %v1937
        %v1940 = vadd.f32 %v1933, %v1938
        %v1941 = vld [vmem:[#allocation4] sm:$0x1]
        %v1942 = vrot.slane %v1940, 7
        %v1944 = vlaneseq
        %v1945 = vshrl.u32 %v1944, 7
        %v1946 = vsub.s32 0, %v1945
        %v1947 = vrot.slane %v1941, %v1946
        %v1949 = vsel %vm917, %v1947, %v1942
        %1950 = vst.msk [vmem:[#allocation4 - $0x7] sm:$0x80] %vm925, %v1940
        %v1951 = vsub.f32 %v1940, %v1949
        %v1952 = vld [vmem:[%s18] sm:$0x1]
        %v1954 = vlaneseq
        %v1955 = vshrl.u32 %v1954, 7
        %v1956 = vsub.s32 0, %v1955
        %v1957 = vrot.slane %v1952, %v1956
        %v1959 = vmul.f32 %v1957, %v1951
        %v1960 = vadd.f32 %v1949, %v1959
        %v1961 = vpack.c.bf16 %v1960, %v1960
        %v1962 = vld [vmem:[%s19] sm:$0x1]
        %v1964 = vlaneseq
        %v1965 = vshrl.u32 %v1964, 7
        %v1966 = vsub.s32 0, %v1965
        %v1967 = vrot.slane %v1962, %v1966
        %v1969 = vmul.f32 %v1967, %v1951
        %v1970 = vadd.f32 %v1949, %v1969
        %v1971 = vpack.c.bf16 %v1970, %v1970
        %v1972 = vld [vmem:[%s20] sm:$0xf]
        %v1973 = vld [vmem:[%s20 + $0x4] sm:$0xf]
        %v1974 = vld [vmem:[%s20 + $0x8] sm:$0xf]
        %v1975 = vld [vmem:[%s20 + $0xc] sm:$0xf]
        %v1980 = vunpack.c.l.b16 %v1972
        %v1981 = vunpack.c.l.b16 %v1973
        %v1982 = vunpack.c.l.b16 %v1974
        %v1983 = vunpack.c.l.b16 %v1975
        %v1984 = vpack.c.b16 %v1981, %v1980
        %v1985 = vpack.c.b16 %v1983, %v1982
        %v1989 = vsel %vm885, %v1961, 0
        %1991 = vmatprep.subr.bf16.mxu0 0
        %1992 = vmatpush1.bf16.msra.mxu0 %v1984
        %1993 = vmatprep.subr.bf16.mxu0 0
        %1994 = vmatpush1.bf16.msra.mxu0 %v1985
        %1995 = vmatprep.subr.bf16.mxu0 0
        %1996 = vmatpush1.bf16.msra.mxu0 0
        %1997 = vmatprep.subr.bf16.mxu0 0
        %1998 = vmatpush1.bf16.msra.mxu0 0
        %1999 = vmatprep.subr.bf16.mxu0 0
        %2000 = vmatpush1.bf16.msra.mxu0 0
        %2001 = vmatprep.subr.bf16.mxu0 0
        %2002 = vmatpush1.bf16.msra.mxu0 0
        %2003 = vmatprep.subr.bf16.mxu0 0
        %2004 = vmatpush1.bf16.msra.mxu0 0
        %2005 = vmatprep.subr.bf16.mxu0 0
        %2006 = vmatpush1.bf16.msra.mxu0 0
        %2007 = vmatprep.subr.bf16.mxu0 0
        %2008 = vmatpush1.bf16.msra.mxu0 0
        %2009 = vmatprep.subr.bf16.mxu0 0
        %2010 = vmatpush1.bf16.msra.mxu0 0
        %2011 = vmatprep.subr.bf16.mxu0 0
        %2012 = vmatpush1.bf16.msra.mxu0 0
        %2013 = vmatprep.subr.bf16.mxu0 0
        %2014 = vmatpush1.bf16.msra.mxu0 0
        %2015 = vmatprep.subr.bf16.mxu0 0
        %2016 = vmatpush1.bf16.msra.mxu0 0
        %2017 = vmatprep.subr.bf16.mxu0 0
        %2018 = vmatpush1.bf16.msra.mxu0 0
        %2019 = vmatprep.subr.bf16.mxu0 0
        %2020 = vmatpush1.bf16.msra.mxu0 0
        %2021 = vmatprep.subr.bf16.mxu0 0
        %2022 = vmatpush1.bf16.msra.mxu0 0
        %2023 = vmatprep.mubr.bf16.mxu0 0
        %2024 = vmatmul.mubr.bf16.gmra.mrb[0].mxu0 %v1989
        %v2025 = vpop.f32.mrb[0].mxu0
        %v2026 = vadd.f32 0.0, %v2025
        %v2027 = vpop.f32.mrb[0].mxu0
        %v2028 = vpop.f32.mrb[0].mxu0
        %v2029 = vpop.f32.mrb[0].mxu0
        %2030 = vdwg.mxu0
        %v2031 = vmax.f32 %v2026, 0.0
        %v2032 = vmul.f32 %v2031, %v2031
        %v2033 = vpack.c.bf16 %v2032, %v2032
        %v2034 = vld [vmem:[%s21] sm:$0xf]
        %v2035 = vld [vmem:[%s21 + $0x4] sm:$0xf]
        %v2036 = vld [vmem:[%s21 + $0x8] sm:$0xf]
        %v2037 = vld [vmem:[%s21 + $0xc] sm:$0xf]
        %v2038 = vld [vmem:[%s21 + $0x10] sm:$0xf]
        %v2039 = vld [vmem:[%s21 + $0x14] sm:$0xf]
        %v2040 = vld [vmem:[%s21 + $0x18] sm:$0xf]
        %v2041 = vld [vmem:[%s21 + $0x1c] sm:$0xf]
        %v2050 = vunpack.c.l.b16 %v2034
        %v2051 = vunpack.c.l.b16 %v2035
        %v2052 = vunpack.c.l.b16 %v2036
        %v2053 = vunpack.c.l.b16 %v2037
        %v2054 = vunpack.c.l.b16 %v2038
        %v2055 = vunpack.c.l.b16 %v2039
        %v2056 = vunpack.c.l.b16 %v2040
        %v2057 = vunpack.c.l.b16 %v2041
        %v2058 = vpack.c.b16 %v2051, %v2050
        %v2059 = vpack.c.b16 %v2053, %v2052
        %v2060 = vpack.c.b16 %v2055, %v2054
        %v2061 = vpack.c.b16 %v2057, %v2056
        %vm2066 = vcmask 523264
        %v2068 = vsel %vm2066, %v2033, 0
        %2070 = vmatprep.subr.bf16.mxu0 0
        %2071 = vmatpush1.bf16.msra.mxu0 %v2058
        %2072 = vmatprep.subr.bf16.mxu0 0
        %2073 = vmatpush1.bf16.msra.mxu0 %v2059
        %2074 = vmatprep.subr.bf16.mxu0 0
        %2075 = vmatpush1.bf16.msra.mxu0 %v2060
        %2076 = vmatprep.subr.bf16.mxu0 0
        %2077 = vmatpush1.bf16.msra.mxu0 %v2061
        %2078 = vmatprep.subr.bf16.mxu0 0
        %2079 = vmatpush1.bf16.msra.mxu0 0
        %2080 = vmatprep.subr.bf16.mxu0 0
        %2081 = vmatpush1.bf16.msra.mxu0 0
        %2082 = vmatprep.subr.bf16.mxu0 0
        %2083 = vmatpush1.bf16.msra.mxu0 0
        %2084 = vmatprep.subr.bf16.mxu0 0
        %2085 = vmatpush1.bf16.msra.mxu0 0
        %2086 = vmatprep.subr.bf16.mxu0 0
        %2087 = vmatpush1.bf16.msra.mxu0 0
        %2088 = vmatprep.subr.bf16.mxu0 0
        %2089 = vmatpush1.bf16.msra.mxu0 0
        %2090 = vmatprep.subr.bf16.mxu0 0
        %2091 = vmatpush1.bf16.msra.mxu0 0
        %2092 = vmatprep.subr.bf16.mxu0 0
        %2093 = vmatpush1.bf16.msra.mxu0 0
        %2094 = vmatprep.subr.bf16.mxu0 0
        %2095 = vmatpush1.bf16.msra.mxu0 0
        %2096 = vmatprep.subr.bf16.mxu0 0
        %2097 = vmatpush1.bf16.msra.mxu0 0
        %2098 = vmatprep.subr.bf16.mxu0 0
        %2099 = vmatpush1.bf16.msra.mxu0 0
        %2100 = vmatprep.subr.bf16.mxu0 0
        %2101 = vmatpush1.bf16.msra.mxu0 0
        %2102 = vmatprep.mubr.bf16.mxu0 0
        %2103 = vmatmul.mubr.bf16.gmra.mrb[0].mxu0 %v2068
        %v2104 = vpop.f32.mrb[0].mxu0
        %v2105 = vadd.f32 0.0, %v2104
        %v2106 = vpop.f32.mrb[0].mxu0
        %v2107 = vpop.f32.mrb[0].mxu0
        %v2108 = vpop.f32.mrb[0].mxu0
        %2109 = vdwg.mxu0
        %v2110 = vld [vmem:[%s22] sm:$0xf]
        %v2111 = vld [vmem:[%s22 + $0x4] sm:$0xf]
        %v2112 = vld [vmem:[%s22 + $0x8] sm:$0xf]
        %v2113 = vld [vmem:[%s22 + $0xc] sm:$0xf]
        %v2118 = vunpack.c.l.b16 %v2110
        %v2119 = vunpack.c.l.b16 %v2111
        %v2120 = vunpack.c.l.b16 %v2112
        %v2121 = vunpack.c.l.b16 %v2113
        %v2122 = vpack.c.b16 %v2119, %v2118
        %v2123 = vpack.c.b16 %v2121, %v2120
        %v2127 = vsel %vm885, %v1971, 0
        %2129 = vmatprep.subr.bf16.mxu0 0
        %2130 = vmatpush1.bf16.msra.mxu0 %v2122
        %2131 = vmatprep.subr.bf16.mxu0 0
        %2132 = vmatpush1.bf16.msra.mxu0 %v2123
        %2133 = vmatprep.subr.bf16.mxu0 0
        %2134 = vmatpush1.bf16.msra.mxu0 0
        %2135 = vmatprep.subr.bf16.mxu0 0
        %2136 = vmatpush1.bf16.msra.mxu0 0
        %2137 = vmatprep.subr.bf16.mxu0 0
        %2138 = vmatpush1.bf16.msra.mxu0 0
        %2139 = vmatprep.subr.bf16.mxu0 0
        %2140 = vmatpush1.bf16.msra.mxu0 0
        %2141 = vmatprep.subr.bf16.mxu0 0
        %2142 = vmatpush1.bf16.msra.mxu0 0
        %2143 = vmatprep.subr.bf16.mxu0 0
        %2144 = vmatpush1.bf16.msra.mxu0 0
        %2145 = vmatprep.subr.bf16.mxu0 0
        %2146 = vmatpush1.bf16.msra.mxu0 0
        %2147 = vmatprep.subr.bf16.mxu0 0
        %2148 = vmatpush1.bf16.msra.mxu0 0
        %2149 = vmatprep.subr.bf16.mxu0 0
        %2150 = vmatpush1.bf16.msra.mxu0 0
        %2151 = vmatprep.subr.bf16.mxu0 0
        %2152 = vmatpush1.bf16.msra.mxu0 0
        %2153 = vmatprep.subr.bf16.mxu0 0
        %2154 = vmatpush1.bf16.msra.mxu0 0
        %2155 = vmatprep.subr.bf16.mxu0 0
        %2156 = vmatpush1.bf16.msra.mxu0 0
        %2157 = vmatprep.subr.bf16.mxu0 0
        %2158 = vmatpush1.bf16.msra.mxu0 0
        %2159 = vmatprep.subr.bf16.mxu0 0
        %2160 = vmatpush1.bf16.msra.mxu0 0
        %2161 = vmatprep.mubr.bf16.mxu0 0
        %2162 = vmatmul.mubr.bf16.gmra.mrb[0].mxu0 %v2127
        %v2163 = vpop.f32.mrb[0].mxu0
        %v2164 = vadd.f32 0.0, %v2163
        %v2165 = vpop.f32.mrb[0].mxu0
        %v2166 = vpop.f32.mrb[0].mxu0
        %v2167 = vpop.f32.mrb[0].mxu0
        %2168 = vdwg.mxu0
        %v2169 = vxor.u32 %v2164, 2147483648
        %v2170 = vmul.f32 %v2169, 1.442695
        %v2171 = vpow.pop %v2170
        %v2172 = vadd.f32 %v2171, 1.0
        %v2173 = vrcp.pop %v2172
        %v2174 = vmul.f32 1.0, %v2173
        %v2175 = vmul.f32 %v2174, %v2105
        %v2176 = vadd.f32 %v1911, %v2175
        %2177 = vst.msk [vmem:[%s857] sm:$0xff] %vm885, %v2176
        %s2178 = sand.u32 %s555, 1
        %s2179 = scalar_lea.sflag [#allocation11], %s2178
        %s2180 = sand.u32 %s555, 1
        %s2181 = smul.addr %s2180, 8
        %s2182 = scalar_lea.vmem [#allocation26], %s2181
        // Predicated region
        $region157: #{tpu_custom_call.1} parent=111 // pred_check
          %p2183 = pneg %p565
        $region158: #{tpu_custom_call.1} parent=111 // pred_check_branch
          %2185 = sbr.rel (%p2183) target = $region160
        $region159: #{tpu_custom_call.1} parent=111 // pred_region
          %s2187 = ssub.s32 128, 128
          %2188 = vsyncadd %s2179, %s2187
          %s2189 = smul.addr %s47, 2
          %s2190 = sadd.s32 %s48, %s2189
          %s2191 = smul.addr %s2190, 128
          %s2192 = scalar_lea.hbm %s23, %s2191
          %s2194 = sshll.u32 %s2182, 4
          %s2195 = int_to_ptr.vmem [resolvable:$true] %s2194
          %2197 = dma.vmem_to_hbm [thread:$0]  %s2195, 128, %s2192, %s2179
        $region160: #{tpu_custom_call.1} parent=111 // pred_fallthru
          _
      $region112: #{tpu_custom_call.1} parent=5 // pred_fallthru
        _
      %p2198 = scmp.le.s32.totalorder 2, %s38
      // Predicated region
      $region161: #{tpu_custom_call.1} parent=5 // pred_check
        %p2199 = pneg %p2198
      $region162: #{tpu_custom_call.1} parent=5 // pred_check_branch
        %2201 = sbr.rel (%p2199) target = $region164
      $region163: #{tpu_custom_call.1} parent=5 // pred_region
        %s2202 = ssub.s32 %s38, 2
        // Predicated region
        $region165: #{tpu_custom_call.1} parent=163 // pred_check
          %p2203 = pneg %p571
        $region166: #{tpu_custom_call.1} parent=163 // pred_check_branch
          %2205 = sbr.rel (%p2203) target = $region168
        $region167: #{tpu_custom_call.1} parent=163 // pred_region
          %s2206 = sand.u32 %s556, 1
          %s2207 = scalar_lea.sflag [#allocation11], %s2206
          %s2208 = sand.u32 %s556, 1
          %s2209 = smul.addr %s2208, 8
          %s2210 = scalar_lea.vmem [#allocation26], %s2209
          %2211 = dma.done %s2207, 128
        $region168: #{tpu_custom_call.1} parent=163 // pred_fallthru
          _
      $region164: #{tpu_custom_call.1} parent=5 // pred_fallthru
        _
    $region6: #{tpu_custom_call.1} parent=1 // loop_footer
      %s42 = sadd.s32 1, %s38
    $region7: #{tpu_custom_call.1} parent=1 // loop_footer_branch
      %37 = sbr.rel target = $region3
    $region8: #{tpu_custom_call.1} parent=1 // loop_exit
      _
    %2212 = vsyncpa [#allocation10], 1
    %s2213 = scalar_lea.sflag [#allocation10], 1
    %2214 = vsyncpa %s2213, 1
    %2215 = vsyncpa [#allocation13], 1
    %2216 = vsyncpa [#allocation16], 1
    %2217 = vsyncpa [#allocation19], 1
    %2218 = vsyncpa [#allocation22], 1
    %2219 = vsyncpa [#allocation25], 1
    %2220 = vsyncpa [#allocation11], 1
    %s2221 = scalar_lea.sflag [#allocation11], 1
    %2222 = vsyncpa %s2221, 1

</llo_original>
